<compile_context>
chip_gen: v7x
topology: tpu7x:2x2x1
jax: 0.10.0
libtpu: 0.0.40
codegen_flags: <defaults>
</compile_context>

<pallas_src>
import functools

import jax
import jax.numpy as jnp
from jax import lax
from jax.experimental import pallas as pl
from jax.experimental.pallas import tpu as pltpu


LN_EPS = 1e-6          # timm ViT LayerNorm eps
BN_EPS = 1e-5          # torch BatchNorm1d default eps
SEQ_PAD = 128          # pad sequence length to a lane-dense multiple (prod: 196 -> 256)
NEG_INF = -1e30


def _round_up(n, m):
    return ((n + m - 1) // m) * m


# ----------------------------- small in-kernel helpers -------------------------------


def _ln(x, g, b):
    mu = jnp.mean(x, axis=-1, keepdims=True)
    var = jnp.mean(jnp.square(x - mu), axis=-1, keepdims=True)
    return (x - mu) * lax.rsqrt(var + LN_EPS) * g + b


def _gelu_tanh(y):
    # TODO(synk): torch nn.GELU defaults to exact erf; tanh approximation kept for robust
    #             Mosaic lowering (numerically very close).
    return 0.5 * y * (1.0 + jnp.tanh(0.7978845608028654 * (y + 0.044715 * y * y * y)))


# ------------------------- BlockSpec / compiler-param helpers ------------------------


def _probe_kernel(w_ref, o_ref):
    o_ref[...] = w_ref[...] + 1.0


@functools.lru_cache(maxsize=None)
def _weight_pipeline_mode():
    """Single-buffer grid-invariant weights (perf review): probe once, fall back cleanly."""
    try:
        spec = pl.BlockSpec((8, 128), lambda i: (0, 0), pipeline_mode=pl.Buffered(1))
        out = pl.pallas_call(
            _probe_kernel,
            grid=(2,),
            in_specs=[spec],
            out_specs=pl.BlockSpec((8, 128), lambda i: (i, 0)),
            out_shape=jax.ShapeDtypeStruct((16, 128), jnp.float32),
        )(jnp.zeros((8, 128), jnp.float32))
        jax.block_until_ready(out)
        return pl.Buffered(1)
    except Exception:            # unsupported on this jax/libtpu -> default double buffering
        return None


def _const_spec(shape):
    """BlockSpec for a weight that is identical for every grid step (constant index map)."""
    index_map = lambda b: (0,) * len(shape)
    mode = _weight_pipeline_mode()
    if mode is None:
        return pl.BlockSpec(shape, index_map)
    return pl.BlockSpec(shape, index_map, pipeline_mode=mode)


@functools.lru_cache(maxsize=None)
def _vmem_limit_bytes():
    # Explicit VMEM budget (perf review): scoped defaults are only 16/32/32 MiB on
    # v5e/v6e/v7x; at the production size (dim=1024) the resident bf16 block weights
    # (~24 MiB) plus activations need more.  Stay well below physical capacity.
    try:
        cap = pltpu.get_tpu_info().vmem_capacity_bytes
        return int(min(100 * 1024 * 1024, (cap * 4) // 5))
    except Exception:
        return 48 * 1024 * 1024


# ----------------------------- shared transformer-block core -------------------------


def _block_core(x, attn_scr,
                n1g_ref, n1b_ref, qkv_w_ref, qkv_b_ref, proj_w_ref, proj_b_ref,
                n2g_ref, n2b_ref, fc1_w_ref, fc1_b_ref, fc2_w_ref, fc2_b_ref,
                nfg_ref, nfb_ref,
                *, heads, head_dim, valid_len):
    """timm ViT block + trailing LayerNorm on a padded (S, D) f32 tile."""
    S, D = x.shape

    # ---- attention: LN1 -> qkv -> per-head softmax(QK^T)V -> proj -> residual ----
    h = _ln(x, n1g_ref[...], n1b_ref[...])
    # softmax scale (head_dim**-0.5) is pre-folded into the q columns of qkv_w / qkv_b.
    qkv = jnp.dot(h.astype(jnp.bfloat16), qkv_w_ref[...],
                  preferred_element_type=jnp.float32) + qkv_b_ref[...]          # (S, 3D)

    # Additive key mask for padded tokens (only materialized when padding exists).
    if valid_len < S:
        key_idx = lax.broadcasted_iota(jnp.int32, (1, S), 1)
        kbias = jnp.where(key_idx < valid_len, 0.0, NEG_INF)                    # (1, S)
    else:
        kbias = None

    # Heads processed in 128-lane-aligned groups; each group's output is stored straight
    # into the (S, D) bf16 VMEM scratch (bounds live (S,S) intermediates), so the output
    # projection can run afterwards as ONE full-K matmul.
    group = min(D, 128)
    hpg = max(1, group // head_dim)                     # heads per 128-lane group
    for g in range(heads // hpg):
        goff = g * group                                # 128-aligned lane offset
        qg = qkv[:, goff:goff + group].astype(jnp.bfloat16)
        kg = qkv[:, D + goff:D + goff + group].astype(jnp.bfloat16)
        vg = qkv[:, 2 * D + goff:2 * D + goff + group].astype(jnp.bfloat16)
        outs = []
        for hh in range(hpg):
            c = hh * head_dim
            s = lax.dot_general(qg[:, c:c + head_dim], kg[:, c:c + head_dim],
                                (((1,), (1,)), ((), ())),
                                preferred_element_type=jnp.float32)             # (S, S)
            if kbias is not None:
                s = s + kbias
            s = s - jnp.max(s, axis=-1, keepdims=True)
            p = jnp.exp(s)
            p = p * pl.reciprocal(jnp.sum(p, axis=-1, keepdims=True), approx=True)
            outs.append(jnp.dot(p.astype(jnp.bfloat16), vg[:, c:c + head_dim],
                                preferred_element_type=jnp.float32).astype(jnp.bfloat16))
        attn_scr[:, goff:goff + group] = (
            outs[0] if hpg == 1 else jnp.concatenate(outs, axis=-1))
    attn = jnp.dot(attn_scr[...], proj_w_ref[...],
                   preferred_element_type=jnp.float32) + proj_b_ref[...]
    x = x + attn

    # ---- MLP: LN2 -> fc1 + GELU -> fc2 -> residual ----
    h = _ln(x, n2g_ref[...], n2b_ref[...])
    h = jnp.dot(h.astype(jnp.bfloat16), fc1_w_ref[...],
                preferred_element_type=jnp.float32) + fc1_b_ref[...]
    h = _gelu_tanh(h)
    h = jnp.dot(h.astype(jnp.bfloat16), fc2_w_ref[...],
                preferred_element_type=jnp.float32) + fc2_b_ref[...]
    x = x + h

    # ---- trailing LayerNorm (self.norm), fused ----
    return _ln(x, nfg_ref[...], nfb_ref[...])


# ----------------------------- fused ViT kernel ---------------------------------------


def _vit_block_kernel(patch_ref, pw_ref, pb_ref, pos_ref,
                      n1g_ref, n1b_ref, qkv_w_ref, qkv_b_ref, proj_w_ref, proj_b_ref,
                      n2g_ref, n2b_ref, fc1_w_ref, fc1_b_ref, fc2_w_ref, fc2_b_ref,
                      nfg_ref, nfb_ref,
                      o_ref,
                      attn_scr,
                      *, heads, head_dim, valid_len):
    # fused: patch-embed matmul + pos-embed add + encoder block + final LayerNorm
    x = jnp.dot(patch_ref[0].astype(jnp.bfloat16), pw_ref[...],
                preferred_element_type=jnp.float32) + pb_ref[...] + pos_ref[...]
    x = _block_core(x, attn_scr,
                    n1g_ref, n1b_ref, qkv_w_ref, qkv_b_ref, proj_w_ref, proj_b_ref,
                    n2g_ref, n2b_ref, fc1_w_ref, fc1_b_ref, fc2_w_ref, fc2_b_ref,
                    nfg_ref, nfb_ref,
                    heads=heads, head_dim=head_dim, valid_len=valid_len)
    o_ref[0] = x[:valid_len].astype(o_ref.dtype)       # write only the valid rows back


def fused_vit_block(patches, kp, n_valid, s_pad, cfg):
    """Patch-embed + pos-embed + encoder block + final LayerNorm in one pallas_call."""
    B, _, pin = patches.shape
    D, MLP = cfg.DIM, cfg.MLP
    blk = kp["blk"]
    kernel = functools.partial(_vit_block_kernel, heads=cfg.HEADS,
                               head_dim=cfg.HEAD_DIM, valid_len=n_valid)
    return pl.pallas_call(
        kernel,
        # One batch row per step kept 'parallel' so v7x's 2 TensorCores both get work.
        # (v6e-only tweak of folding 2 rows/step to fill 256-row MXU passes is deferred.)
        grid=(B,),
        in_specs=[
            pl.BlockSpec((1, s_pad, pin), lambda b: (b, 0, 0)),
            _const_spec((pin, D)), _const_spec((1, D)), _const_spec((s_pad, D)),
            _const_spec((1, D)), _const_spec((1, D)),                  # norm1 g/b
            _const_spec((D, 3 * D)), _const_spec((1, 3 * D)),          # qkv  w/b (bf16/f32)
            _const_spec((D, D)), _const_spec((1, D)),                  # proj w/b
            _const_spec((1, D)), _const_spec((1, D)),                  # norm2 g/b
            _const_spec((D, MLP)), _const_spec((1, MLP)),              # fc1  w/b
            _const_spec((MLP, D)), _const_spec((1, D)),                # fc2  w/b
            _const_spec((1, D)), _const_spec((1, D)),                  # final norm g/b
        ],
        out_specs=pl.BlockSpec((1, n_valid, D), lambda b: (b, 0, 0)),
        out_shape=jax.ShapeDtypeStruct((B, n_valid, D), jnp.float32),
        scratch_shapes=[pltpu.VMEM((s_pad, D), jnp.bfloat16)],
        compiler_params=pltpu.CompilerParams(
            dimension_semantics=("parallel",),
            vmem_limit_bytes=_vmem_limit_bytes()),
    )(patches, kp["patch_w"], kp["patch_b"], kp["pos_embed"],
      blk["norm1_g"], blk["norm1_b"], blk["qkv_w"], blk["qkv_b"],
      blk["proj_w"], blk["proj_b"], blk["norm2_g"], blk["norm2_b"],
      blk["fc1_w"], blk["fc1_b"], blk["fc2_w"], blk["fc2_b"],
      kp["norm_g"], kp["norm_b"])


# ----------------------------- fused classifier kernel --------------------------------


def _cls_block_kernel(feat_ref, we_ref, tex_ref, vis_ref,
                      n1g_ref, n1b_ref, qkv_w_ref, qkv_b_ref, proj_w_ref, proj_b_ref,
                      n2g_ref, n2b_ref, fc1_w_ref, fc1_b_ref, fc2_w_ref, fc2_b_ref,
                      nfg_ref, nfb_ref, head_w_ref, head_b_ref,
                      o_ref,
                      attn_scr,
                      *, heads, head_dim, attr, n_vis, s_pad):
    D = we_ref.shape[1]
    # fused prologue: tex/vis embeds + concat + zero padding (no HBM round trip)
    tex = we_ref[...] + tex_ref[...]                     # (A,  D) word tokens
    vis = feat_ref[0] + vis_ref[...]                     # (Lv, D) visual tokens
    parts = [tex, vis]
    n_valid = attr + n_vis
    if s_pad > n_valid:
        parts.append(jnp.zeros((s_pad - n_valid, D), jnp.float32))
    x = jnp.concatenate(parts, axis=0)                   # (s_pad, D)

    x = _block_core(x, attn_scr,
                    n1g_ref, n1b_ref, qkv_w_ref, qkv_b_ref, proj_w_ref, proj_b_ref,
                    n2g_ref, n2b_ref, fc1_w_ref, fc1_b_ref, fc2_w_ref, fc2_b_ref,
                    nfg_ref, nfb_ref,
                    heads=heads, head_dim=head_dim, valid_len=n_valid)

    # fused epilogue: per-attribute Linear(dim, 1) heads on the first `attr` rows.
    xa = x[:attr]                                        # (A, D)
    o_ref[0] = (jnp.sum(xa * head_w_ref[...], axis=-1, keepdims=True)
                + head_b_ref[...]).astype(o_ref.dtype)   # (A, 1)


def fused_classifier_block(features, we, kp, cfg):
    """[word|visual] assembly + encoder block + final LN + attr heads, one pallas_call."""
    B, n_vis, D = features.shape
    A = we.shape[0]
    MLP = cfg.MLP
    s_pad = _round_up(A + n_vis, SEQ_PAD)
    blk = kp["blk"]
    kernel = functools.partial(_cls_block_kernel, heads=cfg.HEADS, head_dim=cfg.HEAD_DIM,
                               attr=A, n_vis=n_vis, s_pad=s_pad)
    out = pl.pallas_call(
        kernel,
        grid=(B,),
        in_specs=[
            pl.BlockSpec((1, n_vis, D), lambda b: (b, 0, 0)),
            _const_spec((A, D)),                                       # projected word vecs
            _const_spec((1, D)), _const_spec((1, D)),                  # tex / vis embed
            _const_spec((1, D)), _const_spec((1, D)),                  # norm1 g/b
            _const_spec((D, 3 * D)), _const_spec((1, 3 * D)),          # qkv  w/b
            _const_spec((D, D)), _const_spec((1, D)),                  # proj w/b
            _const_spec((1, D)), _const_spec((1, D)),                  # norm2 g/b
            _const_spec((D, MLP)), _const_spec((1, MLP)),              # fc1  w/b
            _const_spec((MLP, D)), _const_spec((1, D)),                # fc2  w/b
            _const_spec((1, D)), _const_spec((1, D)),                  # final norm g/b
            _const_spec((A, D)), _const_spec((A, 1)),                  # attr heads w/b
        ],
        out_specs=pl.BlockSpec((1, A, 1), lambda b: (b, 0, 0)),
        out_shape=jax.ShapeDtypeStruct((B, A, 1), jnp.float32),
        scratch_shapes=[pltpu.VMEM((s_pad, D), jnp.bfloat16)],
        compiler_params=pltpu.CompilerParams(
            dimension_semantics=("parallel",),
            vmem_limit_bytes=_vmem_limit_bytes()),
    )(features, we, kp["tex_embed"], kp["vis_embed"],
      blk["norm1_g"], blk["norm1_b"], blk["qkv_w"], blk["qkv_b"],
      blk["proj_w"], blk["proj_b"], blk["norm2_g"], blk["norm2_b"],
      blk["fc1_w"], blk["fc1_b"], blk["fc2_w"], blk["fc2_b"],
      kp["norm_g"], kp["norm_b"], kp["head_w"], kp["head_b"])
    return out[:, :, 0]                                                # (B, A)


# ----------------------------- tiny XLA pieces ----------------------------------------


def _batchnorm1d_train(x, g, b):
    # TODO(synk): matches torch BatchNorm1d default (training-mode, biased batch stats);
    #             eval mode would use running_mean/var, which the module spec never exposes.
    mu = jnp.mean(x, axis=0, keepdims=True)
    var = jnp.mean(jnp.square(x - mu), axis=0, keepdims=True)
    return (x - mu) * lax.rsqrt(var + BN_EPS) * g + b


# ----------------------------- model (glue + kernels) ---------------------------------


class Config:
    B = 2            # batch
    C = 3            # image channels (NCHW)
    IMG = 16         # spatial
    PATCH = 8        # patch size -> 4 patches
    WORD_DIM = 768   # fixed by nn.Linear(768, dim)
    DIM = 128        # transformer width (small stand-in for 1024)
    HEADS = 4
    HEAD_DIM = DIM // HEADS
    MLP = 4 * DIM
    ATTR = 4         # attr_num


def vit_forward(imgs, kp, cfg):
    # TODO(synk): vit_large() source not provided; a minimal ViT (patch-embed + pos-embed +
    #             one encoder block + final LayerNorm) stands in, sharing its block / norm
    #             params with self.blocks[-1:] / self.norm exactly as the PyTorch module.
    B, C, H, W = imgs.shape
    nh, nw = H // cfg.PATCH, W // cfg.PATCH
    n_patches = nh * nw
    patches = imgs.reshape(B, C, nh, cfg.PATCH, nw, cfg.PATCH)
    patches = patches.transpose(0, 2, 4, 1, 3, 5).reshape(
        B, n_patches, C * cfg.PATCH * cfg.PATCH)
    s_pad = _round_up(n_patches, SEQ_PAD)
    patches = jnp.pad(patches, ((0, 0), (0, s_pad - n_patches), (0, 0)))
    return fused_vit_block(patches, kp, n_patches, s_pad, cfg)          # (B, Np, D)


def transformer_classifier_forward(imgs, word_vec, kp, cfg):
    features = vit_forward(imgs, kp, cfg)                               # (B, Lv, D)
    # word embedding: one tiny (A,768)@(768,D) matmul — left to XLA per the perf review.
    we = (word_vec @ kp["word_w"] + kp["word_b"]).astype(jnp.float32)   # (A, D)
    raw = fused_classifier_block(features, we, kp, cfg)                 # (B, A)
    return _batchnorm1d_train(raw, kp["bn_g"], kp["bn_b"])              # (B, A)


# ----------------------------- parameters ----------------------------------------------


def init_params(key, cfg):
    """Float32, PyTorch-layout-ish parameters (Linear weights stored as (in, out))."""
    ks = iter(jax.random.split(key, 32))

    def nrm(shape, s=0.02):
        return (s * jax.random.normal(next(ks), shape)).astype(jnp.float32)

    D, MLP, A = cfg.DIM, cfg.MLP, cfg.ATTR
    patch_in = cfg.C * cfg.PATCH * cfg.PATCH
    n_patches = (cfg.IMG // cfg.PATCH) ** 2

    block = dict(
        norm1_g=jnp.ones((D,), jnp.float32), norm1_b=jnp.zeros((D,), jnp.float32),
        qkv_w=nrm((D, 3 * D)), qkv_b=jnp.zeros((3 * D,), jnp.float32),
        proj_w=nrm((D, D)), proj_b=jnp.zeros((D,), jnp.float32),
        norm2_g=jnp.ones((D,), jnp.float32), norm2_b=jnp.zeros((D,), jnp.float32),
        fc1_w=nrm((D, MLP)), fc1_b=jnp.zeros((MLP,), jnp.float32),
        fc2_w=nrm((MLP, D)), fc2_b=jnp.zeros((D,), jnp.float32),
    )
    return dict(
        patch_w=nrm((patch_in, D)), patch_b=jnp.zeros((D,), jnp.float32),
        pos_embed=nrm((n_patches, D)),
        block=block,
        norm_g=jnp.ones((D,), jnp.float32), norm_b=jnp.zeros((D,), jnp.float32),
        word_w=nrm((cfg.WORD_DIM, D)), word_b=jnp.zeros((D,), jnp.float32),
        head_w=nrm((A, D)), head_b=jnp.zeros((A,), jnp.float32),
        bn_g=jnp.ones((A,), jnp.float32), bn_b=jnp.zeros((A,), jnp.float32),
        vis_embed=nrm((1, 1, D)),   # nn.Parameter(zeros) in __init__; nonzero to exercise add
        tex_embed=nrm((1, 1, D)),
    )


def prep_params(p, cfg):
    """One-time conversion to kernel-ready layout: bf16 weights, (1,N) bias rows,
    softmax scale folded into q, pos-embed padded to the lane-dense sequence length."""
    D, A = cfg.DIM, cfg.ATTR
    scale = cfg.HEAD_DIM ** -0.5

    def bw(a):
        return a.astype(jnp.bfloat16)

    def row(a):
        return a.reshape(1, -1).astype(jnp.float32)

    qkv_w = p["block"]["qkv_w"].at[:, :D].multiply(scale)   # fold 1/sqrt(head_dim) into q
    qkv_b = p["block"]["qkv_b"].at[:D].multiply(scale)
    blk = dict(
        norm1_g=row(p["block"]["norm1_g"]), norm1_b=row(p["block"]["norm1_b"]),
        qkv_w=bw(qkv_w), qkv_b=row(qkv_b),
        proj_w=bw(p["block"]["proj_w"]), proj_b=row(p["block"]["proj_b"]),
        norm2_g=row(p["block"]["norm2_g"]), norm2_b=row(p["block"]["norm2_b"]),
        fc1_w=bw(p["block"]["fc1_w"]), fc1_b=row(p["block"]["fc1_b"]),
        fc2_w=bw(p["block"]["fc2_w"]), fc2_b=row(p["block"]["fc2_b"]),
    )
    n_patches = (cfg.IMG // cfg.PATCH) ** 2
    s_pad = _round_up(n_patches, SEQ_PAD)
    pos = jnp.pad(p["pos_embed"].astype(jnp.float32), ((0, s_pad - n_patches), (0, 0)))
    return dict(
        patch_w=bw(p["patch_w"]), patch_b=row(p["patch_b"]), pos_embed=pos,
        blk=blk,
        norm_g=row(p["norm_g"]), norm_b=row(p["norm_b"]),
        word_w=p["word_w"], word_b=p["word_b"],
        tex_embed=p["tex_embed"].reshape(1, D).astype(jnp.float32),
        vis_embed=p["vis_embed"].reshape(1, D).astype(jnp.float32),
        head_w=p["head_w"].astype(jnp.float32),
        head_b=p["head_b"].reshape(A, 1).astype(jnp.float32),
        bn_g=p["bn_g"], bn_b=p["bn_b"],
    )


# ----------------------------- main -----------------------------------------------------


if __name__ == "__main__":
    cfg = Config()
    root = jax.random.PRNGKey(0)
    k_img, k_word, k_par = jax.random.split(root, 3)

    imgs = jax.random.normal(k_img, (cfg.B, cfg.C, cfg.IMG, cfg.IMG), jnp.float32)  # NCHW
    word_vec = jax.random.normal(k_word, (cfg.ATTR, cfg.WORD_DIM), jnp.float32)
    params = init_params(k_par, cfg)
    kp = prep_params(params, cfg)          # one-time bf16 conversion / layout prep

    fwd = jax.jit(functools.partial(transformer_classifier_forward, cfg=cfg))
    logits = jax.block_until_ready(fwd(imgs, word_vec, kp))

    assert logits.shape == (cfg.B, cfg.ATTR), logits.shape
    assert bool(jnp.all(jnp.isfinite(logits)))
    print("KERNEL_OK")
</pallas_src>

<mosaic_0001>
module attributes {stable_mosaic.version = 11 : i64} {
  func.func @_vit_block_kernel(%arg0: i32, %arg1: memref<1x128x192xf32, #tpu.memory_space<vmem>>, %arg2: memref<192x128xbf16, #tpu.memory_space<vmem>>, %arg3: memref<1x128xf32, #tpu.memory_space<vmem>>, %arg4: memref<128x128xf32, #tpu.memory_space<vmem>>, %arg5: memref<1x128xf32, #tpu.memory_space<vmem>>, %arg6: memref<1x128xf32, #tpu.memory_space<vmem>>, %arg7: memref<128x384xbf16, #tpu.memory_space<vmem>>, %arg8: memref<1x384xf32, #tpu.memory_space<vmem>>, %arg9: memref<128x128xbf16, #tpu.memory_space<vmem>>, %arg10: memref<1x128xf32, #tpu.memory_space<vmem>>, %arg11: memref<1x128xf32, #tpu.memory_space<vmem>>, %arg12: memref<1x128xf32, #tpu.memory_space<vmem>>, %arg13: memref<128x512xbf16, #tpu.memory_space<vmem>>, %arg14: memref<1x512xf32, #tpu.memory_space<vmem>>, %arg15: memref<512x128xbf16, #tpu.memory_space<vmem>>, %arg16: memref<1x128xf32, #tpu.memory_space<vmem>>, %arg17: memref<1x128xf32, #tpu.memory_space<vmem>>, %arg18: memref<1x128xf32, #tpu.memory_space<vmem>>, %arg19: memref<1x4x128xf32, #tpu.memory_space<vmem>>, %arg20: memref<128x128xbf16, #tpu.memory_space<vmem>>) attributes {dimension_semantics = [#tpu.dimension_semantics<parallel>], iteration_bounds = array<i64: 2>, scalar_prefetch = 0 : i64, scratch_operands = 1 : i64, tpu.core_type = #tpu.core_type<tc>, window_params = [{transform_indices = @transform_0, window_bounds = array<i64: 1, 128, 192>}, {pipeline_mode = #tpu.pipeline_mode<synchronous>, transform_indices = @transform_1, window_bounds = array<i64: 192, 128>}, {pipeline_mode = #tpu.pipeline_mode<synchronous>, transform_indices = @transform_2, window_bounds = array<i64: 1, 128>}, {pipeline_mode = #tpu.pipeline_mode<synchronous>, transform_indices = @transform_3, window_bounds = array<i64: 128, 128>}, {pipeline_mode = #tpu.pipeline_mode<synchronous>, transform_indices = @transform_4, window_bounds = array<i64: 1, 128>}, {pipeline_mode = #tpu.pipeline_mode<synchronous>, transform_indices = @transform_5, window_bounds = array<i64: 1, 128>}, {pipeline_mode = #tpu.pipeline_mode<synchronous>, transform_indices = @transform_6, window_bounds = array<i64: 128, 384>}, {pipeline_mode = #tpu.pipeline_mode<synchronous>, transform_indices = @transform_7, window_bounds = array<i64: 1, 384>}, {pipeline_mode = #tpu.pipeline_mode<synchronous>, transform_indices = @transform_8, window_bounds = array<i64: 128, 128>}, {pipeline_mode = #tpu.pipeline_mode<synchronous>, transform_indices = @transform_9, window_bounds = array<i64: 1, 128>}, {pipeline_mode = #tpu.pipeline_mode<synchronous>, transform_indices = @transform_10, window_bounds = array<i64: 1, 128>}, {pipeline_mode = #tpu.pipeline_mode<synchronous>, transform_indices = @transform_11, window_bounds = array<i64: 1, 128>}, {pipeline_mode = #tpu.pipeline_mode<synchronous>, transform_indices = @transform_12, window_bounds = array<i64: 128, 512>}, {pipeline_mode = #tpu.pipeline_mode<synchronous>, transform_indices = @transform_13, window_bounds = array<i64: 1, 512>}, {pipeline_mode = #tpu.pipeline_mode<synchronous>, transform_indices = @transform_14, window_bounds = array<i64: 512, 128>}, {pipeline_mode = #tpu.pipeline_mode<synchronous>, transform_indices = @transform_15, window_bounds = array<i64: 1, 128>}, {pipeline_mode = #tpu.pipeline_mode<synchronous>, transform_indices = @transform_16, window_bounds = array<i64: 1, 128>}, {pipeline_mode = #tpu.pipeline_mode<synchronous>, transform_indices = @transform_17, window_bounds = array<i64: 1, 128>}, {transform_indices = @transform_18, window_bounds = array<i64: 1, 4, 128>}]} {
    %c0 = arith.constant 0 : index
    %c0_0 = arith.constant 0 : index
    %c0_1 = arith.constant 0 : index
    %0 = vector.load %arg1[%c0, %c0_0, %c0_1] : memref<1x128x192xf32, #tpu.memory_space<vmem>>, vector<1x128x192xf32>
    %1 = vector.shape_cast %0 : vector<1x128x192xf32> to vector<128x192xf32>
    %2 = arith.truncf %1 : vector<128x192xf32> to vector<128x192xbf16>
    %c0_2 = arith.constant 0 : index
    %c0_3 = arith.constant 0 : index
    %3 = vector.load %arg2[%c0_2, %c0_3] : memref<192x128xbf16, #tpu.memory_space<vmem>>, vector<192x128xbf16>
    %cst = arith.constant dense<0.000000e+00> : vector<128x128xf32>
    %4 = tpu.matmul %2, %3, %cst {dimension_numbers = #tpu.dot_dimension_numbers<[1], [0], [0], [1], [0, 0, 1, 1], [], []>} : vector<128x192xbf16>, vector<192x128xbf16>, vector<128x128xf32> -> vector<128x128xf32>
    %c0_4 = arith.constant 0 : index
    %c0_5 = arith.constant 0 : index
    %5 = vector.load %arg3[%c0_4, %c0_5] : memref<1x128xf32, #tpu.memory_space<vmem>>, vector<1x128xf32>
    %6 = vector.broadcast %5 : vector<1x128xf32> to vector<128x128xf32>
    %7 = arith.addf %4, %6 : vector<128x128xf32>
    %c0_6 = arith.constant 0 : index
    %c0_7 = arith.constant 0 : index
    %8 = vector.load %arg4[%c0_6, %c0_7] : memref<128x128xf32, #tpu.memory_space<vmem>>, vector<128x128xf32>
    %9 = arith.addf %7, %8 : vector<128x128xf32>
    %c0_8 = arith.constant 0 : index
    %c0_9 = arith.constant 0 : index
    %10 = vector.load %arg5[%c0_8, %c0_9] : memref<1x128xf32, #tpu.memory_space<vmem>>, vector<1x128xf32>
    %c0_10 = arith.constant 0 : index
    %c0_11 = arith.constant 0 : index
    %11 = vector.load %arg6[%c0_10, %c0_11] : memref<1x128xf32, #tpu.memory_space<vmem>>, vector<1x128xf32>
    %cst_12 = arith.constant dense<0.000000e+00> : vector<128xf32>
    %12 = vector.multi_reduction <add>, %9, %cst_12 [1] : vector<128x128xf32> to vector<128xf32>
    %13 = vector.shape_cast %12 : vector<128xf32> to vector<128x1xf32>
    %cst_13 = arith.constant 1.280000e+02 : f32
    %14 = vector.broadcast %cst_13 : f32 to vector<128x1xf32>
    %15 = arith.divf %13, %14 : vector<128x1xf32>
    %16 = vector.broadcast %15 : vector<128x1xf32> to vector<128x128xf32>
    %17 = arith.subf %9, %16 : vector<128x128xf32>
    %18 = arith.mulf %17, %17 : vector<128x128xf32>
    %cst_14 = arith.constant dense<0.000000e+00> : vector<128xf32>
    %19 = vector.multi_reduction <add>, %18, %cst_14 [1] : vector<128x128xf32> to vector<128xf32>
    %20 = vector.shape_cast %19 : vector<128xf32> to vector<128x1xf32>
    %cst_15 = arith.constant 1.280000e+02 : f32
    %21 = vector.broadcast %cst_15 : f32 to vector<128x1xf32>
    %22 = arith.divf %20, %21 : vector<128x1xf32>
    %23 = vector.broadcast %15 : vector<128x1xf32> to vector<128x128xf32>
    %24 = arith.subf %9, %23 : vector<128x128xf32>
    %cst_16 = arith.constant 9.99999997E-7 : f32
    %25 = vector.broadcast %cst_16 : f32 to vector<128x1xf32>
    %26 = arith.addf %22, %25 : vector<128x1xf32>
    %27 = math.rsqrt %26 : vector<128x1xf32>
    %28 = vector.broadcast %27 : vector<128x1xf32> to vector<128x128xf32>
    %29 = arith.mulf %24, %28 : vector<128x128xf32>
    %30 = vector.broadcast %10 : vector<1x128xf32> to vector<128x128xf32>
    %31 = arith.mulf %29, %30 : vector<128x128xf32>
    %32 = vector.broadcast %11 : vector<1x128xf32> to vector<128x128xf32>
    %33 = arith.addf %31, %32 : vector<128x128xf32>
    %34 = arith.truncf %33 : vector<128x128xf32> to vector<128x128xbf16>
    %c0_17 = arith.constant 0 : index
    %c0_18 = arith.constant 0 : index
    %35 = vector.load %arg7[%c0_17, %c0_18] : memref<128x384xbf16, #tpu.memory_space<vmem>>, vector<128x384xbf16>
    %cst_19 = arith.constant dense<0.000000e+00> : vector<128x384xf32>
    %36 = tpu.matmul %34, %35, %cst_19 {dimension_numbers = #tpu.dot_dimension_numbers<[1], [0], [0], [1], [0, 0, 1, 1], [], []>} : vector<128x128xbf16>, vector<128x384xbf16>, vector<128x384xf32> -> vector<128x384xf32>
    %c0_20 = arith.constant 0 : index
    %c0_21 = arith.constant 0 : index
    %37 = vector.load %arg8[%c0_20, %c0_21] : memref<1x384xf32, #tpu.memory_space<vmem>>, vector<1x384xf32>
    %38 = vector.broadcast %37 : vector<1x384xf32> to vector<128x384xf32>
    %39 = arith.addf %36, %38 : vector<128x384xf32>
    %40 = tpu.iota {dimensions = array<i32: 1>} : vector<1x128xi32>
    %c4_i32 = arith.constant 4 : i32
    %41 = vector.broadcast %c4_i32 : i32 to vector<1x128xi32>
    %42 = arith.cmpi slt, %40, %41 : vector<1x128xi32>
    %cst_22 = arith.constant 0.000000e+00 : f32
    %cst_23 = arith.constant -1.000000e+30 : f32
    %43 = vector.broadcast %cst_22 : f32 to vector<1x128xf32>
    %44 = vector.broadcast %cst_23 : f32 to vector<1x128xf32>
    %45 = arith.select %42, %43, %44 : vector<1x128xi1>, vector<1x128xf32>
    %46 = vector.extract_strided_slice %39 {offsets = [0, 0], sizes = [128, 128], strides = [1, 1]} : vector<128x384xf32> to vector<128x128xf32>
    %47 = arith.truncf %46 : vector<128x128xf32> to vector<128x128xbf16>
    %48 = vector.extract_strided_slice %39 {offsets = [0, 128], sizes = [128, 128], strides = [1, 1]} : vector<128x384xf32> to vector<128x128xf32>
    %49 = arith.truncf %48 : vector<128x128xf32> to vector<128x128xbf16>
    %50 = vector.extract_strided_slice %39 {offsets = [0, 256], sizes = [128, 128], strides = [1, 1]} : vector<128x384xf32> to vector<128x128xf32>
    %51 = arith.truncf %50 : vector<128x128xf32> to vector<128x128xbf16>
    %52 = vector.extract_strided_slice %47 {offsets = [0, 0], sizes = [128, 32], strides = [1, 1]} : vector<128x128xbf16> to vector<128x32xbf16>
    %53 = vector.extract_strided_slice %49 {offsets = [0, 0], sizes = [128, 32], strides = [1, 1]} : vector<128x128xbf16> to vector<128x32xbf16>
    %cst_24 = arith.constant dense<0.000000e+00> : vector<128x128xf32>
    %54 = tpu.matmul %52, %53, %cst_24 {dimension_numbers = #tpu.dot_dimension_numbers<[1], [1], [0], [0], [0, 0, 1, 0], [], []>} : vector<128x32xbf16>, vector<128x32xbf16>, vector<128x128xf32> -> vector<128x128xf32>
    %55 = vector.broadcast %45 : vector<1x128xf32> to vector<128x128xf32>
    %56 = arith.addf %54, %55 : vector<128x128xf32>
    %cst_25 = arith.constant dense<0xFF800000> : vector<128xf32>
    %57 = vector.multi_reduction <maximumf>, %56, %cst_25 [1] : vector<128x128xf32> to vector<128xf32>
    %58 = vector.shape_cast %57 : vector<128xf32> to vector<128x1xf32>
    %59 = vector.broadcast %58 : vector<128x1xf32> to vector<128x128xf32>
    %60 = arith.subf %56, %59 : vector<128x128xf32>
    %61 = math.exp %60 : vector<128x128xf32>
    %cst_26 = arith.constant dense<0.000000e+00> : vector<128xf32>
    %62 = vector.multi_reduction <add>, %61, %cst_26 [1] : vector<128x128xf32> to vector<128xf32>
    %63 = vector.shape_cast %62 : vector<128xf32> to vector<128x1xf32>
    %64 = tpu.reciprocal %63 {approx = true} : vector<128x1xf32> -> vector<128x1xf32>
    %65 = vector.broadcast %64 : vector<128x1xf32> to vector<128x128xf32>
    %66 = arith.mulf %61, %65 : vector<128x128xf32>
    %67 = arith.truncf %66 : vector<128x128xf32> to vector<128x128xbf16>
    %68 = vector.extract_strided_slice %51 {offsets = [0, 0], sizes = [128, 32], strides = [1, 1]} : vector<128x128xbf16> to vector<128x32xbf16>
    %cst_27 = arith.constant dense<0.000000e+00> : vector<128x32xf32>
    %69 = tpu.matmul %67, %68, %cst_27 {dimension_numbers = #tpu.dot_dimension_numbers<[1], [0], [0], [1], [0, 0, 1, 1], [], []>} : vector<128x128xbf16>, vector<128x32xbf16>, vector<128x32xf32> -> vector<128x32xf32>
    %70 = arith.truncf %69 : vector<128x32xf32> to vector<128x32xbf16>
    %71 = vector.extract_strided_slice %47 {offsets = [0, 32], sizes = [128, 32], strides = [1, 1]} : vector<128x128xbf16> to vector<128x32xbf16>
    %72 = vector.extract_strided_slice %49 {offsets = [0, 32], sizes = [128, 32], strides = [1, 1]} : vector<128x128xbf16> to vector<128x32xbf16>
    %cst_28 = arith.constant dense<0.000000e+00> : vector<128x128xf32>
    %73 = tpu.matmul %71, %72, %cst_28 {dimension_numbers = #tpu.dot_dimension_numbers<[1], [1], [0], [0], [0, 0, 1, 0], [], []>} : vector<128x32xbf16>, vector<128x32xbf16>, vector<128x128xf32> -> vector<128x128xf32>
    %74 = vector.broadcast %45 : vector<1x128xf32> to vector<128x128xf32>
    %75 = arith.addf %73, %74 : vector<128x128xf32>
    %cst_29 = arith.constant dense<0xFF800000> : vector<128xf32>
    %76 = vector.multi_reduction <maximumf>, %75, %cst_29 [1] : vector<128x128xf32> to vector<128xf32>
    %77 = vector.shape_cast %76 : vector<128xf32> to vector<128x1xf32>
    %78 = vector.broadcast %77 : vector<128x1xf32> to vector<128x128xf32>
    %79 = arith.subf %75, %78 : vector<128x128xf32>
    %80 = math.exp %79 : vector<128x128xf32>
    %cst_30 = arith.constant dense<0.000000e+00> : vector<128xf32>
    %81 = vector.multi_reduction <add>, %80, %cst_30 [1] : vector<128x128xf32> to vector<128xf32>
    %82 = vector.shape_cast %81 : vector<128xf32> to vector<128x1xf32>
    %83 = tpu.reciprocal %82 {approx = true} : vector<128x1xf32> -> vector<128x1xf32>
    %84 = vector.broadcast %83 : vector<128x1xf32> to vector<128x128xf32>
    %85 = arith.mulf %80, %84 : vector<128x128xf32>
    %86 = arith.truncf %85 : vector<128x128xf32> to vector<128x128xbf16>
    %87 = vector.extract_strided_slice %51 {offsets = [0, 32], sizes = [128, 32], strides = [1, 1]} : vector<128x128xbf16> to vector<128x32xbf16>
    %cst_31 = arith.constant dense<0.000000e+00> : vector<128x32xf32>
    %88 = tpu.matmul %86, %87, %cst_31 {dimension_numbers = #tpu.dot_dimension_numbers<[1], [0], [0], [1], [0, 0, 1, 1], [], []>} : vector<128x128xbf16>, vector<128x32xbf16>, vector<128x32xf32> -> vector<128x32xf32>
    %89 = arith.truncf %88 : vector<128x32xf32> to vector<128x32xbf16>
    %90 = vector.extract_strided_slice %47 {offsets = [0, 64], sizes = [128, 32], strides = [1, 1]} : vector<128x128xbf16> to vector<128x32xbf16>
    %91 = vector.extract_strided_slice %49 {offsets = [0, 64], sizes = [128, 32], strides = [1, 1]} : vector<128x128xbf16> to vector<128x32xbf16>
    %cst_32 = arith.constant dense<0.000000e+00> : vector<128x128xf32>
    %92 = tpu.matmul %90, %91, %cst_32 {dimension_numbers = #tpu.dot_dimension_numbers<[1], [1], [0], [0], [0, 0, 1, 0], [], []>} : vector<128x32xbf16>, vector<128x32xbf16>, vector<128x128xf32> -> vector<128x128xf32>
    %93 = vector.broadcast %45 : vector<1x128xf32> to vector<128x128xf32>
    %94 = arith.addf %92, %93 : vector<128x128xf32>
    %cst_33 = arith.constant dense<0xFF800000> : vector<128xf32>
    %95 = vector.multi_reduction <maximumf>, %94, %cst_33 [1] : vector<128x128xf32> to vector<128xf32>
    %96 = vector.shape_cast %95 : vector<128xf32> to vector<128x1xf32>
    %97 = vector.broadcast %96 : vector<128x1xf32> to vector<128x128xf32>
    %98 = arith.subf %94, %97 : vector<128x128xf32>
    %99 = math.exp %98 : vector<128x128xf32>
    %cst_34 = arith.constant dense<0.000000e+00> : vector<128xf32>
    %100 = vector.multi_reduction <add>, %99, %cst_34 [1] : vector<128x128xf32> to vector<128xf32>
    %101 = vector.shape_cast %100 : vector<128xf32> to vector<128x1xf32>
    %102 = tpu.reciprocal %101 {approx = true} : vector<128x1xf32> -> vector<128x1xf32>
    %103 = vector.broadcast %102 : vector<128x1xf32> to vector<128x128xf32>
    %104 = arith.mulf %99, %103 : vector<128x128xf32>
    %105 = arith.truncf %104 : vector<128x128xf32> to vector<128x128xbf16>
    %106 = vector.extract_strided_slice %51 {offsets = [0, 64], sizes = [128, 32], strides = [1, 1]} : vector<128x128xbf16> to vector<128x32xbf16>
    %cst_35 = arith.constant dense<0.000000e+00> : vector<128x32xf32>
    %107 = tpu.matmul %105, %106, %cst_35 {dimension_numbers = #tpu.dot_dimension_numbers<[1], [0], [0], [1], [0, 0, 1, 1], [], []>} : vector<128x128xbf16>, vector<128x32xbf16>, vector<128x32xf32> -> vector<128x32xf32>
    %108 = arith.truncf %107 : vector<128x32xf32> to vector<128x32xbf16>
    %109 = vector.extract_strided_slice %47 {offsets = [0, 96], sizes = [128, 32], strides = [1, 1]} : vector<128x128xbf16> to vector<128x32xbf16>
    %110 = vector.extract_strided_slice %49 {offsets = [0, 96], sizes = [128, 32], strides = [1, 1]} : vector<128x128xbf16> to vector<128x32xbf16>
    %cst_36 = arith.constant dense<0.000000e+00> : vector<128x128xf32>
    %111 = tpu.matmul %109, %110, %cst_36 {dimension_numbers = #tpu.dot_dimension_numbers<[1], [1], [0], [0], [0, 0, 1, 0], [], []>} : vector<128x32xbf16>, vector<128x32xbf16>, vector<128x128xf32> -> vector<128x128xf32>
    %112 = vector.broadcast %45 : vector<1x128xf32> to vector<128x128xf32>
    %113 = arith.addf %111, %112 : vector<128x128xf32>
    %cst_37 = arith.constant dense<0xFF800000> : vector<128xf32>
    %114 = vector.multi_reduction <maximumf>, %113, %cst_37 [1] : vector<128x128xf32> to vector<128xf32>
    %115 = vector.shape_cast %114 : vector<128xf32> to vector<128x1xf32>
    %116 = vector.broadcast %115 : vector<128x1xf32> to vector<128x128xf32>
    %117 = arith.subf %113, %116 : vector<128x128xf32>
    %118 = math.exp %117 : vector<128x128xf32>
    %cst_38 = arith.constant dense<0.000000e+00> : vector<128xf32>
    %119 = vector.multi_reduction <add>, %118, %cst_38 [1] : vector<128x128xf32> to vector<128xf32>
    %120 = vector.shape_cast %119 : vector<128xf32> to vector<128x1xf32>
    %121 = tpu.reciprocal %120 {approx = true} : vector<128x1xf32> -> vector<128x1xf32>
    %122 = vector.broadcast %121 : vector<128x1xf32> to vector<128x128xf32>
    %123 = arith.mulf %118, %122 : vector<128x128xf32>
    %124 = arith.truncf %123 : vector<128x128xf32> to vector<128x128xbf16>
    %125 = vector.extract_strided_slice %51 {offsets = [0, 96], sizes = [128, 32], strides = [1, 1]} : vector<128x128xbf16> to vector<128x32xbf16>
    %cst_39 = arith.constant dense<0.000000e+00> : vector<128x32xf32>
    %126 = tpu.matmul %124, %125, %cst_39 {dimension_numbers = #tpu.dot_dimension_numbers<[1], [0], [0], [1], [0, 0, 1, 1], [], []>} : vector<128x128xbf16>, vector<128x32xbf16>, vector<128x32xf32> -> vector<128x32xf32>
    %127 = arith.truncf %126 : vector<128x32xf32> to vector<128x32xbf16>
    %128 = tpu.concatenate %70, %89, %108, %127 in 1 : vector<128x32xbf16>, vector<128x32xbf16>, vector<128x32xbf16>, vector<128x32xbf16> -> vector<128x128xbf16>
    %c0_40 = arith.constant 0 : index
    %c0_41 = arith.constant 0 : index
    %129 = vector.load %arg20[%c0_40, %c0_41] : memref<128x128xbf16, #tpu.memory_space<vmem>>, vector<128x128xbf16>
    tpu.vector_store %arg20[%c0_40, %c0_41], %128 {strides = array<i32>} : memref<128x128xbf16, #tpu.memory_space<vmem>>, vector<128x128xbf16>,
    %c0_42 = arith.constant 0 : index
    %c0_43 = arith.constant 0 : index
    %130 = vector.load %arg20[%c0_42, %c0_43] : memref<128x128xbf16, #tpu.memory_space<vmem>>, vector<128x128xbf16>
    %c0_44 = arith.constant 0 : index
    %c0_45 = arith.constant 0 : index
    %131 = vector.load %arg9[%c0_44, %c0_45] : memref<128x128xbf16, #tpu.memory_space<vmem>>, vector<128x128xbf16>
    %cst_46 = arith.constant dense<0.000000e+00> : vector<128x128xf32>
    %132 = tpu.matmul %130, %131, %cst_46 {dimension_numbers = #tpu.dot_dimension_numbers<[1], [0], [0], [1], [0, 0, 1, 1], [], []>} : vector<128x128xbf16>, vector<128x128xbf16>, vector<128x128xf32> -> vector<128x128xf32>
    %c0_47 = arith.constant 0 : index
    %c0_48 = arith.constant 0 : index
    %133 = vector.load %arg10[%c0_47, %c0_48] : memref<1x128xf32, #tpu.memory_space<vmem>>, vector<1x128xf32>
    %134 = vector.broadcast %133 : vector<1x128xf32> to vector<128x128xf32>
    %135 = arith.addf %132, %134 : vector<128x128xf32>
    %136 = arith.addf %9, %135 : vector<128x128xf32>
    %c0_49 = arith.constant 0 : index
    %c0_50 = arith.constant 0 : index
    %137 = vector.load %arg11[%c0_49, %c0_50] : memref<1x128xf32, #tpu.memory_space<vmem>>, vector<1x128xf32>
    %c0_51 = arith.constant 0 : index
    %c0_52 = arith.constant 0 : index
    %138 = vector.load %arg12[%c0_51, %c0_52] : memref<1x128xf32, #tpu.memory_space<vmem>>, vector<1x128xf32>
    %cst_53 = arith.constant dense<0.000000e+00> : vector<128xf32>
    %139 = vector.multi_reduction <add>, %136, %cst_53 [1] : vector<128x128xf32> to vector<128xf32>
    %140 = vector.shape_cast %139 : vector<128xf32> to vector<128x1xf32>
    %cst_54 = arith.constant 1.280000e+02 : f32
    %141 = vector.broadcast %cst_54 : f32 to vector<128x1xf32>
    %142 = arith.divf %140, %141 : vector<128x1xf32>
    %143 = vector.broadcast %142 : vector<128x1xf32> to vector<128x128xf32>
    %144 = arith.subf %136, %143 : vector<128x128xf32>
    %145 = arith.mulf %144, %144 : vector<128x128xf32>
    %cst_55 = arith.constant dense<0.000000e+00> : vector<128xf32>
    %146 = vector.multi_reduction <add>, %145, %cst_55 [1] : vector<128x128xf32> to vector<128xf32>
    %147 = vector.shape_cast %146 : vector<128xf32> to vector<128x1xf32>
    %cst_56 = arith.constant 1.280000e+02 : f32
    %148 = vector.broadcast %cst_56 : f32 to vector<128x1xf32>
    %149 = arith.divf %147, %148 : vector<128x1xf32>
    %150 = vector.broadcast %142 : vector<128x1xf32> to vector<128x128xf32>
    %151 = arith.subf %136, %150 : vector<128x128xf32>
    %cst_57 = arith.constant 9.99999997E-7 : f32
    %152 = vector.broadcast %cst_57 : f32 to vector<128x1xf32>
    %153 = arith.addf %149, %152 : vector<128x1xf32>
    %154 = math.rsqrt %153 : vector<128x1xf32>
    %155 = vector.broadcast %154 : vector<128x1xf32> to vector<128x128xf32>
    %156 = arith.mulf %151, %155 : vector<128x128xf32>
    %157 = vector.broadcast %137 : vector<1x128xf32> to vector<128x128xf32>
    %158 = arith.mulf %156, %157 : vector<128x128xf32>
    %159 = vector.broadcast %138 : vector<1x128xf32> to vector<128x128xf32>
    %160 = arith.addf %158, %159 : vector<128x128xf32>
    %161 = arith.truncf %160 : vector<128x128xf32> to vector<128x128xbf16>
    %c0_58 = arith.constant 0 : index
    %c0_59 = arith.constant 0 : index
    %162 = vector.load %arg13[%c0_58, %c0_59] : memref<128x512xbf16, #tpu.memory_space<vmem>>, vector<128x512xbf16>
    %cst_60 = arith.constant dense<0.000000e+00> : vector<128x512xf32>
    %163 = tpu.matmul %161, %162, %cst_60 {dimension_numbers = #tpu.dot_dimension_numbers<[1], [0], [0], [1], [0, 0, 1, 1], [], []>} : vector<128x128xbf16>, vector<128x512xbf16>, vector<128x512xf32> -> vector<128x512xf32>
    %c0_61 = arith.constant 0 : index
    %c0_62 = arith.constant 0 : index
    %164 = vector.load %arg14[%c0_61, %c0_62] : memref<1x512xf32, #tpu.memory_space<vmem>>, vector<1x512xf32>
    %165 = vector.broadcast %164 : vector<1x512xf32> to vector<128x512xf32>
    %166 = arith.addf %163, %165 : vector<128x512xf32>
    %cst_63 = arith.constant 5.000000e-01 : f32
    %167 = vector.broadcast %cst_63 : f32 to vector<128x512xf32>
    %168 = arith.mulf %167, %166 : vector<128x512xf32>
    %cst_64 = arith.constant 4.471500e-02 : f32
    %169 = vector.broadcast %cst_64 : f32 to vector<128x512xf32>
    %170 = arith.mulf %169, %166 : vector<128x512xf32>
    %171 = arith.mulf %170, %166 : vector<128x512xf32>
    %172 = arith.mulf %171, %166 : vector<128x512xf32>
    %173 = arith.addf %166, %172 : vector<128x512xf32>
    %cst_65 = arith.constant 0.797884583 : f32
    %174 = vector.broadcast %cst_65 : f32 to vector<128x512xf32>
    %175 = arith.mulf %174, %173 : vector<128x512xf32>
    %176 = math.tanh %175 : vector<128x512xf32>
    %cst_66 = arith.constant 1.000000e+00 : f32
    %177 = vector.broadcast %cst_66 : f32 to vector<128x512xf32>
    %178 = arith.addf %177, %176 : vector<128x512xf32>
    %179 = arith.mulf %168, %178 : vector<128x512xf32>
    %180 = arith.truncf %179 : vector<128x512xf32> to vector<128x512xbf16>
    %c0_67 = arith.constant 0 : index
    %c0_68 = arith.constant 0 : index
    %181 = vector.load %arg15[%c0_67, %c0_68] : memref<512x128xbf16, #tpu.memory_space<vmem>>, vector<512x128xbf16>
    %cst_69 = arith.constant dense<0.000000e+00> : vector<128x128xf32>
    %182 = tpu.matmul %180, %181, %cst_69 {dimension_numbers = #tpu.dot_dimension_numbers<[1], [0], [0], [1], [0, 0, 1, 1], [], []>} : vector<128x512xbf16>, vector<512x128xbf16>, vector<128x128xf32> -> vector<128x128xf32>
    %c0_70 = arith.constant 0 : index
    %c0_71 = arith.constant 0 : index
    %183 = vector.load %arg16[%c0_70, %c0_71] : memref<1x128xf32, #tpu.memory_space<vmem>>, vector<1x128xf32>
    %184 = vector.broadcast %183 : vector<1x128xf32> to vector<128x128xf32>
    %185 = arith.addf %182, %184 : vector<128x128xf32>
    %186 = arith.addf %136, %185 : vector<128x128xf32>
    %c0_72 = arith.constant 0 : index
    %c0_73 = arith.constant 0 : index
    %187 = vector.load %arg17[%c0_72, %c0_73] : memref<1x128xf32, #tpu.memory_space<vmem>>, vector<1x128xf32>
    %c0_74 = arith.constant 0 : index
    %c0_75 = arith.constant 0 : index
    %188 = vector.load %arg18[%c0_74, %c0_75] : memref<1x128xf32, #tpu.memory_space<vmem>>, vector<1x128xf32>
    %cst_76 = arith.constant dense<0.000000e+00> : vector<128xf32>
    %189 = vector.multi_reduction <add>, %186, %cst_76 [1] : vector<128x128xf32> to vector<128xf32>
    %190 = vector.shape_cast %189 : vector<128xf32> to vector<128x1xf32>
    %cst_77 = arith.constant 1.280000e+02 : f32
    %191 = vector.broadcast %cst_77 : f32 to vector<128x1xf32>
    %192 = arith.divf %190, %191 : vector<128x1xf32>
    %193 = vector.broadcast %192 : vector<128x1xf32> to vector<128x128xf32>
    %194 = arith.subf %186, %193 : vector<128x128xf32>
    %195 = arith.mulf %194, %194 : vector<128x128xf32>
    %cst_78 = arith.constant dense<0.000000e+00> : vector<128xf32>
    %196 = vector.multi_reduction <add>, %195, %cst_78 [1] : vector<128x128xf32> to vector<128xf32>
    %197 = vector.shape_cast %196 : vector<128xf32> to vector<128x1xf32>
    %cst_79 = arith.constant 1.280000e+02 : f32
    %198 = vector.broadcast %cst_79 : f32 to vector<128x1xf32>
    %199 = arith.divf %197, %198 : vector<128x1xf32>
    %200 = vector.broadcast %192 : vector<128x1xf32> to vector<128x128xf32>
    %201 = arith.subf %186, %200 : vector<128x128xf32>
    %cst_80 = arith.constant 9.99999997E-7 : f32
    %202 = vector.broadcast %cst_80 : f32 to vector<128x1xf32>
    %203 = arith.addf %199, %202 : vector<128x1xf32>
    %204 = math.rsqrt %203 : vector<128x1xf32>
    %205 = vector.broadcast %204 : vector<128x1xf32> to vector<128x128xf32>
    %206 = arith.mulf %201, %205 : vector<128x128xf32>
    %207 = vector.broadcast %187 : vector<1x128xf32> to vector<128x128xf32>
    %208 = arith.mulf %206, %207 : vector<128x128xf32>
    %209 = vector.broadcast %188 : vector<1x128xf32> to vector<128x128xf32>
    %210 = arith.addf %208, %209 : vector<128x128xf32>
    %211 = vector.extract_strided_slice %210 {offsets = [0, 0], sizes = [4, 128], strides = [1, 1]} : vector<128x128xf32> to vector<4x128xf32>
    %c0_81 = arith.constant 0 : index
    %c0_82 = arith.constant 0 : index
    %c0_83 = arith.constant 0 : index
    %212 = vector.load %arg19[%c0_81, %c0_82, %c0_83] : memref<1x4x128xf32, #tpu.memory_space<vmem>>, vector<1x4x128xf32>
    %213 = vector.shape_cast %212 : vector<1x4x128xf32> to vector<4x128xf32>
    %214 = vector.shape_cast %211 : vector<4x128xf32> to vector<1x4x128xf32>
    tpu.vector_store %arg19[%c0_81, %c0_82, %c0_83], %214 {strides = array<i32>} : memref<1x4x128xf32, #tpu.memory_space<vmem>>, vector<1x4x128xf32>,
    return
  }
  func.func @transform_0(%arg0: i32) -> (i32, i32, i32) {
    %c0_i32 = arith.constant 0 : i32
    %c0_i32_0 = arith.constant 0 : i32
    %c0_i32_1 = arith.constant 0 : i32
    return %arg0, %c0_i32, %c0_i32_0 : i32, i32, i32
  }
  func.func @transform_1(%arg0: i32) -> (i32, i32) {
    %c0_i32 = arith.constant 0 : i32
    %c0_i32_0 = arith.constant 0 : i32
    %c0_i32_1 = arith.constant 0 : i32
    return %c0_i32, %c0_i32_0 : i32, i32
  }
  func.func @transform_2(%arg0: i32) -> (i32, i32) {
    %c0_i32 = arith.constant 0 : i32
    %c0_i32_0 = arith.constant 0 : i32
    %c0_i32_1 = arith.constant 0 : i32
    return %c0_i32, %c0_i32_0 : i32, i32
  }
  func.func @transform_3(%arg0: i32) -> (i32, i32) {
    %c0_i32 = arith.constant 0 : i32
    %c0_i32_0 = arith.constant 0 : i32
    %c0_i32_1 = arith.constant 0 : i32
    return %c0_i32, %c0_i32_0 : i32, i32
  }
  func.func @transform_4(%arg0: i32) -> (i32, i32) {
    %c0_i32 = arith.constant 0 : i32
    %c0_i32_0 = arith.constant 0 : i32
    %c0_i32_1 = arith.constant 0 : i32
    return %c0_i32, %c0_i32_0 : i32, i32
  }
  func.func @transform_5(%arg0: i32) -> (i32, i32) {
    %c0_i32 = arith.constant 0 : i32
    %c0_i32_0 = arith.constant 0 : i32
    %c0_i32_1 = arith.constant 0 : i32
    return %c0_i32, %c0_i32_0 : i32, i32
  }
  func.func @transform_6(%arg0: i32) -> (i32, i32) {
    %c0_i32 = arith.constant 0 : i32
    %c0_i32_0 = arith.constant 0 : i32
    %c0_i32_1 = arith.constant 0 : i32
    return %c0_i32, %c0_i32_0 : i32, i32
  }
  func.func @transform_7(%arg0: i32) -> (i32, i32) {
    %c0_i32 = arith.constant 0 : i32
    %c0_i32_0 = arith.constant 0 : i32
    %c0_i32_1 = arith.constant 0 : i32
    return %c0_i32, %c0_i32_0 : i32, i32
  }
  func.func @transform_8(%arg0: i32) -> (i32, i32) {
    %c0_i32 = arith.constant 0 : i32
    %c0_i32_0 = arith.constant 0 : i32
    %c0_i32_1 = arith.constant 0 : i32
    return %c0_i32, %c0_i32_0 : i32, i32
  }
  func.func @transform_9(%arg0: i32) -> (i32, i32) {
    %c0_i32 = arith.constant 0 : i32
    %c0_i32_0 = arith.constant 0 : i32
    %c0_i32_1 = arith.constant 0 : i32
    return %c0_i32, %c0_i32_0 : i32, i32
  }
  func.func @transform_10(%arg0: i32) -> (i32, i32) {
    %c0_i32 = arith.constant 0 : i32
    %c0_i32_0 = arith.constant 0 : i32
    %c0_i32_1 = arith.constant 0 : i32
    return %c0_i32, %c0_i32_0 : i32, i32
  }
  func.func @transform_11(%arg0: i32) -> (i32, i32) {
    %c0_i32 = arith.constant 0 : i32
    %c0_i32_0 = arith.constant 0 : i32
    %c0_i32_1 = arith.constant 0 : i32
    return %c0_i32, %c0_i32_0 : i32, i32
  }
  func.func @transform_12(%arg0: i32) -> (i32, i32) {
    %c0_i32 = arith.constant 0 : i32
    %c0_i32_0 = arith.constant 0 : i32
    %c0_i32_1 = arith.constant 0 : i32
    return %c0_i32, %c0_i32_0 : i32, i32
  }
  func.func @transform_13(%arg0: i32) -> (i32, i32) {
    %c0_i32 = arith.constant 0 : i32
    %c0_i32_0 = arith.constant 0 : i32
    %c0_i32_1 = arith.constant 0 : i32
    return %c0_i32, %c0_i32_0 : i32, i32
  }
  func.func @transform_14(%arg0: i32) -> (i32, i32) {
    %c0_i32 = arith.constant 0 : i32
    %c0_i32_0 = arith.constant 0 : i32
    %c0_i32_1 = arith.constant 0 : i32
    return %c0_i32, %c0_i32_0 : i32, i32
  }
  func.func @transform_15(%arg0: i32) -> (i32, i32) {
    %c0_i32 = arith.constant 0 : i32
    %c0_i32_0 = arith.constant 0 : i32
    %c0_i32_1 = arith.constant 0 : i32
    return %c0_i32, %c0_i32_0 : i32, i32
  }
  func.func @transform_16(%arg0: i32) -> (i32, i32) {
    %c0_i32 = arith.constant 0 : i32
    %c0_i32_0 = arith.constant 0 : i32
    %c0_i32_1 = arith.constant 0 : i32
    return %c0_i32, %c0_i32_0 : i32, i32
  }
  func.func @transform_17(%arg0: i32) -> (i32, i32) {
    %c0_i32 = arith.constant 0 : i32
    %c0_i32_0 = arith.constant 0 : i32
    %c0_i32_1 = arith.constant 0 : i32
    return %c0_i32, %c0_i32_0 : i32, i32
  }
  func.func @transform_18(%arg0: i32) -> (i32, i32, i32) {
    %c0_i32 = arith.constant 0 : i32
    %c0_i32_0 = arith.constant 0 : i32
    %c0_i32_1 = arith.constant 0 : i32
    return %arg0, %c0_i32, %c0_i32_0 : i32, i32, i32
  }
}

module attributes {stable_mosaic.version = 11 : i64} {
  func.func @_cls_block_kernel(%arg0: i32, %arg1: memref<1x4x128xf32, #tpu.memory_space<vmem>>, %arg2: memref<4x128xf32, #tpu.memory_space<vmem>>, %arg3: memref<1x128xf32, #tpu.memory_space<vmem>>, %arg4: memref<1x128xf32, #tpu.memory_space<vmem>>, %arg5: memref<1x128xf32, #tpu.memory_space<vmem>>, %arg6: memref<1x128xf32, #tpu.memory_space<vmem>>, %arg7: memref<128x384xbf16, #tpu.memory_space<vmem>>, %arg8: memref<1x384xf32, #tpu.memory_space<vmem>>, %arg9: memref<128x128xbf16, #tpu.memory_space<vmem>>, %arg10: memref<1x128xf32, #tpu.memory_space<vmem>>, %arg11: memref<1x128xf32, #tpu.memory_space<vmem>>, %arg12: memref<1x128xf32, #tpu.memory_space<vmem>>, %arg13: memref<128x512xbf16, #tpu.memory_space<vmem>>, %arg14: memref<1x512xf32, #tpu.memory_space<vmem>>, %arg15: memref<512x128xbf16, #tpu.memory_space<vmem>>, %arg16: memref<1x128xf32, #tpu.memory_space<vmem>>, %arg17: memref<1x128xf32, #tpu.memory_space<vmem>>, %arg18: memref<1x128xf32, #tpu.memory_space<vmem>>, %arg19: memref<4x128xf32, #tpu.memory_space<vmem>>, %arg20: memref<4x1xf32, #tpu.memory_space<vmem>>, %arg21: memref<1x4x1xf32, #tpu.memory_space<vmem>>, %arg22: memref<128x128xbf16, #tpu.memory_space<vmem>>) attributes {dimension_semantics = [#tpu.dimension_semantics<parallel>], iteration_bounds = array<i64: 2>, scalar_prefetch = 0 : i64, scratch_operands = 1 : i64, tpu.core_type = #tpu.core_type<tc>, window_params = [{transform_indices = @transform_0, window_bounds = array<i64: 1, 4, 128>}, {pipeline_mode = #tpu.pipeline_mode<synchronous>, transform_indices = @transform_1, window_bounds = array<i64: 4, 128>}, {pipeline_mode = #tpu.pipeline_mode<synchronous>, transform_indices = @transform_2, window_bounds = array<i64: 1, 128>}, {pipeline_mode = #tpu.pipeline_mode<synchronous>, transform_indices = @transform_3, window_bounds = array<i64: 1, 128>}, {pipeline_mode = #tpu.pipeline_mode<synchronous>, transform_indices = @transform_4, window_bounds = array<i64: 1, 128>}, {pipeline_mode = #tpu.pipeline_mode<synchronous>, transform_indices = @transform_5, window_bounds = array<i64: 1, 128>}, {pipeline_mode = #tpu.pipeline_mode<synchronous>, transform_indices = @transform_6, window_bounds = array<i64: 128, 384>}, {pipeline_mode = #tpu.pipeline_mode<synchronous>, transform_indices = @transform_7, window_bounds = array<i64: 1, 384>}, {pipeline_mode = #tpu.pipeline_mode<synchronous>, transform_indices = @transform_8, window_bounds = array<i64: 128, 128>}, {pipeline_mode = #tpu.pipeline_mode<synchronous>, transform_indices = @transform_9, window_bounds = array<i64: 1, 128>}, {pipeline_mode = #tpu.pipeline_mode<synchronous>, transform_indices = @transform_10, window_bounds = array<i64: 1, 128>}, {pipeline_mode = #tpu.pipeline_mode<synchronous>, transform_indices = @transform_11, window_bounds = array<i64: 1, 128>}, {pipeline_mode = #tpu.pipeline_mode<synchronous>, transform_indices = @transform_12, window_bounds = array<i64: 128, 512>}, {pipeline_mode = #tpu.pipeline_mode<synchronous>, transform_indices = @transform_13, window_bounds = array<i64: 1, 512>}, {pipeline_mode = #tpu.pipeline_mode<synchronous>, transform_indices = @transform_14, window_bounds = array<i64: 512, 128>}, {pipeline_mode = #tpu.pipeline_mode<synchronous>, transform_indices = @transform_15, window_bounds = array<i64: 1, 128>}, {pipeline_mode = #tpu.pipeline_mode<synchronous>, transform_indices = @transform_16, window_bounds = array<i64: 1, 128>}, {pipeline_mode = #tpu.pipeline_mode<synchronous>, transform_indices = @transform_17, window_bounds = array<i64: 1, 128>}, {pipeline_mode = #tpu.pipeline_mode<synchronous>, transform_indices = @transform_18, window_bounds = array<i64: 4, 128>}, {pipeline_mode = #tpu.pipeline_mode<synchronous>, transform_indices = @transform_19, window_bounds = array<i64: 4, 1>}, {transform_indices = @transform_20, window_bounds = array<i64: 1, 4, 1>}]} {
    %c0 = arith.constant 0 : index
    %c0_0 = arith.constant 0 : index
    %0 = vector.load %arg2[%c0, %c0_0] : memref<4x128xf32, #tpu.memory_space<vmem>>, vector<4x128xf32>
    %c0_1 = arith.constant 0 : index
    %c0_2 = arith.constant 0 : index
    %1 = vector.load %arg3[%c0_1, %c0_2] : memref<1x128xf32, #tpu.memory_space<vmem>>, vector<1x128xf32>
    %2 = vector.broadcast %1 : vector<1x128xf32> to vector<4x128xf32>
    %3 = arith.addf %0, %2 : vector<4x128xf32>
    %c0_3 = arith.constant 0 : index
    %c0_4 = arith.constant 0 : index
    %c0_5 = arith.constant 0 : index
    %4 = vector.load %arg1[%c0_3, %c0_4, %c0_5] : memref<1x4x128xf32, #tpu.memory_space<vmem>>, vector<1x4x128xf32>
    %5 = vector.shape_cast %4 : vector<1x4x128xf32> to vector<4x128xf32>
    %c0_6 = arith.constant 0 : index
    %c0_7 = arith.constant 0 : index
    %6 = vector.load %arg4[%c0_6, %c0_7] : memref<1x128xf32, #tpu.memory_space<vmem>>, vector<1x128xf32>
    %7 = vector.broadcast %6 : vector<1x128xf32> to vector<4x128xf32>
    %8 = arith.addf %5, %7 : vector<4x128xf32>
    %cst = arith.constant 0.000000e+00 : f32
    %9 = vector.broadcast %cst : f32 to vector<120x128xf32>
    %10 = tpu.concatenate %3, %8, %9 in 0 : vector<4x128xf32>, vector<4x128xf32>, vector<120x128xf32> -> vector<128x128xf32>
    %c0_8 = arith.constant 0 : index
    %c0_9 = arith.constant 0 : index
    %11 = vector.load %arg5[%c0_8, %c0_9] : memref<1x128xf32, #tpu.memory_space<vmem>>, vector<1x128xf32>
    %c0_10 = arith.constant 0 : index
    %c0_11 = arith.constant 0 : index
    %12 = vector.load %arg6[%c0_10, %c0_11] : memref<1x128xf32, #tpu.memory_space<vmem>>, vector<1x128xf32>
    %cst_12 = arith.constant dense<0.000000e+00> : vector<128xf32>
    %13 = vector.multi_reduction <add>, %10, %cst_12 [1] : vector<128x128xf32> to vector<128xf32>
    %14 = vector.shape_cast %13 : vector<128xf32> to vector<128x1xf32>
    %cst_13 = arith.constant 1.280000e+02 : f32
    %15 = vector.broadcast %cst_13 : f32 to vector<128x1xf32>
    %16 = arith.divf %14, %15 : vector<128x1xf32>
    %17 = vector.broadcast %16 : vector<128x1xf32> to vector<128x128xf32>
    %18 = arith.subf %10, %17 : vector<128x128xf32>
    %19 = arith.mulf %18, %18 : vector<128x128xf32>
    %cst_14 = arith.constant dense<0.000000e+00> : vector<128xf32>
    %20 = vector.multi_reduction <add>, %19, %cst_14 [1] : vector<128x128xf32> to vector<128xf32>
    %21 = vector.shape_cast %20 : vector<128xf32> to vector<128x1xf32>
    %cst_15 = arith.constant 1.280000e+02 : f32
    %22 = vector.broadcast %cst_15 : f32 to vector<128x1xf32>
    %23 = arith.divf %21, %22 : vector<128x1xf32>
    %24 = vector.broadcast %16 : vector<128x1xf32> to vector<128x128xf32>
    %25 = arith.subf %10, %24 : vector<128x128xf32>
    %cst_16 = arith.constant 9.99999997E-7 : f32
    %26 = vector.broadcast %cst_16 : f32 to vector<128x1xf32>
    %27 = arith.addf %23, %26 : vector<128x1xf32>
    %28 = math.rsqrt %27 : vector<128x1xf32>
    %29 = vector.broadcast %28 : vector<128x1xf32> to vector<128x128xf32>
    %30 = arith.mulf %25, %29 : vector<128x128xf32>
    %31 = vector.broadcast %11 : vector<1x128xf32> to vector<128x128xf32>
    %32 = arith.mulf %30, %31 : vector<128x128xf32>
    %33 = vector.broadcast %12 : vector<1x128xf32> to vector<128x128xf32>
    %34 = arith.addf %32, %33 : vector<128x128xf32>
    %35 = arith.truncf %34 : vector<128x128xf32> to vector<128x128xbf16>
    %c0_17 = arith.constant 0 : index
    %c0_18 = arith.constant 0 : index
    %36 = vector.load %arg7[%c0_17, %c0_18] : memref<128x384xbf16, #tpu.memory_space<vmem>>, vector<128x384xbf16>
    %cst_19 = arith.constant dense<0.000000e+00> : vector<128x384xf32>
    %37 = tpu.matmul %35, %36, %cst_19 {dimension_numbers = #tpu.dot_dimension_numbers<[1], [0], [0], [1], [0, 0, 1, 1], [], []>} : vector<128x128xbf16>, vector<128x384xbf16>, vector<128x384xf32> -> vector<128x384xf32>
    %c0_20 = arith.constant 0 : index
    %c0_21 = arith.constant 0 : index
    %38 = vector.load %arg8[%c0_20, %c0_21] : memref<1x384xf32, #tpu.memory_space<vmem>>, vector<1x384xf32>
    %39 = vector.broadcast %38 : vector<1x384xf32> to vector<128x384xf32>
    %40 = arith.addf %37, %39 : vector<128x384xf32>
    %41 = tpu.iota {dimensions = array<i32: 1>} : vector<1x128xi32>
    %c8_i32 = arith.constant 8 : i32
    %42 = vector.broadcast %c8_i32 : i32 to vector<1x128xi32>
    %43 = arith.cmpi slt, %41, %42 : vector<1x128xi32>
    %cst_22 = arith.constant 0.000000e+00 : f32
    %cst_23 = arith.constant -1.000000e+30 : f32
    %44 = vector.broadcast %cst_22 : f32 to vector<1x128xf32>
    %45 = vector.broadcast %cst_23 : f32 to vector<1x128xf32>
    %46 = arith.select %43, %44, %45 : vector<1x128xi1>, vector<1x128xf32>
    %47 = vector.extract_strided_slice %40 {offsets = [0, 0], sizes = [128, 128], strides = [1, 1]} : vector<128x384xf32> to vector<128x128xf32>
    %48 = arith.truncf %47 : vector<128x128xf32> to vector<128x128xbf16>
    %49 = vector.extract_strided_slice %40 {offsets = [0, 128], sizes = [128, 128], strides = [1, 1]} : vector<128x384xf32> to vector<128x128xf32>
    %50 = arith.truncf %49 : vector<128x128xf32> to vector<128x128xbf16>
    %51 = vector.extract_strided_slice %40 {offsets = [0, 256], sizes = [128, 128], strides = [1, 1]} : vector<128x384xf32> to vector<128x128xf32>
    %52 = arith.truncf %51 : vector<128x128xf32> to vector<128x128xbf16>
    %53 = vector.extract_strided_slice %48 {offsets = [0, 0], sizes = [128, 32], strides = [1, 1]} : vector<128x128xbf16> to vector<128x32xbf16>
    %54 = vector.extract_strided_slice %50 {offsets = [0, 0], sizes = [128, 32], strides = [1, 1]} : vector<128x128xbf16> to vector<128x32xbf16>
    %cst_24 = arith.constant dense<0.000000e+00> : vector<128x128xf32>
    %55 = tpu.matmul %53, %54, %cst_24 {dimension_numbers = #tpu.dot_dimension_numbers<[1], [1], [0], [0], [0, 0, 1, 0], [], []>} : vector<128x32xbf16>, vector<128x32xbf16>, vector<128x128xf32> -> vector<128x128xf32>
    %56 = vector.broadcast %46 : vector<1x128xf32> to vector<128x128xf32>
    %57 = arith.addf %55, %56 : vector<128x128xf32>
    %cst_25 = arith.constant dense<0xFF800000> : vector<128xf32>
    %58 = vector.multi_reduction <maximumf>, %57, %cst_25 [1] : vector<128x128xf32> to vector<128xf32>
    %59 = vector.shape_cast %58 : vector<128xf32> to vector<128x1xf32>
    %60 = vector.broadcast %59 : vector<128x1xf32> to vector<128x128xf32>
    %61 = arith.subf %57, %60 : vector<128x128xf32>
    %62 = math.exp %61 : vector<128x128xf32>
    %cst_26 = arith.constant dense<0.000000e+00> : vector<128xf32>
    %63 = vector.multi_reduction <add>, %62, %cst_26 [1] : vector<128x128xf32> to vector<128xf32>
    %64 = vector.shape_cast %63 : vector<128xf32> to vector<128x1xf32>
    %65 = tpu.reciprocal %64 {approx = true} : vector<128x1xf32> -> vector<128x1xf32>
    %66 = vector.broadcast %65 : vector<128x1xf32> to vector<128x128xf32>
    %67 = arith.mulf %62, %66 : vector<128x128xf32>
    %68 = arith.truncf %67 : vector<128x128xf32> to vector<128x128xbf16>
    %69 = vector.extract_strided_slice %52 {offsets = [0, 0], sizes = [128, 32], strides = [1, 1]} : vector<128x128xbf16> to vector<128x32xbf16>
    %cst_27 = arith.constant dense<0.000000e+00> : vector<128x32xf32>
    %70 = tpu.matmul %68, %69, %cst_27 {dimension_numbers = #tpu.dot_dimension_numbers<[1], [0], [0], [1], [0, 0, 1, 1], [], []>} : vector<128x128xbf16>, vector<128x32xbf16>, vector<128x32xf32> -> vector<128x32xf32>
    %71 = arith.truncf %70 : vector<128x32xf32> to vector<128x32xbf16>
    %72 = vector.extract_strided_slice %48 {offsets = [0, 32], sizes = [128, 32], strides = [1, 1]} : vector<128x128xbf16> to vector<128x32xbf16>
    %73 = vector.extract_strided_slice %50 {offsets = [0, 32], sizes = [128, 32], strides = [1, 1]} : vector<128x128xbf16> to vector<128x32xbf16>
    %cst_28 = arith.constant dense<0.000000e+00> : vector<128x128xf32>
    %74 = tpu.matmul %72, %73, %cst_28 {dimension_numbers = #tpu.dot_dimension_numbers<[1], [1], [0], [0], [0, 0, 1, 0], [], []>} : vector<128x32xbf16>, vector<128x32xbf16>, vector<128x128xf32> -> vector<128x128xf32>
    %75 = vector.broadcast %46 : vector<1x128xf32> to vector<128x128xf32>
    %76 = arith.addf %74, %75 : vector<128x128xf32>
    %cst_29 = arith.constant dense<0xFF800000> : vector<128xf32>
    %77 = vector.multi_reduction <maximumf>, %76, %cst_29 [1] : vector<128x128xf32> to vector<128xf32>
    %78 = vector.shape_cast %77 : vector<128xf32> to vector<128x1xf32>
    %79 = vector.broadcast %78 : vector<128x1xf32> to vector<128x128xf32>
    %80 = arith.subf %76, %79 : vector<128x128xf32>
    %81 = math.exp %80 : vector<128x128xf32>
    %cst_30 = arith.constant dense<0.000000e+00> : vector<128xf32>
    %82 = vector.multi_reduction <add>, %81, %cst_30 [1] : vector<128x128xf32> to vector<128xf32>
    %83 = vector.shape_cast %82 : vector<128xf32> to vector<128x1xf32>
    %84 = tpu.reciprocal %83 {approx = true} : vector<128x1xf32> -> vector<128x1xf32>
    %85 = vector.broadcast %84 : vector<128x1xf32> to vector<128x128xf32>
    %86 = arith.mulf %81, %85 : vector<128x128xf32>
    %87 = arith.truncf %86 : vector<128x128xf32> to vector<128x128xbf16>
    %88 = vector.extract_strided_slice %52 {offsets = [0, 32], sizes = [128, 32], strides = [1, 1]} : vector<128x128xbf16> to vector<128x32xbf16>
    %cst_31 = arith.constant dense<0.000000e+00> : vector<128x32xf32>
    %89 = tpu.matmul %87, %88, %cst_31 {dimension_numbers = #tpu.dot_dimension_numbers<[1], [0], [0], [1], [0, 0, 1, 1], [], []>} : vector<128x128xbf16>, vector<128x32xbf16>, vector<128x32xf32> -> vector<128x32xf32>
    %90 = arith.truncf %89 : vector<128x32xf32> to vector<128x32xbf16>
    %91 = vector.extract_strided_slice %48 {offsets = [0, 64], sizes = [128, 32], strides = [1, 1]} : vector<128x128xbf16> to vector<128x32xbf16>
    %92 = vector.extract_strided_slice %50 {offsets = [0, 64], sizes = [128, 32], strides = [1, 1]} : vector<128x128xbf16> to vector<128x32xbf16>
    %cst_32 = arith.constant dense<0.000000e+00> : vector<128x128xf32>
    %93 = tpu.matmul %91, %92, %cst_32 {dimension_numbers = #tpu.dot_dimension_numbers<[1], [1], [0], [0], [0, 0, 1, 0], [], []>} : vector<128x32xbf16>, vector<128x32xbf16>, vector<128x128xf32> -> vector<128x128xf32>
    %94 = vector.broadcast %46 : vector<1x128xf32> to vector<128x128xf32>
    %95 = arith.addf %93, %94 : vector<128x128xf32>
    %cst_33 = arith.constant dense<0xFF800000> : vector<128xf32>
    %96 = vector.multi_reduction <maximumf>, %95, %cst_33 [1] : vector<128x128xf32> to vector<128xf32>
    %97 = vector.shape_cast %96 : vector<128xf32> to vector<128x1xf32>
    %98 = vector.broadcast %97 : vector<128x1xf32> to vector<128x128xf32>
    %99 = arith.subf %95, %98 : vector<128x128xf32>
    %100 = math.exp %99 : vector<128x128xf32>
    %cst_34 = arith.constant dense<0.000000e+00> : vector<128xf32>
    %101 = vector.multi_reduction <add>, %100, %cst_34 [1] : vector<128x128xf32> to vector<128xf32>
    %102 = vector.shape_cast %101 : vector<128xf32> to vector<128x1xf32>
    %103 = tpu.reciprocal %102 {approx = true} : vector<128x1xf32> -> vector<128x1xf32>
    %104 = vector.broadcast %103 : vector<128x1xf32> to vector<128x128xf32>
    %105 = arith.mulf %100, %104 : vector<128x128xf32>
    %106 = arith.truncf %105 : vector<128x128xf32> to vector<128x128xbf16>
    %107 = vector.extract_strided_slice %52 {offsets = [0, 64], sizes = [128, 32], strides = [1, 1]} : vector<128x128xbf16> to vector<128x32xbf16>
    %cst_35 = arith.constant dense<0.000000e+00> : vector<128x32xf32>
    %108 = tpu.matmul %106, %107, %cst_35 {dimension_numbers = #tpu.dot_dimension_numbers<[1], [0], [0], [1], [0, 0, 1, 1], [], []>} : vector<128x128xbf16>, vector<128x32xbf16>, vector<128x32xf32> -> vector<128x32xf32>
    %109 = arith.truncf %108 : vector<128x32xf32> to vector<128x32xbf16>
    %110 = vector.extract_strided_slice %48 {offsets = [0, 96], sizes = [128, 32], strides = [1, 1]} : vector<128x128xbf16> to vector<128x32xbf16>
    %111 = vector.extract_strided_slice %50 {offsets = [0, 96], sizes = [128, 32], strides = [1, 1]} : vector<128x128xbf16> to vector<128x32xbf16>
    %cst_36 = arith.constant dense<0.000000e+00> : vector<128x128xf32>
    %112 = tpu.matmul %110, %111, %cst_36 {dimension_numbers = #tpu.dot_dimension_numbers<[1], [1], [0], [0], [0, 0, 1, 0], [], []>} : vector<128x32xbf16>, vector<128x32xbf16>, vector<128x128xf32> -> vector<128x128xf32>
    %113 = vector.broadcast %46 : vector<1x128xf32> to vector<128x128xf32>
    %114 = arith.addf %112, %113 : vector<128x128xf32>
    %cst_37 = arith.constant dense<0xFF800000> : vector<128xf32>
    %115 = vector.multi_reduction <maximumf>, %114, %cst_37 [1] : vector<128x128xf32> to vector<128xf32>
    %116 = vector.shape_cast %115 : vector<128xf32> to vector<128x1xf32>
    %117 = vector.broadcast %116 : vector<128x1xf32> to vector<128x128xf32>
    %118 = arith.subf %114, %117 : vector<128x128xf32>
    %119 = math.exp %118 : vector<128x128xf32>
    %cst_38 = arith.constant dense<0.000000e+00> : vector<128xf32>
    %120 = vector.multi_reduction <add>, %119, %cst_38 [1] : vector<128x128xf32> to vector<128xf32>
    %121 = vector.shape_cast %120 : vector<128xf32> to vector<128x1xf32>
    %122 = tpu.reciprocal %121 {approx = true} : vector<128x1xf32> -> vector<128x1xf32>
    %123 = vector.broadcast %122 : vector<128x1xf32> to vector<128x128xf32>
    %124 = arith.mulf %119, %123 : vector<128x128xf32>
    %125 = arith.truncf %124 : vector<128x128xf32> to vector<128x128xbf16>
    %126 = vector.extract_strided_slice %52 {offsets = [0, 96], sizes = [128, 32], strides = [1, 1]} : vector<128x128xbf16> to vector<128x32xbf16>
    %cst_39 = arith.constant dense<0.000000e+00> : vector<128x32xf32>
    %127 = tpu.matmul %125, %126, %cst_39 {dimension_numbers = #tpu.dot_dimension_numbers<[1], [0], [0], [1], [0, 0, 1, 1], [], []>} : vector<128x128xbf16>, vector<128x32xbf16>, vector<128x32xf32> -> vector<128x32xf32>
    %128 = arith.truncf %127 : vector<128x32xf32> to vector<128x32xbf16>
    %129 = tpu.concatenate %71, %90, %109, %128 in 1 : vector<128x32xbf16>, vector<128x32xbf16>, vector<128x32xbf16>, vector<128x32xbf16> -> vector<128x128xbf16>
    %c0_40 = arith.constant 0 : index
    %c0_41 = arith.constant 0 : index
    %130 = vector.load %arg22[%c0_40, %c0_41] : memref<128x128xbf16, #tpu.memory_space<vmem>>, vector<128x128xbf16>
    tpu.vector_store %arg22[%c0_40, %c0_41], %129 {strides = array<i32>} : memref<128x128xbf16, #tpu.memory_space<vmem>>, vector<128x128xbf16>,
    %c0_42 = arith.constant 0 : index
    %c0_43 = arith.constant 0 : index
    %131 = vector.load %arg22[%c0_42, %c0_43] : memref<128x128xbf16, #tpu.memory_space<vmem>>, vector<128x128xbf16>
    %c0_44 = arith.constant 0 : index
    %c0_45 = arith.constant 0 : index
    %132 = vector.load %arg9[%c0_44, %c0_45] : memref<128x128xbf16, #tpu.memory_space<vmem>>, vector<128x128xbf16>
    %cst_46 = arith.constant dense<0.000000e+00> : vector<128x128xf32>
    %133 = tpu.matmul %131, %132, %cst_46 {dimension_numbers = #tpu.dot_dimension_numbers<[1], [0], [0], [1], [0, 0, 1, 1], [], []>} : vector<128x128xbf16>, vector<128x128xbf16>, vector<128x128xf32> -> vector<128x128xf32>
    %c0_47 = arith.constant 0 : index
    %c0_48 = arith.constant 0 : index
    %134 = vector.load %arg10[%c0_47, %c0_48] : memref<1x128xf32, #tpu.memory_space<vmem>>, vector<1x128xf32>
    %135 = vector.broadcast %134 : vector<1x128xf32> to vector<128x128xf32>
    %136 = arith.addf %133, %135 : vector<128x128xf32>
    %137 = arith.addf %10, %136 : vector<128x128xf32>
    %c0_49 = arith.constant 0 : index
    %c0_50 = arith.constant 0 : index
    %138 = vector.load %arg11[%c0_49, %c0_50] : memref<1x128xf32, #tpu.memory_space<vmem>>, vector<1x128xf32>
    %c0_51 = arith.constant 0 : index
    %c0_52 = arith.constant 0 : index
    %139 = vector.load %arg12[%c0_51, %c0_52] : memref<1x128xf32, #tpu.memory_space<vmem>>, vector<1x128xf32>
    %cst_53 = arith.constant dense<0.000000e+00> : vector<128xf32>
    %140 = vector.multi_reduction <add>, %137, %cst_53 [1] : vector<128x128xf32> to vector<128xf32>
    %141 = vector.shape_cast %140 : vector<128xf32> to vector<128x1xf32>
    %cst_54 = arith.constant 1.280000e+02 : f32
    %142 = vector.broadcast %cst_54 : f32 to vector<128x1xf32>
    %143 = arith.divf %141, %142 : vector<128x1xf32>
    %144 = vector.broadcast %143 : vector<128x1xf32> to vector<128x128xf32>
    %145 = arith.subf %137, %144 : vector<128x128xf32>
    %146 = arith.mulf %145, %145 : vector<128x128xf32>
    %cst_55 = arith.constant dense<0.000000e+00> : vector<128xf32>
    %147 = vector.multi_reduction <add>, %146, %cst_55 [1] : vector<128x128xf32> to vector<128xf32>
    %148 = vector.shape_cast %147 : vector<128xf32> to vector<128x1xf32>
    %cst_56 = arith.constant 1.280000e+02 : f32
    %149 = vector.broadcast %cst_56 : f32 to vector<128x1xf32>
    %150 = arith.divf %148, %149 : vector<128x1xf32>
    %151 = vector.broadcast %143 : vector<128x1xf32> to vector<128x128xf32>
    %152 = arith.subf %137, %151 : vector<128x128xf32>
    %cst_57 = arith.constant 9.99999997E-7 : f32
    %153 = vector.broadcast %cst_57 : f32 to vector<128x1xf32>
    %154 = arith.addf %150, %153 : vector<128x1xf32>
    %155 = math.rsqrt %154 : vector<128x1xf32>
    %156 = vector.broadcast %155 : vector<128x1xf32> to vector<128x128xf32>
    %157 = arith.mulf %152, %156 : vector<128x128xf32>
    %158 = vector.broadcast %138 : vector<1x128xf32> to vector<128x128xf32>
    %159 = arith.mulf %157, %158 : vector<128x128xf32>
    %160 = vector.broadcast %139 : vector<1x128xf32> to vector<128x128xf32>
    %161 = arith.addf %159, %160 : vector<128x128xf32>
    %162 = arith.truncf %161 : vector<128x128xf32> to vector<128x128xbf16>
    %c0_58 = arith.constant 0 : index
    %c0_59 = arith.constant 0 : index
    %163 = vector.load %arg13[%c0_58, %c0_59] : memref<128x512xbf16, #tpu.memory_space<vmem>>, vector<128x512xbf16>
    %cst_60 = arith.constant dense<0.000000e+00> : vector<128x512xf32>
    %164 = tpu.matmul %162, %163, %cst_60 {dimension_numbers = #tpu.dot_dimension_numbers<[1], [0], [0], [1], [0, 0, 1, 1], [], []>} : vector<128x128xbf16>, vector<128x512xbf16>, vector<128x512xf32> -> vector<128x512xf32>
    %c0_61 = arith.constant 0 : index
    %c0_62 = arith.constant 0 : index
    %165 = vector.load %arg14[%c0_61, %c0_62] : memref<1x512xf32, #tpu.memory_space<vmem>>, vector<1x512xf32>
    %166 = vector.broadcast %165 : vector<1x512xf32> to vector<128x512xf32>
    %167 = arith.addf %164, %166 : vector<128x512xf32>
    %cst_63 = arith.constant 5.000000e-01 : f32
    %168 = vector.broadcast %cst_63 : f32 to vector<128x512xf32>
    %169 = arith.mulf %168, %167 : vector<128x512xf32>
    %cst_64 = arith.constant 4.471500e-02 : f32
    %170 = vector.broadcast %cst_64 : f32 to vector<128x512xf32>
    %171 = arith.mulf %170, %167 : vector<128x512xf32>
    %172 = arith.mulf %171, %167 : vector<128x512xf32>
    %173 = arith.mulf %172, %167 : vector<128x512xf32>
    %174 = arith.addf %167, %173 : vector<128x512xf32>
    %cst_65 = arith.constant 0.797884583 : f32
    %175 = vector.broadcast %cst_65 : f32 to vector<128x512xf32>
    %176 = arith.mulf %175, %174 : vector<128x512xf32>
    %177 = math.tanh %176 : vector<128x512xf32>
    %cst_66 = arith.constant 1.000000e+00 : f32
    %178 = vector.broadcast %cst_66 : f32 to vector<128x512xf32>
    %179 = arith.addf %178, %177 : vector<128x512xf32>
    %180 = arith.mulf %169, %179 : vector<128x512xf32>
    %181 = arith.truncf %180 : vector<128x512xf32> to vector<128x512xbf16>
    %c0_67 = arith.constant 0 : index
    %c0_68 = arith.constant 0 : index
    %182 = vector.load %arg15[%c0_67, %c0_68] : memref<512x128xbf16, #tpu.memory_space<vmem>>, vector<512x128xbf16>
    %cst_69 = arith.constant dense<0.000000e+00> : vector<128x128xf32>
    %183 = tpu.matmul %181, %182, %cst_69 {dimension_numbers = #tpu.dot_dimension_numbers<[1], [0], [0], [1], [0, 0, 1, 1], [], []>} : vector<128x512xbf16>, vector<512x128xbf16>, vector<128x128xf32> -> vector<128x128xf32>
    %c0_70 = arith.constant 0 : index
    %c0_71 = arith.constant 0 : index
    %184 = vector.load %arg16[%c0_70, %c0_71] : memref<1x128xf32, #tpu.memory_space<vmem>>, vector<1x128xf32>
    %185 = vector.broadcast %184 : vector<1x128xf32> to vector<128x128xf32>
    %186 = arith.addf %183, %185 : vector<128x128xf32>
    %187 = arith.addf %137, %186 : vector<128x128xf32>
    %c0_72 = arith.constant 0 : index
    %c0_73 = arith.constant 0 : index
    %188 = vector.load %arg17[%c0_72, %c0_73] : memref<1x128xf32, #tpu.memory_space<vmem>>, vector<1x128xf32>
    %c0_74 = arith.constant 0 : index
    %c0_75 = arith.constant 0 : index
    %189 = vector.load %arg18[%c0_74, %c0_75] : memref<1x128xf32, #tpu.memory_space<vmem>>, vector<1x128xf32>
    %cst_76 = arith.constant dense<0.000000e+00> : vector<128xf32>
    %190 = vector.multi_reduction <add>, %187, %cst_76 [1] : vector<128x128xf32> to vector<128xf32>
    %191 = vector.shape_cast %190 : vector<128xf32> to vector<128x1xf32>
    %cst_77 = arith.constant 1.280000e+02 : f32
    %192 = vector.broadcast %cst_77 : f32 to vector<128x1xf32>
    %193 = arith.divf %191, %192 : vector<128x1xf32>
    %194 = vector.broadcast %193 : vector<128x1xf32> to vector<128x128xf32>
    %195 = arith.subf %187, %194 : vector<128x128xf32>
    %196 = arith.mulf %195, %195 : vector<128x128xf32>
    %cst_78 = arith.constant dense<0.000000e+00> : vector<128xf32>
    %197 = vector.multi_reduction <add>, %196, %cst_78 [1] : vector<128x128xf32> to vector<128xf32>
    %198 = vector.shape_cast %197 : vector<128xf32> to vector<128x1xf32>
    %cst_79 = arith.constant 1.280000e+02 : f32
    %199 = vector.broadcast %cst_79 : f32 to vector<128x1xf32>
    %200 = arith.divf %198, %199 : vector<128x1xf32>
    %201 = vector.broadcast %193 : vector<128x1xf32> to vector<128x128xf32>
    %202 = arith.subf %187, %201 : vector<128x128xf32>
    %cst_80 = arith.constant 9.99999997E-7 : f32
    %203 = vector.broadcast %cst_80 : f32 to vector<128x1xf32>
    %204 = arith.addf %200, %203 : vector<128x1xf32>
    %205 = math.rsqrt %204 : vector<128x1xf32>
    %206 = vector.broadcast %205 : vector<128x1xf32> to vector<128x128xf32>
    %207 = arith.mulf %202, %206 : vector<128x128xf32>
    %208 = vector.broadcast %188 : vector<1x128xf32> to vector<128x128xf32>
    %209 = arith.mulf %207, %208 : vector<128x128xf32>
    %210 = vector.broadcast %189 : vector<1x128xf32> to vector<128x128xf32>
    %211 = arith.addf %209, %210 : vector<128x128xf32>
    %212 = vector.extract_strided_slice %211 {offsets = [0, 0], sizes = [4, 128], strides = [1, 1]} : vector<128x128xf32> to vector<4x128xf32>
    %c0_81 = arith.constant 0 : index
    %c0_82 = arith.constant 0 : index
    %213 = vector.load %arg19[%c0_81, %c0_82] : memref<4x128xf32, #tpu.memory_space<vmem>>, vector<4x128xf32>
    %214 = arith.mulf %212, %213 : vector<4x128xf32>
    %cst_83 = arith.constant dense<0.000000e+00> : vector<4xf32>
    %215 = vector.multi_reduction <add>, %214, %cst_83 [1] : vector<4x128xf32> to vector<4xf32>
    %216 = vector.shape_cast %215 : vector<4xf32> to vector<4x1xf32>
    %c0_84 = arith.constant 0 : index
    %c0_85 = arith.constant 0 : index
    %217 = vector.load %arg20[%c0_84, %c0_85] : memref<4x1xf32, #tpu.memory_space<vmem>>, vector<4x1xf32>
    %218 = arith.addf %216, %217 : vector<4x1xf32>
    %c0_86 = arith.constant 0 : index
    %c0_87 = arith.constant 0 : index
    %c0_88 = arith.constant 0 : index
    %219 = vector.load %arg21[%c0_86, %c0_87, %c0_88] : memref<1x4x1xf32, #tpu.memory_space<vmem>>, vector<1x4x1xf32>
    %220 = vector.shape_cast %219 : vector<1x4x1xf32> to vector<4x1xf32>
    %221 = vector.shape_cast %218 : vector<4x1xf32> to vector<1x4x1xf32>
    tpu.vector_store %arg21[%c0_86, %c0_87, %c0_88], %221 {strides = array<i32>} : memref<1x4x1xf32, #tpu.memory_space<vmem>>, vector<1x4x1xf32>,
    return
  }
  func.func @transform_0(%arg0: i32) -> (i32, i32, i32) {
    %c0_i32 = arith.constant 0 : i32
    %c0_i32_0 = arith.constant 0 : i32
    %c0_i32_1 = arith.constant 0 : i32
    return %arg0, %c0_i32, %c0_i32_0 : i32, i32, i32
  }
  func.func @transform_1(%arg0: i32) -> (i32, i32) {
    %c0_i32 = arith.constant 0 : i32
    %c0_i32_0 = arith.constant 0 : i32
    %c0_i32_1 = arith.constant 0 : i32
    return %c0_i32, %c0_i32_0 : i32, i32
  }
  func.func @transform_2(%arg0: i32) -> (i32, i32) {
    %c0_i32 = arith.constant 0 : i32
    %c0_i32_0 = arith.constant 0 : i32
    %c0_i32_1 = arith.constant 0 : i32
    return %c0_i32, %c0_i32_0 : i32, i32
  }
  func.func @transform_3(%arg0: i32) -> (i32, i32) {
    %c0_i32 = arith.constant 0 : i32
    %c0_i32_0 = arith.constant 0 : i32
    %c0_i32_1 = arith.constant 0 : i32
    return %c0_i32, %c0_i32_0 : i32, i32
  }
  func.func @transform_4(%arg0: i32) -> (i32, i32) {
    %c0_i32 = arith.constant 0 : i32
    %c0_i32_0 = arith.constant 0 : i32
    %c0_i32_1 = arith.constant 0 : i32
    return %c0_i32, %c0_i32_0 : i32, i32
  }
  func.func @transform_5(%arg0: i32) -> (i32, i32) {
    %c0_i32 = arith.constant 0 : i32
    %c0_i32_0 = arith.constant 0 : i32
    %c0_i32_1 = arith.constant 0 : i32
    return %c0_i32, %c0_i32_0 : i32, i32
  }
  func.func @transform_6(%arg0: i32) -> (i32, i32) {
    %c0_i32 = arith.constant 0 : i32
    %c0_i32_0 = arith.constant 0 : i32
    %c0_i32_1 = arith.constant 0 : i32
    return %c0_i32, %c0_i32_0 : i32, i32
  }
  func.func @transform_7(%arg0: i32) -> (i32, i32) {
    %c0_i32 = arith.constant 0 : i32
    %c0_i32_0 = arith.constant 0 : i32
    %c0_i32_1 = arith.constant 0 : i32
    return %c0_i32, %c0_i32_0 : i32, i32
  }
  func.func @transform_8(%arg0: i32) -> (i32, i32) {
    %c0_i32 = arith.constant 0 : i32
    %c0_i32_0 = arith.constant 0 : i32
    %c0_i32_1 = arith.constant 0 : i32
    return %c0_i32, %c0_i32_0 : i32, i32
  }
  func.func @transform_9(%arg0: i32) -> (i32, i32) {
    %c0_i32 = arith.constant 0 : i32
    %c0_i32_0 = arith.constant 0 : i32
    %c0_i32_1 = arith.constant 0 : i32
    return %c0_i32, %c0_i32_0 : i32, i32
  }
  func.func @transform_10(%arg0: i32) -> (i32, i32) {
    %c0_i32 = arith.constant 0 : i32
    %c0_i32_0 = arith.constant 0 : i32
    %c0_i32_1 = arith.constant 0 : i32
    return %c0_i32, %c0_i32_0 : i32, i32
  }
  func.func @transform_11(%arg0: i32) -> (i32, i32) {
    %c0_i32 = arith.constant 0 : i32
    %c0_i32_0 = arith.constant 0 : i32
    %c0_i32_1 = arith.constant 0 : i32
    return %c0_i32, %c0_i32_0 : i32, i32
  }
  func.func @transform_12(%arg0: i32) -> (i32, i32) {
    %c0_i32 = arith.constant 0 : i32
    %c0_i32_0 = arith.constant 0 : i32
    %c0_i32_1 = arith.constant 0 : i32
    return %c0_i32, %c0_i32_0 : i32, i32
  }
  func.func @transform_13(%arg0: i32) -> (i32, i32) {
    %c0_i32 = arith.constant 0 : i32
    %c0_i32_0 = arith.constant 0 : i32
    %c0_i32_1 = arith.constant 0 : i32
    return %c0_i32, %c0_i32_0 : i32, i32
  }
  func.func @transform_14(%arg0: i32) -> (i32, i32) {
    %c0_i32 = arith.constant 0 : i32
    %c0_i32_0 = arith.constant 0 : i32
    %c0_i32_1 = arith.constant 0 : i32
    return %c0_i32, %c0_i32_0 : i32, i32
  }
  func.func @transform_15(%arg0: i32) -> (i32, i32) {
    %c0_i32 = arith.constant 0 : i32
    %c0_i32_0 = arith.constant 0 : i32
    %c0_i32_1 = arith.constant 0 : i32
    return %c0_i32, %c0_i32_0 : i32, i32
  }
  func.func @transform_16(%arg0: i32) -> (i32, i32) {
    %c0_i32 = arith.constant 0 : i32
    %c0_i32_0 = arith.constant 0 : i32
    %c0_i32_1 = arith.constant 0 : i32
    return %c0_i32, %c0_i32_0 : i32, i32
  }
  func.func @transform_17(%arg0: i32) -> (i32, i32) {
    %c0_i32 = arith.constant 0 : i32
    %c0_i32_0 = arith.constant 0 : i32
    %c0_i32_1 = arith.constant 0 : i32
    return %c0_i32, %c0_i32_0 : i32, i32
  }
  func.func @transform_18(%arg0: i32) -> (i32, i32) {
    %c0_i32 = arith.constant 0 : i32
    %c0_i32_0 = arith.constant 0 : i32
    %c0_i32_1 = arith.constant 0 : i32
    return %c0_i32, %c0_i32_0 : i32, i32
  }
  func.func @transform_19(%arg0: i32) -> (i32, i32) {
    %c0_i32 = arith.constant 0 : i32
    %c0_i32_0 = arith.constant 0 : i32
    %c0_i32_1 = arith.constant 0 : i32
    return %c0_i32, %c0_i32_0 : i32, i32
  }
  func.func @transform_20(%arg0: i32) -> (i32, i32, i32) {
    %c0_i32 = arith.constant 0 : i32
    %c0_i32_0 = arith.constant 0 : i32
    %c0_i32_1 = arith.constant 0 : i32
    return %arg0, %c0_i32, %c0_i32_0 : i32, i32, i32
  }
}

</mosaic_0001>

<llo_original>
// kernel: transformer_classifier_forward.3
$region0: #{transformer_classifier_forward.3}
  #allocation0 [shape = 'u32[]', space=smem, size = 0x4, offset = 0x4, fixed_abs, tag = 'smem constant byte address 0x4 - core index']
  #allocation1 [shape = 'u32[144,128]{1,0:T(1,128)}', space=vmem, size = 0x12000, scoped, tag = 'internal scratch']
  #allocation2 [shape = 'bf16[128,128]{1,0:T(16,128)(2,1)}', space=vmem, size = 0x8000, scoped, tag = 'scratch operand']
  %s0 = inlined_call_operand.vmem [shape: f32[2,4,128], index: 0, kind: input, shape index: {}]
  %s1 = inlined_call_operand.vmem [shape: f32[4,128], index: 1, kind: input, shape index: {}]
  %s2 = inlined_call_operand.vmem [shape: f32[1,128], index: 2, kind: input, shape index: {}]
  %s3 = inlined_call_operand.vmem [shape: f32[1,128], index: 3, kind: input, shape index: {}]
  %s4 = inlined_call_operand.vmem [shape: f32[1,128], index: 4, kind: input, shape index: {}]
  %s5 = inlined_call_operand.vmem [shape: f32[1,128], index: 5, kind: input, shape index: {}]
  %s6 = inlined_call_operand.vmem [shape: bf16[128,384], index: 6, kind: input, shape index: {}]
  %s7 = inlined_call_operand.vmem [shape: f32[1,384], index: 7, kind: input, shape index: {}]
  %s8 = inlined_call_operand.vmem [shape: bf16[128,128], index: 8, kind: input, shape index: {}]
  %s9 = inlined_call_operand.vmem [shape: f32[1,128], index: 9, kind: input, shape index: {}]
  %s10 = inlined_call_operand.vmem [shape: f32[1,128], index: 10, kind: input, shape index: {}]
  %s11 = inlined_call_operand.vmem [shape: f32[1,128], index: 11, kind: input, shape index: {}]
  %s12 = inlined_call_operand.vmem [shape: bf16[128,512], index: 12, kind: input, shape index: {}]
  %s13 = inlined_call_operand.vmem [shape: f32[1,512], index: 13, kind: input, shape index: {}]
  %s14 = inlined_call_operand.vmem [shape: bf16[512,128], index: 14, kind: input, shape index: {}]
  %s15 = inlined_call_operand.vmem [shape: f32[1,128], index: 15, kind: input, shape index: {}]
  %s16 = inlined_call_operand.vmem [shape: f32[1,128], index: 16, kind: input, shape index: {}]
  %s17 = inlined_call_operand.vmem [shape: f32[1,128], index: 17, kind: input, shape index: {}]
  %s18 = inlined_call_operand.vmem [shape: f32[4,128], index: 18, kind: input, shape index: {}]
  %s19 = inlined_call_operand.vmem [shape: f32[4,1], index: 19, kind: input, shape index: {}]
  %s20 = inlined_call_operand.vmem [shape: f32[2,4,1], index: 20, kind: output, shape index: {}]
  %s21 = sld [smem:[#allocation0]]
  $region113: #{transformer_classifier_forward.3} parent=0
    _
  %s23 = ssub.s32 1, %s21
  %s24 = scalar_select 0, %s23, %s21
  loop: start=0, step=1, limit=4
  $region2: #{transformer_classifier_forward.3} parent=0 // loop_pre_header
    _
  $region3: #{transformer_classifier_forward.3} parent=0 // loop_header
    %s26 = sphi 0, %s30
    %p27 = scmp.ge.s32.totalorder %s26, 4
    %s36 = sphi 0, %s38
    %s39 = sphi 0, %s36
    %s40 = sphi 0, %s39
    %s56 = sphi 0, %s40
    %s60 = sphi 0, %s60
    %s62 = sphi 0, %s60
    %s63 = sphi 0, %s62
    %s77 = sphi 0, %s63
    %s81 = sphi 0, %s81
    %s83 = sphi 0, %s81
    %s84 = sphi 0, %s83
    %s98 = sphi 0, %s84
    %s102 = sphi 0, %s102
    %s104 = sphi 0, %s102
    %s105 = sphi 0, %s104
    %s119 = sphi 0, %s105
    %s123 = sphi 0, %s123
    %s125 = sphi 0, %s123
    %s126 = sphi 0, %s125
    %s140 = sphi 0, %s126
    %s144 = sphi 0, %s144
    %s146 = sphi 0, %s144
    %s147 = sphi 0, %s146
    %s161 = sphi 0, %s147
    %s165 = sphi 0, %s165
    %s167 = sphi 0, %s165
    %s168 = sphi 0, %s167
    %s182 = sphi 0, %s168
    %s186 = sphi 0, %s186
    %s188 = sphi 0, %s186
    %s189 = sphi 0, %s188
    %s203 = sphi 0, %s189
    %s207 = sphi 0, %s207
    %s209 = sphi 0, %s207
    %s210 = sphi 0, %s209
    %s224 = sphi 0, %s210
    %s228 = sphi 0, %s228
    %s230 = sphi 0, %s228
    %s231 = sphi 0, %s230
    %s245 = sphi 0, %s231
    %s249 = sphi 0, %s249
    %s251 = sphi 0, %s249
    %s252 = sphi 0, %s251
    %s266 = sphi 0, %s252
    %s270 = sphi 0, %s270
    %s272 = sphi 0, %s270
    %s273 = sphi 0, %s272
    %s287 = sphi 0, %s273
    %s291 = sphi 0, %s291
    %s293 = sphi 0, %s291
    %s294 = sphi 0, %s293
    %s308 = sphi 0, %s294
    %s312 = sphi 0, %s312
    %s314 = sphi 0, %s312
    %s315 = sphi 0, %s314
    %s329 = sphi 0, %s315
    %s333 = sphi 0, %s333
    %s335 = sphi 0, %s333
    %s336 = sphi 0, %s335
    %s350 = sphi 0, %s336
    %s354 = sphi 0, %s354
    %s356 = sphi 0, %s354
    %s357 = sphi 0, %s356
    %s371 = sphi 0, %s357
    %s375 = sphi 0, %s375
    %s377 = sphi 0, %s375
    %s378 = sphi 0, %s377
    %s392 = sphi 0, %s378
    %s396 = sphi 0, %s396
    %s398 = sphi 0, %s396
    %s399 = sphi 0, %s398
    %s413 = sphi 0, %s399
    %s417 = sphi 0, %s417
    %s419 = sphi 0, %s417
    %s420 = sphi 0, %s419
    %s434 = sphi 0, %s420
    %s438 = sphi 0, %s438
    %s440 = sphi 0, %s438
    %s441 = sphi 0, %s440
    %s455 = sphi 0, %s441
    %s461 = sphi 0, %s463
    %s464 = sphi 0, %s461
    %s465 = sphi 0, %s464
    %s481 = sphi 0, %s465
  $region4: #{transformer_classifier_forward.3} parent=0 // loop_header_branch
    %29 = sbr.rel (%p27) target = $region8
  $region5: #{transformer_classifier_forward.3} parent=0 // loop_body
    %s31 = ssub.s32 %s26, 1
    %s32 = ssub.s32 %s26, 2
    %s33 = sadd.s32 %s26, 1
    %s34 = ssub.s32 %s26, %s33
    %p35 = scmp.eq.s32.totalorder %s34, 0
    %s37 = sadd.s32 %s36, 1
    %s38 = scalar_select %p35, %s36, %s37
    %p41 = pneg %p35
    %p42 = scmp.eq.s32.totalorder %s26, 1
    %p43 = por %p41, %p42
    %p44 = scmp.ne.s32.totalorder %s36, %s39
    %p45 = scmp.eq.s32.totalorder %s26, 0
    %p46 = por %p44, %p45
    %p47 = scmp.ne.s32.totalorder %s36, %s39
    %p48 = scmp.eq.s32.totalorder %s31, 1
    %p49 = por %p47, %p48
    %p50 = scmp.ne.s32.totalorder %s39, %s40
    %p51 = scmp.eq.s32.totalorder %s31, 0
    %p52 = por %p50, %p51
    %p53 = scmp.ne.s32.totalorder %s39, %s40
    %p54 = scmp.eq.s32.totalorder %s32, 1
    %p55 = por %p53, %p54
    %p57 = scmp.ne.s32.totalorder %s40, %s56
    %p58 = scmp.eq.s32.totalorder %s32, 0
    %p59 = por %p57, %p58
    %s61 = sadd.s32 %s60, 1
    %p64 = scmp.eq.s32.totalorder %s26, 1
    %p65 = scmp.ne.s32.totalorder %s60, %s62
    %p66 = scmp.eq.s32.totalorder %s26, 0
    %p67 = por %p65, %p66
    %p68 = scmp.ne.s32.totalorder %s60, %s62
    %p69 = scmp.eq.s32.totalorder %s31, 1
    %p70 = por %p68, %p69
    %p71 = scmp.ne.s32.totalorder %s62, %s63
    %p72 = scmp.eq.s32.totalorder %s31, 0
    %p73 = por %p71, %p72
    %p74 = scmp.ne.s32.totalorder %s62, %s63
    %p75 = scmp.eq.s32.totalorder %s32, 1
    %p76 = por %p74, %p75
    %p78 = scmp.ne.s32.totalorder %s63, %s77
    %p79 = scmp.eq.s32.totalorder %s32, 0
    %p80 = por %p78, %p79
    %s82 = sadd.s32 %s81, 1
    %p85 = scmp.eq.s32.totalorder %s26, 1
    %p86 = scmp.ne.s32.totalorder %s81, %s83
    %p87 = scmp.eq.s32.totalorder %s26, 0
    %p88 = por %p86, %p87
    %p89 = scmp.ne.s32.totalorder %s81, %s83
    %p90 = scmp.eq.s32.totalorder %s31, 1
    %p91 = por %p89, %p90
    %p92 = scmp.ne.s32.totalorder %s83, %s84
    %p93 = scmp.eq.s32.totalorder %s31, 0
    %p94 = por %p92, %p93
    %p95 = scmp.ne.s32.totalorder %s83, %s84
    %p96 = scmp.eq.s32.totalorder %s32, 1
    %p97 = por %p95, %p96
    %p99 = scmp.ne.s32.totalorder %s84, %s98
    %p100 = scmp.eq.s32.totalorder %s32, 0
    %p101 = por %p99, %p100
    %s103 = sadd.s32 %s102, 1
    %p106 = scmp.eq.s32.totalorder %s26, 1
    %p107 = scmp.ne.s32.totalorder %s102, %s104
    %p108 = scmp.eq.s32.totalorder %s26, 0
    %p109 = por %p107, %p108
    %p110 = scmp.ne.s32.totalorder %s102, %s104
    %p111 = scmp.eq.s32.totalorder %s31, 1
    %p112 = por %p110, %p111
    %p113 = scmp.ne.s32.totalorder %s104, %s105
    %p114 = scmp.eq.s32.totalorder %s31, 0
    %p115 = por %p113, %p114
    %p116 = scmp.ne.s32.totalorder %s104, %s105
    %p117 = scmp.eq.s32.totalorder %s32, 1
    %p118 = por %p116, %p117
    %p120 = scmp.ne.s32.totalorder %s105, %s119
    %p121 = scmp.eq.s32.totalorder %s32, 0
    %p122 = por %p120, %p121
    %s124 = sadd.s32 %s123, 1
    %p127 = scmp.eq.s32.totalorder %s26, 1
    %p128 = scmp.ne.s32.totalorder %s123, %s125
    %p129 = scmp.eq.s32.totalorder %s26, 0
    %p130 = por %p128, %p129
    %p131 = scmp.ne.s32.totalorder %s123, %s125
    %p132 = scmp.eq.s32.totalorder %s31, 1
    %p133 = por %p131, %p132
    %p134 = scmp.ne.s32.totalorder %s125, %s126
    %p135 = scmp.eq.s32.totalorder %s31, 0
    %p136 = por %p134, %p135
    %p137 = scmp.ne.s32.totalorder %s125, %s126
    %p138 = scmp.eq.s32.totalorder %s32, 1
    %p139 = por %p137, %p138
    %p141 = scmp.ne.s32.totalorder %s126, %s140
    %p142 = scmp.eq.s32.totalorder %s32, 0
    %p143 = por %p141, %p142
    %s145 = sadd.s32 %s144, 1
    %p148 = scmp.eq.s32.totalorder %s26, 1
    %p149 = scmp.ne.s32.totalorder %s144, %s146
    %p150 = scmp.eq.s32.totalorder %s26, 0
    %p151 = por %p149, %p150
    %p152 = scmp.ne.s32.totalorder %s144, %s146
    %p153 = scmp.eq.s32.totalorder %s31, 1
    %p154 = por %p152, %p153
    %p155 = scmp.ne.s32.totalorder %s146, %s147
    %p156 = scmp.eq.s32.totalorder %s31, 0
    %p157 = por %p155, %p156
    %p158 = scmp.ne.s32.totalorder %s146, %s147
    %p159 = scmp.eq.s32.totalorder %s32, 1
    %p160 = por %p158, %p159
    %p162 = scmp.ne.s32.totalorder %s147, %s161
    %p163 = scmp.eq.s32.totalorder %s32, 0
    %p164 = por %p162, %p163
    %s166 = sadd.s32 %s165, 1
    %p169 = scmp.eq.s32.totalorder %s26, 1
    %p170 = scmp.ne.s32.totalorder %s165, %s167
    %p171 = scmp.eq.s32.totalorder %s26, 0
    %p172 = por %p170, %p171
    %p173 = scmp.ne.s32.totalorder %s165, %s167
    %p174 = scmp.eq.s32.totalorder %s31, 1
    %p175 = por %p173, %p174
    %p176 = scmp.ne.s32.totalorder %s167, %s168
    %p177 = scmp.eq.s32.totalorder %s31, 0
    %p178 = por %p176, %p177
    %p179 = scmp.ne.s32.totalorder %s167, %s168
    %p180 = scmp.eq.s32.totalorder %s32, 1
    %p181 = por %p179, %p180
    %p183 = scmp.ne.s32.totalorder %s168, %s182
    %p184 = scmp.eq.s32.totalorder %s32, 0
    %p185 = por %p183, %p184
    %s187 = sadd.s32 %s186, 1
    %p190 = scmp.eq.s32.totalorder %s26, 1
    %p191 = scmp.ne.s32.totalorder %s186, %s188
    %p192 = scmp.eq.s32.totalorder %s26, 0
    %p193 = por %p191, %p192
    %p194 = scmp.ne.s32.totalorder %s186, %s188
    %p195 = scmp.eq.s32.totalorder %s31, 1
    %p196 = por %p194, %p195
    %p197 = scmp.ne.s32.totalorder %s188, %s189
    %p198 = scmp.eq.s32.totalorder %s31, 0
    %p199 = por %p197, %p198
    %p200 = scmp.ne.s32.totalorder %s188, %s189
    %p201 = scmp.eq.s32.totalorder %s32, 1
    %p202 = por %p200, %p201
    %p204 = scmp.ne.s32.totalorder %s189, %s203
    %p205 = scmp.eq.s32.totalorder %s32, 0
    %p206 = por %p204, %p205
    %s208 = sadd.s32 %s207, 1
    %p211 = scmp.eq.s32.totalorder %s26, 1
    %p212 = scmp.ne.s32.totalorder %s207, %s209
    %p213 = scmp.eq.s32.totalorder %s26, 0
    %p214 = por %p212, %p213
    %p215 = scmp.ne.s32.totalorder %s207, %s209
    %p216 = scmp.eq.s32.totalorder %s31, 1
    %p217 = por %p215, %p216
    %p218 = scmp.ne.s32.totalorder %s209, %s210
    %p219 = scmp.eq.s32.totalorder %s31, 0
    %p220 = por %p218, %p219
    %p221 = scmp.ne.s32.totalorder %s209, %s210
    %p222 = scmp.eq.s32.totalorder %s32, 1
    %p223 = por %p221, %p222
    %p225 = scmp.ne.s32.totalorder %s210, %s224
    %p226 = scmp.eq.s32.totalorder %s32, 0
    %p227 = por %p225, %p226
    %s229 = sadd.s32 %s228, 1
    %p232 = scmp.eq.s32.totalorder %s26, 1
    %p233 = scmp.ne.s32.totalorder %s228, %s230
    %p234 = scmp.eq.s32.totalorder %s26, 0
    %p235 = por %p233, %p234
    %p236 = scmp.ne.s32.totalorder %s228, %s230
    %p237 = scmp.eq.s32.totalorder %s31, 1
    %p238 = por %p236, %p237
    %p239 = scmp.ne.s32.totalorder %s230, %s231
    %p240 = scmp.eq.s32.totalorder %s31, 0
    %p241 = por %p239, %p240
    %p242 = scmp.ne.s32.totalorder %s230, %s231
    %p243 = scmp.eq.s32.totalorder %s32, 1
    %p244 = por %p242, %p243
    %p246 = scmp.ne.s32.totalorder %s231, %s245
    %p247 = scmp.eq.s32.totalorder %s32, 0
    %p248 = por %p246, %p247
    %s250 = sadd.s32 %s249, 1
    %p253 = scmp.eq.s32.totalorder %s26, 1
    %p254 = scmp.ne.s32.totalorder %s249, %s251
    %p255 = scmp.eq.s32.totalorder %s26, 0
    %p256 = por %p254, %p255
    %p257 = scmp.ne.s32.totalorder %s249, %s251
    %p258 = scmp.eq.s32.totalorder %s31, 1
    %p259 = por %p257, %p258
    %p260 = scmp.ne.s32.totalorder %s251, %s252
    %p261 = scmp.eq.s32.totalorder %s31, 0
    %p262 = por %p260, %p261
    %p263 = scmp.ne.s32.totalorder %s251, %s252
    %p264 = scmp.eq.s32.totalorder %s32, 1
    %p265 = por %p263, %p264
    %p267 = scmp.ne.s32.totalorder %s252, %s266
    %p268 = scmp.eq.s32.totalorder %s32, 0
    %p269 = por %p267, %p268
    %s271 = sadd.s32 %s270, 1
    %p274 = scmp.eq.s32.totalorder %s26, 1
    %p275 = scmp.ne.s32.totalorder %s270, %s272
    %p276 = scmp.eq.s32.totalorder %s26, 0
    %p277 = por %p275, %p276
    %p278 = scmp.ne.s32.totalorder %s270, %s272
    %p279 = scmp.eq.s32.totalorder %s31, 1
    %p280 = por %p278, %p279
    %p281 = scmp.ne.s32.totalorder %s272, %s273
    %p282 = scmp.eq.s32.totalorder %s31, 0
    %p283 = por %p281, %p282
    %p284 = scmp.ne.s32.totalorder %s272, %s273
    %p285 = scmp.eq.s32.totalorder %s32, 1
    %p286 = por %p284, %p285
    %p288 = scmp.ne.s32.totalorder %s273, %s287
    %p289 = scmp.eq.s32.totalorder %s32, 0
    %p290 = por %p288, %p289
    %s292 = sadd.s32 %s291, 1
    %p295 = scmp.eq.s32.totalorder %s26, 1
    %p296 = scmp.ne.s32.totalorder %s291, %s293
    %p297 = scmp.eq.s32.totalorder %s26, 0
    %p298 = por %p296, %p297
    %p299 = scmp.ne.s32.totalorder %s291, %s293
    %p300 = scmp.eq.s32.totalorder %s31, 1
    %p301 = por %p299, %p300
    %p302 = scmp.ne.s32.totalorder %s293, %s294
    %p303 = scmp.eq.s32.totalorder %s31, 0
    %p304 = por %p302, %p303
    %p305 = scmp.ne.s32.totalorder %s293, %s294
    %p306 = scmp.eq.s32.totalorder %s32, 1
    %p307 = por %p305, %p306
    %p309 = scmp.ne.s32.totalorder %s294, %s308
    %p310 = scmp.eq.s32.totalorder %s32, 0
    %p311 = por %p309, %p310
    %s313 = sadd.s32 %s312, 1
    %p316 = scmp.eq.s32.totalorder %s26, 1
    %p317 = scmp.ne.s32.totalorder %s312, %s314
    %p318 = scmp.eq.s32.totalorder %s26, 0
    %p319 = por %p317, %p318
    %p320 = scmp.ne.s32.totalorder %s312, %s314
    %p321 = scmp.eq.s32.totalorder %s31, 1
    %p322 = por %p320, %p321
    %p323 = scmp.ne.s32.totalorder %s314, %s315
    %p324 = scmp.eq.s32.totalorder %s31, 0
    %p325 = por %p323, %p324
    %p326 = scmp.ne.s32.totalorder %s314, %s315
    %p327 = scmp.eq.s32.totalorder %s32, 1
    %p328 = por %p326, %p327
    %p330 = scmp.ne.s32.totalorder %s315, %s329
    %p331 = scmp.eq.s32.totalorder %s32, 0
    %p332 = por %p330, %p331
    %s334 = sadd.s32 %s333, 1
    %p337 = scmp.eq.s32.totalorder %s26, 1
    %p338 = scmp.ne.s32.totalorder %s333, %s335
    %p339 = scmp.eq.s32.totalorder %s26, 0
    %p340 = por %p338, %p339
    %p341 = scmp.ne.s32.totalorder %s333, %s335
    %p342 = scmp.eq.s32.totalorder %s31, 1
    %p343 = por %p341, %p342
    %p344 = scmp.ne.s32.totalorder %s335, %s336
    %p345 = scmp.eq.s32.totalorder %s31, 0
    %p346 = por %p344, %p345
    %p347 = scmp.ne.s32.totalorder %s335, %s336
    %p348 = scmp.eq.s32.totalorder %s32, 1
    %p349 = por %p347, %p348
    %p351 = scmp.ne.s32.totalorder %s336, %s350
    %p352 = scmp.eq.s32.totalorder %s32, 0
    %p353 = por %p351, %p352
    %s355 = sadd.s32 %s354, 1
    %p358 = scmp.eq.s32.totalorder %s26, 1
    %p359 = scmp.ne.s32.totalorder %s354, %s356
    %p360 = scmp.eq.s32.totalorder %s26, 0
    %p361 = por %p359, %p360
    %p362 = scmp.ne.s32.totalorder %s354, %s356
    %p363 = scmp.eq.s32.totalorder %s31, 1
    %p364 = por %p362, %p363
    %p365 = scmp.ne.s32.totalorder %s356, %s357
    %p366 = scmp.eq.s32.totalorder %s31, 0
    %p367 = por %p365, %p366
    %p368 = scmp.ne.s32.totalorder %s356, %s357
    %p369 = scmp.eq.s32.totalorder %s32, 1
    %p370 = por %p368, %p369
    %p372 = scmp.ne.s32.totalorder %s357, %s371
    %p373 = scmp.eq.s32.totalorder %s32, 0
    %p374 = por %p372, %p373
    %s376 = sadd.s32 %s375, 1
    %p379 = scmp.eq.s32.totalorder %s26, 1
    %p380 = scmp.ne.s32.totalorder %s375, %s377
    %p381 = scmp.eq.s32.totalorder %s26, 0
    %p382 = por %p380, %p381
    %p383 = scmp.ne.s32.totalorder %s375, %s377
    %p384 = scmp.eq.s32.totalorder %s31, 1
    %p385 = por %p383, %p384
    %p386 = scmp.ne.s32.totalorder %s377, %s378
    %p387 = scmp.eq.s32.totalorder %s31, 0
    %p388 = por %p386, %p387
    %p389 = scmp.ne.s32.totalorder %s377, %s378
    %p390 = scmp.eq.s32.totalorder %s32, 1
    %p391 = por %p389, %p390
    %p393 = scmp.ne.s32.totalorder %s378, %s392
    %p394 = scmp.eq.s32.totalorder %s32, 0
    %p395 = por %p393, %p394
    %s397 = sadd.s32 %s396, 1
    %p400 = scmp.eq.s32.totalorder %s26, 1
    %p401 = scmp.ne.s32.totalorder %s396, %s398
    %p402 = scmp.eq.s32.totalorder %s26, 0
    %p403 = por %p401, %p402
    %p404 = scmp.ne.s32.totalorder %s396, %s398
    %p405 = scmp.eq.s32.totalorder %s31, 1
    %p406 = por %p404, %p405
    %p407 = scmp.ne.s32.totalorder %s398, %s399
    %p408 = scmp.eq.s32.totalorder %s31, 0
    %p409 = por %p407, %p408
    %p410 = scmp.ne.s32.totalorder %s398, %s399
    %p411 = scmp.eq.s32.totalorder %s32, 1
    %p412 = por %p410, %p411
    %p414 = scmp.ne.s32.totalorder %s399, %s413
    %p415 = scmp.eq.s32.totalorder %s32, 0
    %p416 = por %p414, %p415
    %s418 = sadd.s32 %s417, 1
    %p421 = scmp.eq.s32.totalorder %s26, 1
    %p422 = scmp.ne.s32.totalorder %s417, %s419
    %p423 = scmp.eq.s32.totalorder %s26, 0
    %p424 = por %p422, %p423
    %p425 = scmp.ne.s32.totalorder %s417, %s419
    %p426 = scmp.eq.s32.totalorder %s31, 1
    %p427 = por %p425, %p426
    %p428 = scmp.ne.s32.totalorder %s419, %s420
    %p429 = scmp.eq.s32.totalorder %s31, 0
    %p430 = por %p428, %p429
    %p431 = scmp.ne.s32.totalorder %s419, %s420
    %p432 = scmp.eq.s32.totalorder %s32, 1
    %p433 = por %p431, %p432
    %p435 = scmp.ne.s32.totalorder %s420, %s434
    %p436 = scmp.eq.s32.totalorder %s32, 0
    %p437 = por %p435, %p436
    %s439 = sadd.s32 %s438, 1
    %p442 = scmp.eq.s32.totalorder %s26, 1
    %p443 = scmp.ne.s32.totalorder %s438, %s440
    %p444 = scmp.eq.s32.totalorder %s26, 0
    %p445 = por %p443, %p444
    %p446 = scmp.ne.s32.totalorder %s438, %s440
    %p447 = scmp.eq.s32.totalorder %s31, 1
    %p448 = por %p446, %p447
    %p449 = scmp.ne.s32.totalorder %s440, %s441
    %p450 = scmp.eq.s32.totalorder %s31, 0
    %p451 = por %p449, %p450
    %p452 = scmp.ne.s32.totalorder %s440, %s441
    %p453 = scmp.eq.s32.totalorder %s32, 1
    %p454 = por %p452, %p453
    %p456 = scmp.ne.s32.totalorder %s441, %s455
    %p457 = scmp.eq.s32.totalorder %s32, 0
    %p458 = por %p456, %p457
    %s459 = ssub.s32 %s26, %s33
    %p460 = scmp.eq.s32.totalorder %s459, 0
    %s462 = sadd.s32 %s461, 1
    %s463 = scalar_select %p460, %s461, %s462
    %p466 = pneg %p460
    %p467 = scmp.eq.s32.totalorder %s26, 1
    %p468 = por %p466, %p467
    %p469 = scmp.ne.s32.totalorder %s461, %s464
    %p470 = scmp.eq.s32.totalorder %s26, 0
    %p471 = por %p469, %p470
    %p472 = scmp.ne.s32.totalorder %s461, %s464
    %p473 = scmp.eq.s32.totalorder %s31, 1
    %p474 = por %p472, %p473
    %p475 = scmp.ne.s32.totalorder %s464, %s465
    %p476 = scmp.eq.s32.totalorder %s31, 0
    %p477 = por %p475, %p476
    %p478 = scmp.ne.s32.totalorder %s464, %s465
    %p479 = scmp.eq.s32.totalorder %s32, 1
    %p480 = por %p478, %p479
    %p482 = scmp.ne.s32.totalorder %s465, %s481
    %p483 = scmp.eq.s32.totalorder %s32, 0
    %p484 = por %p482, %p483
    %p485 = scmp.le.s32.totalorder 1, %s26
    %p486 = scmp.lt.s32.totalorder %s26, 3
    %p487 = pnand %p485, %p486
    %p488 = pneg %p487
    // Predicated region
    $region9: #{transformer_classifier_forward.3} parent=5 // pred_check
      _
    $region10: #{transformer_classifier_forward.3} parent=5 // pred_check_branch
      %490 = sbr.rel (%p487) target = $region12
    $region11: #{transformer_classifier_forward.3} parent=5 // pred_region
      %s491 = ssub.s32 %s26, 1
      // Predicated region
      $region13: #{transformer_classifier_forward.3} parent=11 // pred_check
        %p492 = pneg %p73
      $region14: #{transformer_classifier_forward.3} parent=11 // pred_check_branch
        %494 = sbr.rel (%p492) target = $region16
      $region15: #{transformer_classifier_forward.3} parent=11 // pred_region
        _
      $region16: #{transformer_classifier_forward.3} parent=11 // pred_fallthru
        _
      // Predicated region
      $region17: #{transformer_classifier_forward.3} parent=11 // pred_check
        %p495 = pneg %p94
      $region18: #{transformer_classifier_forward.3} parent=11 // pred_check_branch
        %497 = sbr.rel (%p495) target = $region20
      $region19: #{transformer_classifier_forward.3} parent=11 // pred_region
        _
      $region20: #{transformer_classifier_forward.3} parent=11 // pred_fallthru
        _
      // Predicated region
      $region21: #{transformer_classifier_forward.3} parent=11 // pred_check
        %p498 = pneg %p115
      $region22: #{transformer_classifier_forward.3} parent=11 // pred_check_branch
        %500 = sbr.rel (%p498) target = $region24
      $region23: #{transformer_classifier_forward.3} parent=11 // pred_region
        _
      $region24: #{transformer_classifier_forward.3} parent=11 // pred_fallthru
        _
      // Predicated region
      $region25: #{transformer_classifier_forward.3} parent=11 // pred_check
        %p501 = pneg %p136
      $region26: #{transformer_classifier_forward.3} parent=11 // pred_check_branch
        %503 = sbr.rel (%p501) target = $region28
      $region27: #{transformer_classifier_forward.3} parent=11 // pred_region
        _
      $region28: #{transformer_classifier_forward.3} parent=11 // pred_fallthru
        _
      // Predicated region
      $region29: #{transformer_classifier_forward.3} parent=11 // pred_check
        %p504 = pneg %p157
      $region30: #{transformer_classifier_forward.3} parent=11 // pred_check_branch
        %506 = sbr.rel (%p504) target = $region32
      $region31: #{transformer_classifier_forward.3} parent=11 // pred_region
        _
      $region32: #{transformer_classifier_forward.3} parent=11 // pred_fallthru
        _
      // Predicated region
      $region33: #{transformer_classifier_forward.3} parent=11 // pred_check
        %p507 = pneg %p178
      $region34: #{transformer_classifier_forward.3} parent=11 // pred_check_branch
        %509 = sbr.rel (%p507) target = $region36
      $region35: #{transformer_classifier_forward.3} parent=11 // pred_region
        _
      $region36: #{transformer_classifier_forward.3} parent=11 // pred_fallthru
        _
      // Predicated region
      $region37: #{transformer_classifier_forward.3} parent=11 // pred_check
        %p510 = pneg %p199
      $region38: #{transformer_classifier_forward.3} parent=11 // pred_check_branch
        %512 = sbr.rel (%p510) target = $region40
      $region39: #{transformer_classifier_forward.3} parent=11 // pred_region
        _
      $region40: #{transformer_classifier_forward.3} parent=11 // pred_fallthru
        _
      // Predicated region
      $region41: #{transformer_classifier_forward.3} parent=11 // pred_check
        %p513 = pneg %p220
      $region42: #{transformer_classifier_forward.3} parent=11 // pred_check_branch
        %515 = sbr.rel (%p513) target = $region44
      $region43: #{transformer_classifier_forward.3} parent=11 // pred_region
        _
      $region44: #{transformer_classifier_forward.3} parent=11 // pred_fallthru
        _
      // Predicated region
      $region45: #{transformer_classifier_forward.3} parent=11 // pred_check
        %p516 = pneg %p241
      $region46: #{transformer_classifier_forward.3} parent=11 // pred_check_branch
        %518 = sbr.rel (%p516) target = $region48
      $region47: #{transformer_classifier_forward.3} parent=11 // pred_region
        _
      $region48: #{transformer_classifier_forward.3} parent=11 // pred_fallthru
        _
      // Predicated region
      $region49: #{transformer_classifier_forward.3} parent=11 // pred_check
        %p519 = pneg %p262
      $region50: #{transformer_classifier_forward.3} parent=11 // pred_check_branch
        %521 = sbr.rel (%p519) target = $region52
      $region51: #{transformer_classifier_forward.3} parent=11 // pred_region
        _
      $region52: #{transformer_classifier_forward.3} parent=11 // pred_fallthru
        _
      // Predicated region
      $region53: #{transformer_classifier_forward.3} parent=11 // pred_check
        %p522 = pneg %p283
      $region54: #{transformer_classifier_forward.3} parent=11 // pred_check_branch
        %524 = sbr.rel (%p522) target = $region56
      $region55: #{transformer_classifier_forward.3} parent=11 // pred_region
        _
      $region56: #{transformer_classifier_forward.3} parent=11 // pred_fallthru
        _
      // Predicated region
      $region57: #{transformer_classifier_forward.3} parent=11 // pred_check
        %p525 = pneg %p304
      $region58: #{transformer_classifier_forward.3} parent=11 // pred_check_branch
        %527 = sbr.rel (%p525) target = $region60
      $region59: #{transformer_classifier_forward.3} parent=11 // pred_region
        _
      $region60: #{transformer_classifier_forward.3} parent=11 // pred_fallthru
        _
      // Predicated region
      $region61: #{transformer_classifier_forward.3} parent=11 // pred_check
        %p528 = pneg %p325
      $region62: #{transformer_classifier_forward.3} parent=11 // pred_check_branch
        %530 = sbr.rel (%p528) target = $region64
      $region63: #{transformer_classifier_forward.3} parent=11 // pred_region
        _
      $region64: #{transformer_classifier_forward.3} parent=11 // pred_fallthru
        _
      // Predicated region
      $region65: #{transformer_classifier_forward.3} parent=11 // pred_check
        %p531 = pneg %p346
      $region66: #{transformer_classifier_forward.3} parent=11 // pred_check_branch
        %533 = sbr.rel (%p531) target = $region68
      $region67: #{transformer_classifier_forward.3} parent=11 // pred_region
        _
      $region68: #{transformer_classifier_forward.3} parent=11 // pred_fallthru
        _
      // Predicated region
      $region69: #{transformer_classifier_forward.3} parent=11 // pred_check
        %p534 = pneg %p367
      $region70: #{transformer_classifier_forward.3} parent=11 // pred_check_branch
        %536 = sbr.rel (%p534) target = $region72
      $region71: #{transformer_classifier_forward.3} parent=11 // pred_region
        _
      $region72: #{transformer_classifier_forward.3} parent=11 // pred_fallthru
        _
      // Predicated region
      $region73: #{transformer_classifier_forward.3} parent=11 // pred_check
        %p537 = pneg %p388
      $region74: #{transformer_classifier_forward.3} parent=11 // pred_check_branch
        %539 = sbr.rel (%p537) target = $region76
      $region75: #{transformer_classifier_forward.3} parent=11 // pred_region
        _
      $region76: #{transformer_classifier_forward.3} parent=11 // pred_fallthru
        _
      // Predicated region
      $region77: #{transformer_classifier_forward.3} parent=11 // pred_check
        %p540 = pneg %p409
      $region78: #{transformer_classifier_forward.3} parent=11 // pred_check_branch
        %542 = sbr.rel (%p540) target = $region80
      $region79: #{transformer_classifier_forward.3} parent=11 // pred_region
        _
      $region80: #{transformer_classifier_forward.3} parent=11 // pred_fallthru
        _
      // Predicated region
      $region81: #{transformer_classifier_forward.3} parent=11 // pred_check
        %p543 = pneg %p430
      $region82: #{transformer_classifier_forward.3} parent=11 // pred_check_branch
        %545 = sbr.rel (%p543) target = $region84
      $region83: #{transformer_classifier_forward.3} parent=11 // pred_region
        _
      $region84: #{transformer_classifier_forward.3} parent=11 // pred_fallthru
        _
      // Predicated region
      $region85: #{transformer_classifier_forward.3} parent=11 // pred_check
        %p546 = pneg %p451
      $region86: #{transformer_classifier_forward.3} parent=11 // pred_check_branch
        %548 = sbr.rel (%p546) target = $region88
      $region87: #{transformer_classifier_forward.3} parent=11 // pred_region
        _
      $region88: #{transformer_classifier_forward.3} parent=11 // pred_fallthru
        _
    $region12: #{transformer_classifier_forward.3} parent=5 // pred_fallthru
      _
    %p549 = scmp.lt.s32.totalorder %s26, 2
    // Predicated region
    $region89: #{transformer_classifier_forward.3} parent=5 // pred_check
      %p550 = pneg %p549
    $region90: #{transformer_classifier_forward.3} parent=5 // pred_check_branch
      %552 = sbr.rel (%p550) target = $region92
    $region91: #{transformer_classifier_forward.3} parent=5 // pred_region
      // Predicated region
      $region93: #{transformer_classifier_forward.3} parent=91 // pred_check
        %p553 = pneg %p46
      $region94: #{transformer_classifier_forward.3} parent=91 // pred_check_branch
        %555 = sbr.rel (%p553) target = $region96
      $region95: #{transformer_classifier_forward.3} parent=91 // pred_region
        %p556 = scmp.lt.s32.totalorder %s26, 1
        %s557 = scalar_select %p556, %s26, 1
        %s558 = smul.addr %s557, 4
        %s559 = scalar_lea.vmem %s0, %s558
      $region96: #{transformer_classifier_forward.3} parent=91 // pred_fallthru
        _
    $region92: #{transformer_classifier_forward.3} parent=5 // pred_fallthru
      _
    %p560 = scmp.le.s32.totalorder 1, %s26
    %p561 = scmp.lt.s32.totalorder %s26, 3
    %p562 = pnand %p560, %p561
    %p563 = pneg %p562
    // Predicated region
    $region97: #{transformer_classifier_forward.3} parent=5 // pred_check
      _
    $region98: #{transformer_classifier_forward.3} parent=5 // pred_check_branch
      %565 = sbr.rel (%p562) target = $region100
    $region99: #{transformer_classifier_forward.3} parent=5 // pred_region
      %s566 = ssub.s32 %s26, 1
      %p567 = scmp.lt.s32.totalorder %s31, 1
      %s568 = scalar_select %p567, %s31, 1
      %s569 = smul.addr %s568, 4
      %s570 = scalar_lea.vmem %s0, %s569
      %p571 = pneg %p52
      %p572 = pneg %p49
      %p573 = pneg %p73
      %p574 = pneg %p70
      %p575 = pneg %p94
      %p576 = pneg %p91
      %p577 = pneg %p115
      %p578 = pneg %p112
      %p579 = pneg %p136
      %p580 = pneg %p133
      %p581 = pneg %p157
      %p582 = pneg %p154
      %p583 = pneg %p178
      %p584 = pneg %p175
      %p585 = pneg %p199
      %p586 = pneg %p196
      %p587 = pneg %p220
      %p588 = pneg %p217
      %p589 = pneg %p241
      %p590 = pneg %p238
      %p591 = pneg %p262
      %p592 = pneg %p259
      %p593 = pneg %p283
      %p594 = pneg %p280
      %p595 = pneg %p304
      %p596 = pneg %p301
      %p597 = pneg %p325
      %p598 = pneg %p322
      %p599 = pneg %p346
      %p600 = pneg %p343
      %p601 = pneg %p367
      %p602 = pneg %p364
      %p603 = pneg %p388
      %p604 = pneg %p385
      %p605 = pneg %p409
      %p606 = pneg %p406
      %p607 = pneg %p430
      %p608 = pneg %p427
      %p609 = pneg %p451
      %p610 = pneg %p448
      %p611 = pneg %p477
      %p612 = pneg %p474
      %p613 = scmp.lt.s32.totalorder %s31, 1
      %s614 = scalar_select %p613, %s31, 1
      %s615 = smul.addr %s614, 4
      %s616 = scalar_lea.vmem %s20, %s615
      %p617 = scmp.lt.s32.totalorder %s31, 1
      %s618 = scalar_select %p617, %s31, 1
      %s619 = smul.addr %s618, 4
      %s620 = scalar_lea.vmem %s0, %s619
      %p621 = scmp.lt.s32.totalorder %s31, 1
      %s622 = scalar_select %p621, %s31, 1
      %s623 = smul.addr %s622, 4
      %s624 = scalar_lea.vmem %s20, %s623
      %v626 = vld [vmem:[%s1] sm:$0xf]
      %v627 = vld [vmem:[%s2] sm:$0x1]
      %v629 = vlaneseq
      %v630 = vshrl.u32 %v629, 7
      %v631 = vsub.s32 0, %v630
      %v632 = vrot.slane %v627, %v631
      %v634 = vadd.f32 %v626, %v632
      %v635 = vld [vmem:[%s620] sm:$0xf]
      %v636 = vld [vmem:[%s3] sm:$0x1]
      %v638 = vlaneseq
      %v639 = vshrl.u32 %v638, 7
      %v640 = vsub.s32 0, %v639
      %v641 = vrot.slane %v636, %v640
      %v643 = vadd.f32 %v635, %v641
      %v645 = vrot.slane %v643, 4
      %vm647 = vcmask 1043456
      %v648 = vsel %vm647, %v634, %v645
      %v649 = vld [vmem:[%s4] sm:$0x1]
      %v650 = vld [vmem:[%s5] sm:$0x1]
      %651 = vadd.xlane.f32.xlu0 %v648
      %v652 = vpop.xlane.xlu0 %651
      %653 = vadd.xlane.f32.xlu0 0.0
      %v654 = vpop.xlane.xlu0 %653
      %v655 = vrcp.pop 128.0
      %v656 = vmul.f32 %v652, %v655
      %v657 = vmul.f32 %v654, %v655
      %v658 = vsub.f32 %v648, %v656
      %v659 = vsub.f32 0.0, %v657
      %v660 = vmul.f32 %v658, %v658
      %v661 = vmul.f32 %v659, %v659
      %662 = vadd.xlane.f32.xlu0 %v660
      %v663 = vpop.xlane.xlu0 %662
      %664 = vadd.xlane.f32.xlu0 %v661
      %v665 = vpop.xlane.xlu0 %664
      %v666 = vmul.f32 %v663, %v655
      %v667 = vmul.f32 %v665, %v655
      %v668 = vadd.f32 %v666, 1e-06
      %v669 = vadd.f32 %v667, 1e-06
      %v670 = vrsqrt.pop %v668
      %v671 = vrsqrt.pop %v669
      %v672 = vmul.f32 %v658, %v670
      %v673 = vmul.f32 %v659, %v671
      %v675 = vlaneseq
      %v676 = vshrl.u32 %v675, 7
      %v677 = vsub.s32 0, %v676
      %v678 = vrot.slane %v649, %v677
      %v680 = vmul.f32 %v672, %v678
      %v681 = vmul.f32 %v673, %v678
      %v683 = vlaneseq
      %v684 = vshrl.u32 %v683, 7
      %v685 = vsub.s32 0, %v684
      %v686 = vrot.slane %v650, %v685
      %v688 = vadd.f32 %v680, %v686
      %v689 = vadd.f32 %v681, %v686
      %v690 = vpack.c.bf16 %v689, %v688
      %v691 = vpack.c.bf16 %v689, %v689
      %v692 = vld [vmem:[%s6] sm:$0xff]
      %v693 = vld [vmem:[%s6 + $0x8] sm:$0xf]
      %v694 = vld [vmem:[%s6 + $0xc] sm:$0xff]
      %v695 = vld [vmem:[%s6 + $0x14] sm:$0xf]
      %v696 = vld [vmem:[%s6 + $0x18] sm:$0xff]
      %v697 = vld [vmem:[%s6 + $0x20] sm:$0xf]
      %v698 = vld [vmem:[%s6 + $0x24] sm:$0xff]
      %v699 = vld [vmem:[%s6 + $0x2c] sm:$0xf]
      %v700 = vld [vmem:[%s6 + $0x30] sm:$0xff]
      %v701 = vld [vmem:[%s6 + $0x38] sm:$0xf]
      %v702 = vld [vmem:[%s6 + $0x3c] sm:$0xff]
      %v703 = vld [vmem:[%s6 + $0x44] sm:$0xf]
      %v704 = vld [vmem:[%s6 + $0x48] sm:$0xff]
      %v705 = vld [vmem:[%s6 + $0x50] sm:$0xf]
      %v706 = vld [vmem:[%s6 + $0x54] sm:$0xff]
      %v707 = vld [vmem:[%s6 + $0x5c] sm:$0xf]
      %v708 = vld [vmem:[%s6 + $0x60] sm:$0xff]
      %v709 = vld [vmem:[%s6 + $0x68] sm:$0xf]
      %v710 = vld [vmem:[%s6 + $0x6c] sm:$0xff]
      %v711 = vld [vmem:[%s6 + $0x74] sm:$0xf]
      %v712 = vld [vmem:[%s6 + $0x78] sm:$0xff]
      %v713 = vld [vmem:[%s6 + $0x80] sm:$0xf]
      %v714 = vld [vmem:[%s6 + $0x84] sm:$0xff]
      %v715 = vld [vmem:[%s6 + $0x8c] sm:$0xf]
      %v716 = vld [vmem:[%s6 + $0x90] sm:$0xff]
      %v717 = vld [vmem:[%s6 + $0x98] sm:$0xf]
      %v718 = vld [vmem:[%s6 + $0x9c] sm:$0xff]
      %v719 = vld [vmem:[%s6 + $0xa4] sm:$0xf]
      %v720 = vld [vmem:[%s6 + $0xa8] sm:$0xff]
      %v721 = vld [vmem:[%s6 + $0xb0] sm:$0xf]
      %v722 = vld [vmem:[%s6 + $0xb4] sm:$0xff]
      %v723 = vld [vmem:[%s6 + $0xbc] sm:$0xf]
      %v724 = vld [vmem:[%s7] sm:$0x7]
      %v726 = vlaneseq
      %v727 = vshrl.u32 %v726, 7
      %v728 = vsub.s32 0, %v727
      %v729 = vrot.slane %v724, %v728
      %v730 = vlaneseq
      %v731 = vshrl.u32 %v730, 7
      %v732 = vsub.s32 1, %v731
      %v733 = vrot.slane %v724, %v732
      %v734 = vlaneseq
      %v735 = vshrl.u32 %v734, 7
      %v736 = vsub.s32 2, %v735
      %v737 = vrot.slane %v724, %v736
      %v773 = vunpack.c.l.b16 %v692
      %v774 = vunpack.c.h.b16 %v692
      %v775 = vunpack.c.l.b16 %v693
      %v776 = vunpack.c.l.b16 %v694
      %v777 = vunpack.c.h.b16 %v694
      %v778 = vunpack.c.l.b16 %v695
      %v779 = vunpack.c.l.b16 %v696
      %v780 = vunpack.c.h.b16 %v696
      %v781 = vunpack.c.l.b16 %v697
      %v782 = vunpack.c.l.b16 %v698
      %v783 = vunpack.c.h.b16 %v698
      %v784 = vunpack.c.l.b16 %v699
      %v785 = vunpack.c.l.b16 %v700
      %v786 = vunpack.c.h.b16 %v700
      %v787 = vunpack.c.l.b16 %v701
      %v788 = vunpack.c.l.b16 %v702
      %v789 = vunpack.c.h.b16 %v702
      %v790 = vunpack.c.l.b16 %v703
      %v791 = vunpack.c.l.b16 %v704
      %v792 = vunpack.c.h.b16 %v704
      %v793 = vunpack.c.l.b16 %v705
      %v794 = vunpack.c.l.b16 %v706
      %v795 = vunpack.c.h.b16 %v706
      %v796 = vunpack.c.l.b16 %v707
      %v797 = vunpack.c.l.b16 %v708
      %v798 = vunpack.c.h.b16 %v708
      %v799 = vunpack.c.l.b16 %v709
      %v800 = vunpack.c.l.b16 %v710
      %v801 = vunpack.c.h.b16 %v710
      %v802 = vunpack.c.l.b16 %v711
      %v803 = vunpack.c.l.b16 %v712
      %v804 = vunpack.c.h.b16 %v712
      %v805 = vunpack.c.l.b16 %v713
      %v806 = vunpack.c.l.b16 %v714
      %v807 = vunpack.c.h.b16 %v714
      %v808 = vunpack.c.l.b16 %v715
      %v809 = vunpack.c.l.b16 %v716
      %v810 = vunpack.c.h.b16 %v716
      %v811 = vunpack.c.l.b16 %v717
      %v812 = vunpack.c.l.b16 %v718
      %v813 = vunpack.c.h.b16 %v718
      %v814 = vunpack.c.l.b16 %v719
      %v815 = vunpack.c.l.b16 %v720
      %v816 = vunpack.c.h.b16 %v720
      %v817 = vunpack.c.l.b16 %v721
      %v818 = vunpack.c.l.b16 %v722
      %v819 = vunpack.c.h.b16 %v722
      %v820 = vunpack.c.l.b16 %v723
      %v821 = vpack.c.b16 %v776, %v773
      %v822 = vpack.c.b16 %v777, %v774
      %v823 = vpack.c.b16 %v778, %v775
      %v824 = vpack.c.b16 %v782, %v779
      %v825 = vpack.c.b16 %v783, %v780
      %v826 = vpack.c.b16 %v784, %v781
      %v827 = vpack.c.b16 %v788, %v785
      %v828 = vpack.c.b16 %v789, %v786
      %v829 = vpack.c.b16 %v790, %v787
      %v830 = vpack.c.b16 %v794, %v791
      %v831 = vpack.c.b16 %v795, %v792
      %v832 = vpack.c.b16 %v796, %v793
      %v833 = vpack.c.b16 %v800, %v797
      %v834 = vpack.c.b16 %v801, %v798
      %v835 = vpack.c.b16 %v802, %v799
      %v836 = vpack.c.b16 %v806, %v803
      %v837 = vpack.c.b16 %v807, %v804
      %v838 = vpack.c.b16 %v808, %v805
      %v839 = vpack.c.b16 %v812, %v809
      %v840 = vpack.c.b16 %v813, %v810
      %v841 = vpack.c.b16 %v814, %v811
      %v842 = vpack.c.b16 %v818, %v815
      %v843 = vpack.c.b16 %v819, %v816
      %v844 = vpack.c.b16 %v820, %v817
      %869 = vmatprep.subr.bf16.mxu0 %v822
      %870 = vmatpush1.bf16.msra.mxu0 %v821
      %871 = vmatprep.subr.bf16.mxu0 %v825
      %872 = vmatpush1.bf16.msra.mxu0 %v824
      %873 = vmatprep.subr.bf16.mxu0 %v828
      %874 = vmatpush1.bf16.msra.mxu0 %v827
      %875 = vmatprep.subr.bf16.mxu0 %v831
      %876 = vmatpush1.bf16.msra.mxu0 %v830
      %877 = vmatprep.subr.bf16.mxu0 %v834
      %878 = vmatpush1.bf16.msra.mxu0 %v833
      %879 = vmatprep.subr.bf16.mxu0 %v837
      %880 = vmatpush1.bf16.msra.mxu0 %v836
      %881 = vmatprep.subr.bf16.mxu0 %v840
      %882 = vmatpush1.bf16.msra.mxu0 %v839
      %883 = vmatprep.subr.bf16.mxu0 %v843
      %884 = vmatpush1.bf16.msra.mxu0 %v842
      %885 = vmatprep.subr.bf16.mxu0 0
      %886 = vmatpush1.bf16.msra.mxu0 0
      %887 = vmatprep.subr.bf16.mxu0 0
      %888 = vmatpush1.bf16.msra.mxu0 0
      %889 = vmatprep.subr.bf16.mxu0 0
      %890 = vmatpush1.bf16.msra.mxu0 0
      %891 = vmatprep.subr.bf16.mxu0 0
      %892 = vmatpush1.bf16.msra.mxu0 0
      %893 = vmatprep.subr.bf16.mxu0 0
      %894 = vmatpush1.bf16.msra.mxu0 0
      %895 = vmatprep.subr.bf16.mxu0 0
      %896 = vmatpush1.bf16.msra.mxu0 0
      %897 = vmatprep.subr.bf16.mxu0 0
      %898 = vmatpush1.bf16.msra.mxu0 0
      %899 = vmatprep.subr.bf16.mxu0 0
      %900 = vmatpush1.bf16.msra.mxu0 0
      %901 = vmatprep.mubr.bf16.mxu0 0
      %902 = vmatmul.mubr.bf16.gmra.mrb[0].mxu0 %v690
      %v903 = vpop.f32.mrb[0].mxu0
      %v904 = vadd.f32 %v729, %v903
      %v905 = vpop.f32.mrb[0].mxu0
      %v906 = vadd.f32 %v733, %v905
      %v907 = vpop.f32.mrb[0].mxu0
      %v908 = vadd.f32 %v729, %v907
      %v909 = vpop.f32.mrb[0].mxu0
      %v910 = vadd.f32 %v733, %v909
      %911 = vmatprep.mubr.bf16.mxu0 0
      %912 = vmatmul.mubr.bf16.gmra.mrb[0].mxu0 %v691
      %v913 = vpop.f32.mrb[0].mxu0
      %v914 = vadd.f32 %v729, %v913
      %v915 = vpop.f32.mrb[0].mxu0
      %v916 = vadd.f32 %v733, %v915
      %v917 = vpop.f32.mrb[0].mxu0
      %v918 = vadd.f32 %v729, %v917
      %v919 = vpop.f32.mrb[0].mxu0
      %v920 = vadd.f32 %v733, %v919
      %921 = vmatprep.mubr.bf16.mxu0 0
      %922 = vmatmul.mubr.bf16.gmra.mrb[0].mxu0 %v691
      %v923 = vpop.f32.mrb[0].mxu0
      %v924 = vadd.f32 %v729, %v923
      %v925 = vpop.f32.mrb[0].mxu0
      %v926 = vadd.f32 %v733, %v925
      %v927 = vpop.f32.mrb[0].mxu0
      %v928 = vadd.f32 %v729, %v927
      %v929 = vpop.f32.mrb[0].mxu0
      %v930 = vadd.f32 %v733, %v929
      %931 = vmatprep.mubr.bf16.mxu0 0
      %932 = vmatmul.mubr.bf16.gmra.mrb[0].mxu0 %v691
      %v933 = vpop.f32.mrb[0].mxu0
      %v934 = vadd.f32 %v729, %v933
      %v935 = vpop.f32.mrb[0].mxu0
      %v936 = vadd.f32 %v733, %v935
      %v937 = vpop.f32.mrb[0].mxu0
      %v938 = vadd.f32 %v729, %v937
      %v939 = vpop.f32.mrb[0].mxu0
      %v940 = vadd.f32 %v733, %v939
      %941 = vmatprep.mubr.bf16.mxu0 0
      %942 = vmatmul.mubr.bf16.gmra.mrb[0].mxu0 %v691
      %v943 = vpop.f32.mrb[0].mxu0
      %v944 = vadd.f32 %v729, %v943
      %v945 = vpop.f32.mrb[0].mxu0
      %v946 = vadd.f32 %v733, %v945
      %v947 = vpop.f32.mrb[0].mxu0
      %v948 = vadd.f32 %v729, %v947
      %v949 = vpop.f32.mrb[0].mxu0
      %v950 = vadd.f32 %v733, %v949
      %951 = vmatprep.mubr.bf16.mxu0 0
      %952 = vmatmul.mubr.bf16.gmra.mrb[0].mxu0 %v691
      %v953 = vpop.f32.mrb[0].mxu0
      %v954 = vadd.f32 %v729, %v953
      %v955 = vpop.f32.mrb[0].mxu0
      %v956 = vadd.f32 %v733, %v955
      %v957 = vpop.f32.mrb[0].mxu0
      %v958 = vadd.f32 %v729, %v957
      %v959 = vpop.f32.mrb[0].mxu0
      %v960 = vadd.f32 %v733, %v959
      %961 = vmatprep.mubr.bf16.mxu0 0
      %962 = vmatmul.mubr.bf16.gmra.mrb[0].mxu0 %v691
      %v963 = vpop.f32.mrb[0].mxu0
      %v964 = vadd.f32 %v729, %v963
      %v965 = vpop.f32.mrb[0].mxu0
      %v966 = vadd.f32 %v733, %v965
      %v967 = vpop.f32.mrb[0].mxu0
      %v968 = vadd.f32 %v729, %v967
      %v969 = vpop.f32.mrb[0].mxu0
      %v970 = vadd.f32 %v733, %v969
      %971 = vmatprep.mubr.bf16.mxu0 0
      %972 = vmatmul.mubr.bf16.gmra.mrb[0].mxu0 %v691
      %v973 = vpop.f32.mrb[0].mxu0
      %v974 = vadd.f32 %v729, %v973
      %v975 = vpop.f32.mrb[0].mxu0
      %v976 = vadd.f32 %v733, %v975
      %v977 = vpop.f32.mrb[0].mxu0
      %v978 = vadd.f32 %v729, %v977
      %v979 = vpop.f32.mrb[0].mxu0
      %v980 = vadd.f32 %v733, %v979
      %981 = vdwg.mxu0
      %982 = vmatprep.subr.bf16.mxu0 0
      %983 = vmatpush1.bf16.msra.mxu0 %v823
      %984 = vmatprep.subr.bf16.mxu0 0
      %985 = vmatpush1.bf16.msra.mxu0 %v826
      %986 = vmatprep.subr.bf16.mxu0 0
      %987 = vmatpush1.bf16.msra.mxu0 %v829
      %988 = vmatprep.subr.bf16.mxu0 0
      %989 = vmatpush1.bf16.msra.mxu0 %v832
      %990 = vmatprep.subr.bf16.mxu0 0
      %991 = vmatpush1.bf16.msra.mxu0 %v835
      %992 = vmatprep.subr.bf16.mxu0 0
      %993 = vmatpush1.bf16.msra.mxu0 %v838
      %994 = vmatprep.subr.bf16.mxu0 0
      %995 = vmatpush1.bf16.msra.mxu0 %v841
      %996 = vmatprep.subr.bf16.mxu0 0
      %997 = vmatpush1.bf16.msra.mxu0 %v844
      %998 = vmatprep.subr.bf16.mxu0 0
      %999 = vmatpush1.bf16.msra.mxu0 0
      %1000 = vmatprep.subr.bf16.mxu0 0
      %1001 = vmatpush1.bf16.msra.mxu0 0
      %1002 = vmatprep.subr.bf16.mxu0 0
      %1003 = vmatpush1.bf16.msra.mxu0 0
      %1004 = vmatprep.subr.bf16.mxu0 0
      %1005 = vmatpush1.bf16.msra.mxu0 0
      %1006 = vmatprep.subr.bf16.mxu0 0
      %1007 = vmatpush1.bf16.msra.mxu0 0
      %1008 = vmatprep.subr.bf16.mxu0 0
      %1009 = vmatpush1.bf16.msra.mxu0 0
      %1010 = vmatprep.subr.bf16.mxu0 0
      %1011 = vmatpush1.bf16.msra.mxu0 0
      %1012 = vmatprep.subr.bf16.mxu0 0
      %1013 = vmatpush1.bf16.msra.mxu0 0
      %1014 = vmatprep.mubr.bf16.mxu0 0
      %1015 = vmatmul.mubr.bf16.gmra.mrb[0].mxu0 %v690
      %v1016 = vpop.f32.mrb[0].mxu0
      %v1017 = vadd.f32 %v737, %v1016
      %v1018 = vpop.f32.mrb[0].mxu0
      %v1019 = vpop.f32.mrb[0].mxu0
      %v1020 = vadd.f32 %v737, %v1019
      %v1021 = vpop.f32.mrb[0].mxu0
      %1022 = vmatprep.mubr.bf16.mxu0 0
      %1023 = vmatmul.mubr.bf16.gmra.mrb[0].mxu0 %v691
      %v1024 = vpop.f32.mrb[0].mxu0
      %v1025 = vadd.f32 %v737, %v1024
      %v1026 = vpop.f32.mrb[0].mxu0
      %v1027 = vpop.f32.mrb[0].mxu0
      %v1028 = vadd.f32 %v737, %v1027
      %v1029 = vpop.f32.mrb[0].mxu0
      %1030 = vmatprep.mubr.bf16.mxu0 0
      %1031 = vmatmul.mubr.bf16.gmra.mrb[0].mxu0 %v691
      %v1032 = vpop.f32.mrb[0].mxu0
      %v1033 = vadd.f32 %v737, %v1032
      %v1034 = vpop.f32.mrb[0].mxu0
      %v1035 = vpop.f32.mrb[0].mxu0
      %v1036 = vadd.f32 %v737, %v1035
      %v1037 = vpop.f32.mrb[0].mxu0
      %1038 = vmatprep.mubr.bf16.mxu0 0
      %1039 = vmatmul.mubr.bf16.gmra.mrb[0].mxu0 %v691
      %v1040 = vpop.f32.mrb[0].mxu0
      %v1041 = vadd.f32 %v737, %v1040
      %v1042 = vpop.f32.mrb[0].mxu0
      %v1043 = vpop.f32.mrb[0].mxu0
      %v1044 = vadd.f32 %v737, %v1043
      %v1045 = vpop.f32.mrb[0].mxu0
      %1046 = vmatprep.mubr.bf16.mxu0 0
      %1047 = vmatmul.mubr.bf16.gmra.mrb[0].mxu0 %v691
      %v1048 = vpop.f32.mrb[0].mxu0
      %v1049 = vadd.f32 %v737, %v1048
      %v1050 = vpop.f32.mrb[0].mxu0
      %v1051 = vpop.f32.mrb[0].mxu0
      %v1052 = vadd.f32 %v737, %v1051
      %v1053 = vpop.f32.mrb[0].mxu0
      %1054 = vmatprep.mubr.bf16.mxu0 0
      %1055 = vmatmul.mubr.bf16.gmra.mrb[0].mxu0 %v691
      %v1056 = vpop.f32.mrb[0].mxu0
      %v1057 = vadd.f32 %v737, %v1056
      %v1058 = vpop.f32.mrb[0].mxu0
      %v1059 = vpop.f32.mrb[0].mxu0
      %v1060 = vadd.f32 %v737, %v1059
      %v1061 = vpop.f32.mrb[0].mxu0
      %1062 = vmatprep.mubr.bf16.mxu0 0
      %1063 = vmatmul.mubr.bf16.gmra.mrb[0].mxu0 %v691
      %v1064 = vpop.f32.mrb[0].mxu0
      %v1065 = vadd.f32 %v737, %v1064
      %v1066 = vpop.f32.mrb[0].mxu0
      %v1067 = vpop.f32.mrb[0].mxu0
      %v1068 = vadd.f32 %v737, %v1067
      %v1069 = vpop.f32.mrb[0].mxu0
      %1070 = vmatprep.mubr.bf16.mxu0 0
      %1071 = vmatmul.mubr.bf16.gmra.mrb[0].mxu0 %v691
      %v1072 = vpop.f32.mrb[0].mxu0
      %v1073 = vadd.f32 %v737, %v1072
      %v1074 = vpop.f32.mrb[0].mxu0
      %v1075 = vpop.f32.mrb[0].mxu0
      %v1076 = vadd.f32 %v737, %v1075
      %v1077 = vpop.f32.mrb[0].mxu0
      %1078 = vdwg.mxu0
      %v1079 = vlaneseq
      %v1080 = vand.u32 %v1079, 127
      %vm1081 = vcmp.lt.s32.totalorder %v1080, 8
      %v1082 = vsel %vm1081, 0.0, -1e+30
      %v1083 = vpack.c.bf16 %v908, %v904
      %v1084 = vpack.c.bf16 %v918, %v914
      %v1085 = vpack.c.bf16 %v928, %v924
      %v1086 = vpack.c.bf16 %v938, %v934
      %v1087 = vpack.c.bf16 %v948, %v944
      %v1088 = vpack.c.bf16 %v958, %v954
      %v1089 = vpack.c.bf16 %v968, %v964
      %v1090 = vpack.c.bf16 %v978, %v974
      %v1091 = vpack.c.bf16 %v910, %v906
      %v1092 = vpack.c.bf16 %v920, %v916
      %v1093 = vpack.c.bf16 %v930, %v926
      %v1094 = vpack.c.bf16 %v940, %v936
      %v1095 = vpack.c.bf16 %v950, %v946
      %v1096 = vpack.c.bf16 %v960, %v956
      %v1097 = vpack.c.bf16 %v970, %v966
      %v1098 = vpack.c.bf16 %v980, %v976
      %v1099 = vpack.c.bf16 %v1020, %v1017
      %v1100 = vpack.c.bf16 %v1028, %v1025
      %v1101 = vpack.c.bf16 %v1036, %v1033
      %v1102 = vpack.c.bf16 %v1044, %v1041
      %v1103 = vpack.c.bf16 %v1052, %v1049
      %v1104 = vpack.c.bf16 %v1060, %v1057
      %v1105 = vpack.c.bf16 %v1068, %v1065
      %v1106 = vpack.c.bf16 %v1076, %v1073
      %vm1107 = vcmask 261120
      %v1109 = vsel %vm1107, %v1083, 0
      %v1112 = vsel %vm1107, %v1084, 0
      %v1115 = vsel %vm1107, %v1085, 0
      %v1118 = vsel %vm1107, %v1086, 0
      %v1121 = vsel %vm1107, %v1087, 0
      %v1124 = vsel %vm1107, %v1088, 0
      %v1127 = vsel %vm1107, %v1089, 0
      %v1130 = vsel %vm1107, %v1090, 0
      %v1133 = vsel %vm1107, %v1091, 0
      %v1136 = vsel %vm1107, %v1092, 0
      %v1139 = vsel %vm1107, %v1093, 0
      %v1142 = vsel %vm1107, %v1094, 0
      %v1145 = vsel %vm1107, %v1095, 0
      %v1148 = vsel %vm1107, %v1096, 0
      %v1151 = vsel %vm1107, %v1097, 0
      %v1154 = vsel %vm1107, %v1098, 0
      %1156 = vmatprep.subr.bf16.mxu0 0
      %1157 = vmatpush1.bf16.xpose.msra.mxu0 %v1133
      %1158 = vmatprep.subr.bf16.mxu0 0
      %1159 = vmatpush1.bf16.xpose.msra.mxu0 %v1136
      %1160 = vmatprep.subr.bf16.mxu0 0
      %1161 = vmatpush1.bf16.xpose.msra.mxu0 %v1139
      %1162 = vmatprep.subr.bf16.mxu0 0
      %1163 = vmatpush1.bf16.xpose.msra.mxu0 %v1142
      %1164 = vmatprep.subr.bf16.mxu0 0
      %1165 = vmatpush1.bf16.xpose.msra.mxu0 %v1145
      %1166 = vmatprep.subr.bf16.mxu0 0
      %1167 = vmatpush1.bf16.xpose.msra.mxu0 %v1148
      %1168 = vmatprep.subr.bf16.mxu0 0
      %1169 = vmatpush1.bf16.xpose.msra.mxu0 %v1151
      %1170 = vmatprep.subr.bf16.mxu0 0
      %1171 = vmatpush1.bf16.xpose.msra.mxu0 %v1154
      %1172 = vmatprep.subr.bf16.mxu0 0
      %1173 = vmatpush1.bf16.xpose.msra.mxu0 0
      %1174 = vmatprep.subr.bf16.mxu0 0
      %1175 = vmatpush1.bf16.xpose.msra.mxu0 0
      %1176 = vmatprep.subr.bf16.mxu0 0
      %1177 = vmatpush1.bf16.xpose.msra.mxu0 0
      %1178 = vmatprep.subr.bf16.mxu0 0
      %1179 = vmatpush1.bf16.xpose.msra.mxu0 0
      %1180 = vmatprep.subr.bf16.mxu0 0
      %1181 = vmatpush1.bf16.xpose.msra.mxu0 0
      %1182 = vmatprep.subr.bf16.mxu0 0
      %1183 = vmatpush1.bf16.xpose.msra.mxu0 0
      %1184 = vmatprep.subr.bf16.mxu0 0
      %1185 = vmatpush1.bf16.xpose.msra.mxu0 0
      %1186 = vmatprep.subr.bf16.mxu0 0
      %1187 = vmatpush1.bf16.xpose.msra.mxu0 0
      %1188 = vmatprep.mubr.bf16.mxu0 0
      %1189 = vmatmul.mubr.bf16.gmra.mrb[0].mxu0 %v1109
      %v1190 = vpop.f32.mrb[0].mxu0
      %v1191 = vadd.f32 %v1082, %v1190
      %v1192 = vpop.f32.mrb[0].mxu0
      %v1193 = vpop.f32.mrb[0].mxu0
      %v1194 = vadd.f32 %v1082, %v1193
      %v1195 = vpop.f32.mrb[0].mxu0
      %1196 = vmatprep.mubr.bf16.mxu0 0
      %1197 = vmatmul.mubr.bf16.gmra.mrb[0].mxu0 %v1112
      %v1198 = vpop.f32.mrb[0].mxu0
      %v1199 = vadd.f32 %v1082, %v1198
      %v1200 = vpop.f32.mrb[0].mxu0
      %v1201 = vpop.f32.mrb[0].mxu0
      %v1202 = vadd.f32 %v1082, %v1201
      %v1203 = vpop.f32.mrb[0].mxu0
      %1204 = vmatprep.mubr.bf16.mxu0 0
      %1205 = vmatmul.mubr.bf16.gmra.mrb[0].mxu0 %v1115
      %v1206 = vpop.f32.mrb[0].mxu0
      %v1207 = vadd.f32 %v1082, %v1206
      %v1208 = vpop.f32.mrb[0].mxu0
      %v1209 = vpop.f32.mrb[0].mxu0
      %v1210 = vadd.f32 %v1082, %v1209
      %v1211 = vpop.f32.mrb[0].mxu0
      %1212 = vmatprep.mubr.bf16.mxu0 0
      %1213 = vmatmul.mubr.bf16.gmra.mrb[0].mxu0 %v1118
      %v1214 = vpop.f32.mrb[0].mxu0
      %v1215 = vadd.f32 %v1082, %v1214
      %v1216 = vpop.f32.mrb[0].mxu0
      %v1217 = vpop.f32.mrb[0].mxu0
      %v1218 = vadd.f32 %v1082, %v1217
      %v1219 = vpop.f32.mrb[0].mxu0
      %1220 = vmatprep.mubr.bf16.mxu0 0
      %1221 = vmatmul.mubr.bf16.gmra.mrb[0].mxu0 %v1121
      %v1222 = vpop.f32.mrb[0].mxu0
      %v1223 = vadd.f32 %v1082, %v1222
      %v1224 = vpop.f32.mrb[0].mxu0
      %v1225 = vpop.f32.mrb[0].mxu0
      %v1226 = vadd.f32 %v1082, %v1225
      %v1227 = vpop.f32.mrb[0].mxu0
      %1228 = vmatprep.mubr.bf16.mxu0 0
      %1229 = vmatmul.mubr.bf16.gmra.mrb[0].mxu0 %v1124
      %v1230 = vpop.f32.mrb[0].mxu0
      %v1231 = vadd.f32 %v1082, %v1230
      %v1232 = vpop.f32.mrb[0].mxu0
      %v1233 = vpop.f32.mrb[0].mxu0
      %v1234 = vadd.f32 %v1082, %v1233
      %v1235 = vpop.f32.mrb[0].mxu0
      %1236 = vmatprep.mubr.bf16.mxu0 0
      %1237 = vmatmul.mubr.bf16.gmra.mrb[0].mxu0 %v1127
      %v1238 = vpop.f32.mrb[0].mxu0
      %v1239 = vadd.f32 %v1082, %v1238
      %v1240 = vpop.f32.mrb[0].mxu0
      %v1241 = vpop.f32.mrb[0].mxu0
      %v1242 = vadd.f32 %v1082, %v1241
      %v1243 = vpop.f32.mrb[0].mxu0
      %1244 = vmatprep.mubr.bf16.mxu0 0
      %1245 = vmatmul.mubr.bf16.gmra.mrb[0].mxu0 %v1130
      %v1246 = vpop.f32.mrb[0].mxu0
      %v1247 = vadd.f32 %v1082, %v1246
      %v1248 = vpop.f32.mrb[0].mxu0
      %v1249 = vpop.f32.mrb[0].mxu0
      %v1250 = vadd.f32 %v1082, %v1249
      %v1251 = vpop.f32.mrb[0].mxu0
      %1252 = vdwg.mxu0
      %1253 = vmax.xlane.f32.xlu0 %v1191
      %v1254 = vpop.xlane.xlu0 %1253
      %1255 = vmax.xlane.f32.xlu0 %v1194
      %v1256 = vpop.xlane.xlu0 %1255
      %1257 = vmax.xlane.f32.xlu0 %v1199
      %v1258 = vpop.xlane.xlu0 %1257
      %1259 = vmax.xlane.f32.xlu0 %v1202
      %v1260 = vpop.xlane.xlu0 %1259
      %1261 = vmax.xlane.f32.xlu0 %v1207
      %v1262 = vpop.xlane.xlu0 %1261
      %1263 = vmax.xlane.f32.xlu0 %v1210
      %v1264 = vpop.xlane.xlu0 %1263
      %1265 = vmax.xlane.f32.xlu0 %v1215
      %v1266 = vpop.xlane.xlu0 %1265
      %1267 = vmax.xlane.f32.xlu0 %v1218
      %v1268 = vpop.xlane.xlu0 %1267
      %1269 = vmax.xlane.f32.xlu0 %v1223
      %v1270 = vpop.xlane.xlu0 %1269
      %1271 = vmax.xlane.f32.xlu0 %v1226
      %v1272 = vpop.xlane.xlu0 %1271
      %1273 = vmax.xlane.f32.xlu0 %v1231
      %v1274 = vpop.xlane.xlu0 %1273
      %1275 = vmax.xlane.f32.xlu0 %v1234
      %v1276 = vpop.xlane.xlu0 %1275
      %1277 = vmax.xlane.f32.xlu0 %v1239
      %v1278 = vpop.xlane.xlu0 %1277
      %1279 = vmax.xlane.f32.xlu0 %v1242
      %v1280 = vpop.xlane.xlu0 %1279
      %1281 = vmax.xlane.f32.xlu0 %v1247
      %v1282 = vpop.xlane.xlu0 %1281
      %1283 = vmax.xlane.f32.xlu0 %v1250
      %v1284 = vpop.xlane.xlu0 %1283
      %v1285 = vsub.f32 %v1191, %v1254
      %v1286 = vsub.f32 %v1194, %v1256
      %v1287 = vsub.f32 %v1199, %v1258
      %v1288 = vsub.f32 %v1202, %v1260
      %v1289 = vsub.f32 %v1207, %v1262
      %v1290 = vsub.f32 %v1210, %v1264
      %v1291 = vsub.f32 %v1215, %v1266
      %v1292 = vsub.f32 %v1218, %v1268
      %v1293 = vsub.f32 %v1223, %v1270
      %v1294 = vsub.f32 %v1226, %v1272
      %v1295 = vsub.f32 %v1231, %v1274
      %v1296 = vsub.f32 %v1234, %v1276
      %v1297 = vsub.f32 %v1239, %v1278
      %v1298 = vsub.f32 %v1242, %v1280
      %v1299 = vsub.f32 %v1247, %v1282
      %v1300 = vsub.f32 %v1250, %v1284
      %v1301 = vmul.f32 %v1285, 1.442695
      %v1302 = vpow.pop %v1301
      %v1303 = vmul.f32 %v1286, 1.442695
      %v1304 = vpow.pop %v1303
      %v1305 = vmul.f32 %v1287, 1.442695
      %v1306 = vpow.pop %v1305
      %v1307 = vmul.f32 %v1288, 1.442695
      %v1308 = vpow.pop %v1307
      %v1309 = vmul.f32 %v1289, 1.442695
      %v1310 = vpow.pop %v1309
      %v1311 = vmul.f32 %v1290, 1.442695
      %v1312 = vpow.pop %v1311
      %v1313 = vmul.f32 %v1291, 1.442695
      %v1314 = vpow.pop %v1313
      %v1315 = vmul.f32 %v1292, 1.442695
      %v1316 = vpow.pop %v1315
      %v1317 = vmul.f32 %v1293, 1.442695
      %v1318 = vpow.pop %v1317
      %v1319 = vmul.f32 %v1294, 1.442695
      %v1320 = vpow.pop %v1319
      %v1321 = vmul.f32 %v1295, 1.442695
      %v1322 = vpow.pop %v1321
      %v1323 = vmul.f32 %v1296, 1.442695
      %v1324 = vpow.pop %v1323
      %v1325 = vmul.f32 %v1297, 1.442695
      %v1326 = vpow.pop %v1325
      %v1327 = vmul.f32 %v1298, 1.442695
      %v1328 = vpow.pop %v1327
      %v1329 = vmul.f32 %v1299, 1.442695
      %v1330 = vpow.pop %v1329
      %v1331 = vmul.f32 %v1300, 1.442695
      %v1332 = vpow.pop %v1331
      %1333 = vadd.xlane.f32.xlu0 %v1302
      %v1334 = vpop.xlane.xlu0 %1333
      %1335 = vadd.xlane.f32.xlu0 %v1304
      %v1336 = vpop.xlane.xlu0 %1335
      %1337 = vadd.xlane.f32.xlu0 %v1306
      %v1338 = vpop.xlane.xlu0 %1337
      %1339 = vadd.xlane.f32.xlu0 %v1308
      %v1340 = vpop.xlane.xlu0 %1339
      %1341 = vadd.xlane.f32.xlu0 %v1310
      %v1342 = vpop.xlane.xlu0 %1341
      %1343 = vadd.xlane.f32.xlu0 %v1312
      %v1344 = vpop.xlane.xlu0 %1343
      %1345 = vadd.xlane.f32.xlu0 %v1314
      %v1346 = vpop.xlane.xlu0 %1345
      %1347 = vadd.xlane.f32.xlu0 %v1316
      %v1348 = vpop.xlane.xlu0 %1347
      %1349 = vadd.xlane.f32.xlu0 %v1318
      %v1350 = vpop.xlane.xlu0 %1349
      %1351 = vadd.xlane.f32.xlu0 %v1320
      %v1352 = vpop.xlane.xlu0 %1351
      %1353 = vadd.xlane.f32.xlu0 %v1322
      %v1354 = vpop.xlane.xlu0 %1353
      %1355 = vadd.xlane.f32.xlu0 %v1324
      %v1356 = vpop.xlane.xlu0 %1355
      %1357 = vadd.xlane.f32.xlu0 %v1326
      %v1358 = vpop.xlane.xlu0 %1357
      %1359 = vadd.xlane.f32.xlu0 %v1328
      %v1360 = vpop.xlane.xlu0 %1359
      %1361 = vadd.xlane.f32.xlu0 %v1330
      %v1362 = vpop.xlane.xlu0 %1361
      %1363 = vadd.xlane.f32.xlu0 %v1332
      %v1364 = vpop.xlane.xlu0 %1363
      %v1365 = vrcp.pop %v1334
      %v1366 = vrcp.pop %v1336
      %v1367 = vrcp.pop %v1338
      %v1368 = vrcp.pop %v1340
      %v1369 = vrcp.pop %v1342
      %v1370 = vrcp.pop %v1344
      %v1371 = vrcp.pop %v1346
      %v1372 = vrcp.pop %v1348
      %v1373 = vrcp.pop %v1350
      %v1374 = vrcp.pop %v1352
      %v1375 = vrcp.pop %v1354
      %v1376 = vrcp.pop %v1356
      %v1377 = vrcp.pop %v1358
      %v1378 = vrcp.pop %v1360
      %v1379 = vrcp.pop %v1362
      %v1380 = vrcp.pop %v1364
      %v1381 = vmul.f32 %v1302, %v1365
      %v1382 = vmul.f32 %v1304, %v1366
      %v1383 = vmul.f32 %v1306, %v1367
      %v1384 = vmul.f32 %v1308, %v1368
      %v1385 = vmul.f32 %v1310, %v1369
      %v1386 = vmul.f32 %v1312, %v1370
      %v1387 = vmul.f32 %v1314, %v1371
      %v1388 = vmul.f32 %v1316, %v1372
      %v1389 = vmul.f32 %v1318, %v1373
      %v1390 = vmul.f32 %v1320, %v1374
      %v1391 = vmul.f32 %v1322, %v1375
      %v1392 = vmul.f32 %v1324, %v1376
      %v1393 = vmul.f32 %v1326, %v1377
      %v1394 = vmul.f32 %v1328, %v1378
      %v1395 = vmul.f32 %v1330, %v1379
      %v1396 = vmul.f32 %v1332, %v1380
      %v1397 = vpack.c.bf16 %v1382, %v1381
      %v1398 = vpack.c.bf16 %v1384, %v1383
      %v1399 = vpack.c.bf16 %v1386, %v1385
      %v1400 = vpack.c.bf16 %v1388, %v1387
      %v1401 = vpack.c.bf16 %v1390, %v1389
      %v1402 = vpack.c.bf16 %v1392, %v1391
      %v1403 = vpack.c.bf16 %v1394, %v1393
      %v1404 = vpack.c.bf16 %v1396, %v1395
      %1405 = vmatprep.subr.bf16.mxu0 0
      %1406 = vmatpush1.bf16.msra.mxu0 %v1099
      %1407 = vmatprep.subr.bf16.mxu0 0
      %1408 = vmatpush1.bf16.msra.mxu0 %v1100
      %1409 = vmatprep.subr.bf16.mxu0 0
      %1410 = vmatpush1.bf16.msra.mxu0 %v1101
      %1411 = vmatprep.subr.bf16.mxu0 0
      %1412 = vmatpush1.bf16.msra.mxu0 %v1102
      %1413 = vmatprep.subr.bf16.mxu0 0
      %1414 = vmatpush1.bf16.msra.mxu0 %v1103
      %1415 = vmatprep.subr.bf16.mxu0 0
      %1416 = vmatpush1.bf16.msra.mxu0 %v1104
      %1417 = vmatprep.subr.bf16.mxu0 0
      %1418 = vmatpush1.bf16.msra.mxu0 %v1105
      %1419 = vmatprep.subr.bf16.mxu0 0
      %1420 = vmatpush1.bf16.msra.mxu0 %v1106
      %1421 = vmatprep.subr.bf16.mxu0 0
      %1422 = vmatpush1.bf16.msra.mxu0 0
      %1423 = vmatprep.subr.bf16.mxu0 0
      %1424 = vmatpush1.bf16.msra.mxu0 0
      %1425 = vmatprep.subr.bf16.mxu0 0
      %1426 = vmatpush1.bf16.msra.mxu0 0
      %1427 = vmatprep.subr.bf16.mxu0 0
      %1428 = vmatpush1.bf16.msra.mxu0 0
      %1429 = vmatprep.subr.bf16.mxu0 0
      %1430 = vmatpush1.bf16.msra.mxu0 0
      %1431 = vmatprep.subr.bf16.mxu0 0
      %1432 = vmatpush1.bf16.msra.mxu0 0
      %1433 = vmatprep.subr.bf16.mxu0 0
      %1434 = vmatpush1.bf16.msra.mxu0 0
      %1435 = vmatprep.subr.bf16.mxu0 0
      %1436 = vmatpush1.bf16.msra.mxu0 0
      %1437 = vmatprep.mubr.bf16.mxu0 0
      %1438 = vmatmul.mubr.bf16.gmra.mrb[0].mxu0 %v1397
      %v1439 = vpop.f32.mrb[0].mxu0
      %v1440 = vadd.f32 0.0, %v1439
      %v1441 = vpop.f32.mrb[0].mxu0
      %v1442 = vpop.f32.mrb[0].mxu0
      %v1443 = vadd.f32 0.0, %v1442
      %v1444 = vpop.f32.mrb[0].mxu0
      %1445 = vmatprep.mubr.bf16.mxu0 0
      %1446 = vmatmul.mubr.bf16.gmra.mrb[0].mxu0 %v1398
      %v1447 = vpop.f32.mrb[0].mxu0
      %v1448 = vadd.f32 0.0, %v1447
      %v1449 = vpop.f32.mrb[0].mxu0
      %v1450 = vpop.f32.mrb[0].mxu0
      %v1451 = vadd.f32 0.0, %v1450
      %v1452 = vpop.f32.mrb[0].mxu0
      %1453 = vmatprep.mubr.bf16.mxu0 0
      %1454 = vmatmul.mubr.bf16.gmra.mrb[0].mxu0 %v1399
      %v1455 = vpop.f32.mrb[0].mxu0
      %v1456 = vadd.f32 0.0, %v1455
      %v1457 = vpop.f32.mrb[0].mxu0
      %v1458 = vpop.f32.mrb[0].mxu0
      %v1459 = vadd.f32 0.0, %v1458
      %v1460 = vpop.f32.mrb[0].mxu0
      %1461 = vmatprep.mubr.bf16.mxu0 0
      %1462 = vmatmul.mubr.bf16.gmra.mrb[0].mxu0 %v1400
      %v1463 = vpop.f32.mrb[0].mxu0
      %v1464 = vadd.f32 0.0, %v1463
      %v1465 = vpop.f32.mrb[0].mxu0
      %v1466 = vpop.f32.mrb[0].mxu0
      %v1467 = vadd.f32 0.0, %v1466
      %v1468 = vpop.f32.mrb[0].mxu0
      %1469 = vmatprep.mubr.bf16.mxu0 0
      %1470 = vmatmul.mubr.bf16.gmra.mrb[0].mxu0 %v1401
      %v1471 = vpop.f32.mrb[0].mxu0
      %v1472 = vadd.f32 0.0, %v1471
      %v1473 = vpop.f32.mrb[0].mxu0
      %v1474 = vpop.f32.mrb[0].mxu0
      %v1475 = vadd.f32 0.0, %v1474
      %v1476 = vpop.f32.mrb[0].mxu0
      %1477 = vmatprep.mubr.bf16.mxu0 0
      %1478 = vmatmul.mubr.bf16.gmra.mrb[0].mxu0 %v1402
      %v1479 = vpop.f32.mrb[0].mxu0
      %v1480 = vadd.f32 0.0, %v1479
      %v1481 = vpop.f32.mrb[0].mxu0
      %v1482 = vpop.f32.mrb[0].mxu0
      %v1483 = vadd.f32 0.0, %v1482
      %v1484 = vpop.f32.mrb[0].mxu0
      %1485 = vmatprep.mubr.bf16.mxu0 0
      %1486 = vmatmul.mubr.bf16.gmra.mrb[0].mxu0 %v1403
      %v1487 = vpop.f32.mrb[0].mxu0
      %v1488 = vadd.f32 0.0, %v1487
      %v1489 = vpop.f32.mrb[0].mxu0
      %v1490 = vpop.f32.mrb[0].mxu0
      %v1491 = vadd.f32 0.0, %v1490
      %v1492 = vpop.f32.mrb[0].mxu0
      %1493 = vmatprep.mubr.bf16.mxu0 0
      %1494 = vmatmul.mubr.bf16.gmra.mrb[0].mxu0 %v1404
      %v1495 = vpop.f32.mrb[0].mxu0
      %v1496 = vadd.f32 0.0, %v1495
      %v1497 = vpop.f32.mrb[0].mxu0
      %v1498 = vpop.f32.mrb[0].mxu0
      %v1499 = vadd.f32 0.0, %v1498
      %v1500 = vpop.f32.mrb[0].mxu0
      %1501 = vdwg.mxu0
      %v1502 = vpack.c.bf16 %v1443, %v1440
      %v1503 = vpack.c.bf16 %v1451, %v1448
      %v1504 = vpack.c.bf16 %v1459, %v1456
      %v1505 = vpack.c.bf16 %v1467, %v1464
      %v1506 = vpack.c.bf16 %v1475, %v1472
      %v1507 = vpack.c.bf16 %v1483, %v1480
      %v1508 = vpack.c.bf16 %v1491, %v1488
      %v1509 = vpack.c.bf16 %v1499, %v1496
      %1518 = vrot.lane.b32.xlu0 %v1083, 96
      %v1519 = vpop.permute.xlu0 %1518
      %1520 = vrot.lane.b32.xlu0 %v1084, 96
      %v1521 = vpop.permute.xlu0 %1520
      %1522 = vrot.lane.b32.xlu0 %v1085, 96
      %v1523 = vpop.permute.xlu0 %1522
      %1524 = vrot.lane.b32.xlu0 %v1086, 96
      %v1525 = vpop.permute.xlu0 %1524
      %1526 = vrot.lane.b32.xlu0 %v1087, 96
      %v1527 = vpop.permute.xlu0 %1526
      %1528 = vrot.lane.b32.xlu0 %v1088, 96
      %v1529 = vpop.permute.xlu0 %1528
      %1530 = vrot.lane.b32.xlu0 %v1089, 96
      %v1531 = vpop.permute.xlu0 %1530
      %1532 = vrot.lane.b32.xlu0 %v1090, 96
      %v1533 = vpop.permute.xlu0 %1532
      %1542 = vrot.lane.b32.xlu0 %v1091, 96
      %v1543 = vpop.permute.xlu0 %1542
      %1544 = vrot.lane.b32.xlu0 %v1092, 96
      %v1545 = vpop.permute.xlu0 %1544
      %1546 = vrot.lane.b32.xlu0 %v1093, 96
      %v1547 = vpop.permute.xlu0 %1546
      %1548 = vrot.lane.b32.xlu0 %v1094, 96
      %v1549 = vpop.permute.xlu0 %1548
      %1550 = vrot.lane.b32.xlu0 %v1095, 96
      %v1551 = vpop.permute.xlu0 %1550
      %1552 = vrot.lane.b32.xlu0 %v1096, 96
      %v1553 = vpop.permute.xlu0 %1552
      %1554 = vrot.lane.b32.xlu0 %v1097, 96
      %v1555 = vpop.permute.xlu0 %1554
      %1556 = vrot.lane.b32.xlu0 %v1098, 96
      %v1557 = vpop.permute.xlu0 %1556
      %v1559 = vsel %vm1107, %v1519, 0
      %v1562 = vsel %vm1107, %v1521, 0
      %v1565 = vsel %vm1107, %v1523, 0
      %v1568 = vsel %vm1107, %v1525, 0
      %v1571 = vsel %vm1107, %v1527, 0
      %v1574 = vsel %vm1107, %v1529, 0
      %v1577 = vsel %vm1107, %v1531, 0
      %v1580 = vsel %vm1107, %v1533, 0
      %v1583 = vsel %vm1107, %v1543, 0
      %v1586 = vsel %vm1107, %v1545, 0
      %v1589 = vsel %vm1107, %v1547, 0
      %v1592 = vsel %vm1107, %v1549, 0
      %v1595 = vsel %vm1107, %v1551, 0
      %v1598 = vsel %vm1107, %v1553, 0
      %v1601 = vsel %vm1107, %v1555, 0
      %v1604 = vsel %vm1107, %v1557, 0
      %1606 = vmatprep.subr.bf16.mxu0 0
      %1607 = vmatpush1.bf16.xpose.msra.mxu0 %v1583
      %1608 = vmatprep.subr.bf16.mxu0 0
      %1609 = vmatpush1.bf16.xpose.msra.mxu0 %v1586
      %1610 = vmatprep.subr.bf16.mxu0 0
      %1611 = vmatpush1.bf16.xpose.msra.mxu0 %v1589
      %1612 = vmatprep.subr.bf16.mxu0 0
      %1613 = vmatpush1.bf16.xpose.msra.mxu0 %v1592
      %1614 = vmatprep.subr.bf16.mxu0 0
      %1615 = vmatpush1.bf16.xpose.msra.mxu0 %v1595
      %1616 = vmatprep.subr.bf16.mxu0 0
      %1617 = vmatpush1.bf16.xpose.msra.mxu0 %v1598
      %1618 = vmatprep.subr.bf16.mxu0 0
      %1619 = vmatpush1.bf16.xpose.msra.mxu0 %v1601
      %1620 = vmatprep.subr.bf16.mxu0 0
      %1621 = vmatpush1.bf16.xpose.msra.mxu0 %v1604
      %1622 = vmatprep.subr.bf16.mxu0 0
      %1623 = vmatpush1.bf16.xpose.msra.mxu0 0
      %1624 = vmatprep.subr.bf16.mxu0 0
      %1625 = vmatpush1.bf16.xpose.msra.mxu0 0
      %1626 = vmatprep.subr.bf16.mxu0 0
      %1627 = vmatpush1.bf16.xpose.msra.mxu0 0
      %1628 = vmatprep.subr.bf16.mxu0 0
      %1629 = vmatpush1.bf16.xpose.msra.mxu0 0
      %1630 = vmatprep.subr.bf16.mxu0 0
      %1631 = vmatpush1.bf16.xpose.msra.mxu0 0
      %1632 = vmatprep.subr.bf16.mxu0 0
      %1633 = vmatpush1.bf16.xpose.msra.mxu0 0
      %1634 = vmatprep.subr.bf16.mxu0 0
      %1635 = vmatpush1.bf16.xpose.msra.mxu0 0
      %1636 = vmatprep.subr.bf16.mxu0 0
      %1637 = vmatpush1.bf16.xpose.msra.mxu0 0
      %1638 = vmatprep.mubr.bf16.mxu0 0
      %1639 = vmatmul.mubr.bf16.gmra.mrb[0].mxu0 %v1559
      %v1640 = vpop.f32.mrb[0].mxu0
      %v1641 = vadd.f32 %v1082, %v1640
      %v1642 = vpop.f32.mrb[0].mxu0
      %v1643 = vpop.f32.mrb[0].mxu0
      %v1644 = vadd.f32 %v1082, %v1643
      %v1645 = vpop.f32.mrb[0].mxu0
      %1646 = vmatprep.mubr.bf16.mxu0 0
      %1647 = vmatmul.mubr.bf16.gmra.mrb[0].mxu0 %v1562
      %v1648 = vpop.f32.mrb[0].mxu0
      %v1649 = vadd.f32 %v1082, %v1648
      %v1650 = vpop.f32.mrb[0].mxu0
      %v1651 = vpop.f32.mrb[0].mxu0
      %v1652 = vadd.f32 %v1082, %v1651
      %v1653 = vpop.f32.mrb[0].mxu0
      %1654 = vmatprep.mubr.bf16.mxu0 0
      %1655 = vmatmul.mubr.bf16.gmra.mrb[0].mxu0 %v1565
      %v1656 = vpop.f32.mrb[0].mxu0
      %v1657 = vadd.f32 %v1082, %v1656
      %v1658 = vpop.f32.mrb[0].mxu0
      %v1659 = vpop.f32.mrb[0].mxu0
      %v1660 = vadd.f32 %v1082, %v1659
      %v1661 = vpop.f32.mrb[0].mxu0
      %1662 = vmatprep.mubr.bf16.mxu0 0
      %1663 = vmatmul.mubr.bf16.gmra.mrb[0].mxu0 %v1568
      %v1664 = vpop.f32.mrb[0].mxu0
      %v1665 = vadd.f32 %v1082, %v1664
      %v1666 = vpop.f32.mrb[0].mxu0
      %v1667 = vpop.f32.mrb[0].mxu0
      %v1668 = vadd.f32 %v1082, %v1667
      %v1669 = vpop.f32.mrb[0].mxu0
      %1670 = vmatprep.mubr.bf16.mxu0 0
      %1671 = vmatmul.mubr.bf16.gmra.mrb[0].mxu0 %v1571
      %v1672 = vpop.f32.mrb[0].mxu0
      %v1673 = vadd.f32 %v1082, %v1672
      %v1674 = vpop.f32.mrb[0].mxu0
      %v1675 = vpop.f32.mrb[0].mxu0
      %v1676 = vadd.f32 %v1082, %v1675
      %v1677 = vpop.f32.mrb[0].mxu0
      %1678 = vmatprep.mubr.bf16.mxu0 0
      %1679 = vmatmul.mubr.bf16.gmra.mrb[0].mxu0 %v1574
      %v1680 = vpop.f32.mrb[0].mxu0
      %v1681 = vadd.f32 %v1082, %v1680
      %v1682 = vpop.f32.mrb[0].mxu0
      %v1683 = vpop.f32.mrb[0].mxu0
      %v1684 = vadd.f32 %v1082, %v1683
      %v1685 = vpop.f32.mrb[0].mxu0
      %1686 = vmatprep.mubr.bf16.mxu0 0
      %1687 = vmatmul.mubr.bf16.gmra.mrb[0].mxu0 %v1577
      %v1688 = vpop.f32.mrb[0].mxu0
      %v1689 = vadd.f32 %v1082, %v1688
      %v1690 = vpop.f32.mrb[0].mxu0
      %v1691 = vpop.f32.mrb[0].mxu0
      %v1692 = vadd.f32 %v1082, %v1691
      %v1693 = vpop.f32.mrb[0].mxu0
      %1694 = vmatprep.mubr.bf16.mxu0 0
      %1695 = vmatmul.mubr.bf16.gmra.mrb[0].mxu0 %v1580
      %v1696 = vpop.f32.mrb[0].mxu0
      %v1697 = vadd.f32 %v1082, %v1696
      %v1698 = vpop.f32.mrb[0].mxu0
      %v1699 = vpop.f32.mrb[0].mxu0
      %v1700 = vadd.f32 %v1082, %v1699
      %v1701 = vpop.f32.mrb[0].mxu0
      %1702 = vdwg.mxu0
      %1703 = vmax.xlane.f32.xlu0 %v1641
      %v1704 = vpop.xlane.xlu0 %1703
      %1705 = vmax.xlane.f32.xlu0 %v1644
      %v1706 = vpop.xlane.xlu0 %1705
      %1707 = vmax.xlane.f32.xlu0 %v1649
      %v1708 = vpop.xlane.xlu0 %1707
      %1709 = vmax.xlane.f32.xlu0 %v1652
      %v1710 = vpop.xlane.xlu0 %1709
      %1711 = vmax.xlane.f32.xlu0 %v1657
      %v1712 = vpop.xlane.xlu0 %1711
      %1713 = vmax.xlane.f32.xlu0 %v1660
      %v1714 = vpop.xlane.xlu0 %1713
      %1715 = vmax.xlane.f32.xlu0 %v1665
      %v1716 = vpop.xlane.xlu0 %1715
      %1717 = vmax.xlane.f32.xlu0 %v1668
      %v1718 = vpop.xlane.xlu0 %1717
      %1719 = vmax.xlane.f32.xlu0 %v1673
      %v1720 = vpop.xlane.xlu0 %1719
      %1721 = vmax.xlane.f32.xlu0 %v1676
      %v1722 = vpop.xlane.xlu0 %1721
      %1723 = vmax.xlane.f32.xlu0 %v1681
      %v1724 = vpop.xlane.xlu0 %1723
      %1725 = vmax.xlane.f32.xlu0 %v1684
      %v1726 = vpop.xlane.xlu0 %1725
      %1727 = vmax.xlane.f32.xlu0 %v1689
      %v1728 = vpop.xlane.xlu0 %1727
      %1729 = vmax.xlane.f32.xlu0 %v1692
      %v1730 = vpop.xlane.xlu0 %1729
      %1731 = vmax.xlane.f32.xlu0 %v1697
      %v1732 = vpop.xlane.xlu0 %1731
      %1733 = vmax.xlane.f32.xlu0 %v1700
      %v1734 = vpop.xlane.xlu0 %1733
      %v1735 = vsub.f32 %v1641, %v1704
      %v1736 = vsub.f32 %v1644, %v1706
      %v1737 = vsub.f32 %v1649, %v1708
      %v1738 = vsub.f32 %v1652, %v1710
      %v1739 = vsub.f32 %v1657, %v1712
      %v1740 = vsub.f32 %v1660, %v1714
      %v1741 = vsub.f32 %v1665, %v1716
      %v1742 = vsub.f32 %v1668, %v1718
      %v1743 = vsub.f32 %v1673, %v1720
      %v1744 = vsub.f32 %v1676, %v1722
      %v1745 = vsub.f32 %v1681, %v1724
      %v1746 = vsub.f32 %v1684, %v1726
      %v1747 = vsub.f32 %v1689, %v1728
      %v1748 = vsub.f32 %v1692, %v1730
      %v1749 = vsub.f32 %v1697, %v1732
      %v1750 = vsub.f32 %v1700, %v1734
      %v1751 = vmul.f32 %v1735, 1.442695
      %v1752 = vpow.pop %v1751
      %v1753 = vmul.f32 %v1736, 1.442695
      %v1754 = vpow.pop %v1753
      %v1755 = vmul.f32 %v1737, 1.442695
      %v1756 = vpow.pop %v1755
      %v1757 = vmul.f32 %v1738, 1.442695
      %v1758 = vpow.pop %v1757
      %v1759 = vmul.f32 %v1739, 1.442695
      %v1760 = vpow.pop %v1759
      %v1761 = vmul.f32 %v1740, 1.442695
      %v1762 = vpow.pop %v1761
      %v1763 = vmul.f32 %v1741, 1.442695
      %v1764 = vpow.pop %v1763
      %v1765 = vmul.f32 %v1742, 1.442695
      %v1766 = vpow.pop %v1765
      %v1767 = vmul.f32 %v1743, 1.442695
      %v1768 = vpow.pop %v1767
      %v1769 = vmul.f32 %v1744, 1.442695
      %v1770 = vpow.pop %v1769
      %v1771 = vmul.f32 %v1745, 1.442695
      %v1772 = vpow.pop %v1771
      %v1773 = vmul.f32 %v1746, 1.442695
      %v1774 = vpow.pop %v1773
      %v1775 = vmul.f32 %v1747, 1.442695
      %v1776 = vpow.pop %v1775
      %v1777 = vmul.f32 %v1748, 1.442695
      %v1778 = vpow.pop %v1777
      %v1779 = vmul.f32 %v1749, 1.442695
      %v1780 = vpow.pop %v1779
      %v1781 = vmul.f32 %v1750, 1.442695
      %v1782 = vpow.pop %v1781
      %1783 = vadd.xlane.f32.xlu0 %v1752
      %v1784 = vpop.xlane.xlu0 %1783
      %1785 = vadd.xlane.f32.xlu0 %v1754
      %v1786 = vpop.xlane.xlu0 %1785
      %1787 = vadd.xlane.f32.xlu0 %v1756
      %v1788 = vpop.xlane.xlu0 %1787
      %1789 = vadd.xlane.f32.xlu0 %v1758
      %v1790 = vpop.xlane.xlu0 %1789
      %1791 = vadd.xlane.f32.xlu0 %v1760
      %v1792 = vpop.xlane.xlu0 %1791
      %1793 = vadd.xlane.f32.xlu0 %v1762
      %v1794 = vpop.xlane.xlu0 %1793
      %1795 = vadd.xlane.f32.xlu0 %v1764
      %v1796 = vpop.xlane.xlu0 %1795
      %1797 = vadd.xlane.f32.xlu0 %v1766
      %v1798 = vpop.xlane.xlu0 %1797
      %1799 = vadd.xlane.f32.xlu0 %v1768
      %v1800 = vpop.xlane.xlu0 %1799
      %1801 = vadd.xlane.f32.xlu0 %v1770
      %v1802 = vpop.xlane.xlu0 %1801
      %1803 = vadd.xlane.f32.xlu0 %v1772
      %v1804 = vpop.xlane.xlu0 %1803
      %1805 = vadd.xlane.f32.xlu0 %v1774
      %v1806 = vpop.xlane.xlu0 %1805
      %1807 = vadd.xlane.f32.xlu0 %v1776
      %v1808 = vpop.xlane.xlu0 %1807
      %1809 = vadd.xlane.f32.xlu0 %v1778
      %v1810 = vpop.xlane.xlu0 %1809
      %1811 = vadd.xlane.f32.xlu0 %v1780
      %v1812 = vpop.xlane.xlu0 %1811
      %1813 = vadd.xlane.f32.xlu0 %v1782
      %v1814 = vpop.xlane.xlu0 %1813
      %v1815 = vrcp.pop %v1784
      %v1816 = vrcp.pop %v1786
      %v1817 = vrcp.pop %v1788
      %v1818 = vrcp.pop %v1790
      %v1819 = vrcp.pop %v1792
      %v1820 = vrcp.pop %v1794
      %v1821 = vrcp.pop %v1796
      %v1822 = vrcp.pop %v1798
      %v1823 = vrcp.pop %v1800
      %v1824 = vrcp.pop %v1802
      %v1825 = vrcp.pop %v1804
      %v1826 = vrcp.pop %v1806
      %v1827 = vrcp.pop %v1808
      %v1828 = vrcp.pop %v1810
      %v1829 = vrcp.pop %v1812
      %v1830 = vrcp.pop %v1814
      %v1831 = vmul.f32 %v1752, %v1815
      %v1832 = vmul.f32 %v1754, %v1816
      %v1833 = vmul.f32 %v1756, %v1817
      %v1834 = vmul.f32 %v1758, %v1818
      %v1835 = vmul.f32 %v1760, %v1819
      %v1836 = vmul.f32 %v1762, %v1820
      %v1837 = vmul.f32 %v1764, %v1821
      %v1838 = vmul.f32 %v1766, %v1822
      %v1839 = vmul.f32 %v1768, %v1823
      %v1840 = vmul.f32 %v1770, %v1824
      %v1841 = vmul.f32 %v1772, %v1825
      %v1842 = vmul.f32 %v1774, %v1826
      %v1843 = vmul.f32 %v1776, %v1827
      %v1844 = vmul.f32 %v1778, %v1828
      %v1845 = vmul.f32 %v1780, %v1829
      %v1846 = vmul.f32 %v1782, %v1830
      %v1847 = vpack.c.bf16 %v1832, %v1831
      %v1848 = vpack.c.bf16 %v1834, %v1833
      %v1849 = vpack.c.bf16 %v1836, %v1835
      %v1850 = vpack.c.bf16 %v1838, %v1837
      %v1851 = vpack.c.bf16 %v1840, %v1839
      %v1852 = vpack.c.bf16 %v1842, %v1841
      %v1853 = vpack.c.bf16 %v1844, %v1843
      %v1854 = vpack.c.bf16 %v1846, %v1845
      %1863 = vrot.lane.b32.xlu0 %v1099, 96
      %v1864 = vpop.permute.xlu0 %1863
      %1865 = vrot.lane.b32.xlu0 %v1100, 96
      %v1866 = vpop.permute.xlu0 %1865
      %1867 = vrot.lane.b32.xlu0 %v1101, 96
      %v1868 = vpop.permute.xlu0 %1867
      %1869 = vrot.lane.b32.xlu0 %v1102, 96
      %v1870 = vpop.permute.xlu0 %1869
      %1871 = vrot.lane.b32.xlu0 %v1103, 96
      %v1872 = vpop.permute.xlu0 %1871
      %1873 = vrot.lane.b32.xlu0 %v1104, 96
      %v1874 = vpop.permute.xlu0 %1873
      %1875 = vrot.lane.b32.xlu0 %v1105, 96
      %v1876 = vpop.permute.xlu0 %1875
      %1877 = vrot.lane.b32.xlu0 %v1106, 96
      %v1878 = vpop.permute.xlu0 %1877
      %1887 = vmatprep.subr.bf16.mxu0 0
      %1888 = vmatpush1.bf16.msra.mxu0 %v1864
      %1889 = vmatprep.subr.bf16.mxu0 0
      %1890 = vmatpush1.bf16.msra.mxu0 %v1866
      %1891 = vmatprep.subr.bf16.mxu0 0
      %1892 = vmatpush1.bf16.msra.mxu0 %v1868
      %1893 = vmatprep.subr.bf16.mxu0 0
      %1894 = vmatpush1.bf16.msra.mxu0 %v1870
      %1895 = vmatprep.subr.bf16.mxu0 0
      %1896 = vmatpush1.bf16.msra.mxu0 %v1872
      %1897 = vmatprep.subr.bf16.mxu0 0
      %1898 = vmatpush1.bf16.msra.mxu0 %v1874
      %1899 = vmatprep.subr.bf16.mxu0 0
      %1900 = vmatpush1.bf16.msra.mxu0 %v1876
      %1901 = vmatprep.subr.bf16.mxu0 0
      %1902 = vmatpush1.bf16.msra.mxu0 %v1878
      %1903 = vmatprep.subr.bf16.mxu0 0
      %1904 = vmatpush1.bf16.msra.mxu0 0
      %1905 = vmatprep.subr.bf16.mxu0 0
      %1906 = vmatpush1.bf16.msra.mxu0 0
      %1907 = vmatprep.subr.bf16.mxu0 0
      %1908 = vmatpush1.bf16.msra.mxu0 0
      %1909 = vmatprep.subr.bf16.mxu0 0
      %1910 = vmatpush1.bf16.msra.mxu0 0
      %1911 = vmatprep.subr.bf16.mxu0 0
      %1912 = vmatpush1.bf16.msra.mxu0 0
      %1913 = vmatprep.subr.bf16.mxu0 0
      %1914 = vmatpush1.bf16.msra.mxu0 0
      %1915 = vmatprep.subr.bf16.mxu0 0
      %1916 = vmatpush1.bf16.msra.mxu0 0
      %1917 = vmatprep.subr.bf16.mxu0 0
      %1918 = vmatpush1.bf16.msra.mxu0 0
      %1919 = vmatprep.mubr.bf16.mxu0 0
      %1920 = vmatmul.mubr.bf16.gmra.mrb[0].mxu0 %v1847
      %v1921 = vpop.f32.mrb[0].mxu0
      %v1922 = vadd.f32 0.0, %v1921
      %v1923 = vpop.f32.mrb[0].mxu0
      %v1924 = vpop.f32.mrb[0].mxu0
      %v1925 = vadd.f32 0.0, %v1924
      %v1926 = vpop.f32.mrb[0].mxu0
      %1927 = vmatprep.mubr.bf16.mxu0 0
      %1928 = vmatmul.mubr.bf16.gmra.mrb[0].mxu0 %v1848
      %v1929 = vpop.f32.mrb[0].mxu0
      %v1930 = vadd.f32 0.0, %v1929
      %v1931 = vpop.f32.mrb[0].mxu0
      %v1932 = vpop.f32.mrb[0].mxu0
      %v1933 = vadd.f32 0.0, %v1932
      %v1934 = vpop.f32.mrb[0].mxu0
      %1935 = vmatprep.mubr.bf16.mxu0 0
      %1936 = vmatmul.mubr.bf16.gmra.mrb[0].mxu0 %v1849
      %v1937 = vpop.f32.mrb[0].mxu0
      %v1938 = vadd.f32 0.0, %v1937
      %v1939 = vpop.f32.mrb[0].mxu0
      %v1940 = vpop.f32.mrb[0].mxu0
      %v1941 = vadd.f32 0.0, %v1940
      %v1942 = vpop.f32.mrb[0].mxu0
      %1943 = vmatprep.mubr.bf16.mxu0 0
      %1944 = vmatmul.mubr.bf16.gmra.mrb[0].mxu0 %v1850
      %v1945 = vpop.f32.mrb[0].mxu0
      %v1946 = vadd.f32 0.0, %v1945
      %v1947 = vpop.f32.mrb[0].mxu0
      %v1948 = vpop.f32.mrb[0].mxu0
      %v1949 = vadd.f32 0.0, %v1948
      %v1950 = vpop.f32.mrb[0].mxu0
      %1951 = vmatprep.mubr.bf16.mxu0 0
      %1952 = vmatmul.mubr.bf16.gmra.mrb[0].mxu0 %v1851
      %v1953 = vpop.f32.mrb[0].mxu0
      %v1954 = vadd.f32 0.0, %v1953
      %v1955 = vpop.f32.mrb[0].mxu0
      %v1956 = vpop.f32.mrb[0].mxu0
      %v1957 = vadd.f32 0.0, %v1956
      %v1958 = vpop.f32.mrb[0].mxu0
      %1959 = vmatprep.mubr.bf16.mxu0 0
      %1960 = vmatmul.mubr.bf16.gmra.mrb[0].mxu0 %v1852
      %v1961 = vpop.f32.mrb[0].mxu0
      %v1962 = vadd.f32 0.0, %v1961
      %v1963 = vpop.f32.mrb[0].mxu0
      %v1964 = vpop.f32.mrb[0].mxu0
      %v1965 = vadd.f32 0.0, %v1964
      %v1966 = vpop.f32.mrb[0].mxu0
      %1967 = vmatprep.mubr.bf16.mxu0 0
      %1968 = vmatmul.mubr.bf16.gmra.mrb[0].mxu0 %v1853
      %v1969 = vpop.f32.mrb[0].mxu0
      %v1970 = vadd.f32 0.0, %v1969
      %v1971 = vpop.f32.mrb[0].mxu0
      %v1972 = vpop.f32.mrb[0].mxu0
      %v1973 = vadd.f32 0.0, %v1972
      %v1974 = vpop.f32.mrb[0].mxu0
      %1975 = vmatprep.mubr.bf16.mxu0 0
      %1976 = vmatmul.mubr.bf16.gmra.mrb[0].mxu0 %v1854
      %v1977 = vpop.f32.mrb[0].mxu0
      %v1978 = vadd.f32 0.0, %v1977
      %v1979 = vpop.f32.mrb[0].mxu0
      %v1980 = vpop.f32.mrb[0].mxu0
      %v1981 = vadd.f32 0.0, %v1980
      %v1982 = vpop.f32.mrb[0].mxu0
      %1983 = vdwg.mxu0
      %v1984 = vpack.c.bf16 %v1925, %v1922
      %v1985 = vpack.c.bf16 %v1933, %v1930
      %v1986 = vpack.c.bf16 %v1941, %v1938
      %v1987 = vpack.c.bf16 %v1949, %v1946
      %v1988 = vpack.c.bf16 %v1957, %v1954
      %v1989 = vpack.c.bf16 %v1965, %v1962
      %v1990 = vpack.c.bf16 %v1973, %v1970
      %v1991 = vpack.c.bf16 %v1981, %v1978
      %1992 = vrot.lane.b32.xlu0 %v1083, 64
      %v1993 = vpop.permute.xlu0 %1992
      %1994 = vrot.lane.b32.xlu0 %v1084, 64
      %v1995 = vpop.permute.xlu0 %1994
      %1996 = vrot.lane.b32.xlu0 %v1085, 64
      %v1997 = vpop.permute.xlu0 %1996
      %1998 = vrot.lane.b32.xlu0 %v1086, 64
      %v1999 = vpop.permute.xlu0 %1998
      %2000 = vrot.lane.b32.xlu0 %v1087, 64
      %v2001 = vpop.permute.xlu0 %2000
      %2002 = vrot.lane.b32.xlu0 %v1088, 64
      %v2003 = vpop.permute.xlu0 %2002
      %2004 = vrot.lane.b32.xlu0 %v1089, 64
      %v2005 = vpop.permute.xlu0 %2004
      %2006 = vrot.lane.b32.xlu0 %v1090, 64
      %v2007 = vpop.permute.xlu0 %2006
      %2008 = vrot.lane.b32.xlu0 %v1091, 64
      %v2009 = vpop.permute.xlu0 %2008
      %2010 = vrot.lane.b32.xlu0 %v1092, 64
      %v2011 = vpop.permute.xlu0 %2010
      %2012 = vrot.lane.b32.xlu0 %v1093, 64
      %v2013 = vpop.permute.xlu0 %2012
      %2014 = vrot.lane.b32.xlu0 %v1094, 64
      %v2015 = vpop.permute.xlu0 %2014
      %2016 = vrot.lane.b32.xlu0 %v1095, 64
      %v2017 = vpop.permute.xlu0 %2016
      %2018 = vrot.lane.b32.xlu0 %v1096, 64
      %v2019 = vpop.permute.xlu0 %2018
      %2020 = vrot.lane.b32.xlu0 %v1097, 64
      %v2021 = vpop.permute.xlu0 %2020
      %2022 = vrot.lane.b32.xlu0 %v1098, 64
      %v2023 = vpop.permute.xlu0 %2022
      %v2025 = vsel %vm1107, %v1993, 0
      %v2028 = vsel %vm1107, %v1995, 0
      %v2031 = vsel %vm1107, %v1997, 0
      %v2034 = vsel %vm1107, %v1999, 0
      %v2037 = vsel %vm1107, %v2001, 0
      %v2040 = vsel %vm1107, %v2003, 0
      %v2043 = vsel %vm1107, %v2005, 0
      %v2046 = vsel %vm1107, %v2007, 0
      %v2049 = vsel %vm1107, %v2009, 0
      %v2052 = vsel %vm1107, %v2011, 0
      %v2055 = vsel %vm1107, %v2013, 0
      %v2058 = vsel %vm1107, %v2015, 0
      %v2061 = vsel %vm1107, %v2017, 0
      %v2064 = vsel %vm1107, %v2019, 0
      %v2067 = vsel %vm1107, %v2021, 0
      %v2070 = vsel %vm1107, %v2023, 0
      %2072 = vmatprep.subr.bf16.mxu0 0
      %2073 = vmatpush1.bf16.xpose.msra.mxu0 %v2049
      %2074 = vmatprep.subr.bf16.mxu0 0
      %2075 = vmatpush1.bf16.xpose.msra.mxu0 %v2052
      %2076 = vmatprep.subr.bf16.mxu0 0
      %2077 = vmatpush1.bf16.xpose.msra.mxu0 %v2055
      %2078 = vmatprep.subr.bf16.mxu0 0
      %2079 = vmatpush1.bf16.xpose.msra.mxu0 %v2058
      %2080 = vmatprep.subr.bf16.mxu0 0
      %2081 = vmatpush1.bf16.xpose.msra.mxu0 %v2061
      %2082 = vmatprep.subr.bf16.mxu0 0
      %2083 = vmatpush1.bf16.xpose.msra.mxu0 %v2064
      %2084 = vmatprep.subr.bf16.mxu0 0
      %2085 = vmatpush1.bf16.xpose.msra.mxu0 %v2067
      %2086 = vmatprep.subr.bf16.mxu0 0
      %2087 = vmatpush1.bf16.xpose.msra.mxu0 %v2070
      %2088 = vmatprep.subr.bf16.mxu0 0
      %2089 = vmatpush1.bf16.xpose.msra.mxu0 0
      %2090 = vmatprep.subr.bf16.mxu0 0
      %2091 = vmatpush1.bf16.xpose.msra.mxu0 0
      %2092 = vmatprep.subr.bf16.mxu0 0
      %2093 = vmatpush1.bf16.xpose.msra.mxu0 0
      %2094 = vmatprep.subr.bf16.mxu0 0
      %2095 = vmatpush1.bf16.xpose.msra.mxu0 0
      %2096 = vmatprep.subr.bf16.mxu0 0
      %2097 = vmatpush1.bf16.xpose.msra.mxu0 0
      %2098 = vmatprep.subr.bf16.mxu0 0
      %2099 = vmatpush1.bf16.xpose.msra.mxu0 0
      %2100 = vmatprep.subr.bf16.mxu0 0
      %2101 = vmatpush1.bf16.xpose.msra.mxu0 0
      %2102 = vmatprep.subr.bf16.mxu0 0
      %2103 = vmatpush1.bf16.xpose.msra.mxu0 0
      %2104 = vmatprep.mubr.bf16.mxu0 0
      %2105 = vmatmul.mubr.bf16.gmra.mrb[0].mxu0 %v2025
      %v2106 = vpop.f32.mrb[0].mxu0
      %v2107 = vadd.f32 %v1082, %v2106
      %v2108 = vpop.f32.mrb[0].mxu0
      %v2109 = vpop.f32.mrb[0].mxu0
      %v2110 = vadd.f32 %v1082, %v2109
      %v2111 = vpop.f32.mrb[0].mxu0
      %2112 = vmatprep.mubr.bf16.mxu0 0
      %2113 = vmatmul.mubr.bf16.gmra.mrb[0].mxu0 %v2028
      %v2114 = vpop.f32.mrb[0].mxu0
      %v2115 = vadd.f32 %v1082, %v2114
      %v2116 = vpop.f32.mrb[0].mxu0
      %v2117 = vpop.f32.mrb[0].mxu0
      %v2118 = vadd.f32 %v1082, %v2117
      %v2119 = vpop.f32.mrb[0].mxu0
      %2120 = vmatprep.mubr.bf16.mxu0 0
      %2121 = vmatmul.mubr.bf16.gmra.mrb[0].mxu0 %v2031
      %v2122 = vpop.f32.mrb[0].mxu0
      %v2123 = vadd.f32 %v1082, %v2122
      %v2124 = vpop.f32.mrb[0].mxu0
      %v2125 = vpop.f32.mrb[0].mxu0
      %v2126 = vadd.f32 %v1082, %v2125
      %v2127 = vpop.f32.mrb[0].mxu0
      %2128 = vmatprep.mubr.bf16.mxu0 0
      %2129 = vmatmul.mubr.bf16.gmra.mrb[0].mxu0 %v2034
      %v2130 = vpop.f32.mrb[0].mxu0
      %v2131 = vadd.f32 %v1082, %v2130
      %v2132 = vpop.f32.mrb[0].mxu0
      %v2133 = vpop.f32.mrb[0].mxu0
      %v2134 = vadd.f32 %v1082, %v2133
      %v2135 = vpop.f32.mrb[0].mxu0
      %2136 = vmatprep.mubr.bf16.mxu0 0
      %2137 = vmatmul.mubr.bf16.gmra.mrb[0].mxu0 %v2037
      %v2138 = vpop.f32.mrb[0].mxu0
      %v2139 = vadd.f32 %v1082, %v2138
      %v2140 = vpop.f32.mrb[0].mxu0
      %v2141 = vpop.f32.mrb[0].mxu0
      %v2142 = vadd.f32 %v1082, %v2141
      %v2143 = vpop.f32.mrb[0].mxu0
      %2144 = vmatprep.mubr.bf16.mxu0 0
      %2145 = vmatmul.mubr.bf16.gmra.mrb[0].mxu0 %v2040
      %v2146 = vpop.f32.mrb[0].mxu0
      %v2147 = vadd.f32 %v1082, %v2146
      %v2148 = vpop.f32.mrb[0].mxu0
      %v2149 = vpop.f32.mrb[0].mxu0
      %v2150 = vadd.f32 %v1082, %v2149
      %v2151 = vpop.f32.mrb[0].mxu0
      %2152 = vmatprep.mubr.bf16.mxu0 0
      %2153 = vmatmul.mubr.bf16.gmra.mrb[0].mxu0 %v2043
      %v2154 = vpop.f32.mrb[0].mxu0
      %v2155 = vadd.f32 %v1082, %v2154
      %v2156 = vpop.f32.mrb[0].mxu0
      %v2157 = vpop.f32.mrb[0].mxu0
      %v2158 = vadd.f32 %v1082, %v2157
      %v2159 = vpop.f32.mrb[0].mxu0
      %2160 = vmatprep.mubr.bf16.mxu0 0
      %2161 = vmatmul.mubr.bf16.gmra.mrb[0].mxu0 %v2046
      %v2162 = vpop.f32.mrb[0].mxu0
      %v2163 = vadd.f32 %v1082, %v2162
      %v2164 = vpop.f32.mrb[0].mxu0
      %v2165 = vpop.f32.mrb[0].mxu0
      %v2166 = vadd.f32 %v1082, %v2165
      %v2167 = vpop.f32.mrb[0].mxu0
      %2168 = vdwg.mxu0
      %2169 = vmax.xlane.f32.xlu0 %v2107
      %v2170 = vpop.xlane.xlu0 %2169
      %2171 = vmax.xlane.f32.xlu0 %v2110
      %v2172 = vpop.xlane.xlu0 %2171
      %2173 = vmax.xlane.f32.xlu0 %v2115
      %v2174 = vpop.xlane.xlu0 %2173
      %2175 = vmax.xlane.f32.xlu0 %v2118
      %v2176 = vpop.xlane.xlu0 %2175
      %2177 = vmax.xlane.f32.xlu0 %v2123
      %v2178 = vpop.xlane.xlu0 %2177
      %2179 = vmax.xlane.f32.xlu0 %v2126
      %v2180 = vpop.xlane.xlu0 %2179
      %2181 = vmax.xlane.f32.xlu0 %v2131
      %v2182 = vpop.xlane.xlu0 %2181
      %2183 = vmax.xlane.f32.xlu0 %v2134
      %v2184 = vpop.xlane.xlu0 %2183
      %2185 = vmax.xlane.f32.xlu0 %v2139
      %v2186 = vpop.xlane.xlu0 %2185
      %2187 = vmax.xlane.f32.xlu0 %v2142
      %v2188 = vpop.xlane.xlu0 %2187
      %2189 = vmax.xlane.f32.xlu0 %v2147
      %v2190 = vpop.xlane.xlu0 %2189
      %2191 = vmax.xlane.f32.xlu0 %v2150
      %v2192 = vpop.xlane.xlu0 %2191
      %2193 = vmax.xlane.f32.xlu0 %v2155
      %v2194 = vpop.xlane.xlu0 %2193
      %2195 = vmax.xlane.f32.xlu0 %v2158
      %v2196 = vpop.xlane.xlu0 %2195
      %2197 = vmax.xlane.f32.xlu0 %v2163
      %v2198 = vpop.xlane.xlu0 %2197
      %2199 = vmax.xlane.f32.xlu0 %v2166
      %v2200 = vpop.xlane.xlu0 %2199
      %v2201 = vsub.f32 %v2107, %v2170
      %v2202 = vsub.f32 %v2110, %v2172
      %v2203 = vsub.f32 %v2115, %v2174
      %v2204 = vsub.f32 %v2118, %v2176
      %v2205 = vsub.f32 %v2123, %v2178
      %v2206 = vsub.f32 %v2126, %v2180
      %v2207 = vsub.f32 %v2131, %v2182
      %v2208 = vsub.f32 %v2134, %v2184
      %v2209 = vsub.f32 %v2139, %v2186
      %v2210 = vsub.f32 %v2142, %v2188
      %v2211 = vsub.f32 %v2147, %v2190
      %v2212 = vsub.f32 %v2150, %v2192
      %v2213 = vsub.f32 %v2155, %v2194
      %v2214 = vsub.f32 %v2158, %v2196
      %v2215 = vsub.f32 %v2163, %v2198
      %v2216 = vsub.f32 %v2166, %v2200
      %v2217 = vmul.f32 %v2201, 1.442695
      %v2218 = vpow.pop %v2217
      %v2219 = vmul.f32 %v2202, 1.442695
      %v2220 = vpow.pop %v2219
      %v2221 = vmul.f32 %v2203, 1.442695
      %v2222 = vpow.pop %v2221
      %v2223 = vmul.f32 %v2204, 1.442695
      %v2224 = vpow.pop %v2223
      %v2225 = vmul.f32 %v2205, 1.442695
      %v2226 = vpow.pop %v2225
      %v2227 = vmul.f32 %v2206, 1.442695
      %v2228 = vpow.pop %v2227
      %v2229 = vmul.f32 %v2207, 1.442695
      %v2230 = vpow.pop %v2229
      %v2231 = vmul.f32 %v2208, 1.442695
      %v2232 = vpow.pop %v2231
      %v2233 = vmul.f32 %v2209, 1.442695
      %v2234 = vpow.pop %v2233
      %v2235 = vmul.f32 %v2210, 1.442695
      %v2236 = vpow.pop %v2235
      %v2237 = vmul.f32 %v2211, 1.442695
      %v2238 = vpow.pop %v2237
      %v2239 = vmul.f32 %v2212, 1.442695
      %v2240 = vpow.pop %v2239
      %v2241 = vmul.f32 %v2213, 1.442695
      %v2242 = vpow.pop %v2241
      %v2243 = vmul.f32 %v2214, 1.442695
      %v2244 = vpow.pop %v2243
      %v2245 = vmul.f32 %v2215, 1.442695
      %v2246 = vpow.pop %v2245
      %v2247 = vmul.f32 %v2216, 1.442695
      %v2248 = vpow.pop %v2247
      %2249 = vadd.xlane.f32.xlu0 %v2218
      %v2250 = vpop.xlane.xlu0 %2249
      %2251 = vadd.xlane.f32.xlu0 %v2220
      %v2252 = vpop.xlane.xlu0 %2251
      %2253 = vadd.xlane.f32.xlu0 %v2222
      %v2254 = vpop.xlane.xlu0 %2253
      %2255 = vadd.xlane.f32.xlu0 %v2224
      %v2256 = vpop.xlane.xlu0 %2255
      %2257 = vadd.xlane.f32.xlu0 %v2226
      %v2258 = vpop.xlane.xlu0 %2257
      %2259 = vadd.xlane.f32.xlu0 %v2228
      %v2260 = vpop.xlane.xlu0 %2259
      %2261 = vadd.xlane.f32.xlu0 %v2230
      %v2262 = vpop.xlane.xlu0 %2261
      %2263 = vadd.xlane.f32.xlu0 %v2232
      %v2264 = vpop.xlane.xlu0 %2263
      %2265 = vadd.xlane.f32.xlu0 %v2234
      %v2266 = vpop.xlane.xlu0 %2265
      %2267 = vadd.xlane.f32.xlu0 %v2236
      %v2268 = vpop.xlane.xlu0 %2267
      %2269 = vadd.xlane.f32.xlu0 %v2238
      %v2270 = vpop.xlane.xlu0 %2269
      %2271 = vadd.xlane.f32.xlu0 %v2240
      %v2272 = vpop.xlane.xlu0 %2271
      %2273 = vadd.xlane.f32.xlu0 %v2242
      %v2274 = vpop.xlane.xlu0 %2273
      %2275 = vadd.xlane.f32.xlu0 %v2244
      %v2276 = vpop.xlane.xlu0 %2275
      %2277 = vadd.xlane.f32.xlu0 %v2246
      %v2278 = vpop.xlane.xlu0 %2277
      %2279 = vadd.xlane.f32.xlu0 %v2248
      %v2280 = vpop.xlane.xlu0 %2279
      %v2281 = vrcp.pop %v2250
      %v2282 = vrcp.pop %v2252
      %v2283 = vrcp.pop %v2254
      %v2284 = vrcp.pop %v2256
      %v2285 = vrcp.pop %v2258
      %v2286 = vrcp.pop %v2260
      %v2287 = vrcp.pop %v2262
      %v2288 = vrcp.pop %v2264
      %v2289 = vrcp.pop %v2266
      %v2290 = vrcp.pop %v2268
      %v2291 = vrcp.pop %v2270
      %v2292 = vrcp.pop %v2272
      %v2293 = vrcp.pop %v2274
      %v2294 = vrcp.pop %v2276
      %v2295 = vrcp.pop %v2278
      %v2296 = vrcp.pop %v2280
      %v2297 = vmul.f32 %v2218, %v2281
      %v2298 = vmul.f32 %v2220, %v2282
      %v2299 = vmul.f32 %v2222, %v2283
      %v2300 = vmul.f32 %v2224, %v2284
      %v2301 = vmul.f32 %v2226, %v2285
      %v2302 = vmul.f32 %v2228, %v2286
      %v2303 = vmul.f32 %v2230, %v2287
      %v2304 = vmul.f32 %v2232, %v2288
      %v2305 = vmul.f32 %v2234, %v2289
      %v2306 = vmul.f32 %v2236, %v2290
      %v2307 = vmul.f32 %v2238, %v2291
      %v2308 = vmul.f32 %v2240, %v2292
      %v2309 = vmul.f32 %v2242, %v2293
      %v2310 = vmul.f32 %v2244, %v2294
      %v2311 = vmul.f32 %v2246, %v2295
      %v2312 = vmul.f32 %v2248, %v2296
      %v2313 = vpack.c.bf16 %v2298, %v2297
      %v2314 = vpack.c.bf16 %v2300, %v2299
      %v2315 = vpack.c.bf16 %v2302, %v2301
      %v2316 = vpack.c.bf16 %v2304, %v2303
      %v2317 = vpack.c.bf16 %v2306, %v2305
      %v2318 = vpack.c.bf16 %v2308, %v2307
      %v2319 = vpack.c.bf16 %v2310, %v2309
      %v2320 = vpack.c.bf16 %v2312, %v2311
      %2321 = vrot.lane.b32.xlu0 %v1099, 64
      %v2322 = vpop.permute.xlu0 %2321
      %2323 = vrot.lane.b32.xlu0 %v1100, 64
      %v2324 = vpop.permute.xlu0 %2323
      %2325 = vrot.lane.b32.xlu0 %v1101, 64
      %v2326 = vpop.permute.xlu0 %2325
      %2327 = vrot.lane.b32.xlu0 %v1102, 64
      %v2328 = vpop.permute.xlu0 %2327
      %2329 = vrot.lane.b32.xlu0 %v1103, 64
      %v2330 = vpop.permute.xlu0 %2329
      %2331 = vrot.lane.b32.xlu0 %v1104, 64
      %v2332 = vpop.permute.xlu0 %2331
      %2333 = vrot.lane.b32.xlu0 %v1105, 64
      %v2334 = vpop.permute.xlu0 %2333
      %2335 = vrot.lane.b32.xlu0 %v1106, 64
      %v2336 = vpop.permute.xlu0 %2335
      %2345 = vmatprep.subr.bf16.mxu0 0
      %2346 = vmatpush1.bf16.msra.mxu0 %v2322
      %2347 = vmatprep.subr.bf16.mxu0 0
      %2348 = vmatpush1.bf16.msra.mxu0 %v2324
      %2349 = vmatprep.subr.bf16.mxu0 0
      %2350 = vmatpush1.bf16.msra.mxu0 %v2326
      %2351 = vmatprep.subr.bf16.mxu0 0
      %2352 = vmatpush1.bf16.msra.mxu0 %v2328
      %2353 = vmatprep.subr.bf16.mxu0 0
      %2354 = vmatpush1.bf16.msra.mxu0 %v2330
      %2355 = vmatprep.subr.bf16.mxu0 0
      %2356 = vmatpush1.bf16.msra.mxu0 %v2332
      %2357 = vmatprep.subr.bf16.mxu0 0
      %2358 = vmatpush1.bf16.msra.mxu0 %v2334
      %2359 = vmatprep.subr.bf16.mxu0 0
      %2360 = vmatpush1.bf16.msra.mxu0 %v2336
      %2361 = vmatprep.subr.bf16.mxu0 0
      %2362 = vmatpush1.bf16.msra.mxu0 0
      %2363 = vmatprep.subr.bf16.mxu0 0
      %2364 = vmatpush1.bf16.msra.mxu0 0
      %2365 = vmatprep.subr.bf16.mxu0 0
      %2366 = vmatpush1.bf16.msra.mxu0 0
      %2367 = vmatprep.subr.bf16.mxu0 0
      %2368 = vmatpush1.bf16.msra.mxu0 0
      %2369 = vmatprep.subr.bf16.mxu0 0
      %2370 = vmatpush1.bf16.msra.mxu0 0
      %2371 = vmatprep.subr.bf16.mxu0 0
      %2372 = vmatpush1.bf16.msra.mxu0 0
      %2373 = vmatprep.subr.bf16.mxu0 0
      %2374 = vmatpush1.bf16.msra.mxu0 0
      %2375 = vmatprep.subr.bf16.mxu0 0
      %2376 = vmatpush1.bf16.msra.mxu0 0
      %2377 = vmatprep.mubr.bf16.mxu0 0
      %2378 = vmatmul.mubr.bf16.gmra.mrb[0].mxu0 %v2313
      %v2379 = vpop.f32.mrb[0].mxu0
      %v2380 = vadd.f32 0.0, %v2379
      %v2381 = vpop.f32.mrb[0].mxu0
      %v2382 = vpop.f32.mrb[0].mxu0
      %v2383 = vadd.f32 0.0, %v2382
      %v2384 = vpop.f32.mrb[0].mxu0
      %2385 = vmatprep.mubr.bf16.mxu0 0
      %2386 = vmatmul.mubr.bf16.gmra.mrb[0].mxu0 %v2314
      %v2387 = vpop.f32.mrb[0].mxu0
      %v2388 = vadd.f32 0.0, %v2387
      %v2389 = vpop.f32.mrb[0].mxu0
      %v2390 = vpop.f32.mrb[0].mxu0
      %v2391 = vadd.f32 0.0, %v2390
      %v2392 = vpop.f32.mrb[0].mxu0
      %2393 = vmatprep.mubr.bf16.mxu0 0
      %2394 = vmatmul.mubr.bf16.gmra.mrb[0].mxu0 %v2315
      %v2395 = vpop.f32.mrb[0].mxu0
      %v2396 = vadd.f32 0.0, %v2395
      %v2397 = vpop.f32.mrb[0].mxu0
      %v2398 = vpop.f32.mrb[0].mxu0
      %v2399 = vadd.f32 0.0, %v2398
      %v2400 = vpop.f32.mrb[0].mxu0
      %2401 = vmatprep.mubr.bf16.mxu0 0
      %2402 = vmatmul.mubr.bf16.gmra.mrb[0].mxu0 %v2316
      %v2403 = vpop.f32.mrb[0].mxu0
      %v2404 = vadd.f32 0.0, %v2403
      %v2405 = vpop.f32.mrb[0].mxu0
      %v2406 = vpop.f32.mrb[0].mxu0
      %v2407 = vadd.f32 0.0, %v2406
      %v2408 = vpop.f32.mrb[0].mxu0
      %2409 = vmatprep.mubr.bf16.mxu0 0
      %2410 = vmatmul.mubr.bf16.gmra.mrb[0].mxu0 %v2317
      %v2411 = vpop.f32.mrb[0].mxu0
      %v2412 = vadd.f32 0.0, %v2411
      %v2413 = vpop.f32.mrb[0].mxu0
      %v2414 = vpop.f32.mrb[0].mxu0
      %v2415 = vadd.f32 0.0, %v2414
      %v2416 = vpop.f32.mrb[0].mxu0
      %2417 = vmatprep.mubr.bf16.mxu0 0
      %2418 = vmatmul.mubr.bf16.gmra.mrb[0].mxu0 %v2318
      %v2419 = vpop.f32.mrb[0].mxu0
      %v2420 = vadd.f32 0.0, %v2419
      %v2421 = vpop.f32.mrb[0].mxu0
      %v2422 = vpop.f32.mrb[0].mxu0
      %v2423 = vadd.f32 0.0, %v2422
      %v2424 = vpop.f32.mrb[0].mxu0
      %2425 = vmatprep.mubr.bf16.mxu0 0
      %2426 = vmatmul.mubr.bf16.gmra.mrb[0].mxu0 %v2319
      %v2427 = vpop.f32.mrb[0].mxu0
      %v2428 = vadd.f32 0.0, %v2427
      %v2429 = vpop.f32.mrb[0].mxu0
      %v2430 = vpop.f32.mrb[0].mxu0
      %v2431 = vadd.f32 0.0, %v2430
      %v2432 = vpop.f32.mrb[0].mxu0
      %2433 = vmatprep.mubr.bf16.mxu0 0
      %2434 = vmatmul.mubr.bf16.gmra.mrb[0].mxu0 %v2320
      %v2435 = vpop.f32.mrb[0].mxu0
      %v2436 = vadd.f32 0.0, %v2435
      %v2437 = vpop.f32.mrb[0].mxu0
      %v2438 = vpop.f32.mrb[0].mxu0
      %v2439 = vadd.f32 0.0, %v2438
      %v2440 = vpop.f32.mrb[0].mxu0
      %2441 = vdwg.mxu0
      %v2442 = vpack.c.bf16 %v2383, %v2380
      %v2443 = vpack.c.bf16 %v2391, %v2388
      %v2444 = vpack.c.bf16 %v2399, %v2396
      %v2445 = vpack.c.bf16 %v2407, %v2404
      %v2446 = vpack.c.bf16 %v2415, %v2412
      %v2447 = vpack.c.bf16 %v2423, %v2420
      %v2448 = vpack.c.bf16 %v2431, %v2428
      %v2449 = vpack.c.bf16 %v2439, %v2436
      %2450 = vrot.lane.b32.xlu0 %v1083, 32
      %v2451 = vpop.permute.xlu0 %2450
      %2452 = vrot.lane.b32.xlu0 %v1084, 32
      %v2453 = vpop.permute.xlu0 %2452
      %2454 = vrot.lane.b32.xlu0 %v1085, 32
      %v2455 = vpop.permute.xlu0 %2454
      %2456 = vrot.lane.b32.xlu0 %v1086, 32
      %v2457 = vpop.permute.xlu0 %2456
      %2458 = vrot.lane.b32.xlu0 %v1087, 32
      %v2459 = vpop.permute.xlu0 %2458
      %2460 = vrot.lane.b32.xlu0 %v1088, 32
      %v2461 = vpop.permute.xlu0 %2460
      %2462 = vrot.lane.b32.xlu0 %v1089, 32
      %v2463 = vpop.permute.xlu0 %2462
      %2464 = vrot.lane.b32.xlu0 %v1090, 32
      %v2465 = vpop.permute.xlu0 %2464
      %2466 = vrot.lane.b32.xlu0 %v1091, 32
      %v2467 = vpop.permute.xlu0 %2466
      %2468 = vrot.lane.b32.xlu0 %v1092, 32
      %v2469 = vpop.permute.xlu0 %2468
      %2470 = vrot.lane.b32.xlu0 %v1093, 32
      %v2471 = vpop.permute.xlu0 %2470
      %2472 = vrot.lane.b32.xlu0 %v1094, 32
      %v2473 = vpop.permute.xlu0 %2472
      %2474 = vrot.lane.b32.xlu0 %v1095, 32
      %v2475 = vpop.permute.xlu0 %2474
      %2476 = vrot.lane.b32.xlu0 %v1096, 32
      %v2477 = vpop.permute.xlu0 %2476
      %2478 = vrot.lane.b32.xlu0 %v1097, 32
      %v2479 = vpop.permute.xlu0 %2478
      %2480 = vrot.lane.b32.xlu0 %v1098, 32
      %v2481 = vpop.permute.xlu0 %2480
      %v2483 = vsel %vm1107, %v2451, 0
      %v2486 = vsel %vm1107, %v2453, 0
      %v2489 = vsel %vm1107, %v2455, 0
      %v2492 = vsel %vm1107, %v2457, 0
      %v2495 = vsel %vm1107, %v2459, 0
      %v2498 = vsel %vm1107, %v2461, 0
      %v2501 = vsel %vm1107, %v2463, 0
      %v2504 = vsel %vm1107, %v2465, 0
      %v2507 = vsel %vm1107, %v2467, 0
      %v2510 = vsel %vm1107, %v2469, 0
      %v2513 = vsel %vm1107, %v2471, 0
      %v2516 = vsel %vm1107, %v2473, 0
      %v2519 = vsel %vm1107, %v2475, 0
      %v2522 = vsel %vm1107, %v2477, 0
      %v2525 = vsel %vm1107, %v2479, 0
      %v2528 = vsel %vm1107, %v2481, 0
      %2530 = vmatprep.subr.bf16.mxu0 0
      %2531 = vmatpush1.bf16.xpose.msra.mxu0 %v2507
      %2532 = vmatprep.subr.bf16.mxu0 0
      %2533 = vmatpush1.bf16.xpose.msra.mxu0 %v2510
      %2534 = vmatprep.subr.bf16.mxu0 0
      %2535 = vmatpush1.bf16.xpose.msra.mxu0 %v2513
      %2536 = vmatprep.subr.bf16.mxu0 0
      %2537 = vmatpush1.bf16.xpose.msra.mxu0 %v2516
      %2538 = vmatprep.subr.bf16.mxu0 0
      %2539 = vmatpush1.bf16.xpose.msra.mxu0 %v2519
      %2540 = vmatprep.subr.bf16.mxu0 0
      %2541 = vmatpush1.bf16.xpose.msra.mxu0 %v2522
      %2542 = vmatprep.subr.bf16.mxu0 0
      %2543 = vmatpush1.bf16.xpose.msra.mxu0 %v2525
      %2544 = vmatprep.subr.bf16.mxu0 0
      %2545 = vmatpush1.bf16.xpose.msra.mxu0 %v2528
      %2546 = vmatprep.subr.bf16.mxu0 0
      %2547 = vmatpush1.bf16.xpose.msra.mxu0 0
      %2548 = vmatprep.subr.bf16.mxu0 0
      %2549 = vmatpush1.bf16.xpose.msra.mxu0 0
      %2550 = vmatprep.subr.bf16.mxu0 0
      %2551 = vmatpush1.bf16.xpose.msra.mxu0 0
      %2552 = vmatprep.subr.bf16.mxu0 0
      %2553 = vmatpush1.bf16.xpose.msra.mxu0 0
      %2554 = vmatprep.subr.bf16.mxu0 0
      %2555 = vmatpush1.bf16.xpose.msra.mxu0 0
      %2556 = vmatprep.subr.bf16.mxu0 0
      %2557 = vmatpush1.bf16.xpose.msra.mxu0 0
      %2558 = vmatprep.subr.bf16.mxu0 0
      %2559 = vmatpush1.bf16.xpose.msra.mxu0 0
      %2560 = vmatprep.subr.bf16.mxu0 0
      %2561 = vmatpush1.bf16.xpose.msra.mxu0 0
      %2562 = vmatprep.mubr.bf16.mxu0 0
      %2563 = vmatmul.mubr.bf16.gmra.mrb[0].mxu0 %v2483
      %v2564 = vpop.f32.mrb[0].mxu0
      %v2565 = vadd.f32 %v1082, %v2564
      %v2566 = vpop.f32.mrb[0].mxu0
      %v2567 = vpop.f32.mrb[0].mxu0
      %v2568 = vadd.f32 %v1082, %v2567
      %v2569 = vpop.f32.mrb[0].mxu0
      %2570 = vmatprep.mubr.bf16.mxu0 0
      %2571 = vmatmul.mubr.bf16.gmra.mrb[0].mxu0 %v2486
      %v2572 = vpop.f32.mrb[0].mxu0
      %v2573 = vadd.f32 %v1082, %v2572
      %v2574 = vpop.f32.mrb[0].mxu0
      %v2575 = vpop.f32.mrb[0].mxu0
      %v2576 = vadd.f32 %v1082, %v2575
      %v2577 = vpop.f32.mrb[0].mxu0
      %2578 = vmatprep.mubr.bf16.mxu0 0
      %2579 = vmatmul.mubr.bf16.gmra.mrb[0].mxu0 %v2489
      %v2580 = vpop.f32.mrb[0].mxu0
      %v2581 = vadd.f32 %v1082, %v2580
      %v2582 = vpop.f32.mrb[0].mxu0
      %v2583 = vpop.f32.mrb[0].mxu0
      %v2584 = vadd.f32 %v1082, %v2583
      %v2585 = vpop.f32.mrb[0].mxu0
      %2586 = vmatprep.mubr.bf16.mxu0 0
      %2587 = vmatmul.mubr.bf16.gmra.mrb[0].mxu0 %v2492
      %v2588 = vpop.f32.mrb[0].mxu0
      %v2589 = vadd.f32 %v1082, %v2588
      %v2590 = vpop.f32.mrb[0].mxu0
      %v2591 = vpop.f32.mrb[0].mxu0
      %v2592 = vadd.f32 %v1082, %v2591
      %v2593 = vpop.f32.mrb[0].mxu0
      %2594 = vmatprep.mubr.bf16.mxu0 0
      %2595 = vmatmul.mubr.bf16.gmra.mrb[0].mxu0 %v2495
      %v2596 = vpop.f32.mrb[0].mxu0
      %v2597 = vadd.f32 %v1082, %v2596
      %v2598 = vpop.f32.mrb[0].mxu0
      %v2599 = vpop.f32.mrb[0].mxu0
      %v2600 = vadd.f32 %v1082, %v2599
      %v2601 = vpop.f32.mrb[0].mxu0
      %2602 = vmatprep.mubr.bf16.mxu0 0
      %2603 = vmatmul.mubr.bf16.gmra.mrb[0].mxu0 %v2498
      %v2604 = vpop.f32.mrb[0].mxu0
      %v2605 = vadd.f32 %v1082, %v2604
      %v2606 = vpop.f32.mrb[0].mxu0
      %v2607 = vpop.f32.mrb[0].mxu0
      %v2608 = vadd.f32 %v1082, %v2607
      %v2609 = vpop.f32.mrb[0].mxu0
      %2610 = vmatprep.mubr.bf16.mxu0 0
      %2611 = vmatmul.mubr.bf16.gmra.mrb[0].mxu0 %v2501
      %v2612 = vpop.f32.mrb[0].mxu0
      %v2613 = vadd.f32 %v1082, %v2612
      %v2614 = vpop.f32.mrb[0].mxu0
      %v2615 = vpop.f32.mrb[0].mxu0
      %v2616 = vadd.f32 %v1082, %v2615
      %v2617 = vpop.f32.mrb[0].mxu0
      %2618 = vmatprep.mubr.bf16.mxu0 0
      %2619 = vmatmul.mubr.bf16.gmra.mrb[0].mxu0 %v2504
      %v2620 = vpop.f32.mrb[0].mxu0
      %v2621 = vadd.f32 %v1082, %v2620
      %v2622 = vpop.f32.mrb[0].mxu0
      %v2623 = vpop.f32.mrb[0].mxu0
      %v2624 = vadd.f32 %v1082, %v2623
      %v2625 = vpop.f32.mrb[0].mxu0
      %2626 = vdwg.mxu0
      %2627 = vmax.xlane.f32.xlu0 %v2565
      %v2628 = vpop.xlane.xlu0 %2627
      %2629 = vmax.xlane.f32.xlu0 %v2568
      %v2630 = vpop.xlane.xlu0 %2629
      %2631 = vmax.xlane.f32.xlu0 %v2573
      %v2632 = vpop.xlane.xlu0 %2631
      %2633 = vmax.xlane.f32.xlu0 %v2576
      %v2634 = vpop.xlane.xlu0 %2633
      %2635 = vmax.xlane.f32.xlu0 %v2581
      %v2636 = vpop.xlane.xlu0 %2635
      %2637 = vmax.xlane.f32.xlu0 %v2584
      %v2638 = vpop.xlane.xlu0 %2637
      %2639 = vmax.xlane.f32.xlu0 %v2589
      %v2640 = vpop.xlane.xlu0 %2639
      %2641 = vmax.xlane.f32.xlu0 %v2592
      %v2642 = vpop.xlane.xlu0 %2641
      %2643 = vmax.xlane.f32.xlu0 %v2597
      %v2644 = vpop.xlane.xlu0 %2643
      %2645 = vmax.xlane.f32.xlu0 %v2600
      %v2646 = vpop.xlane.xlu0 %2645
      %2647 = vmax.xlane.f32.xlu0 %v2605
      %v2648 = vpop.xlane.xlu0 %2647
      %2649 = vmax.xlane.f32.xlu0 %v2608
      %v2650 = vpop.xlane.xlu0 %2649
      %2651 = vmax.xlane.f32.xlu0 %v2613
      %v2652 = vpop.xlane.xlu0 %2651
      %2653 = vmax.xlane.f32.xlu0 %v2616
      %v2654 = vpop.xlane.xlu0 %2653
      %2655 = vmax.xlane.f32.xlu0 %v2621
      %v2656 = vpop.xlane.xlu0 %2655
      %2657 = vmax.xlane.f32.xlu0 %v2624
      %v2658 = vpop.xlane.xlu0 %2657
      %v2659 = vsub.f32 %v2565, %v2628
      %v2660 = vsub.f32 %v2568, %v2630
      %v2661 = vsub.f32 %v2573, %v2632
      %v2662 = vsub.f32 %v2576, %v2634
      %v2663 = vsub.f32 %v2581, %v2636
      %v2664 = vsub.f32 %v2584, %v2638
      %v2665 = vsub.f32 %v2589, %v2640
      %v2666 = vsub.f32 %v2592, %v2642
      %v2667 = vsub.f32 %v2597, %v2644
      %v2668 = vsub.f32 %v2600, %v2646
      %v2669 = vsub.f32 %v2605, %v2648
      %v2670 = vsub.f32 %v2608, %v2650
      %v2671 = vsub.f32 %v2613, %v2652
      %v2672 = vsub.f32 %v2616, %v2654
      %v2673 = vsub.f32 %v2621, %v2656
      %v2674 = vsub.f32 %v2624, %v2658
      %v2675 = vmul.f32 %v2659, 1.442695
      %v2676 = vpow.pop %v2675
      %v2677 = vmul.f32 %v2660, 1.442695
      %v2678 = vpow.pop %v2677
      %v2679 = vmul.f32 %v2661, 1.442695
      %v2680 = vpow.pop %v2679
      %v2681 = vmul.f32 %v2662, 1.442695
      %v2682 = vpow.pop %v2681
      %v2683 = vmul.f32 %v2663, 1.442695
      %v2684 = vpow.pop %v2683
      %v2685 = vmul.f32 %v2664, 1.442695
      %v2686 = vpow.pop %v2685
      %v2687 = vmul.f32 %v2665, 1.442695
      %v2688 = vpow.pop %v2687
      %v2689 = vmul.f32 %v2666, 1.442695
      %v2690 = vpow.pop %v2689
      %v2691 = vmul.f32 %v2667, 1.442695
      %v2692 = vpow.pop %v2691
      %v2693 = vmul.f32 %v2668, 1.442695
      %v2694 = vpow.pop %v2693
      %v2695 = vmul.f32 %v2669, 1.442695
      %v2696 = vpow.pop %v2695
      %v2697 = vmul.f32 %v2670, 1.442695
      %v2698 = vpow.pop %v2697
      %v2699 = vmul.f32 %v2671, 1.442695
      %v2700 = vpow.pop %v2699
      %v2701 = vmul.f32 %v2672, 1.442695
      %v2702 = vpow.pop %v2701
      %v2703 = vmul.f32 %v2673, 1.442695
      %v2704 = vpow.pop %v2703
      %v2705 = vmul.f32 %v2674, 1.442695
      %v2706 = vpow.pop %v2705
      %2707 = vadd.xlane.f32.xlu0 %v2676
      %v2708 = vpop.xlane.xlu0 %2707
      %2709 = vadd.xlane.f32.xlu0 %v2678
      %v2710 = vpop.xlane.xlu0 %2709
      %2711 = vadd.xlane.f32.xlu0 %v2680
      %v2712 = vpop.xlane.xlu0 %2711
      %2713 = vadd.xlane.f32.xlu0 %v2682
      %v2714 = vpop.xlane.xlu0 %2713
      %2715 = vadd.xlane.f32.xlu0 %v2684
      %v2716 = vpop.xlane.xlu0 %2715
      %2717 = vadd.xlane.f32.xlu0 %v2686
      %v2718 = vpop.xlane.xlu0 %2717
      %2719 = vadd.xlane.f32.xlu0 %v2688
      %v2720 = vpop.xlane.xlu0 %2719
      %2721 = vadd.xlane.f32.xlu0 %v2690
      %v2722 = vpop.xlane.xlu0 %2721
      %2723 = vadd.xlane.f32.xlu0 %v2692
      %v2724 = vpop.xlane.xlu0 %2723
      %2725 = vadd.xlane.f32.xlu0 %v2694
      %v2726 = vpop.xlane.xlu0 %2725
      %2727 = vadd.xlane.f32.xlu0 %v2696
      %v2728 = vpop.xlane.xlu0 %2727
      %2729 = vadd.xlane.f32.xlu0 %v2698
      %v2730 = vpop.xlane.xlu0 %2729
      %2731 = vadd.xlane.f32.xlu0 %v2700
      %v2732 = vpop.xlane.xlu0 %2731
      %2733 = vadd.xlane.f32.xlu0 %v2702
      %v2734 = vpop.xlane.xlu0 %2733
      %2735 = vadd.xlane.f32.xlu0 %v2704
      %v2736 = vpop.xlane.xlu0 %2735
      %2737 = vadd.xlane.f32.xlu0 %v2706
      %v2738 = vpop.xlane.xlu0 %2737
      %v2739 = vrcp.pop %v2708
      %v2740 = vrcp.pop %v2710
      %v2741 = vrcp.pop %v2712
      %v2742 = vrcp.pop %v2714
      %v2743 = vrcp.pop %v2716
      %v2744 = vrcp.pop %v2718
      %v2745 = vrcp.pop %v2720
      %v2746 = vrcp.pop %v2722
      %v2747 = vrcp.pop %v2724
      %v2748 = vrcp.pop %v2726
      %v2749 = vrcp.pop %v2728
      %v2750 = vrcp.pop %v2730
      %v2751 = vrcp.pop %v2732
      %v2752 = vrcp.pop %v2734
      %v2753 = vrcp.pop %v2736
      %v2754 = vrcp.pop %v2738
      %v2755 = vmul.f32 %v2676, %v2739
      %v2756 = vmul.f32 %v2678, %v2740
      %v2757 = vmul.f32 %v2680, %v2741
      %v2758 = vmul.f32 %v2682, %v2742
      %v2759 = vmul.f32 %v2684, %v2743
      %v2760 = vmul.f32 %v2686, %v2744
      %v2761 = vmul.f32 %v2688, %v2745
      %v2762 = vmul.f32 %v2690, %v2746
      %v2763 = vmul.f32 %v2692, %v2747
      %v2764 = vmul.f32 %v2694, %v2748
      %v2765 = vmul.f32 %v2696, %v2749
      %v2766 = vmul.f32 %v2698, %v2750
      %v2767 = vmul.f32 %v2700, %v2751
      %v2768 = vmul.f32 %v2702, %v2752
      %v2769 = vmul.f32 %v2704, %v2753
      %v2770 = vmul.f32 %v2706, %v2754
      %v2771 = vpack.c.bf16 %v2756, %v2755
      %v2772 = vpack.c.bf16 %v2758, %v2757
      %v2773 = vpack.c.bf16 %v2760, %v2759
      %v2774 = vpack.c.bf16 %v2762, %v2761
      %v2775 = vpack.c.bf16 %v2764, %v2763
      %v2776 = vpack.c.bf16 %v2766, %v2765
      %v2777 = vpack.c.bf16 %v2768, %v2767
      %v2778 = vpack.c.bf16 %v2770, %v2769
      %2779 = vrot.lane.b32.xlu0 %v1099, 32
      %v2780 = vpop.permute.xlu0 %2779
      %2781 = vrot.lane.b32.xlu0 %v1100, 32
      %v2782 = vpop.permute.xlu0 %2781
      %2783 = vrot.lane.b32.xlu0 %v1101, 32
      %v2784 = vpop.permute.xlu0 %2783
      %2785 = vrot.lane.b32.xlu0 %v1102, 32
      %v2786 = vpop.permute.xlu0 %2785
      %2787 = vrot.lane.b32.xlu0 %v1103, 32
      %v2788 = vpop.permute.xlu0 %2787
      %2789 = vrot.lane.b32.xlu0 %v1104, 32
      %v2790 = vpop.permute.xlu0 %2789
      %2791 = vrot.lane.b32.xlu0 %v1105, 32
      %v2792 = vpop.permute.xlu0 %2791
      %2793 = vrot.lane.b32.xlu0 %v1106, 32
      %v2794 = vpop.permute.xlu0 %2793
      %2803 = vmatprep.subr.bf16.mxu0 0
      %2804 = vmatpush1.bf16.msra.mxu0 %v2780
      %2805 = vmatprep.subr.bf16.mxu0 0
      %2806 = vmatpush1.bf16.msra.mxu0 %v2782
      %2807 = vmatprep.subr.bf16.mxu0 0
      %2808 = vmatpush1.bf16.msra.mxu0 %v2784
      %2809 = vmatprep.subr.bf16.mxu0 0
      %2810 = vmatpush1.bf16.msra.mxu0 %v2786
      %2811 = vmatprep.subr.bf16.mxu0 0
      %2812 = vmatpush1.bf16.msra.mxu0 %v2788
      %2813 = vmatprep.subr.bf16.mxu0 0
      %2814 = vmatpush1.bf16.msra.mxu0 %v2790
      %2815 = vmatprep.subr.bf16.mxu0 0
      %2816 = vmatpush1.bf16.msra.mxu0 %v2792
      %2817 = vmatprep.subr.bf16.mxu0 0
      %2818 = vmatpush1.bf16.msra.mxu0 %v2794
      %2819 = vmatprep.subr.bf16.mxu0 0
      %2820 = vmatpush1.bf16.msra.mxu0 0
      %2821 = vmatprep.subr.bf16.mxu0 0
      %2822 = vmatpush1.bf16.msra.mxu0 0
      %2823 = vmatprep.subr.bf16.mxu0 0
      %2824 = vmatpush1.bf16.msra.mxu0 0
      %2825 = vmatprep.subr.bf16.mxu0 0
      %2826 = vmatpush1.bf16.msra.mxu0 0
      %2827 = vmatprep.subr.bf16.mxu0 0
      %2828 = vmatpush1.bf16.msra.mxu0 0
      %2829 = vmatprep.subr.bf16.mxu0 0
      %2830 = vmatpush1.bf16.msra.mxu0 0
      %2831 = vmatprep.subr.bf16.mxu0 0
      %2832 = vmatpush1.bf16.msra.mxu0 0
      %2833 = vmatprep.subr.bf16.mxu0 0
      %2834 = vmatpush1.bf16.msra.mxu0 0
      %2835 = vmatprep.mubr.bf16.mxu0 0
      %2836 = vmatmul.mubr.bf16.gmra.mrb[0].mxu0 %v2771
      %v2837 = vpop.f32.mrb[0].mxu0
      %v2838 = vadd.f32 0.0, %v2837
      %v2839 = vpop.f32.mrb[0].mxu0
      %v2840 = vpop.f32.mrb[0].mxu0
      %v2841 = vadd.f32 0.0, %v2840
      %v2842 = vpop.f32.mrb[0].mxu0
      %2843 = vmatprep.mubr.bf16.mxu0 0
      %2844 = vmatmul.mubr.bf16.gmra.mrb[0].mxu0 %v2772
      %v2845 = vpop.f32.mrb[0].mxu0
      %v2846 = vadd.f32 0.0, %v2845
      %v2847 = vpop.f32.mrb[0].mxu0
      %v2848 = vpop.f32.mrb[0].mxu0
      %v2849 = vadd.f32 0.0, %v2848
      %v2850 = vpop.f32.mrb[0].mxu0
      %2851 = vmatprep.mubr.bf16.mxu0 0
      %2852 = vmatmul.mubr.bf16.gmra.mrb[0].mxu0 %v2773
      %v2853 = vpop.f32.mrb[0].mxu0
      %v2854 = vadd.f32 0.0, %v2853
      %v2855 = vpop.f32.mrb[0].mxu0
      %v2856 = vpop.f32.mrb[0].mxu0
      %v2857 = vadd.f32 0.0, %v2856
      %v2858 = vpop.f32.mrb[0].mxu0
      %2859 = vmatprep.mubr.bf16.mxu0 0
      %2860 = vmatmul.mubr.bf16.gmra.mrb[0].mxu0 %v2774
      %v2861 = vpop.f32.mrb[0].mxu0
      %v2862 = vadd.f32 0.0, %v2861
      %v2863 = vpop.f32.mrb[0].mxu0
      %v2864 = vpop.f32.mrb[0].mxu0
      %v2865 = vadd.f32 0.0, %v2864
      %v2866 = vpop.f32.mrb[0].mxu0
      %2867 = vmatprep.mubr.bf16.mxu0 0
      %2868 = vmatmul.mubr.bf16.gmra.mrb[0].mxu0 %v2775
      %v2869 = vpop.f32.mrb[0].mxu0
      %v2870 = vadd.f32 0.0, %v2869
      %v2871 = vpop.f32.mrb[0].mxu0
      %v2872 = vpop.f32.mrb[0].mxu0
      %v2873 = vadd.f32 0.0, %v2872
      %v2874 = vpop.f32.mrb[0].mxu0
      %2875 = vmatprep.mubr.bf16.mxu0 0
      %2876 = vmatmul.mubr.bf16.gmra.mrb[0].mxu0 %v2776
      %v2877 = vpop.f32.mrb[0].mxu0
      %v2878 = vadd.f32 0.0, %v2877
      %v2879 = vpop.f32.mrb[0].mxu0
      %v2880 = vpop.f32.mrb[0].mxu0
      %v2881 = vadd.f32 0.0, %v2880
      %v2882 = vpop.f32.mrb[0].mxu0
      %2883 = vmatprep.mubr.bf16.mxu0 0
      %2884 = vmatmul.mubr.bf16.gmra.mrb[0].mxu0 %v2777
      %v2885 = vpop.f32.mrb[0].mxu0
      %v2886 = vadd.f32 0.0, %v2885
      %v2887 = vpop.f32.mrb[0].mxu0
      %v2888 = vpop.f32.mrb[0].mxu0
      %v2889 = vadd.f32 0.0, %v2888
      %v2890 = vpop.f32.mrb[0].mxu0
      %2891 = vmatprep.mubr.bf16.mxu0 0
      %2892 = vmatmul.mubr.bf16.gmra.mrb[0].mxu0 %v2778
      %v2893 = vpop.f32.mrb[0].mxu0
      %v2894 = vadd.f32 0.0, %v2893
      %v2895 = vpop.f32.mrb[0].mxu0
      %v2896 = vpop.f32.mrb[0].mxu0
      %v2897 = vadd.f32 0.0, %v2896
      %v2898 = vpop.f32.mrb[0].mxu0
      %2899 = vdwg.mxu0
      %v2900 = vpack.c.bf16 %v2841, %v2838
      %v2901 = vpack.c.bf16 %v2849, %v2846
      %v2902 = vpack.c.bf16 %v2857, %v2854
      %v2903 = vpack.c.bf16 %v2865, %v2862
      %v2904 = vpack.c.bf16 %v2873, %v2870
      %v2905 = vpack.c.bf16 %v2881, %v2878
      %v2906 = vpack.c.bf16 %v2889, %v2886
      %v2907 = vpack.c.bf16 %v2897, %v2894
      %2916 = vrot.lane.b32.xlu0 %v1984, 32
      %v2917 = vpop.permute.xlu0 %2916
      %2918 = vrot.lane.b32.xlu0 %v1985, 32
      %v2919 = vpop.permute.xlu0 %2918
      %2920 = vrot.lane.b32.xlu0 %v1986, 32
      %v2921 = vpop.permute.xlu0 %2920
      %2922 = vrot.lane.b32.xlu0 %v1987, 32
      %v2923 = vpop.permute.xlu0 %2922
      %2924 = vrot.lane.b32.xlu0 %v1988, 32
      %v2925 = vpop.permute.xlu0 %2924
      %2926 = vrot.lane.b32.xlu0 %v1989, 32
      %v2927 = vpop.permute.xlu0 %2926
      %2928 = vrot.lane.b32.xlu0 %v1990, 32
      %v2929 = vpop.permute.xlu0 %2928
      %2930 = vrot.lane.b32.xlu0 %v1991, 32
      %v2931 = vpop.permute.xlu0 %2930
      %2940 = vrot.lane.b32.xlu0 %v2442, 64
      %v2941 = vpop.permute.xlu0 %2940
      %2942 = vrot.lane.b32.xlu0 %v2443, 64
      %v2943 = vpop.permute.xlu0 %2942
      %2944 = vrot.lane.b32.xlu0 %v2444, 64
      %v2945 = vpop.permute.xlu0 %2944
      %2946 = vrot.lane.b32.xlu0 %v2445, 64
      %v2947 = vpop.permute.xlu0 %2946
      %2948 = vrot.lane.b32.xlu0 %v2446, 64
      %v2949 = vpop.permute.xlu0 %2948
      %2950 = vrot.lane.b32.xlu0 %v2447, 64
      %v2951 = vpop.permute.xlu0 %2950
      %2952 = vrot.lane.b32.xlu0 %v2448, 64
      %v2953 = vpop.permute.xlu0 %2952
      %2954 = vrot.lane.b32.xlu0 %v2449, 64
      %v2955 = vpop.permute.xlu0 %2954
      %2964 = vrot.lane.b32.xlu0 %v2900, 96
      %v2965 = vpop.permute.xlu0 %2964
      %2966 = vrot.lane.b32.xlu0 %v2901, 96
      %v2967 = vpop.permute.xlu0 %2966
      %2968 = vrot.lane.b32.xlu0 %v2902, 96
      %v2969 = vpop.permute.xlu0 %2968
      %2970 = vrot.lane.b32.xlu0 %v2903, 96
      %v2971 = vpop.permute.xlu0 %2970
      %2972 = vrot.lane.b32.xlu0 %v2904, 96
      %v2973 = vpop.permute.xlu0 %2972
      %2974 = vrot.lane.b32.xlu0 %v2905, 96
      %v2975 = vpop.permute.xlu0 %2974
      %2976 = vrot.lane.b32.xlu0 %v2906, 96
      %v2977 = vpop.permute.xlu0 %2976
      %2978 = vrot.lane.b32.xlu0 %v2907, 96
      %v2979 = vpop.permute.xlu0 %2978
      %v2982 = vsel %vm1107, %v1502, %v2917
      %v2985 = vsel %vm1107, %v1503, %v2919
      %v2988 = vsel %vm1107, %v1504, %v2921
      %v2991 = vsel %vm1107, %v1505, %v2923
      %v2994 = vsel %vm1107, %v1506, %v2925
      %v2997 = vsel %vm1107, %v1507, %v2927
      %v3000 = vsel %vm1107, %v1508, %v2929
      %v3003 = vsel %vm1107, %v1509, %v2931
      %vm3004 = vcmask 523264
      %v3006 = vsel %vm3004, %v2982, %v2941
      %v3008 = vsel %vm3004, %v2985, %v2943
      %v3010 = vsel %vm3004, %v2988, %v2945
      %v3012 = vsel %vm3004, %v2991, %v2947
      %v3014 = vsel %vm3004, %v2994, %v2949
      %v3016 = vsel %vm3004, %v2997, %v2951
      %v3018 = vsel %vm3004, %v3000, %v2953
      %v3020 = vsel %vm3004, %v3003, %v2955
      %vm3021 = vcmask 785408
      %v3023 = vsel %vm3021, %v3006, %v2965
      %v3026 = vsel %vm3021, %v3008, %v2967
      %v3029 = vsel %vm3021, %v3010, %v2969
      %v3032 = vsel %vm3021, %v3012, %v2971
      %v3035 = vsel %vm3021, %v3014, %v2973
      %v3038 = vsel %vm3021, %v3016, %v2975
      %v3041 = vsel %vm3021, %v3018, %v2977
      %v3044 = vsel %vm3021, %v3020, %v2979
      %3046 = vst [vmem:[#allocation2] sm:$0xff] %v3023
      %3047 = vst [vmem:[#allocation2 + $0x8] sm:$0xff] %v3026
      %3048 = vst [vmem:[#allocation2 + $0x10] sm:$0xff] %v3029
      %3049 = vst [vmem:[#allocation2 + $0x18] sm:$0xff] %v3032
      %3050 = vst [vmem:[#allocation2 + $0x20] sm:$0xff] %v3035
      %3051 = vst [vmem:[#allocation2 + $0x28] sm:$0xff] %v3038
      %3052 = vst [vmem:[#allocation2 + $0x30] sm:$0xff] %v3041
      %3053 = vst [vmem:[#allocation2 + $0x38] sm:$0xff] %v3044
      %v3054 = vld [vmem:[#allocation2] sm:$0xff]
      %v3055 = vld [vmem:[#allocation2 + $0x8] sm:$0xff]
      %v3056 = vld [vmem:[#allocation2 + $0x10] sm:$0xff]
      %v3057 = vld [vmem:[#allocation2 + $0x18] sm:$0xff]
      %v3058 = vld [vmem:[#allocation2 + $0x20] sm:$0xff]
      %v3059 = vld [vmem:[#allocation2 + $0x28] sm:$0xff]
      %v3060 = vld [vmem:[#allocation2 + $0x30] sm:$0xff]
      %v3061 = vld [vmem:[#allocation2 + $0x38] sm:$0xff]
      %v3062 = vld [vmem:[%s8] sm:$0xf]
      %v3063 = vld [vmem:[%s8 + $0x4] sm:$0xf]
      %v3064 = vld [vmem:[%s8 + $0x8] sm:$0xf]
      %v3065 = vld [vmem:[%s8 + $0xc] sm:$0xf]
      %v3066 = vld [vmem:[%s8 + $0x10] sm:$0xf]
      %v3067 = vld [vmem:[%s8 + $0x14] sm:$0xf]
      %v3068 = vld [vmem:[%s8 + $0x18] sm:$0xf]
      %v3069 = vld [vmem:[%s8 + $0x1c] sm:$0xf]
      %v3070 = vld [vmem:[%s8 + $0x20] sm:$0xf]
      %v3071 = vld [vmem:[%s8 + $0x24] sm:$0xf]
      %v3072 = vld [vmem:[%s8 + $0x28] sm:$0xf]
      %v3073 = vld [vmem:[%s8 + $0x2c] sm:$0xf]
      %v3074 = vld [vmem:[%s8 + $0x30] sm:$0xf]
      %v3075 = vld [vmem:[%s8 + $0x34] sm:$0xf]
      %v3076 = vld [vmem:[%s8 + $0x38] sm:$0xf]
      %v3077 = vld [vmem:[%s8 + $0x3c] sm:$0xf]
      %v3078 = vld [vmem:[%s9] sm:$0x1]
      %v3080 = vlaneseq
      %v3081 = vshrl.u32 %v3080, 7
      %v3082 = vsub.s32 0, %v3081
      %v3083 = vrot.slane %v3078, %v3082
      %v3101 = vunpack.c.l.b16 %v3062
      %v3102 = vunpack.c.l.b16 %v3063
      %v3103 = vunpack.c.l.b16 %v3064
      %v3104 = vunpack.c.l.b16 %v3065
      %v3105 = vunpack.c.l.b16 %v3066
      %v3106 = vunpack.c.l.b16 %v3067
      %v3107 = vunpack.c.l.b16 %v3068
      %v3108 = vunpack.c.l.b16 %v3069
      %v3109 = vunpack.c.l.b16 %v3070
      %v3110 = vunpack.c.l.b16 %v3071
      %v3111 = vunpack.c.l.b16 %v3072
      %v3112 = vunpack.c.l.b16 %v3073
      %v3113 = vunpack.c.l.b16 %v3074
      %v3114 = vunpack.c.l.b16 %v3075
      %v3115 = vunpack.c.l.b16 %v3076
      %v3116 = vunpack.c.l.b16 %v3077
      %v3117 = vpack.c.b16 %v3102, %v3101
      %v3118 = vpack.c.b16 %v3104, %v3103
      %v3119 = vpack.c.b16 %v3106, %v3105
      %v3120 = vpack.c.b16 %v3108, %v3107
      %v3121 = vpack.c.b16 %v3110, %v3109
      %v3122 = vpack.c.b16 %v3112, %v3111
      %v3123 = vpack.c.b16 %v3114, %v3113
      %v3124 = vpack.c.b16 %v3116, %v3115
      %3133 = vmatprep.subr.bf16.mxu0 0
      %3134 = vmatpush1.bf16.msra.mxu0 %v3117
      %3135 = vmatprep.subr.bf16.mxu0 0
      %3136 = vmatpush1.bf16.msra.mxu0 %v3118
      %3137 = vmatprep.subr.bf16.mxu0 0
      %3138 = vmatpush1.bf16.msra.mxu0 %v3119
      %3139 = vmatprep.subr.bf16.mxu0 0
      %3140 = vmatpush1.bf16.msra.mxu0 %v3120
      %3141 = vmatprep.subr.bf16.mxu0 0
      %3142 = vmatpush1.bf16.msra.mxu0 %v3121
      %3143 = vmatprep.subr.bf16.mxu0 0
      %3144 = vmatpush1.bf16.msra.mxu0 %v3122
      %3145 = vmatprep.subr.bf16.mxu0 0
      %3146 = vmatpush1.bf16.msra.mxu0 %v3123
      %3147 = vmatprep.subr.bf16.mxu0 0
      %3148 = vmatpush1.bf16.msra.mxu0 %v3124
      %3149 = vmatprep.subr.bf16.mxu0 0
      %3150 = vmatpush1.bf16.msra.mxu0 0
      %3151 = vmatprep.subr.bf16.mxu0 0
      %3152 = vmatpush1.bf16.msra.mxu0 0
      %3153 = vmatprep.subr.bf16.mxu0 0
      %3154 = vmatpush1.bf16.msra.mxu0 0
      %3155 = vmatprep.subr.bf16.mxu0 0
      %3156 = vmatpush1.bf16.msra.mxu0 0
      %3157 = vmatprep.subr.bf16.mxu0 0
      %3158 = vmatpush1.bf16.msra.mxu0 0
      %3159 = vmatprep.subr.bf16.mxu0 0
      %3160 = vmatpush1.bf16.msra.mxu0 0
      %3161 = vmatprep.subr.bf16.mxu0 0
      %3162 = vmatpush1.bf16.msra.mxu0 0
      %3163 = vmatprep.subr.bf16.mxu0 0
      %3164 = vmatpush1.bf16.msra.mxu0 0
      %3165 = vmatprep.mubr.bf16.mxu0 0
      %3166 = vmatmul.mubr.bf16.gmra.mrb[0].mxu0 %v3054
      %v3167 = vpop.f32.mrb[0].mxu0
      %v3168 = vadd.f32 %v3083, %v3167
      %v3169 = vpop.f32.mrb[0].mxu0
      %v3170 = vpop.f32.mrb[0].mxu0
      %v3171 = vadd.f32 %v3083, %v3170
      %v3172 = vpop.f32.mrb[0].mxu0
      %3173 = vmatprep.mubr.bf16.mxu0 0
      %3174 = vmatmul.mubr.bf16.gmra.mrb[0].mxu0 %v3055
      %v3175 = vpop.f32.mrb[0].mxu0
      %v3176 = vadd.f32 %v3083, %v3175
      %v3177 = vpop.f32.mrb[0].mxu0
      %v3178 = vpop.f32.mrb[0].mxu0
      %v3179 = vadd.f32 %v3083, %v3178
      %v3180 = vpop.f32.mrb[0].mxu0
      %3181 = vmatprep.mubr.bf16.mxu0 0
      %3182 = vmatmul.mubr.bf16.gmra.mrb[0].mxu0 %v3056
      %v3183 = vpop.f32.mrb[0].mxu0
      %v3184 = vadd.f32 %v3083, %v3183
      %v3185 = vpop.f32.mrb[0].mxu0
      %v3186 = vpop.f32.mrb[0].mxu0
      %v3187 = vadd.f32 %v3083, %v3186
      %v3188 = vpop.f32.mrb[0].mxu0
      %3189 = vmatprep.mubr.bf16.mxu0 0
      %3190 = vmatmul.mubr.bf16.gmra.mrb[0].mxu0 %v3057
      %v3191 = vpop.f32.mrb[0].mxu0
      %v3192 = vadd.f32 %v3083, %v3191
      %v3193 = vpop.f32.mrb[0].mxu0
      %v3194 = vpop.f32.mrb[0].mxu0
      %v3195 = vadd.f32 %v3083, %v3194
      %v3196 = vpop.f32.mrb[0].mxu0
      %3197 = vmatprep.mubr.bf16.mxu0 0
      %3198 = vmatmul.mubr.bf16.gmra.mrb[0].mxu0 %v3058
      %v3199 = vpop.f32.mrb[0].mxu0
      %v3200 = vadd.f32 %v3083, %v3199
      %v3201 = vpop.f32.mrb[0].mxu0
      %v3202 = vpop.f32.mrb[0].mxu0
      %v3203 = vadd.f32 %v3083, %v3202
      %v3204 = vpop.f32.mrb[0].mxu0
      %3205 = vmatprep.mubr.bf16.mxu0 0
      %3206 = vmatmul.mubr.bf16.gmra.mrb[0].mxu0 %v3059
      %v3207 = vpop.f32.mrb[0].mxu0
      %v3208 = vadd.f32 %v3083, %v3207
      %v3209 = vpop.f32.mrb[0].mxu0
      %v3210 = vpop.f32.mrb[0].mxu0
      %v3211 = vadd.f32 %v3083, %v3210
      %v3212 = vpop.f32.mrb[0].mxu0
      %3213 = vmatprep.mubr.bf16.mxu0 0
      %3214 = vmatmul.mubr.bf16.gmra.mrb[0].mxu0 %v3060
      %v3215 = vpop.f32.mrb[0].mxu0
      %v3216 = vadd.f32 %v3083, %v3215
      %v3217 = vpop.f32.mrb[0].mxu0
      %v3218 = vpop.f32.mrb[0].mxu0
      %v3219 = vadd.f32 %v3083, %v3218
      %v3220 = vpop.f32.mrb[0].mxu0
      %3221 = vmatprep.mubr.bf16.mxu0 0
      %3222 = vmatmul.mubr.bf16.gmra.mrb[0].mxu0 %v3061
      %v3223 = vpop.f32.mrb[0].mxu0
      %v3224 = vadd.f32 %v3083, %v3223
      %v3225 = vpop.f32.mrb[0].mxu0
      %v3226 = vpop.f32.mrb[0].mxu0
      %v3227 = vadd.f32 %v3083, %v3226
      %v3228 = vpop.f32.mrb[0].mxu0
      %3229 = vdwg.mxu0
      %v3230 = vadd.f32 %v648, %v3168
      %v3231 = vadd.f32 %v3171, 0.0
      %v3232 = vadd.f32 %v3176, 0.0
      %v3233 = vadd.f32 %v3179, 0.0
      %v3234 = vadd.f32 %v3184, 0.0
      %v3235 = vadd.f32 %v3187, 0.0
      %v3236 = vadd.f32 %v3192, 0.0
      %v3237 = vadd.f32 %v3195, 0.0
      %v3238 = vadd.f32 %v3200, 0.0
      %v3239 = vadd.f32 %v3203, 0.0
      %v3240 = vadd.f32 %v3208, 0.0
      %v3241 = vadd.f32 %v3211, 0.0
      %v3242 = vadd.f32 %v3216, 0.0
      %v3243 = vadd.f32 %v3219, 0.0
      %v3244 = vadd.f32 %v3224, 0.0
      %v3245 = vadd.f32 %v3227, 0.0
      %v3246 = vld [vmem:[%s10] sm:$0x1]
      %v3247 = vld [vmem:[%s11] sm:$0x1]
      %3248 = vadd.xlane.f32.xlu0 %v3230
      %v3249 = vpop.xlane.xlu0 %3248
      %3250 = vadd.xlane.f32.xlu0 %v3231
      %v3251 = vpop.xlane.xlu0 %3250
      %3252 = vadd.xlane.f32.xlu0 %v3232
      %v3253 = vpop.xlane.xlu0 %3252
      %3254 = vadd.xlane.f32.xlu0 %v3233
      %v3255 = vpop.xlane.xlu0 %3254
      %3256 = vadd.xlane.f32.xlu0 %v3234
      %v3257 = vpop.xlane.xlu0 %3256
      %3258 = vadd.xlane.f32.xlu0 %v3235
      %v3259 = vpop.xlane.xlu0 %3258
      %3260 = vadd.xlane.f32.xlu0 %v3236
      %v3261 = vpop.xlane.xlu0 %3260
      %3262 = vadd.xlane.f32.xlu0 %v3237
      %v3263 = vpop.xlane.xlu0 %3262
      %3264 = vadd.xlane.f32.xlu0 %v3238
      %v3265 = vpop.xlane.xlu0 %3264
      %3266 = vadd.xlane.f32.xlu0 %v3239
      %v3267 = vpop.xlane.xlu0 %3266
      %3268 = vadd.xlane.f32.xlu0 %v3240
      %v3269 = vpop.xlane.xlu0 %3268
      %3270 = vadd.xlane.f32.xlu0 %v3241
      %v3271 = vpop.xlane.xlu0 %3270
      %3272 = vadd.xlane.f32.xlu0 %v3242
      %v3273 = vpop.xlane.xlu0 %3272
      %3274 = vadd.xlane.f32.xlu0 %v3243
      %v3275 = vpop.xlane.xlu0 %3274
      %3276 = vadd.xlane.f32.xlu0 %v3244
      %v3277 = vpop.xlane.xlu0 %3276
      %3278 = vadd.xlane.f32.xlu0 %v3245
      %v3279 = vpop.xlane.xlu0 %3278
      %v3280 = vmul.f32 %v3249, %v655
      %v3281 = vmul.f32 %v3251, %v655
      %v3282 = vmul.f32 %v3253, %v655
      %v3283 = vmul.f32 %v3255, %v655
      %v3284 = vmul.f32 %v3257, %v655
      %v3285 = vmul.f32 %v3259, %v655
      %v3286 = vmul.f32 %v3261, %v655
      %v3287 = vmul.f32 %v3263, %v655
      %v3288 = vmul.f32 %v3265, %v655
      %v3289 = vmul.f32 %v3267, %v655
      %v3290 = vmul.f32 %v3269, %v655
      %v3291 = vmul.f32 %v3271, %v655
      %v3292 = vmul.f32 %v3273, %v655
      %v3293 = vmul.f32 %v3275, %v655
      %v3294 = vmul.f32 %v3277, %v655
      %v3295 = vmul.f32 %v3279, %v655
      %v3296 = vsub.f32 %v3230, %v3280
      %v3297 = vsub.f32 %v3231, %v3281
      %v3298 = vsub.f32 %v3232, %v3282
      %v3299 = vsub.f32 %v3233, %v3283
      %v3300 = vsub.f32 %v3234, %v3284
      %v3301 = vsub.f32 %v3235, %v3285
      %v3302 = vsub.f32 %v3236, %v3286
      %v3303 = vsub.f32 %v3237, %v3287
      %v3304 = vsub.f32 %v3238, %v3288
      %v3305 = vsub.f32 %v3239, %v3289
      %v3306 = vsub.f32 %v3240, %v3290
      %v3307 = vsub.f32 %v3241, %v3291
      %v3308 = vsub.f32 %v3242, %v3292
      %v3309 = vsub.f32 %v3243, %v3293
      %v3310 = vsub.f32 %v3244, %v3294
      %v3311 = vsub.f32 %v3245, %v3295
      %v3312 = vmul.f32 %v3296, %v3296
      %v3313 = vmul.f32 %v3297, %v3297
      %v3314 = vmul.f32 %v3298, %v3298
      %v3315 = vmul.f32 %v3299, %v3299
      %v3316 = vmul.f32 %v3300, %v3300
      %v3317 = vmul.f32 %v3301, %v3301
      %v3318 = vmul.f32 %v3302, %v3302
      %v3319 = vmul.f32 %v3303, %v3303
      %v3320 = vmul.f32 %v3304, %v3304
      %v3321 = vmul.f32 %v3305, %v3305
      %v3322 = vmul.f32 %v3306, %v3306
      %v3323 = vmul.f32 %v3307, %v3307
      %v3324 = vmul.f32 %v3308, %v3308
      %v3325 = vmul.f32 %v3309, %v3309
      %v3326 = vmul.f32 %v3310, %v3310
      %v3327 = vmul.f32 %v3311, %v3311
      %3328 = vadd.xlane.f32.xlu0 %v3312
      %v3329 = vpop.xlane.xlu0 %3328
      %3330 = vadd.xlane.f32.xlu0 %v3313
      %v3331 = vpop.xlane.xlu0 %3330
      %3332 = vadd.xlane.f32.xlu0 %v3314
      %v3333 = vpop.xlane.xlu0 %3332
      %3334 = vadd.xlane.f32.xlu0 %v3315
      %v3335 = vpop.xlane.xlu0 %3334
      %3336 = vadd.xlane.f32.xlu0 %v3316
      %v3337 = vpop.xlane.xlu0 %3336
      %3338 = vadd.xlane.f32.xlu0 %v3317
      %v3339 = vpop.xlane.xlu0 %3338
      %3340 = vadd.xlane.f32.xlu0 %v3318
      %v3341 = vpop.xlane.xlu0 %3340
      %3342 = vadd.xlane.f32.xlu0 %v3319
      %v3343 = vpop.xlane.xlu0 %3342
      %3344 = vadd.xlane.f32.xlu0 %v3320
      %v3345 = vpop.xlane.xlu0 %3344
      %3346 = vadd.xlane.f32.xlu0 %v3321
      %v3347 = vpop.xlane.xlu0 %3346
      %3348 = vadd.xlane.f32.xlu0 %v3322
      %v3349 = vpop.xlane.xlu0 %3348
      %3350 = vadd.xlane.f32.xlu0 %v3323
      %v3351 = vpop.xlane.xlu0 %3350
      %3352 = vadd.xlane.f32.xlu0 %v3324
      %v3353 = vpop.xlane.xlu0 %3352
      %3354 = vadd.xlane.f32.xlu0 %v3325
      %v3355 = vpop.xlane.xlu0 %3354
      %3356 = vadd.xlane.f32.xlu0 %v3326
      %v3357 = vpop.xlane.xlu0 %3356
      %3358 = vadd.xlane.f32.xlu0 %v3327
      %v3359 = vpop.xlane.xlu0 %3358
      %v3360 = vmul.f32 %v3329, %v655
      %v3361 = vmul.f32 %v3331, %v655
      %v3362 = vmul.f32 %v3333, %v655
      %v3363 = vmul.f32 %v3335, %v655
      %v3364 = vmul.f32 %v3337, %v655
      %v3365 = vmul.f32 %v3339, %v655
      %v3366 = vmul.f32 %v3341, %v655
      %v3367 = vmul.f32 %v3343, %v655
      %v3368 = vmul.f32 %v3345, %v655
      %v3369 = vmul.f32 %v3347, %v655
      %v3370 = vmul.f32 %v3349, %v655
      %v3371 = vmul.f32 %v3351, %v655
      %v3372 = vmul.f32 %v3353, %v655
      %v3373 = vmul.f32 %v3355, %v655
      %v3374 = vmul.f32 %v3357, %v655
      %v3375 = vmul.f32 %v3359, %v655
      %v3376 = vadd.f32 %v3360, 1e-06
      %v3377 = vadd.f32 %v3361, 1e-06
      %v3378 = vadd.f32 %v3362, 1e-06
      %v3379 = vadd.f32 %v3363, 1e-06
      %v3380 = vadd.f32 %v3364, 1e-06
      %v3381 = vadd.f32 %v3365, 1e-06
      %v3382 = vadd.f32 %v3366, 1e-06
      %v3383 = vadd.f32 %v3367, 1e-06
      %v3384 = vadd.f32 %v3368, 1e-06
      %v3385 = vadd.f32 %v3369, 1e-06
      %v3386 = vadd.f32 %v3370, 1e-06
      %v3387 = vadd.f32 %v3371, 1e-06
      %v3388 = vadd.f32 %v3372, 1e-06
      %v3389 = vadd.f32 %v3373, 1e-06
      %v3390 = vadd.f32 %v3374, 1e-06
      %v3391 = vadd.f32 %v3375, 1e-06
      %v3392 = vrsqrt.pop %v3376
      %v3393 = vrsqrt.pop %v3377
      %v3394 = vrsqrt.pop %v3378
      %v3395 = vrsqrt.pop %v3379
      %v3396 = vrsqrt.pop %v3380
      %v3397 = vrsqrt.pop %v3381
      %v3398 = vrsqrt.pop %v3382
      %v3399 = vrsqrt.pop %v3383
      %v3400 = vrsqrt.pop %v3384
      %v3401 = vrsqrt.pop %v3385
      %v3402 = vrsqrt.pop %v3386
      %v3403 = vrsqrt.pop %v3387
      %v3404 = vrsqrt.pop %v3388
      %v3405 = vrsqrt.pop %v3389
      %v3406 = vrsqrt.pop %v3390
      %v3407 = vrsqrt.pop %v3391
      %v3408 = vmul.f32 %v3296, %v3392
      %v3409 = vmul.f32 %v3297, %v3393
      %v3410 = vmul.f32 %v3298, %v3394
      %v3411 = vmul.f32 %v3299, %v3395
      %v3412 = vmul.f32 %v3300, %v3396
      %v3413 = vmul.f32 %v3301, %v3397
      %v3414 = vmul.f32 %v3302, %v3398
      %v3415 = vmul.f32 %v3303, %v3399
      %v3416 = vmul.f32 %v3304, %v3400
      %v3417 = vmul.f32 %v3305, %v3401
      %v3418 = vmul.f32 %v3306, %v3402
      %v3419 = vmul.f32 %v3307, %v3403
      %v3420 = vmul.f32 %v3308, %v3404
      %v3421 = vmul.f32 %v3309, %v3405
      %v3422 = vmul.f32 %v3310, %v3406
      %v3423 = vmul.f32 %v3311, %v3407
      %v3425 = vlaneseq
      %v3426 = vshrl.u32 %v3425, 7
      %v3427 = vsub.s32 0, %v3426
      %v3428 = vrot.slane %v3246, %v3427
      %v3430 = vmul.f32 %v3408, %v3428
      %v3431 = vmul.f32 %v3409, %v3428
      %v3432 = vmul.f32 %v3410, %v3428
      %v3433 = vmul.f32 %v3411, %v3428
      %v3434 = vmul.f32 %v3412, %v3428
      %v3435 = vmul.f32 %v3413, %v3428
      %v3436 = vmul.f32 %v3414, %v3428
      %v3437 = vmul.f32 %v3415, %v3428
      %v3438 = vmul.f32 %v3416, %v3428
      %v3439 = vmul.f32 %v3417, %v3428
      %v3440 = vmul.f32 %v3418, %v3428
      %v3441 = vmul.f32 %v3419, %v3428
      %v3442 = vmul.f32 %v3420, %v3428
      %v3443 = vmul.f32 %v3421, %v3428
      %v3444 = vmul.f32 %v3422, %v3428
      %v3445 = vmul.f32 %v3423, %v3428
      %v3447 = vlaneseq
      %v3448 = vshrl.u32 %v3447, 7
      %v3449 = vsub.s32 0, %v3448
      %v3450 = vrot.slane %v3247, %v3449
      %v3452 = vadd.f32 %v3430, %v3450
      %v3453 = vadd.f32 %v3431, %v3450
      %v3454 = vadd.f32 %v3432, %v3450
      %v3455 = vadd.f32 %v3433, %v3450
      %v3456 = vadd.f32 %v3434, %v3450
      %v3457 = vadd.f32 %v3435, %v3450
      %v3458 = vadd.f32 %v3436, %v3450
      %v3459 = vadd.f32 %v3437, %v3450
      %v3460 = vadd.f32 %v3438, %v3450
      %v3461 = vadd.f32 %v3439, %v3450
      %v3462 = vadd.f32 %v3440, %v3450
      %v3463 = vadd.f32 %v3441, %v3450
      %v3464 = vadd.f32 %v3442, %v3450
      %v3465 = vadd.f32 %v3443, %v3450
      %v3466 = vadd.f32 %v3444, %v3450
      %v3467 = vadd.f32 %v3445, %v3450
      %v3468 = vpack.c.bf16 %v3453, %v3452
      %v3469 = vpack.c.bf16 %v3455, %v3454
      %v3470 = vpack.c.bf16 %v3457, %v3456
      %v3471 = vpack.c.bf16 %v3459, %v3458
      %v3472 = vpack.c.bf16 %v3461, %v3460
      %v3473 = vpack.c.bf16 %v3463, %v3462
      %v3474 = vpack.c.bf16 %v3465, %v3464
      %v3475 = vpack.c.bf16 %v3467, %v3466
      %v3476 = vld [vmem:[%s12] sm:$0xff]
      %v3477 = vld [vmem:[%s12 + $0x8] sm:$0xff]
      %v3478 = vld [vmem:[%s12 + $0x10] sm:$0xff]
      %v3479 = vld [vmem:[%s12 + $0x18] sm:$0xff]
      %v3480 = vld [vmem:[%s12 + $0x20] sm:$0xff]
      %v3481 = vld [vmem:[%s12 + $0x28] sm:$0xff]
      %v3482 = vld [vmem:[%s12 + $0x30] sm:$0xff]
      %v3483 = vld [vmem:[%s12 + $0x38] sm:$0xff]
      %v3484 = vld [vmem:[%s12 + $0x40] sm:$0xff]
      %v3485 = vld [vmem:[%s12 + $0x48] sm:$0xff]
      %v3486 = vld [vmem:[%s12 + $0x50] sm:$0xff]
      %v3487 = vld [vmem:[%s12 + $0x58] sm:$0xff]
      %v3488 = vld [vmem:[%s12 + $0x60] sm:$0xff]
      %v3489 = vld [vmem:[%s12 + $0x68] sm:$0xff]
      %v3490 = vld [vmem:[%s12 + $0x70] sm:$0xff]
      %v3491 = vld [vmem:[%s12 + $0x78] sm:$0xff]
      %v3492 = vld [vmem:[%s12 + $0x80] sm:$0xff]
      %v3493 = vld [vmem:[%s12 + $0x88] sm:$0xff]
      %v3494 = vld [vmem:[%s12 + $0x90] sm:$0xff]
      %v3495 = vld [vmem:[%s12 + $0x98] sm:$0xff]
      %v3496 = vld [vmem:[%s12 + $0xa0] sm:$0xff]
      %v3497 = vld [vmem:[%s12 + $0xa8] sm:$0xff]
      %v3498 = vld [vmem:[%s12 + $0xb0] sm:$0xff]
      %v3499 = vld [vmem:[%s12 + $0xb8] sm:$0xff]
      %v3500 = vld [vmem:[%s12 + $0xc0] sm:$0xff]
      %v3501 = vld [vmem:[%s12 + $0xc8] sm:$0xff]
      %v3502 = vld [vmem:[%s12 + $0xd0] sm:$0xff]
      %v3503 = vld [vmem:[%s12 + $0xd8] sm:$0xff]
      %v3504 = vld [vmem:[%s12 + $0xe0] sm:$0xff]
      %v3505 = vld [vmem:[%s12 + $0xe8] sm:$0xff]
      %v3506 = vld [vmem:[%s12 + $0xf0] sm:$0xff]
      %v3507 = vld [vmem:[%s12 + $0xf8] sm:$0xff]
      %v3508 = vld [vmem:[%s13] sm:$0xf]
      %v3510 = vlaneseq
      %v3511 = vshrl.u32 %v3510, 7
      %v3512 = vsub.s32 0, %v3511
      %v3513 = vrot.slane %v3508, %v3512
      %v3514 = vlaneseq
      %v3515 = vshrl.u32 %v3514, 7
      %v3516 = vsub.s32 1, %v3515
      %v3517 = vrot.slane %v3508, %v3516
      %v3518 = vlaneseq
      %v3519 = vshrl.u32 %v3518, 7
      %v3520 = vsub.s32 2, %v3519
      %v3521 = vrot.slane %v3508, %v3520
      %v3522 = vlaneseq
      %v3523 = vshrl.u32 %v3522, 7
      %v3524 = vsub.s32 3, %v3523
      %v3525 = vrot.slane %v3508, %v3524
      %v3562 = vunpack.c.l.b16 %v3476
      %v3563 = vunpack.c.h.b16 %v3476
      %v3564 = vunpack.c.l.b16 %v3477
      %v3565 = vunpack.c.h.b16 %v3477
      %v3566 = vunpack.c.l.b16 %v3478
      %v3567 = vunpack.c.h.b16 %v3478
      %v3568 = vunpack.c.l.b16 %v3479
      %v3569 = vunpack.c.h.b16 %v3479
      %v3570 = vunpack.c.l.b16 %v3480
      %v3571 = vunpack.c.h.b16 %v3480
      %v3572 = vunpack.c.l.b16 %v3481
      %v3573 = vunpack.c.h.b16 %v3481
      %v3574 = vunpack.c.l.b16 %v3482
      %v3575 = vunpack.c.h.b16 %v3482
      %v3576 = vunpack.c.l.b16 %v3483
      %v3577 = vunpack.c.h.b16 %v3483
      %v3578 = vunpack.c.l.b16 %v3484
      %v3579 = vunpack.c.h.b16 %v3484
      %v3580 = vunpack.c.l.b16 %v3485
      %v3581 = vunpack.c.h.b16 %v3485
      %v3582 = vunpack.c.l.b16 %v3486
      %v3583 = vunpack.c.h.b16 %v3486
      %v3584 = vunpack.c.l.b16 %v3487
      %v3585 = vunpack.c.h.b16 %v3487
      %v3586 = vunpack.c.l.b16 %v3488
      %v3587 = vunpack.c.h.b16 %v3488
      %v3588 = vunpack.c.l.b16 %v3489
      %v3589 = vunpack.c.h.b16 %v3489
      %v3590 = vunpack.c.l.b16 %v3490
      %v3591 = vunpack.c.h.b16 %v3490
      %v3592 = vunpack.c.l.b16 %v3491
      %v3593 = vunpack.c.h.b16 %v3491
      %v3594 = vunpack.c.l.b16 %v3492
      %v3595 = vunpack.c.h.b16 %v3492
      %v3596 = vunpack.c.l.b16 %v3493
      %v3597 = vunpack.c.h.b16 %v3493
      %v3598 = vunpack.c.l.b16 %v3494
      %v3599 = vunpack.c.h.b16 %v3494
      %v3600 = vunpack.c.l.b16 %v3495
      %v3601 = vunpack.c.h.b16 %v3495
      %v3602 = vunpack.c.l.b16 %v3496
      %v3603 = vunpack.c.h.b16 %v3496
      %v3604 = vunpack.c.l.b16 %v3497
      %v3605 = vunpack.c.h.b16 %v3497
      %v3606 = vunpack.c.l.b16 %v3498
      %v3607 = vunpack.c.h.b16 %v3498
      %v3608 = vunpack.c.l.b16 %v3499
      %v3609 = vunpack.c.h.b16 %v3499
      %v3610 = vunpack.c.l.b16 %v3500
      %v3611 = vunpack.c.h.b16 %v3500
      %v3612 = vunpack.c.l.b16 %v3501
      %v3613 = vunpack.c.h.b16 %v3501
      %v3614 = vunpack.c.l.b16 %v3502
      %v3615 = vunpack.c.h.b16 %v3502
      %v3616 = vunpack.c.l.b16 %v3503
      %v3617 = vunpack.c.h.b16 %v3503
      %v3618 = vunpack.c.l.b16 %v3504
      %v3619 = vunpack.c.h.b16 %v3504
      %v3620 = vunpack.c.l.b16 %v3505
      %v3621 = vunpack.c.h.b16 %v3505
      %v3622 = vunpack.c.l.b16 %v3506
      %v3623 = vunpack.c.h.b16 %v3506
      %v3624 = vunpack.c.l.b16 %v3507
      %v3625 = vunpack.c.h.b16 %v3507
      %v3626 = vpack.c.b16 %v3566, %v3562
      %v3627 = vpack.c.b16 %v3567, %v3563
      %v3628 = vpack.c.b16 %v3568, %v3564
      %v3629 = vpack.c.b16 %v3569, %v3565
      %v3630 = vpack.c.b16 %v3574, %v3570
      %v3631 = vpack.c.b16 %v3575, %v3571
      %v3632 = vpack.c.b16 %v3576, %v3572
      %v3633 = vpack.c.b16 %v3577, %v3573
      %v3634 = vpack.c.b16 %v3582, %v3578
      %v3635 = vpack.c.b16 %v3583, %v3579
      %v3636 = vpack.c.b16 %v3584, %v3580
      %v3637 = vpack.c.b16 %v3585, %v3581
      %v3638 = vpack.c.b16 %v3590, %v3586
      %v3639 = vpack.c.b16 %v3591, %v3587
      %v3640 = vpack.c.b16 %v3592, %v3588
      %v3641 = vpack.c.b16 %v3593, %v3589
      %v3642 = vpack.c.b16 %v3598, %v3594
      %v3643 = vpack.c.b16 %v3599, %v3595
      %v3644 = vpack.c.b16 %v3600, %v3596
      %v3645 = vpack.c.b16 %v3601, %v3597
      %v3646 = vpack.c.b16 %v3606, %v3602
      %v3647 = vpack.c.b16 %v3607, %v3603
      %v3648 = vpack.c.b16 %v3608, %v3604
      %v3649 = vpack.c.b16 %v3609, %v3605
      %v3650 = vpack.c.b16 %v3614, %v3610
      %v3651 = vpack.c.b16 %v3615, %v3611
      %v3652 = vpack.c.b16 %v3616, %v3612
      %v3653 = vpack.c.b16 %v3617, %v3613
      %v3654 = vpack.c.b16 %v3622, %v3618
      %v3655 = vpack.c.b16 %v3623, %v3619
      %v3656 = vpack.c.b16 %v3624, %v3620
      %v3657 = vpack.c.b16 %v3625, %v3621
      %3690 = vmatprep.subr.bf16.mxu0 %v3627
      %3691 = vmatpush1.bf16.msra.mxu0 %v3626
      %3692 = vmatprep.subr.bf16.mxu0 %v3631
      %3693 = vmatpush1.bf16.msra.mxu0 %v3630
      %3694 = vmatprep.subr.bf16.mxu0 %v3635
      %3695 = vmatpush1.bf16.msra.mxu0 %v3634
      %3696 = vmatprep.subr.bf16.mxu0 %v3639
      %3697 = vmatpush1.bf16.msra.mxu0 %v3638
      %3698 = vmatprep.subr.bf16.mxu0 %v3643
      %3699 = vmatpush1.bf16.msra.mxu0 %v3642
      %3700 = vmatprep.subr.bf16.mxu0 %v3647
      %3701 = vmatpush1.bf16.msra.mxu0 %v3646
      %3702 = vmatprep.subr.bf16.mxu0 %v3651
      %3703 = vmatpush1.bf16.msra.mxu0 %v3650
      %3704 = vmatprep.subr.bf16.mxu0 %v3655
      %3705 = vmatpush1.bf16.msra.mxu0 %v3654
      %3706 = vmatprep.subr.bf16.mxu0 0
      %3707 = vmatpush1.bf16.msra.mxu0 0
      %3708 = vmatprep.subr.bf16.mxu0 0
      %3709 = vmatpush1.bf16.msra.mxu0 0
      %3710 = vmatprep.subr.bf16.mxu0 0
      %3711 = vmatpush1.bf16.msra.mxu0 0
      %3712 = vmatprep.subr.bf16.mxu0 0
      %3713 = vmatpush1.bf16.msra.mxu0 0
      %3714 = vmatprep.subr.bf16.mxu0 0
      %3715 = vmatpush1.bf16.msra.mxu0 0
      %3716 = vmatprep.subr.bf16.mxu0 0
      %3717 = vmatpush1.bf16.msra.mxu0 0
      %3718 = vmatprep.subr.bf16.mxu0 0
      %3719 = vmatpush1.bf16.msra.mxu0 0
      %3720 = vmatprep.subr.bf16.mxu0 0
      %3721 = vmatpush1.bf16.msra.mxu0 0
      %3722 = vmatprep.mubr.bf16.mxu0 0
      %3723 = vmatmul.mubr.bf16.gmra.mrb[0].mxu0 %v3468
      %v3724 = vpop.f32.mrb[0].mxu0
      %v3725 = vadd.f32 %v3513, %v3724
      %v3726 = vpop.f32.mrb[0].mxu0
      %v3727 = vadd.f32 %v3517, %v3726
      %v3728 = vpop.f32.mrb[0].mxu0
      %v3729 = vadd.f32 %v3513, %v3728
      %v3730 = vpop.f32.mrb[0].mxu0
      %v3731 = vadd.f32 %v3517, %v3730
      %3732 = vmatprep.mubr.bf16.mxu0 0
      %3733 = vmatmul.mubr.bf16.gmra.mrb[0].mxu0 %v3469
      %v3734 = vpop.f32.mrb[0].mxu0
      %v3735 = vadd.f32 %v3513, %v3734
      %v3736 = vpop.f32.mrb[0].mxu0
      %v3737 = vadd.f32 %v3517, %v3736
      %v3738 = vpop.f32.mrb[0].mxu0
      %v3739 = vadd.f32 %v3513, %v3738
      %v3740 = vpop.f32.mrb[0].mxu0
      %v3741 = vadd.f32 %v3517, %v3740
      %3742 = vmatprep.mubr.bf16.mxu0 0
      %3743 = vmatmul.mubr.bf16.gmra.mrb[0].mxu0 %v3470
      %v3744 = vpop.f32.mrb[0].mxu0
      %v3745 = vadd.f32 %v3513, %v3744
      %v3746 = vpop.f32.mrb[0].mxu0
      %v3747 = vadd.f32 %v3517, %v3746
      %v3748 = vpop.f32.mrb[0].mxu0
      %v3749 = vadd.f32 %v3513, %v3748
      %v3750 = vpop.f32.mrb[0].mxu0
      %v3751 = vadd.f32 %v3517, %v3750
      %3752 = vmatprep.mubr.bf16.mxu0 0
      %3753 = vmatmul.mubr.bf16.gmra.mrb[0].mxu0 %v3471
      %v3754 = vpop.f32.mrb[0].mxu0
      %v3755 = vadd.f32 %v3513, %v3754
      %v3756 = vpop.f32.mrb[0].mxu0
      %v3757 = vadd.f32 %v3517, %v3756
      %v3758 = vpop.f32.mrb[0].mxu0
      %v3759 = vadd.f32 %v3513, %v3758
      %v3760 = vpop.f32.mrb[0].mxu0
      %v3761 = vadd.f32 %v3517, %v3760
      %3762 = vmatprep.mubr.bf16.mxu0 0
      %3763 = vmatmul.mubr.bf16.gmra.mrb[0].mxu0 %v3472
      %v3764 = vpop.f32.mrb[0].mxu0
      %v3765 = vadd.f32 %v3513, %v3764
      %v3766 = vpop.f32.mrb[0].mxu0
      %v3767 = vadd.f32 %v3517, %v3766
      %v3768 = vpop.f32.mrb[0].mxu0
      %v3769 = vadd.f32 %v3513, %v3768
      %v3770 = vpop.f32.mrb[0].mxu0
      %v3771 = vadd.f32 %v3517, %v3770
      %3772 = vmatprep.mubr.bf16.mxu0 0
      %3773 = vmatmul.mubr.bf16.gmra.mrb[0].mxu0 %v3473
      %v3774 = vpop.f32.mrb[0].mxu0
      %v3775 = vadd.f32 %v3513, %v3774
      %v3776 = vpop.f32.mrb[0].mxu0
      %v3777 = vadd.f32 %v3517, %v3776
      %v3778 = vpop.f32.mrb[0].mxu0
      %v3779 = vadd.f32 %v3513, %v3778
      %v3780 = vpop.f32.mrb[0].mxu0
      %v3781 = vadd.f32 %v3517, %v3780
      %3782 = vmatprep.mubr.bf16.mxu0 0
      %3783 = vmatmul.mubr.bf16.gmra.mrb[0].mxu0 %v3474
      %v3784 = vpop.f32.mrb[0].mxu0
      %v3785 = vadd.f32 %v3513, %v3784
      %v3786 = vpop.f32.mrb[0].mxu0
      %v3787 = vadd.f32 %v3517, %v3786
      %v3788 = vpop.f32.mrb[0].mxu0
      %v3789 = vadd.f32 %v3513, %v3788
      %v3790 = vpop.f32.mrb[0].mxu0
      %v3791 = vadd.f32 %v3517, %v3790
      %3792 = vmatprep.mubr.bf16.mxu0 0
      %3793 = vmatmul.mubr.bf16.gmra.mrb[0].mxu0 %v3475
      %v3794 = vpop.f32.mrb[0].mxu0
      %v3795 = vadd.f32 %v3513, %v3794
      %v3796 = vpop.f32.mrb[0].mxu0
      %v3797 = vadd.f32 %v3517, %v3796
      %v3798 = vpop.f32.mrb[0].mxu0
      %v3799 = vadd.f32 %v3513, %v3798
      %v3800 = vpop.f32.mrb[0].mxu0
      %v3801 = vadd.f32 %v3517, %v3800
      %3802 = vdwg.mxu0
      %3803 = vmatprep.subr.bf16.mxu0 %v3629
      %3804 = vmatpush1.bf16.msra.mxu0 %v3628
      %3805 = vmatprep.subr.bf16.mxu0 %v3633
      %3806 = vmatpush1.bf16.msra.mxu0 %v3632
      %3807 = vmatprep.subr.bf16.mxu0 %v3637
      %3808 = vmatpush1.bf16.msra.mxu0 %v3636
      %3809 = vmatprep.subr.bf16.mxu0 %v3641
      %3810 = vmatpush1.bf16.msra.mxu0 %v3640
      %3811 = vmatprep.subr.bf16.mxu0 %v3645
      %3812 = vmatpush1.bf16.msra.mxu0 %v3644
      %3813 = vmatprep.subr.bf16.mxu0 %v3649
      %3814 = vmatpush1.bf16.msra.mxu0 %v3648
      %3815 = vmatprep.subr.bf16.mxu0 %v3653
      %3816 = vmatpush1.bf16.msra.mxu0 %v3652
      %3817 = vmatprep.subr.bf16.mxu0 %v3657
      %3818 = vmatpush1.bf16.msra.mxu0 %v3656
      %3819 = vmatprep.subr.bf16.mxu0 0
      %3820 = vmatpush1.bf16.msra.mxu0 0
      %3821 = vmatprep.subr.bf16.mxu0 0
      %3822 = vmatpush1.bf16.msra.mxu0 0
      %3823 = vmatprep.subr.bf16.mxu0 0
      %3824 = vmatpush1.bf16.msra.mxu0 0
      %3825 = vmatprep.subr.bf16.mxu0 0
      %3826 = vmatpush1.bf16.msra.mxu0 0
      %3827 = vmatprep.subr.bf16.mxu0 0
      %3828 = vmatpush1.bf16.msra.mxu0 0
      %3829 = vmatprep.subr.bf16.mxu0 0
      %3830 = vmatpush1.bf16.msra.mxu0 0
      %3831 = vmatprep.subr.bf16.mxu0 0
      %3832 = vmatpush1.bf16.msra.mxu0 0
      %3833 = vmatprep.subr.bf16.mxu0 0
      %3834 = vmatpush1.bf16.msra.mxu0 0
      %3835 = vmatprep.mubr.bf16.mxu0 0
      %3836 = vmatmul.mubr.bf16.gmra.mrb[0].mxu0 %v3468
      %v3837 = vpop.f32.mrb[0].mxu0
      %v3838 = vadd.f32 %v3521, %v3837
      %v3839 = vpop.f32.mrb[0].mxu0
      %v3840 = vadd.f32 %v3525, %v3839
      %v3841 = vpop.f32.mrb[0].mxu0
      %v3842 = vadd.f32 %v3521, %v3841
      %v3843 = vpop.f32.mrb[0].mxu0
      %v3844 = vadd.f32 %v3525, %v3843
      %3845 = vmatprep.mubr.bf16.mxu0 0
      %3846 = vmatmul.mubr.bf16.gmra.mrb[0].mxu0 %v3469
      %v3847 = vpop.f32.mrb[0].mxu0
      %v3848 = vadd.f32 %v3521, %v3847
      %v3849 = vpop.f32.mrb[0].mxu0
      %v3850 = vadd.f32 %v3525, %v3849
      %v3851 = vpop.f32.mrb[0].mxu0
      %v3852 = vadd.f32 %v3521, %v3851
      %v3853 = vpop.f32.mrb[0].mxu0
      %v3854 = vadd.f32 %v3525, %v3853
      %3855 = vmatprep.mubr.bf16.mxu0 0
      %3856 = vmatmul.mubr.bf16.gmra.mrb[0].mxu0 %v3470
      %v3857 = vpop.f32.mrb[0].mxu0
      %v3858 = vadd.f32 %v3521, %v3857
      %v3859 = vpop.f32.mrb[0].mxu0
      %v3860 = vadd.f32 %v3525, %v3859
      %v3861 = vpop.f32.mrb[0].mxu0
      %v3862 = vadd.f32 %v3521, %v3861
      %v3863 = vpop.f32.mrb[0].mxu0
      %v3864 = vadd.f32 %v3525, %v3863
      %3865 = vmatprep.mubr.bf16.mxu0 0
      %3866 = vmatmul.mubr.bf16.gmra.mrb[0].mxu0 %v3471
      %v3867 = vpop.f32.mrb[0].mxu0
      %v3868 = vadd.f32 %v3521, %v3867
      %v3869 = vpop.f32.mrb[0].mxu0
      %v3870 = vadd.f32 %v3525, %v3869
      %v3871 = vpop.f32.mrb[0].mxu0
      %v3872 = vadd.f32 %v3521, %v3871
      %v3873 = vpop.f32.mrb[0].mxu0
      %v3874 = vadd.f32 %v3525, %v3873
      %3875 = vmatprep.mubr.bf16.mxu0 0
      %3876 = vmatmul.mubr.bf16.gmra.mrb[0].mxu0 %v3472
      %v3877 = vpop.f32.mrb[0].mxu0
      %v3878 = vadd.f32 %v3521, %v3877
      %v3879 = vpop.f32.mrb[0].mxu0
      %v3880 = vadd.f32 %v3525, %v3879
      %v3881 = vpop.f32.mrb[0].mxu0
      %v3882 = vadd.f32 %v3521, %v3881
      %v3883 = vpop.f32.mrb[0].mxu0
      %v3884 = vadd.f32 %v3525, %v3883
      %3885 = vmatprep.mubr.bf16.mxu0 0
      %3886 = vmatmul.mubr.bf16.gmra.mrb[0].mxu0 %v3473
      %v3887 = vpop.f32.mrb[0].mxu0
      %v3888 = vadd.f32 %v3521, %v3887
      %v3889 = vpop.f32.mrb[0].mxu0
      %v3890 = vadd.f32 %v3525, %v3889
      %v3891 = vpop.f32.mrb[0].mxu0
      %v3892 = vadd.f32 %v3521, %v3891
      %v3893 = vpop.f32.mrb[0].mxu0
      %v3894 = vadd.f32 %v3525, %v3893
      %3895 = vmatprep.mubr.bf16.mxu0 0
      %3896 = vmatmul.mubr.bf16.gmra.mrb[0].mxu0 %v3474
      %v3897 = vpop.f32.mrb[0].mxu0
      %v3898 = vadd.f32 %v3521, %v3897
      %v3899 = vpop.f32.mrb[0].mxu0
      %v3900 = vadd.f32 %v3525, %v3899
      %v3901 = vpop.f32.mrb[0].mxu0
      %v3902 = vadd.f32 %v3521, %v3901
      %v3903 = vpop.f32.mrb[0].mxu0
      %v3904 = vadd.f32 %v3525, %v3903
      %3905 = vmatprep.mubr.bf16.mxu0 0
      %3906 = vmatmul.mubr.bf16.gmra.mrb[0].mxu0 %v3475
      %v3907 = vpop.f32.mrb[0].mxu0
      %v3908 = vadd.f32 %v3521, %v3907
      %v3909 = vpop.f32.mrb[0].mxu0
      %v3910 = vadd.f32 %v3525, %v3909
      %v3911 = vpop.f32.mrb[0].mxu0
      %v3912 = vadd.f32 %v3521, %v3911
      %v3913 = vpop.f32.mrb[0].mxu0
      %v3914 = vadd.f32 %v3525, %v3913
      %3915 = vdwg.mxu0
      %v3916 = vmul.f32 %v3725, 0.5
      %v3917 = vmul.f32 %v3727, 0.5
      %v3918 = vmul.f32 %v3838, 0.5
      %v3919 = vmul.f32 %v3840, 0.5
      %v3920 = vmul.f32 %v3729, 0.5
      %v3921 = vmul.f32 %v3731, 0.5
      %v3922 = vmul.f32 %v3842, 0.5
      %v3923 = vmul.f32 %v3844, 0.5
      %v3924 = vmul.f32 %v3735, 0.5
      %v3925 = vmul.f32 %v3737, 0.5
      %v3926 = vmul.f32 %v3848, 0.5
      %v3927 = vmul.f32 %v3850, 0.5
      %v3928 = vmul.f32 %v3739, 0.5
      %v3929 = vmul.f32 %v3741, 0.5
      %v3930 = vmul.f32 %v3852, 0.5
      %v3931 = vmul.f32 %v3854, 0.5
      %v3932 = vmul.f32 %v3745, 0.5
      %v3933 = vmul.f32 %v3747, 0.5
      %v3934 = vmul.f32 %v3858, 0.5
      %v3935 = vmul.f32 %v3860, 0.5
      %v3936 = vmul.f32 %v3749, 0.5
      %v3937 = vmul.f32 %v3751, 0.5
      %v3938 = vmul.f32 %v3862, 0.5
      %v3939 = vmul.f32 %v3864, 0.5
      %v3940 = vmul.f32 %v3755, 0.5
      %v3941 = vmul.f32 %v3757, 0.5
      %v3942 = vmul.f32 %v3868, 0.5
      %v3943 = vmul.f32 %v3870, 0.5
      %v3944 = vmul.f32 %v3759, 0.5
      %v3945 = vmul.f32 %v3761, 0.5
      %v3946 = vmul.f32 %v3872, 0.5
      %v3947 = vmul.f32 %v3874, 0.5
      %v3948 = vmul.f32 %v3765, 0.5
      %v3949 = vmul.f32 %v3767, 0.5
      %v3950 = vmul.f32 %v3878, 0.5
      %v3951 = vmul.f32 %v3880, 0.5
      %v3952 = vmul.f32 %v3769, 0.5
      %v3953 = vmul.f32 %v3771, 0.5
      %v3954 = vmul.f32 %v3882, 0.5
      %v3955 = vmul.f32 %v3884, 0.5
      %v3956 = vmul.f32 %v3775, 0.5
      %v3957 = vmul.f32 %v3777, 0.5
      %v3958 = vmul.f32 %v3888, 0.5
      %v3959 = vmul.f32 %v3890, 0.5
      %v3960 = vmul.f32 %v3779, 0.5
      %v3961 = vmul.f32 %v3781, 0.5
      %v3962 = vmul.f32 %v3892, 0.5
      %v3963 = vmul.f32 %v3894, 0.5
      %v3964 = vmul.f32 %v3785, 0.5
      %v3965 = vmul.f32 %v3787, 0.5
      %v3966 = vmul.f32 %v3898, 0.5
      %v3967 = vmul.f32 %v3900, 0.5
      %v3968 = vmul.f32 %v3789, 0.5
      %v3969 = vmul.f32 %v3791, 0.5
      %v3970 = vmul.f32 %v3902, 0.5
      %v3971 = vmul.f32 %v3904, 0.5
      %v3972 = vmul.f32 %v3795, 0.5
      %v3973 = vmul.f32 %v3797, 0.5
      %v3974 = vmul.f32 %v3908, 0.5
      %v3975 = vmul.f32 %v3910, 0.5
      %v3976 = vmul.f32 %v3799, 0.5
      %v3977 = vmul.f32 %v3801, 0.5
      %v3978 = vmul.f32 %v3912, 0.5
      %v3979 = vmul.f32 %v3914, 0.5
      %v3980 = vmul.f32 %v3725, 0.044715
      %v3981 = vmul.f32 %v3727, 0.044715
      %v3982 = vmul.f32 %v3838, 0.044715
      %v3983 = vmul.f32 %v3840, 0.044715
      %v3984 = vmul.f32 %v3729, 0.044715
      %v3985 = vmul.f32 %v3731, 0.044715
      %v3986 = vmul.f32 %v3842, 0.044715
      %v3987 = vmul.f32 %v3844, 0.044715
      %v3988 = vmul.f32 %v3735, 0.044715
      %v3989 = vmul.f32 %v3737, 0.044715
      %v3990 = vmul.f32 %v3848, 0.044715
      %v3991 = vmul.f32 %v3850, 0.044715
      %v3992 = vmul.f32 %v3739, 0.044715
      %v3993 = vmul.f32 %v3741, 0.044715
      %v3994 = vmul.f32 %v3852, 0.044715
      %v3995 = vmul.f32 %v3854, 0.044715
      %v3996 = vmul.f32 %v3745, 0.044715
      %v3997 = vmul.f32 %v3747, 0.044715
      %v3998 = vmul.f32 %v3858, 0.044715
      %v3999 = vmul.f32 %v3860, 0.044715
      %v4000 = vmul.f32 %v3749, 0.044715
      %v4001 = vmul.f32 %v3751, 0.044715
      %v4002 = vmul.f32 %v3862, 0.044715
      %v4003 = vmul.f32 %v3864, 0.044715
      %v4004 = vmul.f32 %v3755, 0.044715
      %v4005 = vmul.f32 %v3757, 0.044715
      %v4006 = vmul.f32 %v3868, 0.044715
      %v4007 = vmul.f32 %v3870, 0.044715
      %v4008 = vmul.f32 %v3759, 0.044715
      %v4009 = vmul.f32 %v3761, 0.044715
      %v4010 = vmul.f32 %v3872, 0.044715
      %v4011 = vmul.f32 %v3874, 0.044715
      %v4012 = vmul.f32 %v3765, 0.044715
      %v4013 = vmul.f32 %v3767, 0.044715
      %v4014 = vmul.f32 %v3878, 0.044715
      %v4015 = vmul.f32 %v3880, 0.044715
      %v4016 = vmul.f32 %v3769, 0.044715
      %v4017 = vmul.f32 %v3771, 0.044715
      %v4018 = vmul.f32 %v3882, 0.044715
      %v4019 = vmul.f32 %v3884, 0.044715
      %v4020 = vmul.f32 %v3775, 0.044715
      %v4021 = vmul.f32 %v3777, 0.044715
      %v4022 = vmul.f32 %v3888, 0.044715
      %v4023 = vmul.f32 %v3890, 0.044715
      %v4024 = vmul.f32 %v3779, 0.044715
      %v4025 = vmul.f32 %v3781, 0.044715
      %v4026 = vmul.f32 %v3892, 0.044715
      %v4027 = vmul.f32 %v3894, 0.044715
      %v4028 = vmul.f32 %v3785, 0.044715
      %v4029 = vmul.f32 %v3787, 0.044715
      %v4030 = vmul.f32 %v3898, 0.044715
      %v4031 = vmul.f32 %v3900, 0.044715
      %v4032 = vmul.f32 %v3789, 0.044715
      %v4033 = vmul.f32 %v3791, 0.044715
      %v4034 = vmul.f32 %v3902, 0.044715
      %v4035 = vmul.f32 %v3904, 0.044715
      %v4036 = vmul.f32 %v3795, 0.044715
      %v4037 = vmul.f32 %v3797, 0.044715
      %v4038 = vmul.f32 %v3908, 0.044715
      %v4039 = vmul.f32 %v3910, 0.044715
      %v4040 = vmul.f32 %v3799, 0.044715
      %v4041 = vmul.f32 %v3801, 0.044715
      %v4042 = vmul.f32 %v3912, 0.044715
      %v4043 = vmul.f32 %v3914, 0.044715
      %v4044 = vmul.f32 %v3980, %v3725
      %v4045 = vmul.f32 %v3981, %v3727
      %v4046 = vmul.f32 %v3982, %v3838
      %v4047 = vmul.f32 %v3983, %v3840
      %v4048 = vmul.f32 %v3984, %v3729
      %v4049 = vmul.f32 %v3985, %v3731
      %v4050 = vmul.f32 %v3986, %v3842
      %v4051 = vmul.f32 %v3987, %v3844
      %v4052 = vmul.f32 %v3988, %v3735
      %v4053 = vmul.f32 %v3989, %v3737
      %v4054 = vmul.f32 %v3990, %v3848
      %v4055 = vmul.f32 %v3991, %v3850
      %v4056 = vmul.f32 %v3992, %v3739
      %v4057 = vmul.f32 %v3993, %v3741
      %v4058 = vmul.f32 %v3994, %v3852
      %v4059 = vmul.f32 %v3995, %v3854
      %v4060 = vmul.f32 %v3996, %v3745
      %v4061 = vmul.f32 %v3997, %v3747
      %v4062 = vmul.f32 %v3998, %v3858
      %v4063 = vmul.f32 %v3999, %v3860
      %v4064 = vmul.f32 %v4000, %v3749
      %v4065 = vmul.f32 %v4001, %v3751
      %v4066 = vmul.f32 %v4002, %v3862
      %v4067 = vmul.f32 %v4003, %v3864
      %v4068 = vmul.f32 %v4004, %v3755
      %v4069 = vmul.f32 %v4005, %v3757
      %v4070 = vmul.f32 %v4006, %v3868
      %v4071 = vmul.f32 %v4007, %v3870
      %v4072 = vmul.f32 %v4008, %v3759
      %v4073 = vmul.f32 %v4009, %v3761
      %v4074 = vmul.f32 %v4010, %v3872
      %v4075 = vmul.f32 %v4011, %v3874
      %v4076 = vmul.f32 %v4012, %v3765
      %v4077 = vmul.f32 %v4013, %v3767
      %v4078 = vmul.f32 %v4014, %v3878
      %v4079 = vmul.f32 %v4015, %v3880
      %v4080 = vmul.f32 %v4016, %v3769
      %v4081 = vmul.f32 %v4017, %v3771
      %v4082 = vmul.f32 %v4018, %v3882
      %v4083 = vmul.f32 %v4019, %v3884
      %v4084 = vmul.f32 %v4020, %v3775
      %v4085 = vmul.f32 %v4021, %v3777
      %v4086 = vmul.f32 %v4022, %v3888
      %v4087 = vmul.f32 %v4023, %v3890
      %v4088 = vmul.f32 %v4024, %v3779
      %v4089 = vmul.f32 %v4025, %v3781
      %v4090 = vmul.f32 %v4026, %v3892
      %v4091 = vmul.f32 %v4027, %v3894
      %v4092 = vmul.f32 %v4028, %v3785
      %v4093 = vmul.f32 %v4029, %v3787
      %v4094 = vmul.f32 %v4030, %v3898
      %v4095 = vmul.f32 %v4031, %v3900
      %v4096 = vmul.f32 %v4032, %v3789
      %v4097 = vmul.f32 %v4033, %v3791
      %v4098 = vmul.f32 %v4034, %v3902
      %v4099 = vmul.f32 %v4035, %v3904
      %v4100 = vmul.f32 %v4036, %v3795
      %v4101 = vmul.f32 %v4037, %v3797
      %v4102 = vmul.f32 %v4038, %v3908
      %v4103 = vmul.f32 %v4039, %v3910
      %v4104 = vmul.f32 %v4040, %v3799
      %v4105 = vmul.f32 %v4041, %v3801
      %v4106 = vmul.f32 %v4042, %v3912
      %v4107 = vmul.f32 %v4043, %v3914
      %v4108 = vmul.f32 %v4044, %v3725
      %v4109 = vmul.f32 %v4045, %v3727
      %v4110 = vmul.f32 %v4046, %v3838
      %v4111 = vmul.f32 %v4047, %v3840
      %v4112 = vmul.f32 %v4048, %v3729
      %v4113 = vmul.f32 %v4049, %v3731
      %v4114 = vmul.f32 %v4050, %v3842
      %v4115 = vmul.f32 %v4051, %v3844
      %v4116 = vmul.f32 %v4052, %v3735
      %v4117 = vmul.f32 %v4053, %v3737
      %v4118 = vmul.f32 %v4054, %v3848
      %v4119 = vmul.f32 %v4055, %v3850
      %v4120 = vmul.f32 %v4056, %v3739
      %v4121 = vmul.f32 %v4057, %v3741
      %v4122 = vmul.f32 %v4058, %v3852
      %v4123 = vmul.f32 %v4059, %v3854
      %v4124 = vmul.f32 %v4060, %v3745
      %v4125 = vmul.f32 %v4061, %v3747
      %v4126 = vmul.f32 %v4062, %v3858
      %v4127 = vmul.f32 %v4063, %v3860
      %v4128 = vmul.f32 %v4064, %v3749
      %v4129 = vmul.f32 %v4065, %v3751
      %v4130 = vmul.f32 %v4066, %v3862
      %v4131 = vmul.f32 %v4067, %v3864
      %v4132 = vmul.f32 %v4068, %v3755
      %v4133 = vmul.f32 %v4069, %v3757
      %v4134 = vmul.f32 %v4070, %v3868
      %v4135 = vmul.f32 %v4071, %v3870
      %v4136 = vmul.f32 %v4072, %v3759
      %v4137 = vmul.f32 %v4073, %v3761
      %v4138 = vmul.f32 %v4074, %v3872
      %v4139 = vmul.f32 %v4075, %v3874
      %v4140 = vmul.f32 %v4076, %v3765
      %v4141 = vmul.f32 %v4077, %v3767
      %v4142 = vmul.f32 %v4078, %v3878
      %v4143 = vmul.f32 %v4079, %v3880
      %v4144 = vmul.f32 %v4080, %v3769
      %v4145 = vmul.f32 %v4081, %v3771
      %v4146 = vmul.f32 %v4082, %v3882
      %v4147 = vmul.f32 %v4083, %v3884
      %v4148 = vmul.f32 %v4084, %v3775
      %v4149 = vmul.f32 %v4085, %v3777
      %v4150 = vmul.f32 %v4086, %v3888
      %v4151 = vmul.f32 %v4087, %v3890
      %v4152 = vmul.f32 %v4088, %v3779
      %v4153 = vmul.f32 %v4089, %v3781
      %v4154 = vmul.f32 %v4090, %v3892
      %v4155 = vmul.f32 %v4091, %v3894
      %v4156 = vmul.f32 %v4092, %v3785
      %v4157 = vmul.f32 %v4093, %v3787
      %v4158 = vmul.f32 %v4094, %v3898
      %v4159 = vmul.f32 %v4095, %v3900
      %v4160 = vmul.f32 %v4096, %v3789
      %v4161 = vmul.f32 %v4097, %v3791
      %v4162 = vmul.f32 %v4098, %v3902
      %v4163 = vmul.f32 %v4099, %v3904
      %v4164 = vmul.f32 %v4100, %v3795
      %v4165 = vmul.f32 %v4101, %v3797
      %v4166 = vmul.f32 %v4102, %v3908
      %v4167 = vmul.f32 %v4103, %v3910
      %v4168 = vmul.f32 %v4104, %v3799
      %v4169 = vmul.f32 %v4105, %v3801
      %v4170 = vmul.f32 %v4106, %v3912
      %v4171 = vmul.f32 %v4107, %v3914
      %v4172 = vadd.f32 %v3725, %v4108
      %v4173 = vadd.f32 %v3727, %v4109
      %v4174 = vadd.f32 %v3838, %v4110
      %v4175 = vadd.f32 %v3840, %v4111
      %v4176 = vadd.f32 %v3729, %v4112
      %v4177 = vadd.f32 %v3731, %v4113
      %v4178 = vadd.f32 %v3842, %v4114
      %v4179 = vadd.f32 %v3844, %v4115
      %v4180 = vadd.f32 %v3735, %v4116
      %v4181 = vadd.f32 %v3737, %v4117
      %v4182 = vadd.f32 %v3848, %v4118
      %v4183 = vadd.f32 %v3850, %v4119
      %v4184 = vadd.f32 %v3739, %v4120
      %v4185 = vadd.f32 %v3741, %v4121
      %v4186 = vadd.f32 %v3852, %v4122
      %v4187 = vadd.f32 %v3854, %v4123
      %v4188 = vadd.f32 %v3745, %v4124
      %v4189 = vadd.f32 %v3747, %v4125
      %v4190 = vadd.f32 %v3858, %v4126
      %v4191 = vadd.f32 %v3860, %v4127
      %v4192 = vadd.f32 %v3749, %v4128
      %v4193 = vadd.f32 %v3751, %v4129
      %v4194 = vadd.f32 %v3862, %v4130
      %v4195 = vadd.f32 %v3864, %v4131
      %v4196 = vadd.f32 %v3755, %v4132
      %v4197 = vadd.f32 %v3757, %v4133
      %v4198 = vadd.f32 %v3868, %v4134
      %v4199 = vadd.f32 %v3870, %v4135
      %v4200 = vadd.f32 %v3759, %v4136
      %v4201 = vadd.f32 %v3761, %v4137
      %v4202 = vadd.f32 %v3872, %v4138
      %v4203 = vadd.f32 %v3874, %v4139
      %v4204 = vadd.f32 %v3765, %v4140
      %v4205 = vadd.f32 %v3767, %v4141
      %v4206 = vadd.f32 %v3878, %v4142
      %v4207 = vadd.f32 %v3880, %v4143
      %v4208 = vadd.f32 %v3769, %v4144
      %v4209 = vadd.f32 %v3771, %v4145
      %v4210 = vadd.f32 %v3882, %v4146
      %v4211 = vadd.f32 %v3884, %v4147
      %v4212 = vadd.f32 %v3775, %v4148
      %v4213 = vadd.f32 %v3777, %v4149
      %v4214 = vadd.f32 %v3888, %v4150
      %v4215 = vadd.f32 %v3890, %v4151
      %v4216 = vadd.f32 %v3779, %v4152
      %v4217 = vadd.f32 %v3781, %v4153
      %v4218 = vadd.f32 %v3892, %v4154
      %v4219 = vadd.f32 %v3894, %v4155
      %v4220 = vadd.f32 %v3785, %v4156
      %v4221 = vadd.f32 %v3787, %v4157
      %v4222 = vadd.f32 %v3898, %v4158
      %v4223 = vadd.f32 %v3900, %v4159
      %v4224 = vadd.f32 %v3789, %v4160
      %v4225 = vadd.f32 %v3791, %v4161
      %v4226 = vadd.f32 %v3902, %v4162
      %v4227 = vadd.f32 %v3904, %v4163
      %v4228 = vadd.f32 %v3795, %v4164
      %v4229 = vadd.f32 %v3797, %v4165
      %v4230 = vadd.f32 %v3908, %v4166
      %v4231 = vadd.f32 %v3910, %v4167
      %v4232 = vadd.f32 %v3799, %v4168
      %v4233 = vadd.f32 %v3801, %v4169
      %v4234 = vadd.f32 %v3912, %v4170
      %v4235 = vadd.f32 %v3914, %v4171
      %v4236 = vmul.f32 %v4172, 0.7978846
      %v4237 = vmul.f32 %v4173, 0.7978846
      %v4238 = vmul.f32 %v4174, 0.7978846
      %v4239 = vmul.f32 %v4175, 0.7978846
      %v4240 = vmul.f32 %v4176, 0.7978846
      %v4241 = vmul.f32 %v4177, 0.7978846
      %v4242 = vmul.f32 %v4178, 0.7978846
      %v4243 = vmul.f32 %v4179, 0.7978846
      %v4244 = vmul.f32 %v4180, 0.7978846
      %v4245 = vmul.f32 %v4181, 0.7978846
      %v4246 = vmul.f32 %v4182, 0.7978846
      %v4247 = vmul.f32 %v4183, 0.7978846
      %v4248 = vmul.f32 %v4184, 0.7978846
      %v4249 = vmul.f32 %v4185, 0.7978846
      %v4250 = vmul.f32 %v4186, 0.7978846
      %v4251 = vmul.f32 %v4187, 0.7978846
      %v4252 = vmul.f32 %v4188, 0.7978846
      %v4253 = vmul.f32 %v4189, 0.7978846
      %v4254 = vmul.f32 %v4190, 0.7978846
      %v4255 = vmul.f32 %v4191, 0.7978846
      %v4256 = vmul.f32 %v4192, 0.7978846
      %v4257 = vmul.f32 %v4193, 0.7978846
      %v4258 = vmul.f32 %v4194, 0.7978846
      %v4259 = vmul.f32 %v4195, 0.7978846
      %v4260 = vmul.f32 %v4196, 0.7978846
      %v4261 = vmul.f32 %v4197, 0.7978846
      %v4262 = vmul.f32 %v4198, 0.7978846
      %v4263 = vmul.f32 %v4199, 0.7978846
      %v4264 = vmul.f32 %v4200, 0.7978846
      %v4265 = vmul.f32 %v4201, 0.7978846
      %v4266 = vmul.f32 %v4202, 0.7978846
      %v4267 = vmul.f32 %v4203, 0.7978846
      %v4268 = vmul.f32 %v4204, 0.7978846
      %v4269 = vmul.f32 %v4205, 0.7978846
      %v4270 = vmul.f32 %v4206, 0.7978846
      %v4271 = vmul.f32 %v4207, 0.7978846
      %v4272 = vmul.f32 %v4208, 0.7978846
      %v4273 = vmul.f32 %v4209, 0.7978846
      %v4274 = vmul.f32 %v4210, 0.7978846
      %v4275 = vmul.f32 %v4211, 0.7978846
      %v4276 = vmul.f32 %v4212, 0.7978846
      %v4277 = vmul.f32 %v4213, 0.7978846
      %v4278 = vmul.f32 %v4214, 0.7978846
      %v4279 = vmul.f32 %v4215, 0.7978846
      %v4280 = vmul.f32 %v4216, 0.7978846
      %v4281 = vmul.f32 %v4217, 0.7978846
      %v4282 = vmul.f32 %v4218, 0.7978846
      %v4283 = vmul.f32 %v4219, 0.7978846
      %v4284 = vmul.f32 %v4220, 0.7978846
      %v4285 = vmul.f32 %v4221, 0.7978846
      %v4286 = vmul.f32 %v4222, 0.7978846
      %v4287 = vmul.f32 %v4223, 0.7978846
      %v4288 = vmul.f32 %v4224, 0.7978846
      %v4289 = vmul.f32 %v4225, 0.7978846
      %v4290 = vmul.f32 %v4226, 0.7978846
      %v4291 = vmul.f32 %v4227, 0.7978846
      %v4292 = vmul.f32 %v4228, 0.7978846
      %v4293 = vmul.f32 %v4229, 0.7978846
      %v4294 = vmul.f32 %v4230, 0.7978846
      %v4295 = vmul.f32 %v4231, 0.7978846
      %v4296 = vmul.f32 %v4232, 0.7978846
      %v4297 = vmul.f32 %v4233, 0.7978846
      %v4298 = vmul.f32 %v4234, 0.7978846
      %v4299 = vmul.f32 %v4235, 0.7978846
      %v4300 = vtanh.pop %v4236
      %v4301 = vtanh.pop %v4237
      %v4302 = vtanh.pop %v4238
      %v4303 = vtanh.pop %v4239
      %v4304 = vtanh.pop %v4240
      %v4305 = vtanh.pop %v4241
      %v4306 = vtanh.pop %v4242
      %v4307 = vtanh.pop %v4243
      %v4308 = vtanh.pop %v4244
      %v4309 = vtanh.pop %v4245
      %v4310 = vtanh.pop %v4246
      %v4311 = vtanh.pop %v4247
      %v4312 = vtanh.pop %v4248
      %v4313 = vtanh.pop %v4249
      %v4314 = vtanh.pop %v4250
      %v4315 = vtanh.pop %v4251
      %v4316 = vtanh.pop %v4252
      %v4317 = vtanh.pop %v4253
      %v4318 = vtanh.pop %v4254
      %v4319 = vtanh.pop %v4255
      %v4320 = vtanh.pop %v4256
      %v4321 = vtanh.pop %v4257
      %v4322 = vtanh.pop %v4258
      %v4323 = vtanh.pop %v4259
      %v4324 = vtanh.pop %v4260
      %v4325 = vtanh.pop %v4261
      %v4326 = vtanh.pop %v4262
      %v4327 = vtanh.pop %v4263
      %v4328 = vtanh.pop %v4264
      %v4329 = vtanh.pop %v4265
      %v4330 = vtanh.pop %v4266
      %v4331 = vtanh.pop %v4267
      %v4332 = vtanh.pop %v4268
      %v4333 = vtanh.pop %v4269
      %v4334 = vtanh.pop %v4270
      %v4335 = vtanh.pop %v4271
      %v4336 = vtanh.pop %v4272
      %v4337 = vtanh.pop %v4273
      %v4338 = vtanh.pop %v4274
      %v4339 = vtanh.pop %v4275
      %v4340 = vtanh.pop %v4276
      %v4341 = vtanh.pop %v4277
      %v4342 = vtanh.pop %v4278
      %v4343 = vtanh.pop %v4279
      %v4344 = vtanh.pop %v4280
      %v4345 = vtanh.pop %v4281
      %v4346 = vtanh.pop %v4282
      %v4347 = vtanh.pop %v4283
      %v4348 = vtanh.pop %v4284
      %v4349 = vtanh.pop %v4285
      %v4350 = vtanh.pop %v4286
      %v4351 = vtanh.pop %v4287
      %v4352 = vtanh.pop %v4288
      %v4353 = vtanh.pop %v4289
      %v4354 = vtanh.pop %v4290
      %v4355 = vtanh.pop %v4291
      %v4356 = vtanh.pop %v4292
      %v4357 = vtanh.pop %v4293
      %v4358 = vtanh.pop %v4294
      %v4359 = vtanh.pop %v4295
      %v4360 = vtanh.pop %v4296
      %v4361 = vtanh.pop %v4297
      %v4362 = vtanh.pop %v4298
      %v4363 = vtanh.pop %v4299
      %v4364 = vadd.f32 %v4300, 1.0
      %v4365 = vadd.f32 %v4301, 1.0
      %v4366 = vadd.f32 %v4302, 1.0
      %v4367 = vadd.f32 %v4303, 1.0
      %v4368 = vadd.f32 %v4304, 1.0
      %v4369 = vadd.f32 %v4305, 1.0
      %v4370 = vadd.f32 %v4306, 1.0
      %v4371 = vadd.f32 %v4307, 1.0
      %v4372 = vadd.f32 %v4308, 1.0
      %v4373 = vadd.f32 %v4309, 1.0
      %v4374 = vadd.f32 %v4310, 1.0
      %v4375 = vadd.f32 %v4311, 1.0
      %v4376 = vadd.f32 %v4312, 1.0
      %v4377 = vadd.f32 %v4313, 1.0
      %v4378 = vadd.f32 %v4314, 1.0
      %v4379 = vadd.f32 %v4315, 1.0
      %v4380 = vadd.f32 %v4316, 1.0
      %v4381 = vadd.f32 %v4317, 1.0
      %v4382 = vadd.f32 %v4318, 1.0
      %v4383 = vadd.f32 %v4319, 1.0
      %v4384 = vadd.f32 %v4320, 1.0
      %v4385 = vadd.f32 %v4321, 1.0
      %v4386 = vadd.f32 %v4322, 1.0
      %v4387 = vadd.f32 %v4323, 1.0
      %v4388 = vadd.f32 %v4324, 1.0
      %v4389 = vadd.f32 %v4325, 1.0
      %v4390 = vadd.f32 %v4326, 1.0
      %v4391 = vadd.f32 %v4327, 1.0
      %v4392 = vadd.f32 %v4328, 1.0
      %v4393 = vadd.f32 %v4329, 1.0
      %v4394 = vadd.f32 %v4330, 1.0
      %v4395 = vadd.f32 %v4331, 1.0
      %v4396 = vadd.f32 %v4332, 1.0
      %v4397 = vadd.f32 %v4333, 1.0
      %v4398 = vadd.f32 %v4334, 1.0
      %v4399 = vadd.f32 %v4335, 1.0
      %v4400 = vadd.f32 %v4336, 1.0
      %v4401 = vadd.f32 %v4337, 1.0
      %v4402 = vadd.f32 %v4338, 1.0
      %v4403 = vadd.f32 %v4339, 1.0
      %v4404 = vadd.f32 %v4340, 1.0
      %v4405 = vadd.f32 %v4341, 1.0
      %v4406 = vadd.f32 %v4342, 1.0
      %v4407 = vadd.f32 %v4343, 1.0
      %v4408 = vadd.f32 %v4344, 1.0
      %v4409 = vadd.f32 %v4345, 1.0
      %v4410 = vadd.f32 %v4346, 1.0
      %v4411 = vadd.f32 %v4347, 1.0
      %v4412 = vadd.f32 %v4348, 1.0
      %v4413 = vadd.f32 %v4349, 1.0
      %v4414 = vadd.f32 %v4350, 1.0
      %v4415 = vadd.f32 %v4351, 1.0
      %v4416 = vadd.f32 %v4352, 1.0
      %v4417 = vadd.f32 %v4353, 1.0
      %v4418 = vadd.f32 %v4354, 1.0
      %v4419 = vadd.f32 %v4355, 1.0
      %v4420 = vadd.f32 %v4356, 1.0
      %v4421 = vadd.f32 %v4357, 1.0
      %v4422 = vadd.f32 %v4358, 1.0
      %v4423 = vadd.f32 %v4359, 1.0
      %v4424 = vadd.f32 %v4360, 1.0
      %v4425 = vadd.f32 %v4361, 1.0
      %v4426 = vadd.f32 %v4362, 1.0
      %v4427 = vadd.f32 %v4363, 1.0
      %v4428 = vmul.f32 %v3916, %v4364
      %v4429 = vmul.f32 %v3917, %v4365
      %v4430 = vmul.f32 %v3918, %v4366
      %v4431 = vmul.f32 %v3919, %v4367
      %v4432 = vmul.f32 %v3920, %v4368
      %v4433 = vmul.f32 %v3921, %v4369
      %v4434 = vmul.f32 %v3922, %v4370
      %v4435 = vmul.f32 %v3923, %v4371
      %v4436 = vmul.f32 %v3924, %v4372
      %v4437 = vmul.f32 %v3925, %v4373
      %v4438 = vmul.f32 %v3926, %v4374
      %v4439 = vmul.f32 %v3927, %v4375
      %v4440 = vmul.f32 %v3928, %v4376
      %v4441 = vmul.f32 %v3929, %v4377
      %v4442 = vmul.f32 %v3930, %v4378
      %v4443 = vmul.f32 %v3931, %v4379
      %v4444 = vmul.f32 %v3932, %v4380
      %v4445 = vmul.f32 %v3933, %v4381
      %v4446 = vmul.f32 %v3934, %v4382
      %v4447 = vmul.f32 %v3935, %v4383
      %v4448 = vmul.f32 %v3936, %v4384
      %v4449 = vmul.f32 %v3937, %v4385
      %v4450 = vmul.f32 %v3938, %v4386
      %v4451 = vmul.f32 %v3939, %v4387
      %v4452 = vmul.f32 %v3940, %v4388
      %v4453 = vmul.f32 %v3941, %v4389
      %v4454 = vmul.f32 %v3942, %v4390
      %v4455 = vmul.f32 %v3943, %v4391
      %v4456 = vmul.f32 %v3944, %v4392
      %v4457 = vmul.f32 %v3945, %v4393
      %v4458 = vmul.f32 %v3946, %v4394
      %v4459 = vmul.f32 %v3947, %v4395
      %v4460 = vmul.f32 %v3948, %v4396
      %v4461 = vmul.f32 %v3949, %v4397
      %v4462 = vmul.f32 %v3950, %v4398
      %v4463 = vmul.f32 %v3951, %v4399
      %v4464 = vmul.f32 %v3952, %v4400
      %v4465 = vmul.f32 %v3953, %v4401
      %v4466 = vmul.f32 %v3954, %v4402
      %v4467 = vmul.f32 %v3955, %v4403
      %v4468 = vmul.f32 %v3956, %v4404
      %v4469 = vmul.f32 %v3957, %v4405
      %v4470 = vmul.f32 %v3958, %v4406
      %v4471 = vmul.f32 %v3959, %v4407
      %v4472 = vmul.f32 %v3960, %v4408
      %v4473 = vmul.f32 %v3961, %v4409
      %v4474 = vmul.f32 %v3962, %v4410
      %v4475 = vmul.f32 %v3963, %v4411
      %v4476 = vmul.f32 %v3964, %v4412
      %v4477 = vmul.f32 %v3965, %v4413
      %v4478 = vmul.f32 %v3966, %v4414
      %v4479 = vmul.f32 %v3967, %v4415
      %v4480 = vmul.f32 %v3968, %v4416
      %v4481 = vmul.f32 %v3969, %v4417
      %v4482 = vmul.f32 %v3970, %v4418
      %v4483 = vmul.f32 %v3971, %v4419
      %v4484 = vmul.f32 %v3972, %v4420
      %v4485 = vmul.f32 %v3973, %v4421
      %v4486 = vmul.f32 %v3974, %v4422
      %v4487 = vmul.f32 %v3975, %v4423
      %v4488 = vmul.f32 %v3976, %v4424
      %v4489 = vmul.f32 %v3977, %v4425
      %v4490 = vmul.f32 %v3978, %v4426
      %v4491 = vmul.f32 %v3979, %v4427
      %v4492 = vpack.c.bf16 %v4432, %v4428
      %v4493 = vpack.c.bf16 %v4433, %v4429
      %v4494 = vpack.c.bf16 %v4434, %v4430
      %v4495 = vpack.c.bf16 %v4435, %v4431
      %v4496 = vpack.c.bf16 %v4440, %v4436
      %v4497 = vpack.c.bf16 %v4441, %v4437
      %v4498 = vpack.c.bf16 %v4442, %v4438
      %v4499 = vpack.c.bf16 %v4443, %v4439
      %v4500 = vpack.c.bf16 %v4448, %v4444
      %v4501 = vpack.c.bf16 %v4449, %v4445
      %v4502 = vpack.c.bf16 %v4450, %v4446
      %v4503 = vpack.c.bf16 %v4451, %v4447
      %v4504 = vpack.c.bf16 %v4456, %v4452
      %v4505 = vpack.c.bf16 %v4457, %v4453
      %v4506 = vpack.c.bf16 %v4458, %v4454
      %v4507 = vpack.c.bf16 %v4459, %v4455
      %v4508 = vpack.c.bf16 %v4464, %v4460
      %v4509 = vpack.c.bf16 %v4465, %v4461
      %v4510 = vpack.c.bf16 %v4466, %v4462
      %v4511 = vpack.c.bf16 %v4467, %v4463
      %v4512 = vpack.c.bf16 %v4472, %v4468
      %v4513 = vpack.c.bf16 %v4473, %v4469
      %v4514 = vpack.c.bf16 %v4474, %v4470
      %v4515 = vpack.c.bf16 %v4475, %v4471
      %v4516 = vpack.c.bf16 %v4480, %v4476
      %v4517 = vpack.c.bf16 %v4481, %v4477
      %v4518 = vpack.c.bf16 %v4482, %v4478
      %v4519 = vpack.c.bf16 %v4483, %v4479
      %v4520 = vpack.c.bf16 %v4488, %v4484
      %v4521 = vpack.c.bf16 %v4489, %v4485
      %v4522 = vpack.c.bf16 %v4490, %v4486
      %v4523 = vpack.c.bf16 %v4491, %v4487
      %v4524 = vld [vmem:[%s14] sm:$0xf]
      %v4525 = vld [vmem:[%s14 + $0x4] sm:$0xf]
      %v4526 = vld [vmem:[%s14 + $0x8] sm:$0xf]
      %v4527 = vld [vmem:[%s14 + $0xc] sm:$0xf]
      %v4528 = vld [vmem:[%s14 + $0x10] sm:$0xf]
      %v4529 = vld [vmem:[%s14 + $0x14] sm:$0xf]
      %v4530 = vld [vmem:[%s14 + $0x18] sm:$0xf]
      %v4531 = vld [vmem:[%s14 + $0x1c] sm:$0xf]
      %v4532 = vld [vmem:[%s14 + $0x20] sm:$0xf]
      %v4533 = vld [vmem:[%s14 + $0x24] sm:$0xf]
      %v4534 = vld [vmem:[%s14 + $0x28] sm:$0xf]
      %v4535 = vld [vmem:[%s14 + $0x2c] sm:$0xf]
      %v4536 = vld [vmem:[%s14 + $0x30] sm:$0xf]
      %v4537 = vld [vmem:[%s14 + $0x34] sm:$0xf]
      %v4538 = vld [vmem:[%s14 + $0x38] sm:$0xf]
      %v4539 = vld [vmem:[%s14 + $0x3c] sm:$0xf]
      %v4540 = vld [vmem:[%s14 + $0x40] sm:$0xf]
      %v4541 = vld [vmem:[%s14 + $0x44] sm:$0xf]
      %v4542 = vld [vmem:[%s14 + $0x48] sm:$0xf]
      %v4543 = vld [vmem:[%s14 + $0x4c] sm:$0xf]
      %v4544 = vld [vmem:[%s14 + $0x50] sm:$0xf]
      %v4545 = vld [vmem:[%s14 + $0x54] sm:$0xf]
      %v4546 = vld [vmem:[%s14 + $0x58] sm:$0xf]
      %v4547 = vld [vmem:[%s14 + $0x5c] sm:$0xf]
      %v4548 = vld [vmem:[%s14 + $0x60] sm:$0xf]
      %v4549 = vld [vmem:[%s14 + $0x64] sm:$0xf]
      %v4550 = vld [vmem:[%s14 + $0x68] sm:$0xf]
      %v4551 = vld [vmem:[%s14 + $0x6c] sm:$0xf]
      %v4552 = vld [vmem:[%s14 + $0x70] sm:$0xf]
      %v4553 = vld [vmem:[%s14 + $0x74] sm:$0xf]
      %v4554 = vld [vmem:[%s14 + $0x78] sm:$0xf]
      %v4555 = vld [vmem:[%s14 + $0x7c] sm:$0xf]
      %v4556 = vld [vmem:[%s14 + $0x80] sm:$0xf]
      %v4557 = vld [vmem:[%s14 + $0x84] sm:$0xf]
      %v4558 = vld [vmem:[%s14 + $0x88] sm:$0xf]
      %v4559 = vld [vmem:[%s14 + $0x8c] sm:$0xf]
      %v4560 = vld [vmem:[%s14 + $0x90] sm:$0xf]
      %v4561 = vld [vmem:[%s14 + $0x94] sm:$0xf]
      %v4562 = vld [vmem:[%s14 + $0x98] sm:$0xf]
      %v4563 = vld [vmem:[%s14 + $0x9c] sm:$0xf]
      %v4564 = vld [vmem:[%s14 + $0xa0] sm:$0xf]
      %v4565 = vld [vmem:[%s14 + $0xa4] sm:$0xf]
      %v4566 = vld [vmem:[%s14 + $0xa8] sm:$0xf]
      %v4567 = vld [vmem:[%s14 + $0xac] sm:$0xf]
      %v4568 = vld [vmem:[%s14 + $0xb0] sm:$0xf]
      %v4569 = vld [vmem:[%s14 + $0xb4] sm:$0xf]
      %v4570 = vld [vmem:[%s14 + $0xb8] sm:$0xf]
      %v4571 = vld [vmem:[%s14 + $0xbc] sm:$0xf]
      %v4572 = vld [vmem:[%s14 + $0xc0] sm:$0xf]
      %v4573 = vld [vmem:[%s14 + $0xc4] sm:$0xf]
      %v4574 = vld [vmem:[%s14 + $0xc8] sm:$0xf]
      %v4575 = vld [vmem:[%s14 + $0xcc] sm:$0xf]
      %v4576 = vld [vmem:[%s14 + $0xd0] sm:$0xf]
      %v4577 = vld [vmem:[%s14 + $0xd4] sm:$0xf]
      %v4578 = vld [vmem:[%s14 + $0xd8] sm:$0xf]
      %v4579 = vld [vmem:[%s14 + $0xdc] sm:$0xf]
      %v4580 = vld [vmem:[%s14 + $0xe0] sm:$0xf]
      %v4581 = vld [vmem:[%s14 + $0xe4] sm:$0xf]
      %v4582 = vld [vmem:[%s14 + $0xe8] sm:$0xf]
      %v4583 = vld [vmem:[%s14 + $0xec] sm:$0xf]
      %v4584 = vld [vmem:[%s14 + $0xf0] sm:$0xf]
      %v4585 = vld [vmem:[%s14 + $0xf4] sm:$0xf]
      %v4586 = vld [vmem:[%s14 + $0xf8] sm:$0xf]
      %v4587 = vld [vmem:[%s14 + $0xfc] sm:$0xf]
      %v4588 = vld [vmem:[%s15] sm:$0x1]
      %v4590 = vlaneseq
      %v4591 = vshrl.u32 %v4590, 7
      %v4592 = vsub.s32 0, %v4591
      %v4593 = vrot.slane %v4588, %v4592
      %v4659 = vunpack.c.l.b16 %v4524
      %v4660 = vunpack.c.l.b16 %v4525
      %v4661 = vunpack.c.l.b16 %v4526
      %v4662 = vunpack.c.l.b16 %v4527
      %v4663 = vunpack.c.l.b16 %v4528
      %v4664 = vunpack.c.l.b16 %v4529
      %v4665 = vunpack.c.l.b16 %v4530
      %v4666 = vunpack.c.l.b16 %v4531
      %v4667 = vunpack.c.l.b16 %v4532
      %v4668 = vunpack.c.l.b16 %v4533
      %v4669 = vunpack.c.l.b16 %v4534
      %v4670 = vunpack.c.l.b16 %v4535
      %v4671 = vunpack.c.l.b16 %v4536
      %v4672 = vunpack.c.l.b16 %v4537
      %v4673 = vunpack.c.l.b16 %v4538
      %v4674 = vunpack.c.l.b16 %v4539
      %v4675 = vunpack.c.l.b16 %v4540
      %v4676 = vunpack.c.l.b16 %v4541
      %v4677 = vunpack.c.l.b16 %v4542
      %v4678 = vunpack.c.l.b16 %v4543
      %v4679 = vunpack.c.l.b16 %v4544
      %v4680 = vunpack.c.l.b16 %v4545
      %v4681 = vunpack.c.l.b16 %v4546
      %v4682 = vunpack.c.l.b16 %v4547
      %v4683 = vunpack.c.l.b16 %v4548
      %v4684 = vunpack.c.l.b16 %v4549
      %v4685 = vunpack.c.l.b16 %v4550
      %v4686 = vunpack.c.l.b16 %v4551
      %v4687 = vunpack.c.l.b16 %v4552
      %v4688 = vunpack.c.l.b16 %v4553
      %v4689 = vunpack.c.l.b16 %v4554
      %v4690 = vunpack.c.l.b16 %v4555
      %v4691 = vunpack.c.l.b16 %v4556
      %v4692 = vunpack.c.l.b16 %v4557
      %v4693 = vunpack.c.l.b16 %v4558
      %v4694 = vunpack.c.l.b16 %v4559
      %v4695 = vunpack.c.l.b16 %v4560
      %v4696 = vunpack.c.l.b16 %v4561
      %v4697 = vunpack.c.l.b16 %v4562
      %v4698 = vunpack.c.l.b16 %v4563
      %v4699 = vunpack.c.l.b16 %v4564
      %v4700 = vunpack.c.l.b16 %v4565
      %v4701 = vunpack.c.l.b16 %v4566
      %v4702 = vunpack.c.l.b16 %v4567
      %v4703 = vunpack.c.l.b16 %v4568
      %v4704 = vunpack.c.l.b16 %v4569
      %v4705 = vunpack.c.l.b16 %v4570
      %v4706 = vunpack.c.l.b16 %v4571
      %v4707 = vunpack.c.l.b16 %v4572
      %v4708 = vunpack.c.l.b16 %v4573
      %v4709 = vunpack.c.l.b16 %v4574
      %v4710 = vunpack.c.l.b16 %v4575
      %v4711 = vunpack.c.l.b16 %v4576
      %v4712 = vunpack.c.l.b16 %v4577
      %v4713 = vunpack.c.l.b16 %v4578
      %v4714 = vunpack.c.l.b16 %v4579
      %v4715 = vunpack.c.l.b16 %v4580
      %v4716 = vunpack.c.l.b16 %v4581
      %v4717 = vunpack.c.l.b16 %v4582
      %v4718 = vunpack.c.l.b16 %v4583
      %v4719 = vunpack.c.l.b16 %v4584
      %v4720 = vunpack.c.l.b16 %v4585
      %v4721 = vunpack.c.l.b16 %v4586
      %v4722 = vunpack.c.l.b16 %v4587
      %v4723 = vpack.c.b16 %v4660, %v4659
      %v4724 = vpack.c.b16 %v4662, %v4661
      %v4725 = vpack.c.b16 %v4664, %v4663
      %v4726 = vpack.c.b16 %v4666, %v4665
      %v4727 = vpack.c.b16 %v4668, %v4667
      %v4728 = vpack.c.b16 %v4670, %v4669
      %v4729 = vpack.c.b16 %v4672, %v4671
      %v4730 = vpack.c.b16 %v4674, %v4673
      %v4731 = vpack.c.b16 %v4676, %v4675
      %v4732 = vpack.c.b16 %v4678, %v4677
      %v4733 = vpack.c.b16 %v4680, %v4679
      %v4734 = vpack.c.b16 %v4682, %v4681
      %v4735 = vpack.c.b16 %v4684, %v4683
      %v4736 = vpack.c.b16 %v4686, %v4685
      %v4737 = vpack.c.b16 %v4688, %v4687
      %v4738 = vpack.c.b16 %v4690, %v4689
      %v4739 = vpack.c.b16 %v4692, %v4691
      %v4740 = vpack.c.b16 %v4694, %v4693
      %v4741 = vpack.c.b16 %v4696, %v4695
      %v4742 = vpack.c.b16 %v4698, %v4697
      %v4743 = vpack.c.b16 %v4700, %v4699
      %v4744 = vpack.c.b16 %v4702, %v4701
      %v4745 = vpack.c.b16 %v4704, %v4703
      %v4746 = vpack.c.b16 %v4706, %v4705
      %v4747 = vpack.c.b16 %v4708, %v4707
      %v4748 = vpack.c.b16 %v4710, %v4709
      %v4749 = vpack.c.b16 %v4712, %v4711
      %v4750 = vpack.c.b16 %v4714, %v4713
      %v4751 = vpack.c.b16 %v4716, %v4715
      %v4752 = vpack.c.b16 %v4718, %v4717
      %v4753 = vpack.c.b16 %v4720, %v4719
      %v4754 = vpack.c.b16 %v4722, %v4721
      %4787 = vmatprep.subr.bf16.mxu0 0
      %4788 = vmatpush1.bf16.msra.mxu0 %v4723
      %4789 = vmatprep.subr.bf16.mxu0 0
      %4790 = vmatpush1.bf16.msra.mxu0 %v4724
      %4791 = vmatprep.subr.bf16.mxu0 0
      %4792 = vmatpush1.bf16.msra.mxu0 %v4725
      %4793 = vmatprep.subr.bf16.mxu0 0
      %4794 = vmatpush1.bf16.msra.mxu0 %v4726
      %4795 = vmatprep.subr.bf16.mxu0 0
      %4796 = vmatpush1.bf16.msra.mxu0 %v4727
      %4797 = vmatprep.subr.bf16.mxu0 0
      %4798 = vmatpush1.bf16.msra.mxu0 %v4728
      %4799 = vmatprep.subr.bf16.mxu0 0
      %4800 = vmatpush1.bf16.msra.mxu0 %v4729
      %4801 = vmatprep.subr.bf16.mxu0 0
      %4802 = vmatpush1.bf16.msra.mxu0 %v4730
      %4803 = vmatprep.subr.bf16.mxu0 0
      %4804 = vmatpush1.bf16.msra.mxu0 %v4731
      %4805 = vmatprep.subr.bf16.mxu0 0
      %4806 = vmatpush1.bf16.msra.mxu0 %v4732
      %4807 = vmatprep.subr.bf16.mxu0 0
      %4808 = vmatpush1.bf16.msra.mxu0 %v4733
      %4809 = vmatprep.subr.bf16.mxu0 0
      %4810 = vmatpush1.bf16.msra.mxu0 %v4734
      %4811 = vmatprep.subr.bf16.mxu0 0
      %4812 = vmatpush1.bf16.msra.mxu0 %v4735
      %4813 = vmatprep.subr.bf16.mxu0 0
      %4814 = vmatpush1.bf16.msra.mxu0 %v4736
      %4815 = vmatprep.subr.bf16.mxu0 0
      %4816 = vmatpush1.bf16.msra.mxu0 %v4737
      %4817 = vmatprep.subr.bf16.mxu0 0
      %4818 = vmatpush1.bf16.msra.mxu0 %v4738
      %4819 = vmatprep.mubr.bf16.mxu0 %v4493
      %4820 = vmatmul.mubr.bf16.gmra.mrb[0].mxu0 %v4492
      %v4821 = vpop.f32.mrb[0].mxu0
      %v4822 = vadd.f32 %v4593, %v4821
      %v4823 = vpop.f32.mrb[0].mxu0
      %v4824 = vpop.f32.mrb[0].mxu0
      %v4825 = vpop.f32.mrb[0].mxu0
      %4826 = vmatprep.mubr.bf16.mxu0 %v4497
      %4827 = vmatmul.mubr.bf16.gmra.mrb[0].mxu0 %v4496
      %v4828 = vpop.f32.mrb[0].mxu0
      %v4829 = vpop.f32.mrb[0].mxu0
      %v4830 = vpop.f32.mrb[0].mxu0
      %v4831 = vpop.f32.mrb[0].mxu0
      %4832 = vmatprep.mubr.bf16.mxu0 %v4501
      %4833 = vmatmul.mubr.bf16.gmra.mrb[0].mxu0 %v4500
      %v4834 = vpop.f32.mrb[0].mxu0
      %v4835 = vpop.f32.mrb[0].mxu0
      %v4836 = vpop.f32.mrb[0].mxu0
      %v4837 = vpop.f32.mrb[0].mxu0
      %4838 = vmatprep.mubr.bf16.mxu0 %v4505
      %4839 = vmatmul.mubr.bf16.gmra.mrb[0].mxu0 %v4504
      %v4840 = vpop.f32.mrb[0].mxu0
      %v4841 = vpop.f32.mrb[0].mxu0
      %v4842 = vpop.f32.mrb[0].mxu0
      %v4843 = vpop.f32.mrb[0].mxu0
      %4844 = vmatprep.mubr.bf16.mxu0 %v4509
      %4845 = vmatmul.mubr.bf16.gmra.mrb[0].mxu0 %v4508
      %v4846 = vpop.f32.mrb[0].mxu0
      %v4847 = vpop.f32.mrb[0].mxu0
      %v4848 = vpop.f32.mrb[0].mxu0
      %v4849 = vpop.f32.mrb[0].mxu0
      %4850 = vmatprep.mubr.bf16.mxu0 %v4513
      %4851 = vmatmul.mubr.bf16.gmra.mrb[0].mxu0 %v4512
      %v4852 = vpop.f32.mrb[0].mxu0
      %v4853 = vpop.f32.mrb[0].mxu0
      %v4854 = vpop.f32.mrb[0].mxu0
      %v4855 = vpop.f32.mrb[0].mxu0
      %4856 = vmatprep.mubr.bf16.mxu0 %v4517
      %4857 = vmatmul.mubr.bf16.gmra.mrb[0].mxu0 %v4516
      %v4858 = vpop.f32.mrb[0].mxu0
      %v4859 = vpop.f32.mrb[0].mxu0
      %v4860 = vpop.f32.mrb[0].mxu0
      %v4861 = vpop.f32.mrb[0].mxu0
      %4862 = vmatprep.mubr.bf16.mxu0 %v4521
      %4863 = vmatmul.mubr.bf16.gmra.mrb[0].mxu0 %v4520
      %v4864 = vpop.f32.mrb[0].mxu0
      %v4865 = vpop.f32.mrb[0].mxu0
      %v4866 = vpop.f32.mrb[0].mxu0
      %v4867 = vpop.f32.mrb[0].mxu0
      %4868 = vdwg.mxu0
      %4869 = vmatprep.subr.bf16.mxu0 0
      %4870 = vmatpush1.bf16.msra.mxu0 %v4739
      %4871 = vmatprep.subr.bf16.mxu0 0
      %4872 = vmatpush1.bf16.msra.mxu0 %v4740
      %4873 = vmatprep.subr.bf16.mxu0 0
      %4874 = vmatpush1.bf16.msra.mxu0 %v4741
      %4875 = vmatprep.subr.bf16.mxu0 0
      %4876 = vmatpush1.bf16.msra.mxu0 %v4742
      %4877 = vmatprep.subr.bf16.mxu0 0
      %4878 = vmatpush1.bf16.msra.mxu0 %v4743
      %4879 = vmatprep.subr.bf16.mxu0 0
      %4880 = vmatpush1.bf16.msra.mxu0 %v4744
      %4881 = vmatprep.subr.bf16.mxu0 0
      %4882 = vmatpush1.bf16.msra.mxu0 %v4745
      %4883 = vmatprep.subr.bf16.mxu0 0
      %4884 = vmatpush1.bf16.msra.mxu0 %v4746
      %4885 = vmatprep.subr.bf16.mxu0 0
      %4886 = vmatpush1.bf16.msra.mxu0 %v4747
      %4887 = vmatprep.subr.bf16.mxu0 0
      %4888 = vmatpush1.bf16.msra.mxu0 %v4748
      %4889 = vmatprep.subr.bf16.mxu0 0
      %4890 = vmatpush1.bf16.msra.mxu0 %v4749
      %4891 = vmatprep.subr.bf16.mxu0 0
      %4892 = vmatpush1.bf16.msra.mxu0 %v4750
      %4893 = vmatprep.subr.bf16.mxu0 0
      %4894 = vmatpush1.bf16.msra.mxu0 %v4751
      %4895 = vmatprep.subr.bf16.mxu0 0
      %4896 = vmatpush1.bf16.msra.mxu0 %v4752
      %4897 = vmatprep.subr.bf16.mxu0 0
      %4898 = vmatpush1.bf16.msra.mxu0 %v4753
      %4899 = vmatprep.subr.bf16.mxu0 0
      %4900 = vmatpush1.bf16.msra.mxu0 %v4754
      %4901 = vmatprep.mubr.bf16.mxu0 %v4495
      %4902 = vmatmul.mubr.bf16.gmra.mrb[0].mxu0 %v4494
      %v4903 = vpop.f32.mrb[0].mxu0
      %v4904 = vadd.f32 %v4822, %v4903
      %v4905 = vpop.f32.mrb[0].mxu0
      %v4906 = vpop.f32.mrb[0].mxu0
      %v4907 = vpop.f32.mrb[0].mxu0
      %4908 = vmatprep.mubr.bf16.mxu0 %v4499
      %4909 = vmatmul.mubr.bf16.gmra.mrb[0].mxu0 %v4498
      %v4910 = vpop.f32.mrb[0].mxu0
      %v4911 = vpop.f32.mrb[0].mxu0
      %v4912 = vpop.f32.mrb[0].mxu0
      %v4913 = vpop.f32.mrb[0].mxu0
      %4914 = vmatprep.mubr.bf16.mxu0 %v4503
      %4915 = vmatmul.mubr.bf16.gmra.mrb[0].mxu0 %v4502
      %v4916 = vpop.f32.mrb[0].mxu0
      %v4917 = vpop.f32.mrb[0].mxu0
      %v4918 = vpop.f32.mrb[0].mxu0
      %v4919 = vpop.f32.mrb[0].mxu0
      %4920 = vmatprep.mubr.bf16.mxu0 %v4507
      %4921 = vmatmul.mubr.bf16.gmra.mrb[0].mxu0 %v4506
      %v4922 = vpop.f32.mrb[0].mxu0
      %v4923 = vpop.f32.mrb[0].mxu0
      %v4924 = vpop.f32.mrb[0].mxu0
      %v4925 = vpop.f32.mrb[0].mxu0
      %4926 = vmatprep.mubr.bf16.mxu0 %v4511
      %4927 = vmatmul.mubr.bf16.gmra.mrb[0].mxu0 %v4510
      %v4928 = vpop.f32.mrb[0].mxu0
      %v4929 = vpop.f32.mrb[0].mxu0
      %v4930 = vpop.f32.mrb[0].mxu0
      %v4931 = vpop.f32.mrb[0].mxu0
      %4932 = vmatprep.mubr.bf16.mxu0 %v4515
      %4933 = vmatmul.mubr.bf16.gmra.mrb[0].mxu0 %v4514
      %v4934 = vpop.f32.mrb[0].mxu0
      %v4935 = vpop.f32.mrb[0].mxu0
      %v4936 = vpop.f32.mrb[0].mxu0
      %v4937 = vpop.f32.mrb[0].mxu0
      %4938 = vmatprep.mubr.bf16.mxu0 %v4519
      %4939 = vmatmul.mubr.bf16.gmra.mrb[0].mxu0 %v4518
      %v4940 = vpop.f32.mrb[0].mxu0
      %v4941 = vpop.f32.mrb[0].mxu0
      %v4942 = vpop.f32.mrb[0].mxu0
      %v4943 = vpop.f32.mrb[0].mxu0
      %4944 = vmatprep.mubr.bf16.mxu0 %v4523
      %4945 = vmatmul.mubr.bf16.gmra.mrb[0].mxu0 %v4522
      %v4946 = vpop.f32.mrb[0].mxu0
      %v4947 = vpop.f32.mrb[0].mxu0
      %v4948 = vpop.f32.mrb[0].mxu0
      %v4949 = vpop.f32.mrb[0].mxu0
      %4950 = vdwg.mxu0
      %v4951 = vadd.f32 %v3230, %v4904
      %v4952 = vld [vmem:[%s16] sm:$0x1]
      %v4953 = vld [vmem:[%s17] sm:$0x1]
      %4954 = vadd.xlane.f32.xlu0 %v4951
      %v4955 = vpop.xlane.xlu0 %4954
      %v4956 = vmul.f32 %v4955, %v655
      %v4957 = vsub.f32 %v4951, %v4956
      %v4958 = vmul.f32 %v4957, %v4957
      %4959 = vadd.xlane.f32.xlu0 %v4958
      %v4960 = vpop.xlane.xlu0 %4959
      %v4961 = vmul.f32 %v4960, %v655
      %v4962 = vadd.f32 %v4961, 1e-06
      %v4963 = vrsqrt.pop %v4962
      %v4964 = vmul.f32 %v4957, %v4963
      %v4966 = vlaneseq
      %v4967 = vshrl.u32 %v4966, 7
      %v4968 = vsub.s32 0, %v4967
      %v4969 = vrot.slane %v4952, %v4968
      %v4971 = vmul.f32 %v4964, %v4969
      %v4973 = vlaneseq
      %v4974 = vshrl.u32 %v4973, 7
      %v4975 = vsub.s32 0, %v4974
      %v4976 = vrot.slane %v4953, %v4975
      %v4978 = vadd.f32 %v4971, %v4976
      %v4979 = vld [vmem:[%s18] sm:$0xf]
      %v4980 = vmul.f32 %v4978, %v4979
      %v4981 = vsel %vm647, %v4980, 0.0
      %4982 = vadd.xlane.f32.xlu0 %v4981
      %v4983 = vpop.xlane.xlu0 %4982
      %v4984 = vld [vmem:[%s19] sm:$0xf]
      %v4985 = vadd.f32 %v4983, %v4984
      %vm4986 = vcmask 3072
      %4987 = vst.msk [vmem:[%s624] sm:$0xf] %vm4986, %v4985
      %p4988 = scmp.lt.s32.totalorder %s31, 1
      %s4989 = scalar_select %p4988, %s31, 1
      %s4990 = smul.addr %s4989, 4
      %s4991 = scalar_lea.vmem %s20, %s4990
      // Predicated region
      $region101: #{transformer_classifier_forward.3} parent=99 // pred_check
        %p4992 = pneg %p474
      $region102: #{transformer_classifier_forward.3} parent=99 // pred_check_branch
        %4994 = sbr.rel (%p4992) target = $region104
      $region103: #{transformer_classifier_forward.3} parent=99 // pred_region
        _
      $region104: #{transformer_classifier_forward.3} parent=99 // pred_fallthru
        _
    $region100: #{transformer_classifier_forward.3} parent=5 // pred_fallthru
      _
    %p4995 = scmp.le.s32.totalorder 2, %s26
    // Predicated region
    $region105: #{transformer_classifier_forward.3} parent=5 // pred_check
      %p4996 = pneg %p4995
    $region106: #{transformer_classifier_forward.3} parent=5 // pred_check_branch
      %4998 = sbr.rel (%p4996) target = $region108
    $region107: #{transformer_classifier_forward.3} parent=5 // pred_region
      %s4999 = ssub.s32 %s26, 2
      // Predicated region
      $region109: #{transformer_classifier_forward.3} parent=107 // pred_check
        %p5000 = pneg %p480
      $region110: #{transformer_classifier_forward.3} parent=107 // pred_check_branch
        %5002 = sbr.rel (%p5000) target = $region112
      $region111: #{transformer_classifier_forward.3} parent=107 // pred_region
        %p5003 = scmp.lt.s32.totalorder %s32, 1
        %s5004 = scalar_select %p5003, %s32, 1
        %s5005 = smul.addr %s5004, 4
        %s5006 = scalar_lea.vmem %s20, %s5005
      $region112: #{transformer_classifier_forward.3} parent=107 // pred_fallthru
        _
    $region108: #{transformer_classifier_forward.3} parent=5 // pred_fallthru
      _
  $region6: #{transformer_classifier_forward.3} parent=0 // loop_footer
    %s30 = sadd.s32 1, %s26
  $region7: #{transformer_classifier_forward.3} parent=0 // loop_footer_branch
    %25 = sbr.rel target = $region3
  $region8: #{transformer_classifier_forward.3} parent=0 // loop_exit
    _

// kernel: transformer_classifier_forward.2
$region0: #{transformer_classifier_forward.2}
  #allocation0 [shape = 'u32[]', space=smem, size = 0x4, offset = 0x4, fixed_abs, tag = 'smem constant byte address 0x4 - core index']
  #allocation1 [shape = 'u32[144,128]{1,0:T(1,128)}', space=vmem, size = 0x12000, scoped, tag = 'internal scratch']
  #allocation2 [shape = 'bf16[128,128]{1,0:T(16,128)(2,1)}', space=vmem, size = 0x8000, scoped, tag = 'scratch operand']
  %s0 = inlined_call_operand.vmem [shape: f32[2,128,192], index: 0, kind: input, shape index: {}]
  %s1 = inlined_call_operand.vmem [shape: bf16[192,128], index: 1, kind: input, shape index: {}]
  %s2 = inlined_call_operand.vmem [shape: f32[1,128], index: 2, kind: input, shape index: {}]
  %s3 = inlined_call_operand.vmem [shape: f32[128,128], index: 3, kind: input, shape index: {}]
  %s4 = inlined_call_operand.vmem [shape: f32[1,128], index: 4, kind: input, shape index: {}]
  %s5 = inlined_call_operand.vmem [shape: f32[1,128], index: 5, kind: input, shape index: {}]
  %s6 = inlined_call_operand.vmem [shape: bf16[128,384], index: 6, kind: input, shape index: {}]
  %s7 = inlined_call_operand.vmem [shape: f32[1,384], index: 7, kind: input, shape index: {}]
  %s8 = inlined_call_operand.vmem [shape: bf16[128,128], index: 8, kind: input, shape index: {}]
  %s9 = inlined_call_operand.vmem [shape: f32[1,128], index: 9, kind: input, shape index: {}]
  %s10 = inlined_call_operand.vmem [shape: f32[1,128], index: 10, kind: input, shape index: {}]
  %s11 = inlined_call_operand.vmem [shape: f32[1,128], index: 11, kind: input, shape index: {}]
  %s12 = inlined_call_operand.vmem [shape: bf16[128,512], index: 12, kind: input, shape index: {}]
  %s13 = inlined_call_operand.vmem [shape: f32[1,512], index: 13, kind: input, shape index: {}]
  %s14 = inlined_call_operand.vmem [shape: bf16[512,128], index: 14, kind: input, shape index: {}]
  %s15 = inlined_call_operand.vmem [shape: f32[1,128], index: 15, kind: input, shape index: {}]
  %s16 = inlined_call_operand.vmem [shape: f32[1,128], index: 16, kind: input, shape index: {}]
  %s17 = inlined_call_operand.vmem [shape: f32[1,128], index: 17, kind: input, shape index: {}]
  %s18 = inlined_call_operand.vmem [shape: f32[2,4,128], index: 18, kind: output, shape index: {}]
  %s19 = sld [smem:[#allocation0]]
  $region105: #{transformer_classifier_forward.2} parent=0
    _
  %s21 = ssub.s32 1, %s19
  %s22 = scalar_select 0, %s21, %s19
  loop: start=0, step=1, limit=4
  $region2: #{transformer_classifier_forward.2} parent=0 // loop_pre_header
    _
  $region3: #{transformer_classifier_forward.2} parent=0 // loop_header
    %s24 = sphi 0, %s28
    %p25 = scmp.ge.s32.totalorder %s24, 4
    %s34 = sphi 0, %s36
    %s37 = sphi 0, %s34
    %s38 = sphi 0, %s37
    %s54 = sphi 0, %s38
    %s58 = sphi 0, %s58
    %s60 = sphi 0, %s58
    %s61 = sphi 0, %s60
    %s75 = sphi 0, %s61
    %s79 = sphi 0, %s79
    %s81 = sphi 0, %s79
    %s82 = sphi 0, %s81
    %s96 = sphi 0, %s82
    %s100 = sphi 0, %s100
    %s102 = sphi 0, %s100
    %s103 = sphi 0, %s102
    %s117 = sphi 0, %s103
    %s121 = sphi 0, %s121
    %s123 = sphi 0, %s121
    %s124 = sphi 0, %s123
    %s138 = sphi 0, %s124
    %s142 = sphi 0, %s142
    %s144 = sphi 0, %s142
    %s145 = sphi 0, %s144
    %s159 = sphi 0, %s145
    %s163 = sphi 0, %s163
    %s165 = sphi 0, %s163
    %s166 = sphi 0, %s165
    %s180 = sphi 0, %s166
    %s184 = sphi 0, %s184
    %s186 = sphi 0, %s184
    %s187 = sphi 0, %s186
    %s201 = sphi 0, %s187
    %s205 = sphi 0, %s205
    %s207 = sphi 0, %s205
    %s208 = sphi 0, %s207
    %s222 = sphi 0, %s208
    %s226 = sphi 0, %s226
    %s228 = sphi 0, %s226
    %s229 = sphi 0, %s228
    %s243 = sphi 0, %s229
    %s247 = sphi 0, %s247
    %s249 = sphi 0, %s247
    %s250 = sphi 0, %s249
    %s264 = sphi 0, %s250
    %s268 = sphi 0, %s268
    %s270 = sphi 0, %s268
    %s271 = sphi 0, %s270
    %s285 = sphi 0, %s271
    %s289 = sphi 0, %s289
    %s291 = sphi 0, %s289
    %s292 = sphi 0, %s291
    %s306 = sphi 0, %s292
    %s310 = sphi 0, %s310
    %s312 = sphi 0, %s310
    %s313 = sphi 0, %s312
    %s327 = sphi 0, %s313
    %s331 = sphi 0, %s331
    %s333 = sphi 0, %s331
    %s334 = sphi 0, %s333
    %s348 = sphi 0, %s334
    %s352 = sphi 0, %s352
    %s354 = sphi 0, %s352
    %s355 = sphi 0, %s354
    %s369 = sphi 0, %s355
    %s373 = sphi 0, %s373
    %s375 = sphi 0, %s373
    %s376 = sphi 0, %s375
    %s390 = sphi 0, %s376
    %s394 = sphi 0, %s394
    %s396 = sphi 0, %s394
    %s397 = sphi 0, %s396
    %s411 = sphi 0, %s397
    %s417 = sphi 0, %s419
    %s420 = sphi 0, %s417
    %s421 = sphi 0, %s420
    %s437 = sphi 0, %s421
  $region4: #{transformer_classifier_forward.2} parent=0 // loop_header_branch
    %27 = sbr.rel (%p25) target = $region8
  $region5: #{transformer_classifier_forward.2} parent=0 // loop_body
    %s29 = ssub.s32 %s24, 1
    %s30 = ssub.s32 %s24, 2
    %s31 = sadd.s32 %s24, 1
    %s32 = ssub.s32 %s24, %s31
    %p33 = scmp.eq.s32.totalorder %s32, 0
    %s35 = sadd.s32 %s34, 1
    %s36 = scalar_select %p33, %s34, %s35
    %p39 = pneg %p33
    %p40 = scmp.eq.s32.totalorder %s24, 1
    %p41 = por %p39, %p40
    %p42 = scmp.ne.s32.totalorder %s34, %s37
    %p43 = scmp.eq.s32.totalorder %s24, 0
    %p44 = por %p42, %p43
    %p45 = scmp.ne.s32.totalorder %s34, %s37
    %p46 = scmp.eq.s32.totalorder %s29, 1
    %p47 = por %p45, %p46
    %p48 = scmp.ne.s32.totalorder %s37, %s38
    %p49 = scmp.eq.s32.totalorder %s29, 0
    %p50 = por %p48, %p49
    %p51 = scmp.ne.s32.totalorder %s37, %s38
    %p52 = scmp.eq.s32.totalorder %s30, 1
    %p53 = por %p51, %p52
    %p55 = scmp.ne.s32.totalorder %s38, %s54
    %p56 = scmp.eq.s32.totalorder %s30, 0
    %p57 = por %p55, %p56
    %s59 = sadd.s32 %s58, 1
    %p62 = scmp.eq.s32.totalorder %s24, 1
    %p63 = scmp.ne.s32.totalorder %s58, %s60
    %p64 = scmp.eq.s32.totalorder %s24, 0
    %p65 = por %p63, %p64
    %p66 = scmp.ne.s32.totalorder %s58, %s60
    %p67 = scmp.eq.s32.totalorder %s29, 1
    %p68 = por %p66, %p67
    %p69 = scmp.ne.s32.totalorder %s60, %s61
    %p70 = scmp.eq.s32.totalorder %s29, 0
    %p71 = por %p69, %p70
    %p72 = scmp.ne.s32.totalorder %s60, %s61
    %p73 = scmp.eq.s32.totalorder %s30, 1
    %p74 = por %p72, %p73
    %p76 = scmp.ne.s32.totalorder %s61, %s75
    %p77 = scmp.eq.s32.totalorder %s30, 0
    %p78 = por %p76, %p77
    %s80 = sadd.s32 %s79, 1
    %p83 = scmp.eq.s32.totalorder %s24, 1
    %p84 = scmp.ne.s32.totalorder %s79, %s81
    %p85 = scmp.eq.s32.totalorder %s24, 0
    %p86 = por %p84, %p85
    %p87 = scmp.ne.s32.totalorder %s79, %s81
    %p88 = scmp.eq.s32.totalorder %s29, 1
    %p89 = por %p87, %p88
    %p90 = scmp.ne.s32.totalorder %s81, %s82
    %p91 = scmp.eq.s32.totalorder %s29, 0
    %p92 = por %p90, %p91
    %p93 = scmp.ne.s32.totalorder %s81, %s82
    %p94 = scmp.eq.s32.totalorder %s30, 1
    %p95 = por %p93, %p94
    %p97 = scmp.ne.s32.totalorder %s82, %s96
    %p98 = scmp.eq.s32.totalorder %s30, 0
    %p99 = por %p97, %p98
    %s101 = sadd.s32 %s100, 1
    %p104 = scmp.eq.s32.totalorder %s24, 1
    %p105 = scmp.ne.s32.totalorder %s100, %s102
    %p106 = scmp.eq.s32.totalorder %s24, 0
    %p107 = por %p105, %p106
    %p108 = scmp.ne.s32.totalorder %s100, %s102
    %p109 = scmp.eq.s32.totalorder %s29, 1
    %p110 = por %p108, %p109
    %p111 = scmp.ne.s32.totalorder %s102, %s103
    %p112 = scmp.eq.s32.totalorder %s29, 0
    %p113 = por %p111, %p112
    %p114 = scmp.ne.s32.totalorder %s102, %s103
    %p115 = scmp.eq.s32.totalorder %s30, 1
    %p116 = por %p114, %p115
    %p118 = scmp.ne.s32.totalorder %s103, %s117
    %p119 = scmp.eq.s32.totalorder %s30, 0
    %p120 = por %p118, %p119
    %s122 = sadd.s32 %s121, 1
    %p125 = scmp.eq.s32.totalorder %s24, 1
    %p126 = scmp.ne.s32.totalorder %s121, %s123
    %p127 = scmp.eq.s32.totalorder %s24, 0
    %p128 = por %p126, %p127
    %p129 = scmp.ne.s32.totalorder %s121, %s123
    %p130 = scmp.eq.s32.totalorder %s29, 1
    %p131 = por %p129, %p130
    %p132 = scmp.ne.s32.totalorder %s123, %s124
    %p133 = scmp.eq.s32.totalorder %s29, 0
    %p134 = por %p132, %p133
    %p135 = scmp.ne.s32.totalorder %s123, %s124
    %p136 = scmp.eq.s32.totalorder %s30, 1
    %p137 = por %p135, %p136
    %p139 = scmp.ne.s32.totalorder %s124, %s138
    %p140 = scmp.eq.s32.totalorder %s30, 0
    %p141 = por %p139, %p140
    %s143 = sadd.s32 %s142, 1
    %p146 = scmp.eq.s32.totalorder %s24, 1
    %p147 = scmp.ne.s32.totalorder %s142, %s144
    %p148 = scmp.eq.s32.totalorder %s24, 0
    %p149 = por %p147, %p148
    %p150 = scmp.ne.s32.totalorder %s142, %s144
    %p151 = scmp.eq.s32.totalorder %s29, 1
    %p152 = por %p150, %p151
    %p153 = scmp.ne.s32.totalorder %s144, %s145
    %p154 = scmp.eq.s32.totalorder %s29, 0
    %p155 = por %p153, %p154
    %p156 = scmp.ne.s32.totalorder %s144, %s145
    %p157 = scmp.eq.s32.totalorder %s30, 1
    %p158 = por %p156, %p157
    %p160 = scmp.ne.s32.totalorder %s145, %s159
    %p161 = scmp.eq.s32.totalorder %s30, 0
    %p162 = por %p160, %p161
    %s164 = sadd.s32 %s163, 1
    %p167 = scmp.eq.s32.totalorder %s24, 1
    %p168 = scmp.ne.s32.totalorder %s163, %s165
    %p169 = scmp.eq.s32.totalorder %s24, 0
    %p170 = por %p168, %p169
    %p171 = scmp.ne.s32.totalorder %s163, %s165
    %p172 = scmp.eq.s32.totalorder %s29, 1
    %p173 = por %p171, %p172
    %p174 = scmp.ne.s32.totalorder %s165, %s166
    %p175 = scmp.eq.s32.totalorder %s29, 0
    %p176 = por %p174, %p175
    %p177 = scmp.ne.s32.totalorder %s165, %s166
    %p178 = scmp.eq.s32.totalorder %s30, 1
    %p179 = por %p177, %p178
    %p181 = scmp.ne.s32.totalorder %s166, %s180
    %p182 = scmp.eq.s32.totalorder %s30, 0
    %p183 = por %p181, %p182
    %s185 = sadd.s32 %s184, 1
    %p188 = scmp.eq.s32.totalorder %s24, 1
    %p189 = scmp.ne.s32.totalorder %s184, %s186
    %p190 = scmp.eq.s32.totalorder %s24, 0
    %p191 = por %p189, %p190
    %p192 = scmp.ne.s32.totalorder %s184, %s186
    %p193 = scmp.eq.s32.totalorder %s29, 1
    %p194 = por %p192, %p193
    %p195 = scmp.ne.s32.totalorder %s186, %s187
    %p196 = scmp.eq.s32.totalorder %s29, 0
    %p197 = por %p195, %p196
    %p198 = scmp.ne.s32.totalorder %s186, %s187
    %p199 = scmp.eq.s32.totalorder %s30, 1
    %p200 = por %p198, %p199
    %p202 = scmp.ne.s32.totalorder %s187, %s201
    %p203 = scmp.eq.s32.totalorder %s30, 0
    %p204 = por %p202, %p203
    %s206 = sadd.s32 %s205, 1
    %p209 = scmp.eq.s32.totalorder %s24, 1
    %p210 = scmp.ne.s32.totalorder %s205, %s207
    %p211 = scmp.eq.s32.totalorder %s24, 0
    %p212 = por %p210, %p211
    %p213 = scmp.ne.s32.totalorder %s205, %s207
    %p214 = scmp.eq.s32.totalorder %s29, 1
    %p215 = por %p213, %p214
    %p216 = scmp.ne.s32.totalorder %s207, %s208
    %p217 = scmp.eq.s32.totalorder %s29, 0
    %p218 = por %p216, %p217
    %p219 = scmp.ne.s32.totalorder %s207, %s208
    %p220 = scmp.eq.s32.totalorder %s30, 1
    %p221 = por %p219, %p220
    %p223 = scmp.ne.s32.totalorder %s208, %s222
    %p224 = scmp.eq.s32.totalorder %s30, 0
    %p225 = por %p223, %p224
    %s227 = sadd.s32 %s226, 1
    %p230 = scmp.eq.s32.totalorder %s24, 1
    %p231 = scmp.ne.s32.totalorder %s226, %s228
    %p232 = scmp.eq.s32.totalorder %s24, 0
    %p233 = por %p231, %p232
    %p234 = scmp.ne.s32.totalorder %s226, %s228
    %p235 = scmp.eq.s32.totalorder %s29, 1
    %p236 = por %p234, %p235
    %p237 = scmp.ne.s32.totalorder %s228, %s229
    %p238 = scmp.eq.s32.totalorder %s29, 0
    %p239 = por %p237, %p238
    %p240 = scmp.ne.s32.totalorder %s228, %s229
    %p241 = scmp.eq.s32.totalorder %s30, 1
    %p242 = por %p240, %p241
    %p244 = scmp.ne.s32.totalorder %s229, %s243
    %p245 = scmp.eq.s32.totalorder %s30, 0
    %p246 = por %p244, %p245
    %s248 = sadd.s32 %s247, 1
    %p251 = scmp.eq.s32.totalorder %s24, 1
    %p252 = scmp.ne.s32.totalorder %s247, %s249
    %p253 = scmp.eq.s32.totalorder %s24, 0
    %p254 = por %p252, %p253
    %p255 = scmp.ne.s32.totalorder %s247, %s249
    %p256 = scmp.eq.s32.totalorder %s29, 1
    %p257 = por %p255, %p256
    %p258 = scmp.ne.s32.totalorder %s249, %s250
    %p259 = scmp.eq.s32.totalorder %s29, 0
    %p260 = por %p258, %p259
    %p261 = scmp.ne.s32.totalorder %s249, %s250
    %p262 = scmp.eq.s32.totalorder %s30, 1
    %p263 = por %p261, %p262
    %p265 = scmp.ne.s32.totalorder %s250, %s264
    %p266 = scmp.eq.s32.totalorder %s30, 0
    %p267 = por %p265, %p266
    %s269 = sadd.s32 %s268, 1
    %p272 = scmp.eq.s32.totalorder %s24, 1
    %p273 = scmp.ne.s32.totalorder %s268, %s270
    %p274 = scmp.eq.s32.totalorder %s24, 0
    %p275 = por %p273, %p274
    %p276 = scmp.ne.s32.totalorder %s268, %s270
    %p277 = scmp.eq.s32.totalorder %s29, 1
    %p278 = por %p276, %p277
    %p279 = scmp.ne.s32.totalorder %s270, %s271
    %p280 = scmp.eq.s32.totalorder %s29, 0
    %p281 = por %p279, %p280
    %p282 = scmp.ne.s32.totalorder %s270, %s271
    %p283 = scmp.eq.s32.totalorder %s30, 1
    %p284 = por %p282, %p283
    %p286 = scmp.ne.s32.totalorder %s271, %s285
    %p287 = scmp.eq.s32.totalorder %s30, 0
    %p288 = por %p286, %p287
    %s290 = sadd.s32 %s289, 1
    %p293 = scmp.eq.s32.totalorder %s24, 1
    %p294 = scmp.ne.s32.totalorder %s289, %s291
    %p295 = scmp.eq.s32.totalorder %s24, 0
    %p296 = por %p294, %p295
    %p297 = scmp.ne.s32.totalorder %s289, %s291
    %p298 = scmp.eq.s32.totalorder %s29, 1
    %p299 = por %p297, %p298
    %p300 = scmp.ne.s32.totalorder %s291, %s292
    %p301 = scmp.eq.s32.totalorder %s29, 0
    %p302 = por %p300, %p301
    %p303 = scmp.ne.s32.totalorder %s291, %s292
    %p304 = scmp.eq.s32.totalorder %s30, 1
    %p305 = por %p303, %p304
    %p307 = scmp.ne.s32.totalorder %s292, %s306
    %p308 = scmp.eq.s32.totalorder %s30, 0
    %p309 = por %p307, %p308
    %s311 = sadd.s32 %s310, 1
    %p314 = scmp.eq.s32.totalorder %s24, 1
    %p315 = scmp.ne.s32.totalorder %s310, %s312
    %p316 = scmp.eq.s32.totalorder %s24, 0
    %p317 = por %p315, %p316
    %p318 = scmp.ne.s32.totalorder %s310, %s312
    %p319 = scmp.eq.s32.totalorder %s29, 1
    %p320 = por %p318, %p319
    %p321 = scmp.ne.s32.totalorder %s312, %s313
    %p322 = scmp.eq.s32.totalorder %s29, 0
    %p323 = por %p321, %p322
    %p324 = scmp.ne.s32.totalorder %s312, %s313
    %p325 = scmp.eq.s32.totalorder %s30, 1
    %p326 = por %p324, %p325
    %p328 = scmp.ne.s32.totalorder %s313, %s327
    %p329 = scmp.eq.s32.totalorder %s30, 0
    %p330 = por %p328, %p329
    %s332 = sadd.s32 %s331, 1
    %p335 = scmp.eq.s32.totalorder %s24, 1
    %p336 = scmp.ne.s32.totalorder %s331, %s333
    %p337 = scmp.eq.s32.totalorder %s24, 0
    %p338 = por %p336, %p337
    %p339 = scmp.ne.s32.totalorder %s331, %s333
    %p340 = scmp.eq.s32.totalorder %s29, 1
    %p341 = por %p339, %p340
    %p342 = scmp.ne.s32.totalorder %s333, %s334
    %p343 = scmp.eq.s32.totalorder %s29, 0
    %p344 = por %p342, %p343
    %p345 = scmp.ne.s32.totalorder %s333, %s334
    %p346 = scmp.eq.s32.totalorder %s30, 1
    %p347 = por %p345, %p346
    %p349 = scmp.ne.s32.totalorder %s334, %s348
    %p350 = scmp.eq.s32.totalorder %s30, 0
    %p351 = por %p349, %p350
    %s353 = sadd.s32 %s352, 1
    %p356 = scmp.eq.s32.totalorder %s24, 1
    %p357 = scmp.ne.s32.totalorder %s352, %s354
    %p358 = scmp.eq.s32.totalorder %s24, 0
    %p359 = por %p357, %p358
    %p360 = scmp.ne.s32.totalorder %s352, %s354
    %p361 = scmp.eq.s32.totalorder %s29, 1
    %p362 = por %p360, %p361
    %p363 = scmp.ne.s32.totalorder %s354, %s355
    %p364 = scmp.eq.s32.totalorder %s29, 0
    %p365 = por %p363, %p364
    %p366 = scmp.ne.s32.totalorder %s354, %s355
    %p367 = scmp.eq.s32.totalorder %s30, 1
    %p368 = por %p366, %p367
    %p370 = scmp.ne.s32.totalorder %s355, %s369
    %p371 = scmp.eq.s32.totalorder %s30, 0
    %p372 = por %p370, %p371
    %s374 = sadd.s32 %s373, 1
    %p377 = scmp.eq.s32.totalorder %s24, 1
    %p378 = scmp.ne.s32.totalorder %s373, %s375
    %p379 = scmp.eq.s32.totalorder %s24, 0
    %p380 = por %p378, %p379
    %p381 = scmp.ne.s32.totalorder %s373, %s375
    %p382 = scmp.eq.s32.totalorder %s29, 1
    %p383 = por %p381, %p382
    %p384 = scmp.ne.s32.totalorder %s375, %s376
    %p385 = scmp.eq.s32.totalorder %s29, 0
    %p386 = por %p384, %p385
    %p387 = scmp.ne.s32.totalorder %s375, %s376
    %p388 = scmp.eq.s32.totalorder %s30, 1
    %p389 = por %p387, %p388
    %p391 = scmp.ne.s32.totalorder %s376, %s390
    %p392 = scmp.eq.s32.totalorder %s30, 0
    %p393 = por %p391, %p392
    %s395 = sadd.s32 %s394, 1
    %p398 = scmp.eq.s32.totalorder %s24, 1
    %p399 = scmp.ne.s32.totalorder %s394, %s396
    %p400 = scmp.eq.s32.totalorder %s24, 0
    %p401 = por %p399, %p400
    %p402 = scmp.ne.s32.totalorder %s394, %s396
    %p403 = scmp.eq.s32.totalorder %s29, 1
    %p404 = por %p402, %p403
    %p405 = scmp.ne.s32.totalorder %s396, %s397
    %p406 = scmp.eq.s32.totalorder %s29, 0
    %p407 = por %p405, %p406
    %p408 = scmp.ne.s32.totalorder %s396, %s397
    %p409 = scmp.eq.s32.totalorder %s30, 1
    %p410 = por %p408, %p409
    %p412 = scmp.ne.s32.totalorder %s397, %s411
    %p413 = scmp.eq.s32.totalorder %s30, 0
    %p414 = por %p412, %p413
    %s415 = ssub.s32 %s24, %s31
    %p416 = scmp.eq.s32.totalorder %s415, 0
    %s418 = sadd.s32 %s417, 1
    %s419 = scalar_select %p416, %s417, %s418
    %p422 = pneg %p416
    %p423 = scmp.eq.s32.totalorder %s24, 1
    %p424 = por %p422, %p423
    %p425 = scmp.ne.s32.totalorder %s417, %s420
    %p426 = scmp.eq.s32.totalorder %s24, 0
    %p427 = por %p425, %p426
    %p428 = scmp.ne.s32.totalorder %s417, %s420
    %p429 = scmp.eq.s32.totalorder %s29, 1
    %p430 = por %p428, %p429
    %p431 = scmp.ne.s32.totalorder %s420, %s421
    %p432 = scmp.eq.s32.totalorder %s29, 0
    %p433 = por %p431, %p432
    %p434 = scmp.ne.s32.totalorder %s420, %s421
    %p435 = scmp.eq.s32.totalorder %s30, 1
    %p436 = por %p434, %p435
    %p438 = scmp.ne.s32.totalorder %s421, %s437
    %p439 = scmp.eq.s32.totalorder %s30, 0
    %p440 = por %p438, %p439
    %p441 = scmp.le.s32.totalorder 1, %s24
    %p442 = scmp.lt.s32.totalorder %s24, 3
    %p443 = pnand %p441, %p442
    %p444 = pneg %p443
    // Predicated region
    $region9: #{transformer_classifier_forward.2} parent=5 // pred_check
      _
    $region10: #{transformer_classifier_forward.2} parent=5 // pred_check_branch
      %446 = sbr.rel (%p443) target = $region12
    $region11: #{transformer_classifier_forward.2} parent=5 // pred_region
      %s447 = ssub.s32 %s24, 1
      // Predicated region
      $region13: #{transformer_classifier_forward.2} parent=11 // pred_check
        %p448 = pneg %p71
      $region14: #{transformer_classifier_forward.2} parent=11 // pred_check_branch
        %450 = sbr.rel (%p448) target = $region16
      $region15: #{transformer_classifier_forward.2} parent=11 // pred_region
        _
      $region16: #{transformer_classifier_forward.2} parent=11 // pred_fallthru
        _
      // Predicated region
      $region17: #{transformer_classifier_forward.2} parent=11 // pred_check
        %p451 = pneg %p92
      $region18: #{transformer_classifier_forward.2} parent=11 // pred_check_branch
        %453 = sbr.rel (%p451) target = $region20
      $region19: #{transformer_classifier_forward.2} parent=11 // pred_region
        _
      $region20: #{transformer_classifier_forward.2} parent=11 // pred_fallthru
        _
      // Predicated region
      $region21: #{transformer_classifier_forward.2} parent=11 // pred_check
        %p454 = pneg %p113
      $region22: #{transformer_classifier_forward.2} parent=11 // pred_check_branch
        %456 = sbr.rel (%p454) target = $region24
      $region23: #{transformer_classifier_forward.2} parent=11 // pred_region
        _
      $region24: #{transformer_classifier_forward.2} parent=11 // pred_fallthru
        _
      // Predicated region
      $region25: #{transformer_classifier_forward.2} parent=11 // pred_check
        %p457 = pneg %p134
      $region26: #{transformer_classifier_forward.2} parent=11 // pred_check_branch
        %459 = sbr.rel (%p457) target = $region28
      $region27: #{transformer_classifier_forward.2} parent=11 // pred_region
        _
      $region28: #{transformer_classifier_forward.2} parent=11 // pred_fallthru
        _
      // Predicated region
      $region29: #{transformer_classifier_forward.2} parent=11 // pred_check
        %p460 = pneg %p155
      $region30: #{transformer_classifier_forward.2} parent=11 // pred_check_branch
        %462 = sbr.rel (%p460) target = $region32
      $region31: #{transformer_classifier_forward.2} parent=11 // pred_region
        _
      $region32: #{transformer_classifier_forward.2} parent=11 // pred_fallthru
        _
      // Predicated region
      $region33: #{transformer_classifier_forward.2} parent=11 // pred_check
        %p463 = pneg %p176
      $region34: #{transformer_classifier_forward.2} parent=11 // pred_check_branch
        %465 = sbr.rel (%p463) target = $region36
      $region35: #{transformer_classifier_forward.2} parent=11 // pred_region
        _
      $region36: #{transformer_classifier_forward.2} parent=11 // pred_fallthru
        _
      // Predicated region
      $region37: #{transformer_classifier_forward.2} parent=11 // pred_check
        %p466 = pneg %p197
      $region38: #{transformer_classifier_forward.2} parent=11 // pred_check_branch
        %468 = sbr.rel (%p466) target = $region40
      $region39: #{transformer_classifier_forward.2} parent=11 // pred_region
        _
      $region40: #{transformer_classifier_forward.2} parent=11 // pred_fallthru
        _
      // Predicated region
      $region41: #{transformer_classifier_forward.2} parent=11 // pred_check
        %p469 = pneg %p218
      $region42: #{transformer_classifier_forward.2} parent=11 // pred_check_branch
        %471 = sbr.rel (%p469) target = $region44
      $region43: #{transformer_classifier_forward.2} parent=11 // pred_region
        _
      $region44: #{transformer_classifier_forward.2} parent=11 // pred_fallthru
        _
      // Predicated region
      $region45: #{transformer_classifier_forward.2} parent=11 // pred_check
        %p472 = pneg %p239
      $region46: #{transformer_classifier_forward.2} parent=11 // pred_check_branch
        %474 = sbr.rel (%p472) target = $region48
      $region47: #{transformer_classifier_forward.2} parent=11 // pred_region
        _
      $region48: #{transformer_classifier_forward.2} parent=11 // pred_fallthru
        _
      // Predicated region
      $region49: #{transformer_classifier_forward.2} parent=11 // pred_check
        %p475 = pneg %p260
      $region50: #{transformer_classifier_forward.2} parent=11 // pred_check_branch
        %477 = sbr.rel (%p475) target = $region52
      $region51: #{transformer_classifier_forward.2} parent=11 // pred_region
        _
      $region52: #{transformer_classifier_forward.2} parent=11 // pred_fallthru
        _
      // Predicated region
      $region53: #{transformer_classifier_forward.2} parent=11 // pred_check
        %p478 = pneg %p281
      $region54: #{transformer_classifier_forward.2} parent=11 // pred_check_branch
        %480 = sbr.rel (%p478) target = $region56
      $region55: #{transformer_classifier_forward.2} parent=11 // pred_region
        _
      $region56: #{transformer_classifier_forward.2} parent=11 // pred_fallthru
        _
      // Predicated region
      $region57: #{transformer_classifier_forward.2} parent=11 // pred_check
        %p481 = pneg %p302
      $region58: #{transformer_classifier_forward.2} parent=11 // pred_check_branch
        %483 = sbr.rel (%p481) target = $region60
      $region59: #{transformer_classifier_forward.2} parent=11 // pred_region
        _
      $region60: #{transformer_classifier_forward.2} parent=11 // pred_fallthru
        _
      // Predicated region
      $region61: #{transformer_classifier_forward.2} parent=11 // pred_check
        %p484 = pneg %p323
      $region62: #{transformer_classifier_forward.2} parent=11 // pred_check_branch
        %486 = sbr.rel (%p484) target = $region64
      $region63: #{transformer_classifier_forward.2} parent=11 // pred_region
        _
      $region64: #{transformer_classifier_forward.2} parent=11 // pred_fallthru
        _
      // Predicated region
      $region65: #{transformer_classifier_forward.2} parent=11 // pred_check
        %p487 = pneg %p344
      $region66: #{transformer_classifier_forward.2} parent=11 // pred_check_branch
        %489 = sbr.rel (%p487) target = $region68
      $region67: #{transformer_classifier_forward.2} parent=11 // pred_region
        _
      $region68: #{transformer_classifier_forward.2} parent=11 // pred_fallthru
        _
      // Predicated region
      $region69: #{transformer_classifier_forward.2} parent=11 // pred_check
        %p490 = pneg %p365
      $region70: #{transformer_classifier_forward.2} parent=11 // pred_check_branch
        %492 = sbr.rel (%p490) target = $region72
      $region71: #{transformer_classifier_forward.2} parent=11 // pred_region
        _
      $region72: #{transformer_classifier_forward.2} parent=11 // pred_fallthru
        _
      // Predicated region
      $region73: #{transformer_classifier_forward.2} parent=11 // pred_check
        %p493 = pneg %p386
      $region74: #{transformer_classifier_forward.2} parent=11 // pred_check_branch
        %495 = sbr.rel (%p493) target = $region76
      $region75: #{transformer_classifier_forward.2} parent=11 // pred_region
        _
      $region76: #{transformer_classifier_forward.2} parent=11 // pred_fallthru
        _
      // Predicated region
      $region77: #{transformer_classifier_forward.2} parent=11 // pred_check
        %p496 = pneg %p407
      $region78: #{transformer_classifier_forward.2} parent=11 // pred_check_branch
        %498 = sbr.rel (%p496) target = $region80
      $region79: #{transformer_classifier_forward.2} parent=11 // pred_region
        _
      $region80: #{transformer_classifier_forward.2} parent=11 // pred_fallthru
        _
    $region12: #{transformer_classifier_forward.2} parent=5 // pred_fallthru
      _
    %p499 = scmp.lt.s32.totalorder %s24, 2
    // Predicated region
    $region81: #{transformer_classifier_forward.2} parent=5 // pred_check
      %p500 = pneg %p499
    $region82: #{transformer_classifier_forward.2} parent=5 // pred_check_branch
      %502 = sbr.rel (%p500) target = $region84
    $region83: #{transformer_classifier_forward.2} parent=5 // pred_region
      // Predicated region
      $region85: #{transformer_classifier_forward.2} parent=83 // pred_check
        %p503 = pneg %p44
      $region86: #{transformer_classifier_forward.2} parent=83 // pred_check_branch
        %505 = sbr.rel (%p503) target = $region88
      $region87: #{transformer_classifier_forward.2} parent=83 // pred_region
        %p506 = scmp.lt.s32.totalorder %s24, 1
        %s507 = scalar_select %p506, %s24, 1
        %s508 = smul.addr %s507, 32
        %s509 = smul.addr %s508, 8
        %s510 = scalar_lea.vmem %s0, %s509
      $region88: #{transformer_classifier_forward.2} parent=83 // pred_fallthru
        _
    $region84: #{transformer_classifier_forward.2} parent=5 // pred_fallthru
      _
    %p511 = scmp.le.s32.totalorder 1, %s24
    %p512 = scmp.lt.s32.totalorder %s24, 3
    %p513 = pnand %p511, %p512
    %p514 = pneg %p513
    // Predicated region
    $region89: #{transformer_classifier_forward.2} parent=5 // pred_check
      _
    $region90: #{transformer_classifier_forward.2} parent=5 // pred_check_branch
      %516 = sbr.rel (%p513) target = $region92
    $region91: #{transformer_classifier_forward.2} parent=5 // pred_region
      %s517 = ssub.s32 %s24, 1
      %p518 = scmp.lt.s32.totalorder %s29, 1
      %s519 = scalar_select %p518, %s29, 1
      %s520 = smul.addr %s519, 32
      %s521 = smul.addr %s520, 8
      %s522 = scalar_lea.vmem %s0, %s521
      %p523 = pneg %p50
      %p524 = pneg %p47
      %p525 = pneg %p71
      %p526 = pneg %p68
      %p527 = pneg %p92
      %p528 = pneg %p89
      %p529 = pneg %p113
      %p530 = pneg %p110
      %p531 = pneg %p134
      %p532 = pneg %p131
      %p533 = pneg %p155
      %p534 = pneg %p152
      %p535 = pneg %p176
      %p536 = pneg %p173
      %p537 = pneg %p197
      %p538 = pneg %p194
      %p539 = pneg %p218
      %p540 = pneg %p215
      %p541 = pneg %p239
      %p542 = pneg %p236
      %p543 = pneg %p260
      %p544 = pneg %p257
      %p545 = pneg %p281
      %p546 = pneg %p278
      %p547 = pneg %p302
      %p548 = pneg %p299
      %p549 = pneg %p323
      %p550 = pneg %p320
      %p551 = pneg %p344
      %p552 = pneg %p341
      %p553 = pneg %p365
      %p554 = pneg %p362
      %p555 = pneg %p386
      %p556 = pneg %p383
      %p557 = pneg %p407
      %p558 = pneg %p404
      %p559 = pneg %p433
      %p560 = pneg %p430
      %p561 = scmp.lt.s32.totalorder %s29, 1
      %s562 = scalar_select %p561, %s29, 1
      %s563 = smul.addr %s562, 4
      %s564 = scalar_lea.vmem %s18, %s563
      %p565 = scmp.lt.s32.totalorder %s29, 1
      %s566 = scalar_select %p565, %s29, 1
      %s567 = smul.addr %s566, 32
      %s568 = smul.addr %s567, 8
      %s569 = scalar_lea.vmem %s0, %s568
      %p570 = scmp.lt.s32.totalorder %s29, 1
      %s571 = scalar_select %p570, %s29, 1
      %s572 = smul.addr %s571, 4
      %s573 = scalar_lea.vmem %s18, %s572
      %v575 = vld [vmem:[%s569] sm:$0xff]
      %v576 = vld [vmem:[%s569 + $0x8] sm:$0xff]
      %v577 = vld [vmem:[%s569 + $0x10] sm:$0xff]
      %v578 = vld [vmem:[%s569 + $0x18] sm:$0xff]
      %v579 = vld [vmem:[%s569 + $0x20] sm:$0xff]
      %v580 = vld [vmem:[%s569 + $0x28] sm:$0xff]
      %v581 = vld [vmem:[%s569 + $0x30] sm:$0xff]
      %v582 = vld [vmem:[%s569 + $0x38] sm:$0xff]
      %v583 = vld [vmem:[%s569 + $0x40] sm:$0xff]
      %v584 = vld [vmem:[%s569 + $0x48] sm:$0xff]
      %v585 = vld [vmem:[%s569 + $0x50] sm:$0xff]
      %v586 = vld [vmem:[%s569 + $0x58] sm:$0xff]
      %v587 = vld [vmem:[%s569 + $0x60] sm:$0xff]
      %v588 = vld [vmem:[%s569 + $0x68] sm:$0xff]
      %v589 = vld [vmem:[%s569 + $0x70] sm:$0xff]
      %v590 = vld [vmem:[%s569 + $0x78] sm:$0xff]
      %v591 = vld [vmem:[%s569 + $0x80] sm:$0xff]
      %v592 = vld [vmem:[%s569 + $0x88] sm:$0xff]
      %v593 = vld [vmem:[%s569 + $0x90] sm:$0xff]
      %v594 = vld [vmem:[%s569 + $0x98] sm:$0xff]
      %v595 = vld [vmem:[%s569 + $0xa0] sm:$0xff]
      %v596 = vld [vmem:[%s569 + $0xa8] sm:$0xff]
      %v597 = vld [vmem:[%s569 + $0xb0] sm:$0xff]
      %v598 = vld [vmem:[%s569 + $0xb8] sm:$0xff]
      %v599 = vld [vmem:[%s569 + $0xc0] sm:$0xff]
      %v600 = vld [vmem:[%s569 + $0xc8] sm:$0xff]
      %v601 = vld [vmem:[%s569 + $0xd0] sm:$0xff]
      %v602 = vld [vmem:[%s569 + $0xd8] sm:$0xff]
      %v603 = vld [vmem:[%s569 + $0xe0] sm:$0xff]
      %v604 = vld [vmem:[%s569 + $0xe8] sm:$0xff]
      %v605 = vld [vmem:[%s569 + $0xf0] sm:$0xff]
      %v606 = vld [vmem:[%s569 + $0xf8] sm:$0xff]
      %v607 = vpack.c.bf16 %v577, %v575
      %v608 = vpack.c.bf16 %v578, %v576
      %v609 = vpack.c.bf16 %v581, %v579
      %v610 = vpack.c.bf16 %v582, %v580
      %v611 = vpack.c.bf16 %v585, %v583
      %v612 = vpack.c.bf16 %v586, %v584
      %v613 = vpack.c.bf16 %v589, %v587
      %v614 = vpack.c.bf16 %v590, %v588
      %v615 = vpack.c.bf16 %v593, %v591
      %v616 = vpack.c.bf16 %v594, %v592
      %v617 = vpack.c.bf16 %v597, %v595
      %v618 = vpack.c.bf16 %v598, %v596
      %v619 = vpack.c.bf16 %v601, %v599
      %v620 = vpack.c.bf16 %v602, %v600
      %v621 = vpack.c.bf16 %v605, %v603
      %v622 = vpack.c.bf16 %v606, %v604
      %v623 = vld [vmem:[%s1] sm:$0xf]
      %v624 = vld [vmem:[%s1 + $0x4] sm:$0xf]
      %v625 = vld [vmem:[%s1 + $0x8] sm:$0xf]
      %v626 = vld [vmem:[%s1 + $0xc] sm:$0xf]
      %v627 = vld [vmem:[%s1 + $0x10] sm:$0xf]
      %v628 = vld [vmem:[%s1 + $0x14] sm:$0xf]
      %v629 = vld [vmem:[%s1 + $0x18] sm:$0xf]
      %v630 = vld [vmem:[%s1 + $0x1c] sm:$0xf]
      %v631 = vld [vmem:[%s1 + $0x20] sm:$0xf]
      %v632 = vld [vmem:[%s1 + $0x24] sm:$0xf]
      %v633 = vld [vmem:[%s1 + $0x28] sm:$0xf]
      %v634 = vld [vmem:[%s1 + $0x2c] sm:$0xf]
      %v635 = vld [vmem:[%s1 + $0x30] sm:$0xf]
      %v636 = vld [vmem:[%s1 + $0x34] sm:$0xf]
      %v637 = vld [vmem:[%s1 + $0x38] sm:$0xf]
      %v638 = vld [vmem:[%s1 + $0x3c] sm:$0xf]
      %v639 = vld [vmem:[%s1 + $0x40] sm:$0xf]
      %v640 = vld [vmem:[%s1 + $0x44] sm:$0xf]
      %v641 = vld [vmem:[%s1 + $0x48] sm:$0xf]
      %v642 = vld [vmem:[%s1 + $0x4c] sm:$0xf]
      %v643 = vld [vmem:[%s1 + $0x50] sm:$0xf]
      %v644 = vld [vmem:[%s1 + $0x54] sm:$0xf]
      %v645 = vld [vmem:[%s1 + $0x58] sm:$0xf]
      %v646 = vld [vmem:[%s1 + $0x5c] sm:$0xf]
      %v647 = vld [vmem:[%s2] sm:$0x1]
      %v649 = vlaneseq
      %v650 = vshrl.u32 %v649, 7
      %v651 = vsub.s32 0, %v650
      %v652 = vrot.slane %v647, %v651
      %v678 = vunpack.c.l.b16 %v623
      %v679 = vunpack.c.l.b16 %v624
      %v680 = vunpack.c.l.b16 %v625
      %v681 = vunpack.c.l.b16 %v626
      %v682 = vunpack.c.l.b16 %v627
      %v683 = vunpack.c.l.b16 %v628
      %v684 = vunpack.c.l.b16 %v629
      %v685 = vunpack.c.l.b16 %v630
      %v686 = vunpack.c.l.b16 %v631
      %v687 = vunpack.c.l.b16 %v632
      %v688 = vunpack.c.l.b16 %v633
      %v689 = vunpack.c.l.b16 %v634
      %v690 = vunpack.c.l.b16 %v635
      %v691 = vunpack.c.l.b16 %v636
      %v692 = vunpack.c.l.b16 %v637
      %v693 = vunpack.c.l.b16 %v638
      %v694 = vunpack.c.l.b16 %v639
      %v695 = vunpack.c.l.b16 %v640
      %v696 = vunpack.c.l.b16 %v641
      %v697 = vunpack.c.l.b16 %v642
      %v698 = vunpack.c.l.b16 %v643
      %v699 = vunpack.c.l.b16 %v644
      %v700 = vunpack.c.l.b16 %v645
      %v701 = vunpack.c.l.b16 %v646
      %v702 = vpack.c.b16 %v679, %v678
      %v703 = vpack.c.b16 %v681, %v680
      %v704 = vpack.c.b16 %v683, %v682
      %v705 = vpack.c.b16 %v685, %v684
      %v706 = vpack.c.b16 %v687, %v686
      %v707 = vpack.c.b16 %v689, %v688
      %v708 = vpack.c.b16 %v691, %v690
      %v709 = vpack.c.b16 %v693, %v692
      %v710 = vpack.c.b16 %v695, %v694
      %v711 = vpack.c.b16 %v697, %v696
      %v712 = vpack.c.b16 %v699, %v698
      %v713 = vpack.c.b16 %v701, %v700
      %vm726 = vcmask 523264
      %v728 = vsel %vm726, %v608, 0
      %v731 = vsel %vm726, %v610, 0
      %v734 = vsel %vm726, %v612, 0
      %v737 = vsel %vm726, %v614, 0
      %v740 = vsel %vm726, %v616, 0
      %v743 = vsel %vm726, %v618, 0
      %v746 = vsel %vm726, %v620, 0
      %v749 = vsel %vm726, %v622, 0
      %751 = vmatprep.subr.bf16.mxu0 0
      %752 = vmatpush1.bf16.msra.mxu0 %v702
      %753 = vmatprep.subr.bf16.mxu0 0
      %754 = vmatpush1.bf16.msra.mxu0 %v703
      %755 = vmatprep.subr.bf16.mxu0 0
      %756 = vmatpush1.bf16.msra.mxu0 %v704
      %757 = vmatprep.subr.bf16.mxu0 0
      %758 = vmatpush1.bf16.msra.mxu0 %v705
      %759 = vmatprep.subr.bf16.mxu0 0
      %760 = vmatpush1.bf16.msra.mxu0 %v706
      %761 = vmatprep.subr.bf16.mxu0 0
      %762 = vmatpush1.bf16.msra.mxu0 %v707
      %763 = vmatprep.subr.bf16.mxu0 0
      %764 = vmatpush1.bf16.msra.mxu0 %v708
      %765 = vmatprep.subr.bf16.mxu0 0
      %766 = vmatpush1.bf16.msra.mxu0 %v709
      %767 = vmatprep.subr.bf16.mxu0 0
      %768 = vmatpush1.bf16.msra.mxu0 %v710
      %769 = vmatprep.subr.bf16.mxu0 0
      %770 = vmatpush1.bf16.msra.mxu0 %v711
      %771 = vmatprep.subr.bf16.mxu0 0
      %772 = vmatpush1.bf16.msra.mxu0 %v712
      %773 = vmatprep.subr.bf16.mxu0 0
      %774 = vmatpush1.bf16.msra.mxu0 %v713
      %775 = vmatprep.subr.bf16.mxu0 0
      %776 = vmatpush1.bf16.msra.mxu0 0
      %777 = vmatprep.subr.bf16.mxu0 0
      %778 = vmatpush1.bf16.msra.mxu0 0
      %779 = vmatprep.subr.bf16.mxu0 0
      %780 = vmatpush1.bf16.msra.mxu0 0
      %781 = vmatprep.subr.bf16.mxu0 0
      %782 = vmatpush1.bf16.msra.mxu0 0
      %783 = vmatprep.mubr.bf16.mxu0 %v728
      %784 = vmatmul.mubr.bf16.gmra.mrb[0].mxu0 %v607
      %v785 = vpop.f32.mrb[0].mxu0
      %v786 = vadd.f32 %v652, %v785
      %v787 = vpop.f32.mrb[0].mxu0
      %v788 = vpop.f32.mrb[0].mxu0
      %v789 = vadd.f32 %v652, %v788
      %v790 = vpop.f32.mrb[0].mxu0
      %791 = vmatprep.mubr.bf16.mxu0 %v731
      %792 = vmatmul.mubr.bf16.gmra.mrb[0].mxu0 %v609
      %v793 = vpop.f32.mrb[0].mxu0
      %v794 = vadd.f32 %v652, %v793
      %v795 = vpop.f32.mrb[0].mxu0
      %v796 = vpop.f32.mrb[0].mxu0
      %v797 = vadd.f32 %v652, %v796
      %v798 = vpop.f32.mrb[0].mxu0
      %799 = vmatprep.mubr.bf16.mxu0 %v734
      %800 = vmatmul.mubr.bf16.gmra.mrb[0].mxu0 %v611
      %v801 = vpop.f32.mrb[0].mxu0
      %v802 = vadd.f32 %v652, %v801
      %v803 = vpop.f32.mrb[0].mxu0
      %v804 = vpop.f32.mrb[0].mxu0
      %v805 = vadd.f32 %v652, %v804
      %v806 = vpop.f32.mrb[0].mxu0
      %807 = vmatprep.mubr.bf16.mxu0 %v737
      %808 = vmatmul.mubr.bf16.gmra.mrb[0].mxu0 %v613
      %v809 = vpop.f32.mrb[0].mxu0
      %v810 = vadd.f32 %v652, %v809
      %v811 = vpop.f32.mrb[0].mxu0
      %v812 = vpop.f32.mrb[0].mxu0
      %v813 = vadd.f32 %v652, %v812
      %v814 = vpop.f32.mrb[0].mxu0
      %815 = vmatprep.mubr.bf16.mxu0 %v740
      %816 = vmatmul.mubr.bf16.gmra.mrb[0].mxu0 %v615
      %v817 = vpop.f32.mrb[0].mxu0
      %v818 = vadd.f32 %v652, %v817
      %v819 = vpop.f32.mrb[0].mxu0
      %v820 = vpop.f32.mrb[0].mxu0
      %v821 = vadd.f32 %v652, %v820
      %v822 = vpop.f32.mrb[0].mxu0
      %823 = vmatprep.mubr.bf16.mxu0 %v743
      %824 = vmatmul.mubr.bf16.gmra.mrb[0].mxu0 %v617
      %v825 = vpop.f32.mrb[0].mxu0
      %v826 = vadd.f32 %v652, %v825
      %v827 = vpop.f32.mrb[0].mxu0
      %v828 = vpop.f32.mrb[0].mxu0
      %v829 = vadd.f32 %v652, %v828
      %v830 = vpop.f32.mrb[0].mxu0
      %831 = vmatprep.mubr.bf16.mxu0 %v746
      %832 = vmatmul.mubr.bf16.gmra.mrb[0].mxu0 %v619
      %v833 = vpop.f32.mrb[0].mxu0
      %v834 = vadd.f32 %v652, %v833
      %v835 = vpop.f32.mrb[0].mxu0
      %v836 = vpop.f32.mrb[0].mxu0
      %v837 = vadd.f32 %v652, %v836
      %v838 = vpop.f32.mrb[0].mxu0
      %839 = vmatprep.mubr.bf16.mxu0 %v749
      %840 = vmatmul.mubr.bf16.gmra.mrb[0].mxu0 %v621
      %v841 = vpop.f32.mrb[0].mxu0
      %v842 = vadd.f32 %v652, %v841
      %v843 = vpop.f32.mrb[0].mxu0
      %v844 = vpop.f32.mrb[0].mxu0
      %v845 = vadd.f32 %v652, %v844
      %v846 = vpop.f32.mrb[0].mxu0
      %847 = vdwg.mxu0
      %v848 = vld [vmem:[%s3] sm:$0xff]
      %v849 = vld [vmem:[%s3 + $0x8] sm:$0xff]
      %v850 = vld [vmem:[%s3 + $0x10] sm:$0xff]
      %v851 = vld [vmem:[%s3 + $0x18] sm:$0xff]
      %v852 = vld [vmem:[%s3 + $0x20] sm:$0xff]
      %v853 = vld [vmem:[%s3 + $0x28] sm:$0xff]
      %v854 = vld [vmem:[%s3 + $0x30] sm:$0xff]
      %v855 = vld [vmem:[%s3 + $0x38] sm:$0xff]
      %v856 = vld [vmem:[%s3 + $0x40] sm:$0xff]
      %v857 = vld [vmem:[%s3 + $0x48] sm:$0xff]
      %v858 = vld [vmem:[%s3 + $0x50] sm:$0xff]
      %v859 = vld [vmem:[%s3 + $0x58] sm:$0xff]
      %v860 = vld [vmem:[%s3 + $0x60] sm:$0xff]
      %v861 = vld [vmem:[%s3 + $0x68] sm:$0xff]
      %v862 = vld [vmem:[%s3 + $0x70] sm:$0xff]
      %v863 = vld [vmem:[%s3 + $0x78] sm:$0xff]
      %v864 = vadd.f32 %v786, %v848
      %v865 = vadd.f32 %v789, %v849
      %v866 = vadd.f32 %v794, %v850
      %v867 = vadd.f32 %v797, %v851
      %v868 = vadd.f32 %v802, %v852
      %v869 = vadd.f32 %v805, %v853
      %v870 = vadd.f32 %v810, %v854
      %v871 = vadd.f32 %v813, %v855
      %v872 = vadd.f32 %v818, %v856
      %v873 = vadd.f32 %v821, %v857
      %v874 = vadd.f32 %v826, %v858
      %v875 = vadd.f32 %v829, %v859
      %v876 = vadd.f32 %v834, %v860
      %v877 = vadd.f32 %v837, %v861
      %v878 = vadd.f32 %v842, %v862
      %v879 = vadd.f32 %v845, %v863
      %v880 = vld [vmem:[%s4] sm:$0x1]
      %v881 = vld [vmem:[%s5] sm:$0x1]
      %882 = vadd.xlane.f32.xlu0 %v864
      %v883 = vpop.xlane.xlu0 %882
      %884 = vadd.xlane.f32.xlu0 %v865
      %v885 = vpop.xlane.xlu0 %884
      %886 = vadd.xlane.f32.xlu0 %v866
      %v887 = vpop.xlane.xlu0 %886
      %888 = vadd.xlane.f32.xlu0 %v867
      %v889 = vpop.xlane.xlu0 %888
      %890 = vadd.xlane.f32.xlu0 %v868
      %v891 = vpop.xlane.xlu0 %890
      %892 = vadd.xlane.f32.xlu0 %v869
      %v893 = vpop.xlane.xlu0 %892
      %894 = vadd.xlane.f32.xlu0 %v870
      %v895 = vpop.xlane.xlu0 %894
      %896 = vadd.xlane.f32.xlu0 %v871
      %v897 = vpop.xlane.xlu0 %896
      %898 = vadd.xlane.f32.xlu0 %v872
      %v899 = vpop.xlane.xlu0 %898
      %900 = vadd.xlane.f32.xlu0 %v873
      %v901 = vpop.xlane.xlu0 %900
      %902 = vadd.xlane.f32.xlu0 %v874
      %v903 = vpop.xlane.xlu0 %902
      %904 = vadd.xlane.f32.xlu0 %v875
      %v905 = vpop.xlane.xlu0 %904
      %906 = vadd.xlane.f32.xlu0 %v876
      %v907 = vpop.xlane.xlu0 %906
      %908 = vadd.xlane.f32.xlu0 %v877
      %v909 = vpop.xlane.xlu0 %908
      %910 = vadd.xlane.f32.xlu0 %v878
      %v911 = vpop.xlane.xlu0 %910
      %912 = vadd.xlane.f32.xlu0 %v879
      %v913 = vpop.xlane.xlu0 %912
      %v914 = vrcp.pop 128.0
      %v915 = vmul.f32 %v883, %v914
      %v916 = vmul.f32 %v885, %v914
      %v917 = vmul.f32 %v887, %v914
      %v918 = vmul.f32 %v889, %v914
      %v919 = vmul.f32 %v891, %v914
      %v920 = vmul.f32 %v893, %v914
      %v921 = vmul.f32 %v895, %v914
      %v922 = vmul.f32 %v897, %v914
      %v923 = vmul.f32 %v899, %v914
      %v924 = vmul.f32 %v901, %v914
      %v925 = vmul.f32 %v903, %v914
      %v926 = vmul.f32 %v905, %v914
      %v927 = vmul.f32 %v907, %v914
      %v928 = vmul.f32 %v909, %v914
      %v929 = vmul.f32 %v911, %v914
      %v930 = vmul.f32 %v913, %v914
      %v931 = vsub.f32 %v864, %v915
      %v932 = vsub.f32 %v865, %v916
      %v933 = vsub.f32 %v866, %v917
      %v934 = vsub.f32 %v867, %v918
      %v935 = vsub.f32 %v868, %v919
      %v936 = vsub.f32 %v869, %v920
      %v937 = vsub.f32 %v870, %v921
      %v938 = vsub.f32 %v871, %v922
      %v939 = vsub.f32 %v872, %v923
      %v940 = vsub.f32 %v873, %v924
      %v941 = vsub.f32 %v874, %v925
      %v942 = vsub.f32 %v875, %v926
      %v943 = vsub.f32 %v876, %v927
      %v944 = vsub.f32 %v877, %v928
      %v945 = vsub.f32 %v878, %v929
      %v946 = vsub.f32 %v879, %v930
      %v947 = vmul.f32 %v931, %v931
      %v948 = vmul.f32 %v932, %v932
      %v949 = vmul.f32 %v933, %v933
      %v950 = vmul.f32 %v934, %v934
      %v951 = vmul.f32 %v935, %v935
      %v952 = vmul.f32 %v936, %v936
      %v953 = vmul.f32 %v937, %v937
      %v954 = vmul.f32 %v938, %v938
      %v955 = vmul.f32 %v939, %v939
      %v956 = vmul.f32 %v940, %v940
      %v957 = vmul.f32 %v941, %v941
      %v958 = vmul.f32 %v942, %v942
      %v959 = vmul.f32 %v943, %v943
      %v960 = vmul.f32 %v944, %v944
      %v961 = vmul.f32 %v945, %v945
      %v962 = vmul.f32 %v946, %v946
      %963 = vadd.xlane.f32.xlu0 %v947
      %v964 = vpop.xlane.xlu0 %963
      %965 = vadd.xlane.f32.xlu0 %v948
      %v966 = vpop.xlane.xlu0 %965
      %967 = vadd.xlane.f32.xlu0 %v949
      %v968 = vpop.xlane.xlu0 %967
      %969 = vadd.xlane.f32.xlu0 %v950
      %v970 = vpop.xlane.xlu0 %969
      %971 = vadd.xlane.f32.xlu0 %v951
      %v972 = vpop.xlane.xlu0 %971
      %973 = vadd.xlane.f32.xlu0 %v952
      %v974 = vpop.xlane.xlu0 %973
      %975 = vadd.xlane.f32.xlu0 %v953
      %v976 = vpop.xlane.xlu0 %975
      %977 = vadd.xlane.f32.xlu0 %v954
      %v978 = vpop.xlane.xlu0 %977
      %979 = vadd.xlane.f32.xlu0 %v955
      %v980 = vpop.xlane.xlu0 %979
      %981 = vadd.xlane.f32.xlu0 %v956
      %v982 = vpop.xlane.xlu0 %981
      %983 = vadd.xlane.f32.xlu0 %v957
      %v984 = vpop.xlane.xlu0 %983
      %985 = vadd.xlane.f32.xlu0 %v958
      %v986 = vpop.xlane.xlu0 %985
      %987 = vadd.xlane.f32.xlu0 %v959
      %v988 = vpop.xlane.xlu0 %987
      %989 = vadd.xlane.f32.xlu0 %v960
      %v990 = vpop.xlane.xlu0 %989
      %991 = vadd.xlane.f32.xlu0 %v961
      %v992 = vpop.xlane.xlu0 %991
      %993 = vadd.xlane.f32.xlu0 %v962
      %v994 = vpop.xlane.xlu0 %993
      %v995 = vmul.f32 %v964, %v914
      %v996 = vmul.f32 %v966, %v914
      %v997 = vmul.f32 %v968, %v914
      %v998 = vmul.f32 %v970, %v914
      %v999 = vmul.f32 %v972, %v914
      %v1000 = vmul.f32 %v974, %v914
      %v1001 = vmul.f32 %v976, %v914
      %v1002 = vmul.f32 %v978, %v914
      %v1003 = vmul.f32 %v980, %v914
      %v1004 = vmul.f32 %v982, %v914
      %v1005 = vmul.f32 %v984, %v914
      %v1006 = vmul.f32 %v986, %v914
      %v1007 = vmul.f32 %v988, %v914
      %v1008 = vmul.f32 %v990, %v914
      %v1009 = vmul.f32 %v992, %v914
      %v1010 = vmul.f32 %v994, %v914
      %v1011 = vadd.f32 %v995, 1e-06
      %v1012 = vadd.f32 %v996, 1e-06
      %v1013 = vadd.f32 %v997, 1e-06
      %v1014 = vadd.f32 %v998, 1e-06
      %v1015 = vadd.f32 %v999, 1e-06
      %v1016 = vadd.f32 %v1000, 1e-06
      %v1017 = vadd.f32 %v1001, 1e-06
      %v1018 = vadd.f32 %v1002, 1e-06
      %v1019 = vadd.f32 %v1003, 1e-06
      %v1020 = vadd.f32 %v1004, 1e-06
      %v1021 = vadd.f32 %v1005, 1e-06
      %v1022 = vadd.f32 %v1006, 1e-06
      %v1023 = vadd.f32 %v1007, 1e-06
      %v1024 = vadd.f32 %v1008, 1e-06
      %v1025 = vadd.f32 %v1009, 1e-06
      %v1026 = vadd.f32 %v1010, 1e-06
      %v1027 = vrsqrt.pop %v1011
      %v1028 = vrsqrt.pop %v1012
      %v1029 = vrsqrt.pop %v1013
      %v1030 = vrsqrt.pop %v1014
      %v1031 = vrsqrt.pop %v1015
      %v1032 = vrsqrt.pop %v1016
      %v1033 = vrsqrt.pop %v1017
      %v1034 = vrsqrt.pop %v1018
      %v1035 = vrsqrt.pop %v1019
      %v1036 = vrsqrt.pop %v1020
      %v1037 = vrsqrt.pop %v1021
      %v1038 = vrsqrt.pop %v1022
      %v1039 = vrsqrt.pop %v1023
      %v1040 = vrsqrt.pop %v1024
      %v1041 = vrsqrt.pop %v1025
      %v1042 = vrsqrt.pop %v1026
      %v1043 = vmul.f32 %v931, %v1027
      %v1044 = vmul.f32 %v932, %v1028
      %v1045 = vmul.f32 %v933, %v1029
      %v1046 = vmul.f32 %v934, %v1030
      %v1047 = vmul.f32 %v935, %v1031
      %v1048 = vmul.f32 %v936, %v1032
      %v1049 = vmul.f32 %v937, %v1033
      %v1050 = vmul.f32 %v938, %v1034
      %v1051 = vmul.f32 %v939, %v1035
      %v1052 = vmul.f32 %v940, %v1036
      %v1053 = vmul.f32 %v941, %v1037
      %v1054 = vmul.f32 %v942, %v1038
      %v1055 = vmul.f32 %v943, %v1039
      %v1056 = vmul.f32 %v944, %v1040
      %v1057 = vmul.f32 %v945, %v1041
      %v1058 = vmul.f32 %v946, %v1042
      %v1060 = vlaneseq
      %v1061 = vshrl.u32 %v1060, 7
      %v1062 = vsub.s32 0, %v1061
      %v1063 = vrot.slane %v880, %v1062
      %v1065 = vmul.f32 %v1043, %v1063
      %v1066 = vmul.f32 %v1044, %v1063
      %v1067 = vmul.f32 %v1045, %v1063
      %v1068 = vmul.f32 %v1046, %v1063
      %v1069 = vmul.f32 %v1047, %v1063
      %v1070 = vmul.f32 %v1048, %v1063
      %v1071 = vmul.f32 %v1049, %v1063
      %v1072 = vmul.f32 %v1050, %v1063
      %v1073 = vmul.f32 %v1051, %v1063
      %v1074 = vmul.f32 %v1052, %v1063
      %v1075 = vmul.f32 %v1053, %v1063
      %v1076 = vmul.f32 %v1054, %v1063
      %v1077 = vmul.f32 %v1055, %v1063
      %v1078 = vmul.f32 %v1056, %v1063
      %v1079 = vmul.f32 %v1057, %v1063
      %v1080 = vmul.f32 %v1058, %v1063
      %v1082 = vlaneseq
      %v1083 = vshrl.u32 %v1082, 7
      %v1084 = vsub.s32 0, %v1083
      %v1085 = vrot.slane %v881, %v1084
      %v1087 = vadd.f32 %v1065, %v1085
      %v1088 = vadd.f32 %v1066, %v1085
      %v1089 = vadd.f32 %v1067, %v1085
      %v1090 = vadd.f32 %v1068, %v1085
      %v1091 = vadd.f32 %v1069, %v1085
      %v1092 = vadd.f32 %v1070, %v1085
      %v1093 = vadd.f32 %v1071, %v1085
      %v1094 = vadd.f32 %v1072, %v1085
      %v1095 = vadd.f32 %v1073, %v1085
      %v1096 = vadd.f32 %v1074, %v1085
      %v1097 = vadd.f32 %v1075, %v1085
      %v1098 = vadd.f32 %v1076, %v1085
      %v1099 = vadd.f32 %v1077, %v1085
      %v1100 = vadd.f32 %v1078, %v1085
      %v1101 = vadd.f32 %v1079, %v1085
      %v1102 = vadd.f32 %v1080, %v1085
      %v1103 = vpack.c.bf16 %v1088, %v1087
      %v1104 = vpack.c.bf16 %v1090, %v1089
      %v1105 = vpack.c.bf16 %v1092, %v1091
      %v1106 = vpack.c.bf16 %v1094, %v1093
      %v1107 = vpack.c.bf16 %v1096, %v1095
      %v1108 = vpack.c.bf16 %v1098, %v1097
      %v1109 = vpack.c.bf16 %v1100, %v1099
      %v1110 = vpack.c.bf16 %v1102, %v1101
      %v1111 = vld [vmem:[%s6] sm:$0xff]
      %v1112 = vld [vmem:[%s6 + $0x8] sm:$0xf]
      %v1113 = vld [vmem:[%s6 + $0xc] sm:$0xff]
      %v1114 = vld [vmem:[%s6 + $0x14] sm:$0xf]
      %v1115 = vld [vmem:[%s6 + $0x18] sm:$0xff]
      %v1116 = vld [vmem:[%s6 + $0x20] sm:$0xf]
      %v1117 = vld [vmem:[%s6 + $0x24] sm:$0xff]
      %v1118 = vld [vmem:[%s6 + $0x2c] sm:$0xf]
      %v1119 = vld [vmem:[%s6 + $0x30] sm:$0xff]
      %v1120 = vld [vmem:[%s6 + $0x38] sm:$0xf]
      %v1121 = vld [vmem:[%s6 + $0x3c] sm:$0xff]
      %v1122 = vld [vmem:[%s6 + $0x44] sm:$0xf]
      %v1123 = vld [vmem:[%s6 + $0x48] sm:$0xff]
      %v1124 = vld [vmem:[%s6 + $0x50] sm:$0xf]
      %v1125 = vld [vmem:[%s6 + $0x54] sm:$0xff]
      %v1126 = vld [vmem:[%s6 + $0x5c] sm:$0xf]
      %v1127 = vld [vmem:[%s6 + $0x60] sm:$0xff]
      %v1128 = vld [vmem:[%s6 + $0x68] sm:$0xf]
      %v1129 = vld [vmem:[%s6 + $0x6c] sm:$0xff]
      %v1130 = vld [vmem:[%s6 + $0x74] sm:$0xf]
      %v1131 = vld [vmem:[%s6 + $0x78] sm:$0xff]
      %v1132 = vld [vmem:[%s6 + $0x80] sm:$0xf]
      %v1133 = vld [vmem:[%s6 + $0x84] sm:$0xff]
      %v1134 = vld [vmem:[%s6 + $0x8c] sm:$0xf]
      %v1135 = vld [vmem:[%s6 + $0x90] sm:$0xff]
      %v1136 = vld [vmem:[%s6 + $0x98] sm:$0xf]
      %v1137 = vld [vmem:[%s6 + $0x9c] sm:$0xff]
      %v1138 = vld [vmem:[%s6 + $0xa4] sm:$0xf]
      %v1139 = vld [vmem:[%s6 + $0xa8] sm:$0xff]
      %v1140 = vld [vmem:[%s6 + $0xb0] sm:$0xf]
      %v1141 = vld [vmem:[%s6 + $0xb4] sm:$0xff]
      %v1142 = vld [vmem:[%s6 + $0xbc] sm:$0xf]
      %v1143 = vld [vmem:[%s7] sm:$0x7]
      %v1145 = vlaneseq
      %v1146 = vshrl.u32 %v1145, 7
      %v1147 = vsub.s32 0, %v1146
      %v1148 = vrot.slane %v1143, %v1147
      %v1149 = vlaneseq
      %v1150 = vshrl.u32 %v1149, 7
      %v1151 = vsub.s32 1, %v1150
      %v1152 = vrot.slane %v1143, %v1151
      %v1153 = vlaneseq
      %v1154 = vshrl.u32 %v1153, 7
      %v1155 = vsub.s32 2, %v1154
      %v1156 = vrot.slane %v1143, %v1155
      %v1192 = vunpack.c.l.b16 %v1111
      %v1193 = vunpack.c.h.b16 %v1111
      %v1194 = vunpack.c.l.b16 %v1112
      %v1195 = vunpack.c.l.b16 %v1113
      %v1196 = vunpack.c.h.b16 %v1113
      %v1197 = vunpack.c.l.b16 %v1114
      %v1198 = vunpack.c.l.b16 %v1115
      %v1199 = vunpack.c.h.b16 %v1115
      %v1200 = vunpack.c.l.b16 %v1116
      %v1201 = vunpack.c.l.b16 %v1117
      %v1202 = vunpack.c.h.b16 %v1117
      %v1203 = vunpack.c.l.b16 %v1118
      %v1204 = vunpack.c.l.b16 %v1119
      %v1205 = vunpack.c.h.b16 %v1119
      %v1206 = vunpack.c.l.b16 %v1120
      %v1207 = vunpack.c.l.b16 %v1121
      %v1208 = vunpack.c.h.b16 %v1121
      %v1209 = vunpack.c.l.b16 %v1122
      %v1210 = vunpack.c.l.b16 %v1123
      %v1211 = vunpack.c.h.b16 %v1123
      %v1212 = vunpack.c.l.b16 %v1124
      %v1213 = vunpack.c.l.b16 %v1125
      %v1214 = vunpack.c.h.b16 %v1125
      %v1215 = vunpack.c.l.b16 %v1126
      %v1216 = vunpack.c.l.b16 %v1127
      %v1217 = vunpack.c.h.b16 %v1127
      %v1218 = vunpack.c.l.b16 %v1128
      %v1219 = vunpack.c.l.b16 %v1129
      %v1220 = vunpack.c.h.b16 %v1129
      %v1221 = vunpack.c.l.b16 %v1130
      %v1222 = vunpack.c.l.b16 %v1131
      %v1223 = vunpack.c.h.b16 %v1131
      %v1224 = vunpack.c.l.b16 %v1132
      %v1225 = vunpack.c.l.b16 %v1133
      %v1226 = vunpack.c.h.b16 %v1133
      %v1227 = vunpack.c.l.b16 %v1134
      %v1228 = vunpack.c.l.b16 %v1135
      %v1229 = vunpack.c.h.b16 %v1135
      %v1230 = vunpack.c.l.b16 %v1136
      %v1231 = vunpack.c.l.b16 %v1137
      %v1232 = vunpack.c.h.b16 %v1137
      %v1233 = vunpack.c.l.b16 %v1138
      %v1234 = vunpack.c.l.b16 %v1139
      %v1235 = vunpack.c.h.b16 %v1139
      %v1236 = vunpack.c.l.b16 %v1140
      %v1237 = vunpack.c.l.b16 %v1141
      %v1238 = vunpack.c.h.b16 %v1141
      %v1239 = vunpack.c.l.b16 %v1142
      %v1240 = vpack.c.b16 %v1195, %v1192
      %v1241 = vpack.c.b16 %v1196, %v1193
      %v1242 = vpack.c.b16 %v1197, %v1194
      %v1243 = vpack.c.b16 %v1201, %v1198
      %v1244 = vpack.c.b16 %v1202, %v1199
      %v1245 = vpack.c.b16 %v1203, %v1200
      %v1246 = vpack.c.b16 %v1207, %v1204
      %v1247 = vpack.c.b16 %v1208, %v1205
      %v1248 = vpack.c.b16 %v1209, %v1206
      %v1249 = vpack.c.b16 %v1213, %v1210
      %v1250 = vpack.c.b16 %v1214, %v1211
      %v1251 = vpack.c.b16 %v1215, %v1212
      %v1252 = vpack.c.b16 %v1219, %v1216
      %v1253 = vpack.c.b16 %v1220, %v1217
      %v1254 = vpack.c.b16 %v1221, %v1218
      %v1255 = vpack.c.b16 %v1225, %v1222
      %v1256 = vpack.c.b16 %v1226, %v1223
      %v1257 = vpack.c.b16 %v1227, %v1224
      %v1258 = vpack.c.b16 %v1231, %v1228
      %v1259 = vpack.c.b16 %v1232, %v1229
      %v1260 = vpack.c.b16 %v1233, %v1230
      %v1261 = vpack.c.b16 %v1237, %v1234
      %v1262 = vpack.c.b16 %v1238, %v1235
      %v1263 = vpack.c.b16 %v1239, %v1236
      %1288 = vmatprep.subr.bf16.mxu0 %v1241
      %1289 = vmatpush1.bf16.msra.mxu0 %v1240
      %1290 = vmatprep.subr.bf16.mxu0 %v1244
      %1291 = vmatpush1.bf16.msra.mxu0 %v1243
      %1292 = vmatprep.subr.bf16.mxu0 %v1247
      %1293 = vmatpush1.bf16.msra.mxu0 %v1246
      %1294 = vmatprep.subr.bf16.mxu0 %v1250
      %1295 = vmatpush1.bf16.msra.mxu0 %v1249
      %1296 = vmatprep.subr.bf16.mxu0 %v1253
      %1297 = vmatpush1.bf16.msra.mxu0 %v1252
      %1298 = vmatprep.subr.bf16.mxu0 %v1256
      %1299 = vmatpush1.bf16.msra.mxu0 %v1255
      %1300 = vmatprep.subr.bf16.mxu0 %v1259
      %1301 = vmatpush1.bf16.msra.mxu0 %v1258
      %1302 = vmatprep.subr.bf16.mxu0 %v1262
      %1303 = vmatpush1.bf16.msra.mxu0 %v1261
      %1304 = vmatprep.subr.bf16.mxu0 0
      %1305 = vmatpush1.bf16.msra.mxu0 0
      %1306 = vmatprep.subr.bf16.mxu0 0
      %1307 = vmatpush1.bf16.msra.mxu0 0
      %1308 = vmatprep.subr.bf16.mxu0 0
      %1309 = vmatpush1.bf16.msra.mxu0 0
      %1310 = vmatprep.subr.bf16.mxu0 0
      %1311 = vmatpush1.bf16.msra.mxu0 0
      %1312 = vmatprep.subr.bf16.mxu0 0
      %1313 = vmatpush1.bf16.msra.mxu0 0
      %1314 = vmatprep.subr.bf16.mxu0 0
      %1315 = vmatpush1.bf16.msra.mxu0 0
      %1316 = vmatprep.subr.bf16.mxu0 0
      %1317 = vmatpush1.bf16.msra.mxu0 0
      %1318 = vmatprep.subr.bf16.mxu0 0
      %1319 = vmatpush1.bf16.msra.mxu0 0
      %1320 = vmatprep.mubr.bf16.mxu0 0
      %1321 = vmatmul.mubr.bf16.gmra.mrb[0].mxu0 %v1103
      %v1322 = vpop.f32.mrb[0].mxu0
      %v1323 = vadd.f32 %v1148, %v1322
      %v1324 = vpop.f32.mrb[0].mxu0
      %v1325 = vadd.f32 %v1152, %v1324
      %v1326 = vpop.f32.mrb[0].mxu0
      %v1327 = vadd.f32 %v1148, %v1326
      %v1328 = vpop.f32.mrb[0].mxu0
      %v1329 = vadd.f32 %v1152, %v1328
      %1330 = vmatprep.mubr.bf16.mxu0 0
      %1331 = vmatmul.mubr.bf16.gmra.mrb[0].mxu0 %v1104
      %v1332 = vpop.f32.mrb[0].mxu0
      %v1333 = vadd.f32 %v1148, %v1332
      %v1334 = vpop.f32.mrb[0].mxu0
      %v1335 = vadd.f32 %v1152, %v1334
      %v1336 = vpop.f32.mrb[0].mxu0
      %v1337 = vadd.f32 %v1148, %v1336
      %v1338 = vpop.f32.mrb[0].mxu0
      %v1339 = vadd.f32 %v1152, %v1338
      %1340 = vmatprep.mubr.bf16.mxu0 0
      %1341 = vmatmul.mubr.bf16.gmra.mrb[0].mxu0 %v1105
      %v1342 = vpop.f32.mrb[0].mxu0
      %v1343 = vadd.f32 %v1148, %v1342
      %v1344 = vpop.f32.mrb[0].mxu0
      %v1345 = vadd.f32 %v1152, %v1344
      %v1346 = vpop.f32.mrb[0].mxu0
      %v1347 = vadd.f32 %v1148, %v1346
      %v1348 = vpop.f32.mrb[0].mxu0
      %v1349 = vadd.f32 %v1152, %v1348
      %1350 = vmatprep.mubr.bf16.mxu0 0
      %1351 = vmatmul.mubr.bf16.gmra.mrb[0].mxu0 %v1106
      %v1352 = vpop.f32.mrb[0].mxu0
      %v1353 = vadd.f32 %v1148, %v1352
      %v1354 = vpop.f32.mrb[0].mxu0
      %v1355 = vadd.f32 %v1152, %v1354
      %v1356 = vpop.f32.mrb[0].mxu0
      %v1357 = vadd.f32 %v1148, %v1356
      %v1358 = vpop.f32.mrb[0].mxu0
      %v1359 = vadd.f32 %v1152, %v1358
      %1360 = vmatprep.mubr.bf16.mxu0 0
      %1361 = vmatmul.mubr.bf16.gmra.mrb[0].mxu0 %v1107
      %v1362 = vpop.f32.mrb[0].mxu0
      %v1363 = vadd.f32 %v1148, %v1362
      %v1364 = vpop.f32.mrb[0].mxu0
      %v1365 = vadd.f32 %v1152, %v1364
      %v1366 = vpop.f32.mrb[0].mxu0
      %v1367 = vadd.f32 %v1148, %v1366
      %v1368 = vpop.f32.mrb[0].mxu0
      %v1369 = vadd.f32 %v1152, %v1368
      %1370 = vmatprep.mubr.bf16.mxu0 0
      %1371 = vmatmul.mubr.bf16.gmra.mrb[0].mxu0 %v1108
      %v1372 = vpop.f32.mrb[0].mxu0
      %v1373 = vadd.f32 %v1148, %v1372
      %v1374 = vpop.f32.mrb[0].mxu0
      %v1375 = vadd.f32 %v1152, %v1374
      %v1376 = vpop.f32.mrb[0].mxu0
      %v1377 = vadd.f32 %v1148, %v1376
      %v1378 = vpop.f32.mrb[0].mxu0
      %v1379 = vadd.f32 %v1152, %v1378
      %1380 = vmatprep.mubr.bf16.mxu0 0
      %1381 = vmatmul.mubr.bf16.gmra.mrb[0].mxu0 %v1109
      %v1382 = vpop.f32.mrb[0].mxu0
      %v1383 = vadd.f32 %v1148, %v1382
      %v1384 = vpop.f32.mrb[0].mxu0
      %v1385 = vadd.f32 %v1152, %v1384
      %v1386 = vpop.f32.mrb[0].mxu0
      %v1387 = vadd.f32 %v1148, %v1386
      %v1388 = vpop.f32.mrb[0].mxu0
      %v1389 = vadd.f32 %v1152, %v1388
      %1390 = vmatprep.mubr.bf16.mxu0 0
      %1391 = vmatmul.mubr.bf16.gmra.mrb[0].mxu0 %v1110
      %v1392 = vpop.f32.mrb[0].mxu0
      %v1393 = vadd.f32 %v1148, %v1392
      %v1394 = vpop.f32.mrb[0].mxu0
      %v1395 = vadd.f32 %v1152, %v1394
      %v1396 = vpop.f32.mrb[0].mxu0
      %v1397 = vadd.f32 %v1148, %v1396
      %v1398 = vpop.f32.mrb[0].mxu0
      %v1399 = vadd.f32 %v1152, %v1398
      %1400 = vdwg.mxu0
      %1401 = vmatprep.subr.bf16.mxu0 0
      %1402 = vmatpush1.bf16.msra.mxu0 %v1242
      %1403 = vmatprep.subr.bf16.mxu0 0
      %1404 = vmatpush1.bf16.msra.mxu0 %v1245
      %1405 = vmatprep.subr.bf16.mxu0 0
      %1406 = vmatpush1.bf16.msra.mxu0 %v1248
      %1407 = vmatprep.subr.bf16.mxu0 0
      %1408 = vmatpush1.bf16.msra.mxu0 %v1251
      %1409 = vmatprep.subr.bf16.mxu0 0
      %1410 = vmatpush1.bf16.msra.mxu0 %v1254
      %1411 = vmatprep.subr.bf16.mxu0 0
      %1412 = vmatpush1.bf16.msra.mxu0 %v1257
      %1413 = vmatprep.subr.bf16.mxu0 0
      %1414 = vmatpush1.bf16.msra.mxu0 %v1260
      %1415 = vmatprep.subr.bf16.mxu0 0
      %1416 = vmatpush1.bf16.msra.mxu0 %v1263
      %1417 = vmatprep.subr.bf16.mxu0 0
      %1418 = vmatpush1.bf16.msra.mxu0 0
      %1419 = vmatprep.subr.bf16.mxu0 0
      %1420 = vmatpush1.bf16.msra.mxu0 0
      %1421 = vmatprep.subr.bf16.mxu0 0
      %1422 = vmatpush1.bf16.msra.mxu0 0
      %1423 = vmatprep.subr.bf16.mxu0 0
      %1424 = vmatpush1.bf16.msra.mxu0 0
      %1425 = vmatprep.subr.bf16.mxu0 0
      %1426 = vmatpush1.bf16.msra.mxu0 0
      %1427 = vmatprep.subr.bf16.mxu0 0
      %1428 = vmatpush1.bf16.msra.mxu0 0
      %1429 = vmatprep.subr.bf16.mxu0 0
      %1430 = vmatpush1.bf16.msra.mxu0 0
      %1431 = vmatprep.subr.bf16.mxu0 0
      %1432 = vmatpush1.bf16.msra.mxu0 0
      %1433 = vmatprep.mubr.bf16.mxu0 0
      %1434 = vmatmul.mubr.bf16.gmra.mrb[0].mxu0 %v1103
      %v1435 = vpop.f32.mrb[0].mxu0
      %v1436 = vadd.f32 %v1156, %v1435
      %v1437 = vpop.f32.mrb[0].mxu0
      %v1438 = vpop.f32.mrb[0].mxu0
      %v1439 = vadd.f32 %v1156, %v1438
      %v1440 = vpop.f32.mrb[0].mxu0
      %1441 = vmatprep.mubr.bf16.mxu0 0
      %1442 = vmatmul.mubr.bf16.gmra.mrb[0].mxu0 %v1104
      %v1443 = vpop.f32.mrb[0].mxu0
      %v1444 = vadd.f32 %v1156, %v1443
      %v1445 = vpop.f32.mrb[0].mxu0
      %v1446 = vpop.f32.mrb[0].mxu0
      %v1447 = vadd.f32 %v1156, %v1446
      %v1448 = vpop.f32.mrb[0].mxu0
      %1449 = vmatprep.mubr.bf16.mxu0 0
      %1450 = vmatmul.mubr.bf16.gmra.mrb[0].mxu0 %v1105
      %v1451 = vpop.f32.mrb[0].mxu0
      %v1452 = vadd.f32 %v1156, %v1451
      %v1453 = vpop.f32.mrb[0].mxu0
      %v1454 = vpop.f32.mrb[0].mxu0
      %v1455 = vadd.f32 %v1156, %v1454
      %v1456 = vpop.f32.mrb[0].mxu0
      %1457 = vmatprep.mubr.bf16.mxu0 0
      %1458 = vmatmul.mubr.bf16.gmra.mrb[0].mxu0 %v1106
      %v1459 = vpop.f32.mrb[0].mxu0
      %v1460 = vadd.f32 %v1156, %v1459
      %v1461 = vpop.f32.mrb[0].mxu0
      %v1462 = vpop.f32.mrb[0].mxu0
      %v1463 = vadd.f32 %v1156, %v1462
      %v1464 = vpop.f32.mrb[0].mxu0
      %1465 = vmatprep.mubr.bf16.mxu0 0
      %1466 = vmatmul.mubr.bf16.gmra.mrb[0].mxu0 %v1107
      %v1467 = vpop.f32.mrb[0].mxu0
      %v1468 = vadd.f32 %v1156, %v1467
      %v1469 = vpop.f32.mrb[0].mxu0
      %v1470 = vpop.f32.mrb[0].mxu0
      %v1471 = vadd.f32 %v1156, %v1470
      %v1472 = vpop.f32.mrb[0].mxu0
      %1473 = vmatprep.mubr.bf16.mxu0 0
      %1474 = vmatmul.mubr.bf16.gmra.mrb[0].mxu0 %v1108
      %v1475 = vpop.f32.mrb[0].mxu0
      %v1476 = vadd.f32 %v1156, %v1475
      %v1477 = vpop.f32.mrb[0].mxu0
      %v1478 = vpop.f32.mrb[0].mxu0
      %v1479 = vadd.f32 %v1156, %v1478
      %v1480 = vpop.f32.mrb[0].mxu0
      %1481 = vmatprep.mubr.bf16.mxu0 0
      %1482 = vmatmul.mubr.bf16.gmra.mrb[0].mxu0 %v1109
      %v1483 = vpop.f32.mrb[0].mxu0
      %v1484 = vadd.f32 %v1156, %v1483
      %v1485 = vpop.f32.mrb[0].mxu0
      %v1486 = vpop.f32.mrb[0].mxu0
      %v1487 = vadd.f32 %v1156, %v1486
      %v1488 = vpop.f32.mrb[0].mxu0
      %1489 = vmatprep.mubr.bf16.mxu0 0
      %1490 = vmatmul.mubr.bf16.gmra.mrb[0].mxu0 %v1110
      %v1491 = vpop.f32.mrb[0].mxu0
      %v1492 = vadd.f32 %v1156, %v1491
      %v1493 = vpop.f32.mrb[0].mxu0
      %v1494 = vpop.f32.mrb[0].mxu0
      %v1495 = vadd.f32 %v1156, %v1494
      %v1496 = vpop.f32.mrb[0].mxu0
      %1497 = vdwg.mxu0
      %v1498 = vlaneseq
      %v1499 = vand.u32 %v1498, 127
      %vm1500 = vcmp.lt.s32.totalorder %v1499, 4
      %v1501 = vsel %vm1500, 0.0, -1e+30
      %v1502 = vpack.c.bf16 %v1327, %v1323
      %v1503 = vpack.c.bf16 %v1337, %v1333
      %v1504 = vpack.c.bf16 %v1347, %v1343
      %v1505 = vpack.c.bf16 %v1357, %v1353
      %v1506 = vpack.c.bf16 %v1367, %v1363
      %v1507 = vpack.c.bf16 %v1377, %v1373
      %v1508 = vpack.c.bf16 %v1387, %v1383
      %v1509 = vpack.c.bf16 %v1397, %v1393
      %v1510 = vpack.c.bf16 %v1329, %v1325
      %v1511 = vpack.c.bf16 %v1339, %v1335
      %v1512 = vpack.c.bf16 %v1349, %v1345
      %v1513 = vpack.c.bf16 %v1359, %v1355
      %v1514 = vpack.c.bf16 %v1369, %v1365
      %v1515 = vpack.c.bf16 %v1379, %v1375
      %v1516 = vpack.c.bf16 %v1389, %v1385
      %v1517 = vpack.c.bf16 %v1399, %v1395
      %v1518 = vpack.c.bf16 %v1439, %v1436
      %v1519 = vpack.c.bf16 %v1447, %v1444
      %v1520 = vpack.c.bf16 %v1455, %v1452
      %v1521 = vpack.c.bf16 %v1463, %v1460
      %v1522 = vpack.c.bf16 %v1471, %v1468
      %v1523 = vpack.c.bf16 %v1479, %v1476
      %v1524 = vpack.c.bf16 %v1487, %v1484
      %v1525 = vpack.c.bf16 %v1495, %v1492
      %vm1526 = vcmask 261120
      %v1528 = vsel %vm1526, %v1502, 0
      %v1531 = vsel %vm1526, %v1503, 0
      %v1534 = vsel %vm1526, %v1504, 0
      %v1537 = vsel %vm1526, %v1505, 0
      %v1540 = vsel %vm1526, %v1506, 0
      %v1543 = vsel %vm1526, %v1507, 0
      %v1546 = vsel %vm1526, %v1508, 0
      %v1549 = vsel %vm1526, %v1509, 0
      %v1552 = vsel %vm1526, %v1510, 0
      %v1555 = vsel %vm1526, %v1511, 0
      %v1558 = vsel %vm1526, %v1512, 0
      %v1561 = vsel %vm1526, %v1513, 0
      %v1564 = vsel %vm1526, %v1514, 0
      %v1567 = vsel %vm1526, %v1515, 0
      %v1570 = vsel %vm1526, %v1516, 0
      %v1573 = vsel %vm1526, %v1517, 0
      %1575 = vmatprep.subr.bf16.mxu0 0
      %1576 = vmatpush1.bf16.xpose.msra.mxu0 %v1552
      %1577 = vmatprep.subr.bf16.mxu0 0
      %1578 = vmatpush1.bf16.xpose.msra.mxu0 %v1555
      %1579 = vmatprep.subr.bf16.mxu0 0
      %1580 = vmatpush1.bf16.xpose.msra.mxu0 %v1558
      %1581 = vmatprep.subr.bf16.mxu0 0
      %1582 = vmatpush1.bf16.xpose.msra.mxu0 %v1561
      %1583 = vmatprep.subr.bf16.mxu0 0
      %1584 = vmatpush1.bf16.xpose.msra.mxu0 %v1564
      %1585 = vmatprep.subr.bf16.mxu0 0
      %1586 = vmatpush1.bf16.xpose.msra.mxu0 %v1567
      %1587 = vmatprep.subr.bf16.mxu0 0
      %1588 = vmatpush1.bf16.xpose.msra.mxu0 %v1570
      %1589 = vmatprep.subr.bf16.mxu0 0
      %1590 = vmatpush1.bf16.xpose.msra.mxu0 %v1573
      %1591 = vmatprep.subr.bf16.mxu0 0
      %1592 = vmatpush1.bf16.xpose.msra.mxu0 0
      %1593 = vmatprep.subr.bf16.mxu0 0
      %1594 = vmatpush1.bf16.xpose.msra.mxu0 0
      %1595 = vmatprep.subr.bf16.mxu0 0
      %1596 = vmatpush1.bf16.xpose.msra.mxu0 0
      %1597 = vmatprep.subr.bf16.mxu0 0
      %1598 = vmatpush1.bf16.xpose.msra.mxu0 0
      %1599 = vmatprep.subr.bf16.mxu0 0
      %1600 = vmatpush1.bf16.xpose.msra.mxu0 0
      %1601 = vmatprep.subr.bf16.mxu0 0
      %1602 = vmatpush1.bf16.xpose.msra.mxu0 0
      %1603 = vmatprep.subr.bf16.mxu0 0
      %1604 = vmatpush1.bf16.xpose.msra.mxu0 0
      %1605 = vmatprep.subr.bf16.mxu0 0
      %1606 = vmatpush1.bf16.xpose.msra.mxu0 0
      %1607 = vmatprep.mubr.bf16.mxu0 0
      %1608 = vmatmul.mubr.bf16.gmra.mrb[0].mxu0 %v1528
      %v1609 = vpop.f32.mrb[0].mxu0
      %v1610 = vadd.f32 %v1501, %v1609
      %v1611 = vpop.f32.mrb[0].mxu0
      %v1612 = vpop.f32.mrb[0].mxu0
      %v1613 = vadd.f32 %v1501, %v1612
      %v1614 = vpop.f32.mrb[0].mxu0
      %1615 = vmatprep.mubr.bf16.mxu0 0
      %1616 = vmatmul.mubr.bf16.gmra.mrb[0].mxu0 %v1531
      %v1617 = vpop.f32.mrb[0].mxu0
      %v1618 = vadd.f32 %v1501, %v1617
      %v1619 = vpop.f32.mrb[0].mxu0
      %v1620 = vpop.f32.mrb[0].mxu0
      %v1621 = vadd.f32 %v1501, %v1620
      %v1622 = vpop.f32.mrb[0].mxu0
      %1623 = vmatprep.mubr.bf16.mxu0 0
      %1624 = vmatmul.mubr.bf16.gmra.mrb[0].mxu0 %v1534
      %v1625 = vpop.f32.mrb[0].mxu0
      %v1626 = vadd.f32 %v1501, %v1625
      %v1627 = vpop.f32.mrb[0].mxu0
      %v1628 = vpop.f32.mrb[0].mxu0
      %v1629 = vadd.f32 %v1501, %v1628
      %v1630 = vpop.f32.mrb[0].mxu0
      %1631 = vmatprep.mubr.bf16.mxu0 0
      %1632 = vmatmul.mubr.bf16.gmra.mrb[0].mxu0 %v1537
      %v1633 = vpop.f32.mrb[0].mxu0
      %v1634 = vadd.f32 %v1501, %v1633
      %v1635 = vpop.f32.mrb[0].mxu0
      %v1636 = vpop.f32.mrb[0].mxu0
      %v1637 = vadd.f32 %v1501, %v1636
      %v1638 = vpop.f32.mrb[0].mxu0
      %1639 = vmatprep.mubr.bf16.mxu0 0
      %1640 = vmatmul.mubr.bf16.gmra.mrb[0].mxu0 %v1540
      %v1641 = vpop.f32.mrb[0].mxu0
      %v1642 = vadd.f32 %v1501, %v1641
      %v1643 = vpop.f32.mrb[0].mxu0
      %v1644 = vpop.f32.mrb[0].mxu0
      %v1645 = vadd.f32 %v1501, %v1644
      %v1646 = vpop.f32.mrb[0].mxu0
      %1647 = vmatprep.mubr.bf16.mxu0 0
      %1648 = vmatmul.mubr.bf16.gmra.mrb[0].mxu0 %v1543
      %v1649 = vpop.f32.mrb[0].mxu0
      %v1650 = vadd.f32 %v1501, %v1649
      %v1651 = vpop.f32.mrb[0].mxu0
      %v1652 = vpop.f32.mrb[0].mxu0
      %v1653 = vadd.f32 %v1501, %v1652
      %v1654 = vpop.f32.mrb[0].mxu0
      %1655 = vmatprep.mubr.bf16.mxu0 0
      %1656 = vmatmul.mubr.bf16.gmra.mrb[0].mxu0 %v1546
      %v1657 = vpop.f32.mrb[0].mxu0
      %v1658 = vadd.f32 %v1501, %v1657
      %v1659 = vpop.f32.mrb[0].mxu0
      %v1660 = vpop.f32.mrb[0].mxu0
      %v1661 = vadd.f32 %v1501, %v1660
      %v1662 = vpop.f32.mrb[0].mxu0
      %1663 = vmatprep.mubr.bf16.mxu0 0
      %1664 = vmatmul.mubr.bf16.gmra.mrb[0].mxu0 %v1549
      %v1665 = vpop.f32.mrb[0].mxu0
      %v1666 = vadd.f32 %v1501, %v1665
      %v1667 = vpop.f32.mrb[0].mxu0
      %v1668 = vpop.f32.mrb[0].mxu0
      %v1669 = vadd.f32 %v1501, %v1668
      %v1670 = vpop.f32.mrb[0].mxu0
      %1671 = vdwg.mxu0
      %1672 = vmax.xlane.f32.xlu0 %v1610
      %v1673 = vpop.xlane.xlu0 %1672
      %1674 = vmax.xlane.f32.xlu0 %v1613
      %v1675 = vpop.xlane.xlu0 %1674
      %1676 = vmax.xlane.f32.xlu0 %v1618
      %v1677 = vpop.xlane.xlu0 %1676
      %1678 = vmax.xlane.f32.xlu0 %v1621
      %v1679 = vpop.xlane.xlu0 %1678
      %1680 = vmax.xlane.f32.xlu0 %v1626
      %v1681 = vpop.xlane.xlu0 %1680
      %1682 = vmax.xlane.f32.xlu0 %v1629
      %v1683 = vpop.xlane.xlu0 %1682
      %1684 = vmax.xlane.f32.xlu0 %v1634
      %v1685 = vpop.xlane.xlu0 %1684
      %1686 = vmax.xlane.f32.xlu0 %v1637
      %v1687 = vpop.xlane.xlu0 %1686
      %1688 = vmax.xlane.f32.xlu0 %v1642
      %v1689 = vpop.xlane.xlu0 %1688
      %1690 = vmax.xlane.f32.xlu0 %v1645
      %v1691 = vpop.xlane.xlu0 %1690
      %1692 = vmax.xlane.f32.xlu0 %v1650
      %v1693 = vpop.xlane.xlu0 %1692
      %1694 = vmax.xlane.f32.xlu0 %v1653
      %v1695 = vpop.xlane.xlu0 %1694
      %1696 = vmax.xlane.f32.xlu0 %v1658
      %v1697 = vpop.xlane.xlu0 %1696
      %1698 = vmax.xlane.f32.xlu0 %v1661
      %v1699 = vpop.xlane.xlu0 %1698
      %1700 = vmax.xlane.f32.xlu0 %v1666
      %v1701 = vpop.xlane.xlu0 %1700
      %1702 = vmax.xlane.f32.xlu0 %v1669
      %v1703 = vpop.xlane.xlu0 %1702
      %v1704 = vsub.f32 %v1610, %v1673
      %v1705 = vsub.f32 %v1613, %v1675
      %v1706 = vsub.f32 %v1618, %v1677
      %v1707 = vsub.f32 %v1621, %v1679
      %v1708 = vsub.f32 %v1626, %v1681
      %v1709 = vsub.f32 %v1629, %v1683
      %v1710 = vsub.f32 %v1634, %v1685
      %v1711 = vsub.f32 %v1637, %v1687
      %v1712 = vsub.f32 %v1642, %v1689
      %v1713 = vsub.f32 %v1645, %v1691
      %v1714 = vsub.f32 %v1650, %v1693
      %v1715 = vsub.f32 %v1653, %v1695
      %v1716 = vsub.f32 %v1658, %v1697
      %v1717 = vsub.f32 %v1661, %v1699
      %v1718 = vsub.f32 %v1666, %v1701
      %v1719 = vsub.f32 %v1669, %v1703
      %v1720 = vmul.f32 %v1704, 1.442695
      %v1721 = vpow.pop %v1720
      %v1722 = vmul.f32 %v1705, 1.442695
      %v1723 = vpow.pop %v1722
      %v1724 = vmul.f32 %v1706, 1.442695
      %v1725 = vpow.pop %v1724
      %v1726 = vmul.f32 %v1707, 1.442695
      %v1727 = vpow.pop %v1726
      %v1728 = vmul.f32 %v1708, 1.442695
      %v1729 = vpow.pop %v1728
      %v1730 = vmul.f32 %v1709, 1.442695
      %v1731 = vpow.pop %v1730
      %v1732 = vmul.f32 %v1710, 1.442695
      %v1733 = vpow.pop %v1732
      %v1734 = vmul.f32 %v1711, 1.442695
      %v1735 = vpow.pop %v1734
      %v1736 = vmul.f32 %v1712, 1.442695
      %v1737 = vpow.pop %v1736
      %v1738 = vmul.f32 %v1713, 1.442695
      %v1739 = vpow.pop %v1738
      %v1740 = vmul.f32 %v1714, 1.442695
      %v1741 = vpow.pop %v1740
      %v1742 = vmul.f32 %v1715, 1.442695
      %v1743 = vpow.pop %v1742
      %v1744 = vmul.f32 %v1716, 1.442695
      %v1745 = vpow.pop %v1744
      %v1746 = vmul.f32 %v1717, 1.442695
      %v1747 = vpow.pop %v1746
      %v1748 = vmul.f32 %v1718, 1.442695
      %v1749 = vpow.pop %v1748
      %v1750 = vmul.f32 %v1719, 1.442695
      %v1751 = vpow.pop %v1750
      %1752 = vadd.xlane.f32.xlu0 %v1721
      %v1753 = vpop.xlane.xlu0 %1752
      %1754 = vadd.xlane.f32.xlu0 %v1723
      %v1755 = vpop.xlane.xlu0 %1754
      %1756 = vadd.xlane.f32.xlu0 %v1725
      %v1757 = vpop.xlane.xlu0 %1756
      %1758 = vadd.xlane.f32.xlu0 %v1727
      %v1759 = vpop.xlane.xlu0 %1758
      %1760 = vadd.xlane.f32.xlu0 %v1729
      %v1761 = vpop.xlane.xlu0 %1760
      %1762 = vadd.xlane.f32.xlu0 %v1731
      %v1763 = vpop.xlane.xlu0 %1762
      %1764 = vadd.xlane.f32.xlu0 %v1733
      %v1765 = vpop.xlane.xlu0 %1764
      %1766 = vadd.xlane.f32.xlu0 %v1735
      %v1767 = vpop.xlane.xlu0 %1766
      %1768 = vadd.xlane.f32.xlu0 %v1737
      %v1769 = vpop.xlane.xlu0 %1768
      %1770 = vadd.xlane.f32.xlu0 %v1739
      %v1771 = vpop.xlane.xlu0 %1770
      %1772 = vadd.xlane.f32.xlu0 %v1741
      %v1773 = vpop.xlane.xlu0 %1772
      %1774 = vadd.xlane.f32.xlu0 %v1743
      %v1775 = vpop.xlane.xlu0 %1774
      %1776 = vadd.xlane.f32.xlu0 %v1745
      %v1777 = vpop.xlane.xlu0 %1776
      %1778 = vadd.xlane.f32.xlu0 %v1747
      %v1779 = vpop.xlane.xlu0 %1778
      %1780 = vadd.xlane.f32.xlu0 %v1749
      %v1781 = vpop.xlane.xlu0 %1780
      %1782 = vadd.xlane.f32.xlu0 %v1751
      %v1783 = vpop.xlane.xlu0 %1782
      %v1784 = vrcp.pop %v1753
      %v1785 = vrcp.pop %v1755
      %v1786 = vrcp.pop %v1757
      %v1787 = vrcp.pop %v1759
      %v1788 = vrcp.pop %v1761
      %v1789 = vrcp.pop %v1763
      %v1790 = vrcp.pop %v1765
      %v1791 = vrcp.pop %v1767
      %v1792 = vrcp.pop %v1769
      %v1793 = vrcp.pop %v1771
      %v1794 = vrcp.pop %v1773
      %v1795 = vrcp.pop %v1775
      %v1796 = vrcp.pop %v1777
      %v1797 = vrcp.pop %v1779
      %v1798 = vrcp.pop %v1781
      %v1799 = vrcp.pop %v1783
      %v1800 = vmul.f32 %v1721, %v1784
      %v1801 = vmul.f32 %v1723, %v1785
      %v1802 = vmul.f32 %v1725, %v1786
      %v1803 = vmul.f32 %v1727, %v1787
      %v1804 = vmul.f32 %v1729, %v1788
      %v1805 = vmul.f32 %v1731, %v1789
      %v1806 = vmul.f32 %v1733, %v1790
      %v1807 = vmul.f32 %v1735, %v1791
      %v1808 = vmul.f32 %v1737, %v1792
      %v1809 = vmul.f32 %v1739, %v1793
      %v1810 = vmul.f32 %v1741, %v1794
      %v1811 = vmul.f32 %v1743, %v1795
      %v1812 = vmul.f32 %v1745, %v1796
      %v1813 = vmul.f32 %v1747, %v1797
      %v1814 = vmul.f32 %v1749, %v1798
      %v1815 = vmul.f32 %v1751, %v1799
      %v1816 = vpack.c.bf16 %v1801, %v1800
      %v1817 = vpack.c.bf16 %v1803, %v1802
      %v1818 = vpack.c.bf16 %v1805, %v1804
      %v1819 = vpack.c.bf16 %v1807, %v1806
      %v1820 = vpack.c.bf16 %v1809, %v1808
      %v1821 = vpack.c.bf16 %v1811, %v1810
      %v1822 = vpack.c.bf16 %v1813, %v1812
      %v1823 = vpack.c.bf16 %v1815, %v1814
      %1824 = vmatprep.subr.bf16.mxu0 0
      %1825 = vmatpush1.bf16.msra.mxu0 %v1518
      %1826 = vmatprep.subr.bf16.mxu0 0
      %1827 = vmatpush1.bf16.msra.mxu0 %v1519
      %1828 = vmatprep.subr.bf16.mxu0 0
      %1829 = vmatpush1.bf16.msra.mxu0 %v1520
      %1830 = vmatprep.subr.bf16.mxu0 0
      %1831 = vmatpush1.bf16.msra.mxu0 %v1521
      %1832 = vmatprep.subr.bf16.mxu0 0
      %1833 = vmatpush1.bf16.msra.mxu0 %v1522
      %1834 = vmatprep.subr.bf16.mxu0 0
      %1835 = vmatpush1.bf16.msra.mxu0 %v1523
      %1836 = vmatprep.subr.bf16.mxu0 0
      %1837 = vmatpush1.bf16.msra.mxu0 %v1524
      %1838 = vmatprep.subr.bf16.mxu0 0
      %1839 = vmatpush1.bf16.msra.mxu0 %v1525
      %1840 = vmatprep.subr.bf16.mxu0 0
      %1841 = vmatpush1.bf16.msra.mxu0 0
      %1842 = vmatprep.subr.bf16.mxu0 0
      %1843 = vmatpush1.bf16.msra.mxu0 0
      %1844 = vmatprep.subr.bf16.mxu0 0
      %1845 = vmatpush1.bf16.msra.mxu0 0
      %1846 = vmatprep.subr.bf16.mxu0 0
      %1847 = vmatpush1.bf16.msra.mxu0 0
      %1848 = vmatprep.subr.bf16.mxu0 0
      %1849 = vmatpush1.bf16.msra.mxu0 0
      %1850 = vmatprep.subr.bf16.mxu0 0
      %1851 = vmatpush1.bf16.msra.mxu0 0
      %1852 = vmatprep.subr.bf16.mxu0 0
      %1853 = vmatpush1.bf16.msra.mxu0 0
      %1854 = vmatprep.subr.bf16.mxu0 0
      %1855 = vmatpush1.bf16.msra.mxu0 0
      %1856 = vmatprep.mubr.bf16.mxu0 0
      %1857 = vmatmul.mubr.bf16.gmra.mrb[0].mxu0 %v1816
      %v1858 = vpop.f32.mrb[0].mxu0
      %v1859 = vadd.f32 0.0, %v1858
      %v1860 = vpop.f32.mrb[0].mxu0
      %v1861 = vpop.f32.mrb[0].mxu0
      %v1862 = vadd.f32 0.0, %v1861
      %v1863 = vpop.f32.mrb[0].mxu0
      %1864 = vmatprep.mubr.bf16.mxu0 0
      %1865 = vmatmul.mubr.bf16.gmra.mrb[0].mxu0 %v1817
      %v1866 = vpop.f32.mrb[0].mxu0
      %v1867 = vadd.f32 0.0, %v1866
      %v1868 = vpop.f32.mrb[0].mxu0
      %v1869 = vpop.f32.mrb[0].mxu0
      %v1870 = vadd.f32 0.0, %v1869
      %v1871 = vpop.f32.mrb[0].mxu0
      %1872 = vmatprep.mubr.bf16.mxu0 0
      %1873 = vmatmul.mubr.bf16.gmra.mrb[0].mxu0 %v1818
      %v1874 = vpop.f32.mrb[0].mxu0
      %v1875 = vadd.f32 0.0, %v1874
      %v1876 = vpop.f32.mrb[0].mxu0
      %v1877 = vpop.f32.mrb[0].mxu0
      %v1878 = vadd.f32 0.0, %v1877
      %v1879 = vpop.f32.mrb[0].mxu0
      %1880 = vmatprep.mubr.bf16.mxu0 0
      %1881 = vmatmul.mubr.bf16.gmra.mrb[0].mxu0 %v1819
      %v1882 = vpop.f32.mrb[0].mxu0
      %v1883 = vadd.f32 0.0, %v1882
      %v1884 = vpop.f32.mrb[0].mxu0
      %v1885 = vpop.f32.mrb[0].mxu0
      %v1886 = vadd.f32 0.0, %v1885
      %v1887 = vpop.f32.mrb[0].mxu0
      %1888 = vmatprep.mubr.bf16.mxu0 0
      %1889 = vmatmul.mubr.bf16.gmra.mrb[0].mxu0 %v1820
      %v1890 = vpop.f32.mrb[0].mxu0
      %v1891 = vadd.f32 0.0, %v1890
      %v1892 = vpop.f32.mrb[0].mxu0
      %v1893 = vpop.f32.mrb[0].mxu0
      %v1894 = vadd.f32 0.0, %v1893
      %v1895 = vpop.f32.mrb[0].mxu0
      %1896 = vmatprep.mubr.bf16.mxu0 0
      %1897 = vmatmul.mubr.bf16.gmra.mrb[0].mxu0 %v1821
      %v1898 = vpop.f32.mrb[0].mxu0
      %v1899 = vadd.f32 0.0, %v1898
      %v1900 = vpop.f32.mrb[0].mxu0
      %v1901 = vpop.f32.mrb[0].mxu0
      %v1902 = vadd.f32 0.0, %v1901
      %v1903 = vpop.f32.mrb[0].mxu0
      %1904 = vmatprep.mubr.bf16.mxu0 0
      %1905 = vmatmul.mubr.bf16.gmra.mrb[0].mxu0 %v1822
      %v1906 = vpop.f32.mrb[0].mxu0
      %v1907 = vadd.f32 0.0, %v1906
      %v1908 = vpop.f32.mrb[0].mxu0
      %v1909 = vpop.f32.mrb[0].mxu0
      %v1910 = vadd.f32 0.0, %v1909
      %v1911 = vpop.f32.mrb[0].mxu0
      %1912 = vmatprep.mubr.bf16.mxu0 0
      %1913 = vmatmul.mubr.bf16.gmra.mrb[0].mxu0 %v1823
      %v1914 = vpop.f32.mrb[0].mxu0
      %v1915 = vadd.f32 0.0, %v1914
      %v1916 = vpop.f32.mrb[0].mxu0
      %v1917 = vpop.f32.mrb[0].mxu0
      %v1918 = vadd.f32 0.0, %v1917
      %v1919 = vpop.f32.mrb[0].mxu0
      %1920 = vdwg.mxu0
      %v1921 = vpack.c.bf16 %v1862, %v1859
      %v1922 = vpack.c.bf16 %v1870, %v1867
      %v1923 = vpack.c.bf16 %v1878, %v1875
      %v1924 = vpack.c.bf16 %v1886, %v1883
      %v1925 = vpack.c.bf16 %v1894, %v1891
      %v1926 = vpack.c.bf16 %v1902, %v1899
      %v1927 = vpack.c.bf16 %v1910, %v1907
      %v1928 = vpack.c.bf16 %v1918, %v1915
      %1937 = vrot.lane.b32.xlu0 %v1502, 96
      %v1938 = vpop.permute.xlu0 %1937
      %1939 = vrot.lane.b32.xlu0 %v1503, 96
      %v1940 = vpop.permute.xlu0 %1939
      %1941 = vrot.lane.b32.xlu0 %v1504, 96
      %v1942 = vpop.permute.xlu0 %1941
      %1943 = vrot.lane.b32.xlu0 %v1505, 96
      %v1944 = vpop.permute.xlu0 %1943
      %1945 = vrot.lane.b32.xlu0 %v1506, 96
      %v1946 = vpop.permute.xlu0 %1945
      %1947 = vrot.lane.b32.xlu0 %v1507, 96
      %v1948 = vpop.permute.xlu0 %1947
      %1949 = vrot.lane.b32.xlu0 %v1508, 96
      %v1950 = vpop.permute.xlu0 %1949
      %1951 = vrot.lane.b32.xlu0 %v1509, 96
      %v1952 = vpop.permute.xlu0 %1951
      %1961 = vrot.lane.b32.xlu0 %v1510, 96
      %v1962 = vpop.permute.xlu0 %1961
      %1963 = vrot.lane.b32.xlu0 %v1511, 96
      %v1964 = vpop.permute.xlu0 %1963
      %1965 = vrot.lane.b32.xlu0 %v1512, 96
      %v1966 = vpop.permute.xlu0 %1965
      %1967 = vrot.lane.b32.xlu0 %v1513, 96
      %v1968 = vpop.permute.xlu0 %1967
      %1969 = vrot.lane.b32.xlu0 %v1514, 96
      %v1970 = vpop.permute.xlu0 %1969
      %1971 = vrot.lane.b32.xlu0 %v1515, 96
      %v1972 = vpop.permute.xlu0 %1971
      %1973 = vrot.lane.b32.xlu0 %v1516, 96
      %v1974 = vpop.permute.xlu0 %1973
      %1975 = vrot.lane.b32.xlu0 %v1517, 96
      %v1976 = vpop.permute.xlu0 %1975
      %v1978 = vsel %vm1526, %v1938, 0
      %v1981 = vsel %vm1526, %v1940, 0
      %v1984 = vsel %vm1526, %v1942, 0
      %v1987 = vsel %vm1526, %v1944, 0
      %v1990 = vsel %vm1526, %v1946, 0
      %v1993 = vsel %vm1526, %v1948, 0
      %v1996 = vsel %vm1526, %v1950, 0
      %v1999 = vsel %vm1526, %v1952, 0
      %v2002 = vsel %vm1526, %v1962, 0
      %v2005 = vsel %vm1526, %v1964, 0
      %v2008 = vsel %vm1526, %v1966, 0
      %v2011 = vsel %vm1526, %v1968, 0
      %v2014 = vsel %vm1526, %v1970, 0
      %v2017 = vsel %vm1526, %v1972, 0
      %v2020 = vsel %vm1526, %v1974, 0
      %v2023 = vsel %vm1526, %v1976, 0
      %2025 = vmatprep.subr.bf16.mxu0 0
      %2026 = vmatpush1.bf16.xpose.msra.mxu0 %v2002
      %2027 = vmatprep.subr.bf16.mxu0 0
      %2028 = vmatpush1.bf16.xpose.msra.mxu0 %v2005
      %2029 = vmatprep.subr.bf16.mxu0 0
      %2030 = vmatpush1.bf16.xpose.msra.mxu0 %v2008
      %2031 = vmatprep.subr.bf16.mxu0 0
      %2032 = vmatpush1.bf16.xpose.msra.mxu0 %v2011
      %2033 = vmatprep.subr.bf16.mxu0 0
      %2034 = vmatpush1.bf16.xpose.msra.mxu0 %v2014
      %2035 = vmatprep.subr.bf16.mxu0 0
      %2036 = vmatpush1.bf16.xpose.msra.mxu0 %v2017
      %2037 = vmatprep.subr.bf16.mxu0 0
      %2038 = vmatpush1.bf16.xpose.msra.mxu0 %v2020
      %2039 = vmatprep.subr.bf16.mxu0 0
      %2040 = vmatpush1.bf16.xpose.msra.mxu0 %v2023
      %2041 = vmatprep.subr.bf16.mxu0 0
      %2042 = vmatpush1.bf16.xpose.msra.mxu0 0
      %2043 = vmatprep.subr.bf16.mxu0 0
      %2044 = vmatpush1.bf16.xpose.msra.mxu0 0
      %2045 = vmatprep.subr.bf16.mxu0 0
      %2046 = vmatpush1.bf16.xpose.msra.mxu0 0
      %2047 = vmatprep.subr.bf16.mxu0 0
      %2048 = vmatpush1.bf16.xpose.msra.mxu0 0
      %2049 = vmatprep.subr.bf16.mxu0 0
      %2050 = vmatpush1.bf16.xpose.msra.mxu0 0
      %2051 = vmatprep.subr.bf16.mxu0 0
      %2052 = vmatpush1.bf16.xpose.msra.mxu0 0
      %2053 = vmatprep.subr.bf16.mxu0 0
      %2054 = vmatpush1.bf16.xpose.msra.mxu0 0
      %2055 = vmatprep.subr.bf16.mxu0 0
      %2056 = vmatpush1.bf16.xpose.msra.mxu0 0
      %2057 = vmatprep.mubr.bf16.mxu0 0
      %2058 = vmatmul.mubr.bf16.gmra.mrb[0].mxu0 %v1978
      %v2059 = vpop.f32.mrb[0].mxu0
      %v2060 = vadd.f32 %v1501, %v2059
      %v2061 = vpop.f32.mrb[0].mxu0
      %v2062 = vpop.f32.mrb[0].mxu0
      %v2063 = vadd.f32 %v1501, %v2062
      %v2064 = vpop.f32.mrb[0].mxu0
      %2065 = vmatprep.mubr.bf16.mxu0 0
      %2066 = vmatmul.mubr.bf16.gmra.mrb[0].mxu0 %v1981
      %v2067 = vpop.f32.mrb[0].mxu0
      %v2068 = vadd.f32 %v1501, %v2067
      %v2069 = vpop.f32.mrb[0].mxu0
      %v2070 = vpop.f32.mrb[0].mxu0
      %v2071 = vadd.f32 %v1501, %v2070
      %v2072 = vpop.f32.mrb[0].mxu0
      %2073 = vmatprep.mubr.bf16.mxu0 0
      %2074 = vmatmul.mubr.bf16.gmra.mrb[0].mxu0 %v1984
      %v2075 = vpop.f32.mrb[0].mxu0
      %v2076 = vadd.f32 %v1501, %v2075
      %v2077 = vpop.f32.mrb[0].mxu0
      %v2078 = vpop.f32.mrb[0].mxu0
      %v2079 = vadd.f32 %v1501, %v2078
      %v2080 = vpop.f32.mrb[0].mxu0
      %2081 = vmatprep.mubr.bf16.mxu0 0
      %2082 = vmatmul.mubr.bf16.gmra.mrb[0].mxu0 %v1987
      %v2083 = vpop.f32.mrb[0].mxu0
      %v2084 = vadd.f32 %v1501, %v2083
      %v2085 = vpop.f32.mrb[0].mxu0
      %v2086 = vpop.f32.mrb[0].mxu0
      %v2087 = vadd.f32 %v1501, %v2086
      %v2088 = vpop.f32.mrb[0].mxu0
      %2089 = vmatprep.mubr.bf16.mxu0 0
      %2090 = vmatmul.mubr.bf16.gmra.mrb[0].mxu0 %v1990
      %v2091 = vpop.f32.mrb[0].mxu0
      %v2092 = vadd.f32 %v1501, %v2091
      %v2093 = vpop.f32.mrb[0].mxu0
      %v2094 = vpop.f32.mrb[0].mxu0
      %v2095 = vadd.f32 %v1501, %v2094
      %v2096 = vpop.f32.mrb[0].mxu0
      %2097 = vmatprep.mubr.bf16.mxu0 0
      %2098 = vmatmul.mubr.bf16.gmra.mrb[0].mxu0 %v1993
      %v2099 = vpop.f32.mrb[0].mxu0
      %v2100 = vadd.f32 %v1501, %v2099
      %v2101 = vpop.f32.mrb[0].mxu0
      %v2102 = vpop.f32.mrb[0].mxu0
      %v2103 = vadd.f32 %v1501, %v2102
      %v2104 = vpop.f32.mrb[0].mxu0
      %2105 = vmatprep.mubr.bf16.mxu0 0
      %2106 = vmatmul.mubr.bf16.gmra.mrb[0].mxu0 %v1996
      %v2107 = vpop.f32.mrb[0].mxu0
      %v2108 = vadd.f32 %v1501, %v2107
      %v2109 = vpop.f32.mrb[0].mxu0
      %v2110 = vpop.f32.mrb[0].mxu0
      %v2111 = vadd.f32 %v1501, %v2110
      %v2112 = vpop.f32.mrb[0].mxu0
      %2113 = vmatprep.mubr.bf16.mxu0 0
      %2114 = vmatmul.mubr.bf16.gmra.mrb[0].mxu0 %v1999
      %v2115 = vpop.f32.mrb[0].mxu0
      %v2116 = vadd.f32 %v1501, %v2115
      %v2117 = vpop.f32.mrb[0].mxu0
      %v2118 = vpop.f32.mrb[0].mxu0
      %v2119 = vadd.f32 %v1501, %v2118
      %v2120 = vpop.f32.mrb[0].mxu0
      %2121 = vdwg.mxu0
      %2122 = vmax.xlane.f32.xlu0 %v2060
      %v2123 = vpop.xlane.xlu0 %2122
      %2124 = vmax.xlane.f32.xlu0 %v2063
      %v2125 = vpop.xlane.xlu0 %2124
      %2126 = vmax.xlane.f32.xlu0 %v2068
      %v2127 = vpop.xlane.xlu0 %2126
      %2128 = vmax.xlane.f32.xlu0 %v2071
      %v2129 = vpop.xlane.xlu0 %2128
      %2130 = vmax.xlane.f32.xlu0 %v2076
      %v2131 = vpop.xlane.xlu0 %2130
      %2132 = vmax.xlane.f32.xlu0 %v2079
      %v2133 = vpop.xlane.xlu0 %2132
      %2134 = vmax.xlane.f32.xlu0 %v2084
      %v2135 = vpop.xlane.xlu0 %2134
      %2136 = vmax.xlane.f32.xlu0 %v2087
      %v2137 = vpop.xlane.xlu0 %2136
      %2138 = vmax.xlane.f32.xlu0 %v2092
      %v2139 = vpop.xlane.xlu0 %2138
      %2140 = vmax.xlane.f32.xlu0 %v2095
      %v2141 = vpop.xlane.xlu0 %2140
      %2142 = vmax.xlane.f32.xlu0 %v2100
      %v2143 = vpop.xlane.xlu0 %2142
      %2144 = vmax.xlane.f32.xlu0 %v2103
      %v2145 = vpop.xlane.xlu0 %2144
      %2146 = vmax.xlane.f32.xlu0 %v2108
      %v2147 = vpop.xlane.xlu0 %2146
      %2148 = vmax.xlane.f32.xlu0 %v2111
      %v2149 = vpop.xlane.xlu0 %2148
      %2150 = vmax.xlane.f32.xlu0 %v2116
      %v2151 = vpop.xlane.xlu0 %2150
      %2152 = vmax.xlane.f32.xlu0 %v2119
      %v2153 = vpop.xlane.xlu0 %2152
      %v2154 = vsub.f32 %v2060, %v2123
      %v2155 = vsub.f32 %v2063, %v2125
      %v2156 = vsub.f32 %v2068, %v2127
      %v2157 = vsub.f32 %v2071, %v2129
      %v2158 = vsub.f32 %v2076, %v2131
      %v2159 = vsub.f32 %v2079, %v2133
      %v2160 = vsub.f32 %v2084, %v2135
      %v2161 = vsub.f32 %v2087, %v2137
      %v2162 = vsub.f32 %v2092, %v2139
      %v2163 = vsub.f32 %v2095, %v2141
      %v2164 = vsub.f32 %v2100, %v2143
      %v2165 = vsub.f32 %v2103, %v2145
      %v2166 = vsub.f32 %v2108, %v2147
      %v2167 = vsub.f32 %v2111, %v2149
      %v2168 = vsub.f32 %v2116, %v2151
      %v2169 = vsub.f32 %v2119, %v2153
      %v2170 = vmul.f32 %v2154, 1.442695
      %v2171 = vpow.pop %v2170
      %v2172 = vmul.f32 %v2155, 1.442695
      %v2173 = vpow.pop %v2172
      %v2174 = vmul.f32 %v2156, 1.442695
      %v2175 = vpow.pop %v2174
      %v2176 = vmul.f32 %v2157, 1.442695
      %v2177 = vpow.pop %v2176
      %v2178 = vmul.f32 %v2158, 1.442695
      %v2179 = vpow.pop %v2178
      %v2180 = vmul.f32 %v2159, 1.442695
      %v2181 = vpow.pop %v2180
      %v2182 = vmul.f32 %v2160, 1.442695
      %v2183 = vpow.pop %v2182
      %v2184 = vmul.f32 %v2161, 1.442695
      %v2185 = vpow.pop %v2184
      %v2186 = vmul.f32 %v2162, 1.442695
      %v2187 = vpow.pop %v2186
      %v2188 = vmul.f32 %v2163, 1.442695
      %v2189 = vpow.pop %v2188
      %v2190 = vmul.f32 %v2164, 1.442695
      %v2191 = vpow.pop %v2190
      %v2192 = vmul.f32 %v2165, 1.442695
      %v2193 = vpow.pop %v2192
      %v2194 = vmul.f32 %v2166, 1.442695
      %v2195 = vpow.pop %v2194
      %v2196 = vmul.f32 %v2167, 1.442695
      %v2197 = vpow.pop %v2196
      %v2198 = vmul.f32 %v2168, 1.442695
      %v2199 = vpow.pop %v2198
      %v2200 = vmul.f32 %v2169, 1.442695
      %v2201 = vpow.pop %v2200
      %2202 = vadd.xlane.f32.xlu0 %v2171
      %v2203 = vpop.xlane.xlu0 %2202
      %2204 = vadd.xlane.f32.xlu0 %v2173
      %v2205 = vpop.xlane.xlu0 %2204
      %2206 = vadd.xlane.f32.xlu0 %v2175
      %v2207 = vpop.xlane.xlu0 %2206
      %2208 = vadd.xlane.f32.xlu0 %v2177
      %v2209 = vpop.xlane.xlu0 %2208
      %2210 = vadd.xlane.f32.xlu0 %v2179
      %v2211 = vpop.xlane.xlu0 %2210
      %2212 = vadd.xlane.f32.xlu0 %v2181
      %v2213 = vpop.xlane.xlu0 %2212
      %2214 = vadd.xlane.f32.xlu0 %v2183
      %v2215 = vpop.xlane.xlu0 %2214
      %2216 = vadd.xlane.f32.xlu0 %v2185
      %v2217 = vpop.xlane.xlu0 %2216
      %2218 = vadd.xlane.f32.xlu0 %v2187
      %v2219 = vpop.xlane.xlu0 %2218
      %2220 = vadd.xlane.f32.xlu0 %v2189
      %v2221 = vpop.xlane.xlu0 %2220
      %2222 = vadd.xlane.f32.xlu0 %v2191
      %v2223 = vpop.xlane.xlu0 %2222
      %2224 = vadd.xlane.f32.xlu0 %v2193
      %v2225 = vpop.xlane.xlu0 %2224
      %2226 = vadd.xlane.f32.xlu0 %v2195
      %v2227 = vpop.xlane.xlu0 %2226
      %2228 = vadd.xlane.f32.xlu0 %v2197
      %v2229 = vpop.xlane.xlu0 %2228
      %2230 = vadd.xlane.f32.xlu0 %v2199
      %v2231 = vpop.xlane.xlu0 %2230
      %2232 = vadd.xlane.f32.xlu0 %v2201
      %v2233 = vpop.xlane.xlu0 %2232
      %v2234 = vrcp.pop %v2203
      %v2235 = vrcp.pop %v2205
      %v2236 = vrcp.pop %v2207
      %v2237 = vrcp.pop %v2209
      %v2238 = vrcp.pop %v2211
      %v2239 = vrcp.pop %v2213
      %v2240 = vrcp.pop %v2215
      %v2241 = vrcp.pop %v2217
      %v2242 = vrcp.pop %v2219
      %v2243 = vrcp.pop %v2221
      %v2244 = vrcp.pop %v2223
      %v2245 = vrcp.pop %v2225
      %v2246 = vrcp.pop %v2227
      %v2247 = vrcp.pop %v2229
      %v2248 = vrcp.pop %v2231
      %v2249 = vrcp.pop %v2233
      %v2250 = vmul.f32 %v2171, %v2234
      %v2251 = vmul.f32 %v2173, %v2235
      %v2252 = vmul.f32 %v2175, %v2236
      %v2253 = vmul.f32 %v2177, %v2237
      %v2254 = vmul.f32 %v2179, %v2238
      %v2255 = vmul.f32 %v2181, %v2239
      %v2256 = vmul.f32 %v2183, %v2240
      %v2257 = vmul.f32 %v2185, %v2241
      %v2258 = vmul.f32 %v2187, %v2242
      %v2259 = vmul.f32 %v2189, %v2243
      %v2260 = vmul.f32 %v2191, %v2244
      %v2261 = vmul.f32 %v2193, %v2245
      %v2262 = vmul.f32 %v2195, %v2246
      %v2263 = vmul.f32 %v2197, %v2247
      %v2264 = vmul.f32 %v2199, %v2248
      %v2265 = vmul.f32 %v2201, %v2249
      %v2266 = vpack.c.bf16 %v2251, %v2250
      %v2267 = vpack.c.bf16 %v2253, %v2252
      %v2268 = vpack.c.bf16 %v2255, %v2254
      %v2269 = vpack.c.bf16 %v2257, %v2256
      %v2270 = vpack.c.bf16 %v2259, %v2258
      %v2271 = vpack.c.bf16 %v2261, %v2260
      %v2272 = vpack.c.bf16 %v2263, %v2262
      %v2273 = vpack.c.bf16 %v2265, %v2264
      %2282 = vrot.lane.b32.xlu0 %v1518, 96
      %v2283 = vpop.permute.xlu0 %2282
      %2284 = vrot.lane.b32.xlu0 %v1519, 96
      %v2285 = vpop.permute.xlu0 %2284
      %2286 = vrot.lane.b32.xlu0 %v1520, 96
      %v2287 = vpop.permute.xlu0 %2286
      %2288 = vrot.lane.b32.xlu0 %v1521, 96
      %v2289 = vpop.permute.xlu0 %2288
      %2290 = vrot.lane.b32.xlu0 %v1522, 96
      %v2291 = vpop.permute.xlu0 %2290
      %2292 = vrot.lane.b32.xlu0 %v1523, 96
      %v2293 = vpop.permute.xlu0 %2292
      %2294 = vrot.lane.b32.xlu0 %v1524, 96
      %v2295 = vpop.permute.xlu0 %2294
      %2296 = vrot.lane.b32.xlu0 %v1525, 96
      %v2297 = vpop.permute.xlu0 %2296
      %2306 = vmatprep.subr.bf16.mxu0 0
      %2307 = vmatpush1.bf16.msra.mxu0 %v2283
      %2308 = vmatprep.subr.bf16.mxu0 0
      %2309 = vmatpush1.bf16.msra.mxu0 %v2285
      %2310 = vmatprep.subr.bf16.mxu0 0
      %2311 = vmatpush1.bf16.msra.mxu0 %v2287
      %2312 = vmatprep.subr.bf16.mxu0 0
      %2313 = vmatpush1.bf16.msra.mxu0 %v2289
      %2314 = vmatprep.subr.bf16.mxu0 0
      %2315 = vmatpush1.bf16.msra.mxu0 %v2291
      %2316 = vmatprep.subr.bf16.mxu0 0
      %2317 = vmatpush1.bf16.msra.mxu0 %v2293
      %2318 = vmatprep.subr.bf16.mxu0 0
      %2319 = vmatpush1.bf16.msra.mxu0 %v2295
      %2320 = vmatprep.subr.bf16.mxu0 0
      %2321 = vmatpush1.bf16.msra.mxu0 %v2297
      %2322 = vmatprep.subr.bf16.mxu0 0
      %2323 = vmatpush1.bf16.msra.mxu0 0
      %2324 = vmatprep.subr.bf16.mxu0 0
      %2325 = vmatpush1.bf16.msra.mxu0 0
      %2326 = vmatprep.subr.bf16.mxu0 0
      %2327 = vmatpush1.bf16.msra.mxu0 0
      %2328 = vmatprep.subr.bf16.mxu0 0
      %2329 = vmatpush1.bf16.msra.mxu0 0
      %2330 = vmatprep.subr.bf16.mxu0 0
      %2331 = vmatpush1.bf16.msra.mxu0 0
      %2332 = vmatprep.subr.bf16.mxu0 0
      %2333 = vmatpush1.bf16.msra.mxu0 0
      %2334 = vmatprep.subr.bf16.mxu0 0
      %2335 = vmatpush1.bf16.msra.mxu0 0
      %2336 = vmatprep.subr.bf16.mxu0 0
      %2337 = vmatpush1.bf16.msra.mxu0 0
      %2338 = vmatprep.mubr.bf16.mxu0 0
      %2339 = vmatmul.mubr.bf16.gmra.mrb[0].mxu0 %v2266
      %v2340 = vpop.f32.mrb[0].mxu0
      %v2341 = vadd.f32 0.0, %v2340
      %v2342 = vpop.f32.mrb[0].mxu0
      %v2343 = vpop.f32.mrb[0].mxu0
      %v2344 = vadd.f32 0.0, %v2343
      %v2345 = vpop.f32.mrb[0].mxu0
      %2346 = vmatprep.mubr.bf16.mxu0 0
      %2347 = vmatmul.mubr.bf16.gmra.mrb[0].mxu0 %v2267
      %v2348 = vpop.f32.mrb[0].mxu0
      %v2349 = vadd.f32 0.0, %v2348
      %v2350 = vpop.f32.mrb[0].mxu0
      %v2351 = vpop.f32.mrb[0].mxu0
      %v2352 = vadd.f32 0.0, %v2351
      %v2353 = vpop.f32.mrb[0].mxu0
      %2354 = vmatprep.mubr.bf16.mxu0 0
      %2355 = vmatmul.mubr.bf16.gmra.mrb[0].mxu0 %v2268
      %v2356 = vpop.f32.mrb[0].mxu0
      %v2357 = vadd.f32 0.0, %v2356
      %v2358 = vpop.f32.mrb[0].mxu0
      %v2359 = vpop.f32.mrb[0].mxu0
      %v2360 = vadd.f32 0.0, %v2359
      %v2361 = vpop.f32.mrb[0].mxu0
      %2362 = vmatprep.mubr.bf16.mxu0 0
      %2363 = vmatmul.mubr.bf16.gmra.mrb[0].mxu0 %v2269
      %v2364 = vpop.f32.mrb[0].mxu0
      %v2365 = vadd.f32 0.0, %v2364
      %v2366 = vpop.f32.mrb[0].mxu0
      %v2367 = vpop.f32.mrb[0].mxu0
      %v2368 = vadd.f32 0.0, %v2367
      %v2369 = vpop.f32.mrb[0].mxu0
      %2370 = vmatprep.mubr.bf16.mxu0 0
      %2371 = vmatmul.mubr.bf16.gmra.mrb[0].mxu0 %v2270
      %v2372 = vpop.f32.mrb[0].mxu0
      %v2373 = vadd.f32 0.0, %v2372
      %v2374 = vpop.f32.mrb[0].mxu0
      %v2375 = vpop.f32.mrb[0].mxu0
      %v2376 = vadd.f32 0.0, %v2375
      %v2377 = vpop.f32.mrb[0].mxu0
      %2378 = vmatprep.mubr.bf16.mxu0 0
      %2379 = vmatmul.mubr.bf16.gmra.mrb[0].mxu0 %v2271
      %v2380 = vpop.f32.mrb[0].mxu0
      %v2381 = vadd.f32 0.0, %v2380
      %v2382 = vpop.f32.mrb[0].mxu0
      %v2383 = vpop.f32.mrb[0].mxu0
      %v2384 = vadd.f32 0.0, %v2383
      %v2385 = vpop.f32.mrb[0].mxu0
      %2386 = vmatprep.mubr.bf16.mxu0 0
      %2387 = vmatmul.mubr.bf16.gmra.mrb[0].mxu0 %v2272
      %v2388 = vpop.f32.mrb[0].mxu0
      %v2389 = vadd.f32 0.0, %v2388
      %v2390 = vpop.f32.mrb[0].mxu0
      %v2391 = vpop.f32.mrb[0].mxu0
      %v2392 = vadd.f32 0.0, %v2391
      %v2393 = vpop.f32.mrb[0].mxu0
      %2394 = vmatprep.mubr.bf16.mxu0 0
      %2395 = vmatmul.mubr.bf16.gmra.mrb[0].mxu0 %v2273
      %v2396 = vpop.f32.mrb[0].mxu0
      %v2397 = vadd.f32 0.0, %v2396
      %v2398 = vpop.f32.mrb[0].mxu0
      %v2399 = vpop.f32.mrb[0].mxu0
      %v2400 = vadd.f32 0.0, %v2399
      %v2401 = vpop.f32.mrb[0].mxu0
      %2402 = vdwg.mxu0
      %v2403 = vpack.c.bf16 %v2344, %v2341
      %v2404 = vpack.c.bf16 %v2352, %v2349
      %v2405 = vpack.c.bf16 %v2360, %v2357
      %v2406 = vpack.c.bf16 %v2368, %v2365
      %v2407 = vpack.c.bf16 %v2376, %v2373
      %v2408 = vpack.c.bf16 %v2384, %v2381
      %v2409 = vpack.c.bf16 %v2392, %v2389
      %v2410 = vpack.c.bf16 %v2400, %v2397
      %2411 = vrot.lane.b32.xlu0 %v1502, 64
      %v2412 = vpop.permute.xlu0 %2411
      %2413 = vrot.lane.b32.xlu0 %v1503, 64
      %v2414 = vpop.permute.xlu0 %2413
      %2415 = vrot.lane.b32.xlu0 %v1504, 64
      %v2416 = vpop.permute.xlu0 %2415
      %2417 = vrot.lane.b32.xlu0 %v1505, 64
      %v2418 = vpop.permute.xlu0 %2417
      %2419 = vrot.lane.b32.xlu0 %v1506, 64
      %v2420 = vpop.permute.xlu0 %2419
      %2421 = vrot.lane.b32.xlu0 %v1507, 64
      %v2422 = vpop.permute.xlu0 %2421
      %2423 = vrot.lane.b32.xlu0 %v1508, 64
      %v2424 = vpop.permute.xlu0 %2423
      %2425 = vrot.lane.b32.xlu0 %v1509, 64
      %v2426 = vpop.permute.xlu0 %2425
      %2427 = vrot.lane.b32.xlu0 %v1510, 64
      %v2428 = vpop.permute.xlu0 %2427
      %2429 = vrot.lane.b32.xlu0 %v1511, 64
      %v2430 = vpop.permute.xlu0 %2429
      %2431 = vrot.lane.b32.xlu0 %v1512, 64
      %v2432 = vpop.permute.xlu0 %2431
      %2433 = vrot.lane.b32.xlu0 %v1513, 64
      %v2434 = vpop.permute.xlu0 %2433
      %2435 = vrot.lane.b32.xlu0 %v1514, 64
      %v2436 = vpop.permute.xlu0 %2435
      %2437 = vrot.lane.b32.xlu0 %v1515, 64
      %v2438 = vpop.permute.xlu0 %2437
      %2439 = vrot.lane.b32.xlu0 %v1516, 64
      %v2440 = vpop.permute.xlu0 %2439
      %2441 = vrot.lane.b32.xlu0 %v1517, 64
      %v2442 = vpop.permute.xlu0 %2441
      %v2444 = vsel %vm1526, %v2412, 0
      %v2447 = vsel %vm1526, %v2414, 0
      %v2450 = vsel %vm1526, %v2416, 0
      %v2453 = vsel %vm1526, %v2418, 0
      %v2456 = vsel %vm1526, %v2420, 0
      %v2459 = vsel %vm1526, %v2422, 0
      %v2462 = vsel %vm1526, %v2424, 0
      %v2465 = vsel %vm1526, %v2426, 0
      %v2468 = vsel %vm1526, %v2428, 0
      %v2471 = vsel %vm1526, %v2430, 0
      %v2474 = vsel %vm1526, %v2432, 0
      %v2477 = vsel %vm1526, %v2434, 0
      %v2480 = vsel %vm1526, %v2436, 0
      %v2483 = vsel %vm1526, %v2438, 0
      %v2486 = vsel %vm1526, %v2440, 0
      %v2489 = vsel %vm1526, %v2442, 0
      %2491 = vmatprep.subr.bf16.mxu0 0
      %2492 = vmatpush1.bf16.xpose.msra.mxu0 %v2468
      %2493 = vmatprep.subr.bf16.mxu0 0
      %2494 = vmatpush1.bf16.xpose.msra.mxu0 %v2471
      %2495 = vmatprep.subr.bf16.mxu0 0
      %2496 = vmatpush1.bf16.xpose.msra.mxu0 %v2474
      %2497 = vmatprep.subr.bf16.mxu0 0
      %2498 = vmatpush1.bf16.xpose.msra.mxu0 %v2477
      %2499 = vmatprep.subr.bf16.mxu0 0
      %2500 = vmatpush1.bf16.xpose.msra.mxu0 %v2480
      %2501 = vmatprep.subr.bf16.mxu0 0
      %2502 = vmatpush1.bf16.xpose.msra.mxu0 %v2483
      %2503 = vmatprep.subr.bf16.mxu0 0
      %2504 = vmatpush1.bf16.xpose.msra.mxu0 %v2486
      %2505 = vmatprep.subr.bf16.mxu0 0
      %2506 = vmatpush1.bf16.xpose.msra.mxu0 %v2489
      %2507 = vmatprep.subr.bf16.mxu0 0
      %2508 = vmatpush1.bf16.xpose.msra.mxu0 0
      %2509 = vmatprep.subr.bf16.mxu0 0
      %2510 = vmatpush1.bf16.xpose.msra.mxu0 0
      %2511 = vmatprep.subr.bf16.mxu0 0
      %2512 = vmatpush1.bf16.xpose.msra.mxu0 0
      %2513 = vmatprep.subr.bf16.mxu0 0
      %2514 = vmatpush1.bf16.xpose.msra.mxu0 0
      %2515 = vmatprep.subr.bf16.mxu0 0
      %2516 = vmatpush1.bf16.xpose.msra.mxu0 0
      %2517 = vmatprep.subr.bf16.mxu0 0
      %2518 = vmatpush1.bf16.xpose.msra.mxu0 0
      %2519 = vmatprep.subr.bf16.mxu0 0
      %2520 = vmatpush1.bf16.xpose.msra.mxu0 0
      %2521 = vmatprep.subr.bf16.mxu0 0
      %2522 = vmatpush1.bf16.xpose.msra.mxu0 0
      %2523 = vmatprep.mubr.bf16.mxu0 0
      %2524 = vmatmul.mubr.bf16.gmra.mrb[0].mxu0 %v2444
      %v2525 = vpop.f32.mrb[0].mxu0
      %v2526 = vadd.f32 %v1501, %v2525
      %v2527 = vpop.f32.mrb[0].mxu0
      %v2528 = vpop.f32.mrb[0].mxu0
      %v2529 = vadd.f32 %v1501, %v2528
      %v2530 = vpop.f32.mrb[0].mxu0
      %2531 = vmatprep.mubr.bf16.mxu0 0
      %2532 = vmatmul.mubr.bf16.gmra.mrb[0].mxu0 %v2447
      %v2533 = vpop.f32.mrb[0].mxu0
      %v2534 = vadd.f32 %v1501, %v2533
      %v2535 = vpop.f32.mrb[0].mxu0
      %v2536 = vpop.f32.mrb[0].mxu0
      %v2537 = vadd.f32 %v1501, %v2536
      %v2538 = vpop.f32.mrb[0].mxu0
      %2539 = vmatprep.mubr.bf16.mxu0 0
      %2540 = vmatmul.mubr.bf16.gmra.mrb[0].mxu0 %v2450
      %v2541 = vpop.f32.mrb[0].mxu0
      %v2542 = vadd.f32 %v1501, %v2541
      %v2543 = vpop.f32.mrb[0].mxu0
      %v2544 = vpop.f32.mrb[0].mxu0
      %v2545 = vadd.f32 %v1501, %v2544
      %v2546 = vpop.f32.mrb[0].mxu0
      %2547 = vmatprep.mubr.bf16.mxu0 0
      %2548 = vmatmul.mubr.bf16.gmra.mrb[0].mxu0 %v2453
      %v2549 = vpop.f32.mrb[0].mxu0
      %v2550 = vadd.f32 %v1501, %v2549
      %v2551 = vpop.f32.mrb[0].mxu0
      %v2552 = vpop.f32.mrb[0].mxu0
      %v2553 = vadd.f32 %v1501, %v2552
      %v2554 = vpop.f32.mrb[0].mxu0
      %2555 = vmatprep.mubr.bf16.mxu0 0
      %2556 = vmatmul.mubr.bf16.gmra.mrb[0].mxu0 %v2456
      %v2557 = vpop.f32.mrb[0].mxu0
      %v2558 = vadd.f32 %v1501, %v2557
      %v2559 = vpop.f32.mrb[0].mxu0
      %v2560 = vpop.f32.mrb[0].mxu0
      %v2561 = vadd.f32 %v1501, %v2560
      %v2562 = vpop.f32.mrb[0].mxu0
      %2563 = vmatprep.mubr.bf16.mxu0 0
      %2564 = vmatmul.mubr.bf16.gmra.mrb[0].mxu0 %v2459
      %v2565 = vpop.f32.mrb[0].mxu0
      %v2566 = vadd.f32 %v1501, %v2565
      %v2567 = vpop.f32.mrb[0].mxu0
      %v2568 = vpop.f32.mrb[0].mxu0
      %v2569 = vadd.f32 %v1501, %v2568
      %v2570 = vpop.f32.mrb[0].mxu0
      %2571 = vmatprep.mubr.bf16.mxu0 0
      %2572 = vmatmul.mubr.bf16.gmra.mrb[0].mxu0 %v2462
      %v2573 = vpop.f32.mrb[0].mxu0
      %v2574 = vadd.f32 %v1501, %v2573
      %v2575 = vpop.f32.mrb[0].mxu0
      %v2576 = vpop.f32.mrb[0].mxu0
      %v2577 = vadd.f32 %v1501, %v2576
      %v2578 = vpop.f32.mrb[0].mxu0
      %2579 = vmatprep.mubr.bf16.mxu0 0
      %2580 = vmatmul.mubr.bf16.gmra.mrb[0].mxu0 %v2465
      %v2581 = vpop.f32.mrb[0].mxu0
      %v2582 = vadd.f32 %v1501, %v2581
      %v2583 = vpop.f32.mrb[0].mxu0
      %v2584 = vpop.f32.mrb[0].mxu0
      %v2585 = vadd.f32 %v1501, %v2584
      %v2586 = vpop.f32.mrb[0].mxu0
      %2587 = vdwg.mxu0
      %2588 = vmax.xlane.f32.xlu0 %v2526
      %v2589 = vpop.xlane.xlu0 %2588
      %2590 = vmax.xlane.f32.xlu0 %v2529
      %v2591 = vpop.xlane.xlu0 %2590
      %2592 = vmax.xlane.f32.xlu0 %v2534
      %v2593 = vpop.xlane.xlu0 %2592
      %2594 = vmax.xlane.f32.xlu0 %v2537
      %v2595 = vpop.xlane.xlu0 %2594
      %2596 = vmax.xlane.f32.xlu0 %v2542
      %v2597 = vpop.xlane.xlu0 %2596
      %2598 = vmax.xlane.f32.xlu0 %v2545
      %v2599 = vpop.xlane.xlu0 %2598
      %2600 = vmax.xlane.f32.xlu0 %v2550
      %v2601 = vpop.xlane.xlu0 %2600
      %2602 = vmax.xlane.f32.xlu0 %v2553
      %v2603 = vpop.xlane.xlu0 %2602
      %2604 = vmax.xlane.f32.xlu0 %v2558
      %v2605 = vpop.xlane.xlu0 %2604
      %2606 = vmax.xlane.f32.xlu0 %v2561
      %v2607 = vpop.xlane.xlu0 %2606
      %2608 = vmax.xlane.f32.xlu0 %v2566
      %v2609 = vpop.xlane.xlu0 %2608
      %2610 = vmax.xlane.f32.xlu0 %v2569
      %v2611 = vpop.xlane.xlu0 %2610
      %2612 = vmax.xlane.f32.xlu0 %v2574
      %v2613 = vpop.xlane.xlu0 %2612
      %2614 = vmax.xlane.f32.xlu0 %v2577
      %v2615 = vpop.xlane.xlu0 %2614
      %2616 = vmax.xlane.f32.xlu0 %v2582
      %v2617 = vpop.xlane.xlu0 %2616
      %2618 = vmax.xlane.f32.xlu0 %v2585
      %v2619 = vpop.xlane.xlu0 %2618
      %v2620 = vsub.f32 %v2526, %v2589
      %v2621 = vsub.f32 %v2529, %v2591
      %v2622 = vsub.f32 %v2534, %v2593
      %v2623 = vsub.f32 %v2537, %v2595
      %v2624 = vsub.f32 %v2542, %v2597
      %v2625 = vsub.f32 %v2545, %v2599
      %v2626 = vsub.f32 %v2550, %v2601
      %v2627 = vsub.f32 %v2553, %v2603
      %v2628 = vsub.f32 %v2558, %v2605
      %v2629 = vsub.f32 %v2561, %v2607
      %v2630 = vsub.f32 %v2566, %v2609
      %v2631 = vsub.f32 %v2569, %v2611
      %v2632 = vsub.f32 %v2574, %v2613
      %v2633 = vsub.f32 %v2577, %v2615
      %v2634 = vsub.f32 %v2582, %v2617
      %v2635 = vsub.f32 %v2585, %v2619
      %v2636 = vmul.f32 %v2620, 1.442695
      %v2637 = vpow.pop %v2636
      %v2638 = vmul.f32 %v2621, 1.442695
      %v2639 = vpow.pop %v2638
      %v2640 = vmul.f32 %v2622, 1.442695
      %v2641 = vpow.pop %v2640
      %v2642 = vmul.f32 %v2623, 1.442695
      %v2643 = vpow.pop %v2642
      %v2644 = vmul.f32 %v2624, 1.442695
      %v2645 = vpow.pop %v2644
      %v2646 = vmul.f32 %v2625, 1.442695
      %v2647 = vpow.pop %v2646
      %v2648 = vmul.f32 %v2626, 1.442695
      %v2649 = vpow.pop %v2648
      %v2650 = vmul.f32 %v2627, 1.442695
      %v2651 = vpow.pop %v2650
      %v2652 = vmul.f32 %v2628, 1.442695
      %v2653 = vpow.pop %v2652
      %v2654 = vmul.f32 %v2629, 1.442695
      %v2655 = vpow.pop %v2654
      %v2656 = vmul.f32 %v2630, 1.442695
      %v2657 = vpow.pop %v2656
      %v2658 = vmul.f32 %v2631, 1.442695
      %v2659 = vpow.pop %v2658
      %v2660 = vmul.f32 %v2632, 1.442695
      %v2661 = vpow.pop %v2660
      %v2662 = vmul.f32 %v2633, 1.442695
      %v2663 = vpow.pop %v2662
      %v2664 = vmul.f32 %v2634, 1.442695
      %v2665 = vpow.pop %v2664
      %v2666 = vmul.f32 %v2635, 1.442695
      %v2667 = vpow.pop %v2666
      %2668 = vadd.xlane.f32.xlu0 %v2637
      %v2669 = vpop.xlane.xlu0 %2668
      %2670 = vadd.xlane.f32.xlu0 %v2639
      %v2671 = vpop.xlane.xlu0 %2670
      %2672 = vadd.xlane.f32.xlu0 %v2641
      %v2673 = vpop.xlane.xlu0 %2672
      %2674 = vadd.xlane.f32.xlu0 %v2643
      %v2675 = vpop.xlane.xlu0 %2674
      %2676 = vadd.xlane.f32.xlu0 %v2645
      %v2677 = vpop.xlane.xlu0 %2676
      %2678 = vadd.xlane.f32.xlu0 %v2647
      %v2679 = vpop.xlane.xlu0 %2678
      %2680 = vadd.xlane.f32.xlu0 %v2649
      %v2681 = vpop.xlane.xlu0 %2680
      %2682 = vadd.xlane.f32.xlu0 %v2651
      %v2683 = vpop.xlane.xlu0 %2682
      %2684 = vadd.xlane.f32.xlu0 %v2653
      %v2685 = vpop.xlane.xlu0 %2684
      %2686 = vadd.xlane.f32.xlu0 %v2655
      %v2687 = vpop.xlane.xlu0 %2686
      %2688 = vadd.xlane.f32.xlu0 %v2657
      %v2689 = vpop.xlane.xlu0 %2688
      %2690 = vadd.xlane.f32.xlu0 %v2659
      %v2691 = vpop.xlane.xlu0 %2690
      %2692 = vadd.xlane.f32.xlu0 %v2661
      %v2693 = vpop.xlane.xlu0 %2692
      %2694 = vadd.xlane.f32.xlu0 %v2663
      %v2695 = vpop.xlane.xlu0 %2694
      %2696 = vadd.xlane.f32.xlu0 %v2665
      %v2697 = vpop.xlane.xlu0 %2696
      %2698 = vadd.xlane.f32.xlu0 %v2667
      %v2699 = vpop.xlane.xlu0 %2698
      %v2700 = vrcp.pop %v2669
      %v2701 = vrcp.pop %v2671
      %v2702 = vrcp.pop %v2673
      %v2703 = vrcp.pop %v2675
      %v2704 = vrcp.pop %v2677
      %v2705 = vrcp.pop %v2679
      %v2706 = vrcp.pop %v2681
      %v2707 = vrcp.pop %v2683
      %v2708 = vrcp.pop %v2685
      %v2709 = vrcp.pop %v2687
      %v2710 = vrcp.pop %v2689
      %v2711 = vrcp.pop %v2691
      %v2712 = vrcp.pop %v2693
      %v2713 = vrcp.pop %v2695
      %v2714 = vrcp.pop %v2697
      %v2715 = vrcp.pop %v2699
      %v2716 = vmul.f32 %v2637, %v2700
      %v2717 = vmul.f32 %v2639, %v2701
      %v2718 = vmul.f32 %v2641, %v2702
      %v2719 = vmul.f32 %v2643, %v2703
      %v2720 = vmul.f32 %v2645, %v2704
      %v2721 = vmul.f32 %v2647, %v2705
      %v2722 = vmul.f32 %v2649, %v2706
      %v2723 = vmul.f32 %v2651, %v2707
      %v2724 = vmul.f32 %v2653, %v2708
      %v2725 = vmul.f32 %v2655, %v2709
      %v2726 = vmul.f32 %v2657, %v2710
      %v2727 = vmul.f32 %v2659, %v2711
      %v2728 = vmul.f32 %v2661, %v2712
      %v2729 = vmul.f32 %v2663, %v2713
      %v2730 = vmul.f32 %v2665, %v2714
      %v2731 = vmul.f32 %v2667, %v2715
      %v2732 = vpack.c.bf16 %v2717, %v2716
      %v2733 = vpack.c.bf16 %v2719, %v2718
      %v2734 = vpack.c.bf16 %v2721, %v2720
      %v2735 = vpack.c.bf16 %v2723, %v2722
      %v2736 = vpack.c.bf16 %v2725, %v2724
      %v2737 = vpack.c.bf16 %v2727, %v2726
      %v2738 = vpack.c.bf16 %v2729, %v2728
      %v2739 = vpack.c.bf16 %v2731, %v2730
      %2740 = vrot.lane.b32.xlu0 %v1518, 64
      %v2741 = vpop.permute.xlu0 %2740
      %2742 = vrot.lane.b32.xlu0 %v1519, 64
      %v2743 = vpop.permute.xlu0 %2742
      %2744 = vrot.lane.b32.xlu0 %v1520, 64
      %v2745 = vpop.permute.xlu0 %2744
      %2746 = vrot.lane.b32.xlu0 %v1521, 64
      %v2747 = vpop.permute.xlu0 %2746
      %2748 = vrot.lane.b32.xlu0 %v1522, 64
      %v2749 = vpop.permute.xlu0 %2748
      %2750 = vrot.lane.b32.xlu0 %v1523, 64
      %v2751 = vpop.permute.xlu0 %2750
      %2752 = vrot.lane.b32.xlu0 %v1524, 64
      %v2753 = vpop.permute.xlu0 %2752
      %2754 = vrot.lane.b32.xlu0 %v1525, 64
      %v2755 = vpop.permute.xlu0 %2754
      %2764 = vmatprep.subr.bf16.mxu0 0
      %2765 = vmatpush1.bf16.msra.mxu0 %v2741
      %2766 = vmatprep.subr.bf16.mxu0 0
      %2767 = vmatpush1.bf16.msra.mxu0 %v2743
      %2768 = vmatprep.subr.bf16.mxu0 0
      %2769 = vmatpush1.bf16.msra.mxu0 %v2745
      %2770 = vmatprep.subr.bf16.mxu0 0
      %2771 = vmatpush1.bf16.msra.mxu0 %v2747
      %2772 = vmatprep.subr.bf16.mxu0 0
      %2773 = vmatpush1.bf16.msra.mxu0 %v2749
      %2774 = vmatprep.subr.bf16.mxu0 0
      %2775 = vmatpush1.bf16.msra.mxu0 %v2751
      %2776 = vmatprep.subr.bf16.mxu0 0
      %2777 = vmatpush1.bf16.msra.mxu0 %v2753
      %2778 = vmatprep.subr.bf16.mxu0 0
      %2779 = vmatpush1.bf16.msra.mxu0 %v2755
      %2780 = vmatprep.subr.bf16.mxu0 0
      %2781 = vmatpush1.bf16.msra.mxu0 0
      %2782 = vmatprep.subr.bf16.mxu0 0
      %2783 = vmatpush1.bf16.msra.mxu0 0
      %2784 = vmatprep.subr.bf16.mxu0 0
      %2785 = vmatpush1.bf16.msra.mxu0 0
      %2786 = vmatprep.subr.bf16.mxu0 0
      %2787 = vmatpush1.bf16.msra.mxu0 0
      %2788 = vmatprep.subr.bf16.mxu0 0
      %2789 = vmatpush1.bf16.msra.mxu0 0
      %2790 = vmatprep.subr.bf16.mxu0 0
      %2791 = vmatpush1.bf16.msra.mxu0 0
      %2792 = vmatprep.subr.bf16.mxu0 0
      %2793 = vmatpush1.bf16.msra.mxu0 0
      %2794 = vmatprep.subr.bf16.mxu0 0
      %2795 = vmatpush1.bf16.msra.mxu0 0
      %2796 = vmatprep.mubr.bf16.mxu0 0
      %2797 = vmatmul.mubr.bf16.gmra.mrb[0].mxu0 %v2732
      %v2798 = vpop.f32.mrb[0].mxu0
      %v2799 = vadd.f32 0.0, %v2798
      %v2800 = vpop.f32.mrb[0].mxu0
      %v2801 = vpop.f32.mrb[0].mxu0
      %v2802 = vadd.f32 0.0, %v2801
      %v2803 = vpop.f32.mrb[0].mxu0
      %2804 = vmatprep.mubr.bf16.mxu0 0
      %2805 = vmatmul.mubr.bf16.gmra.mrb[0].mxu0 %v2733
      %v2806 = vpop.f32.mrb[0].mxu0
      %v2807 = vadd.f32 0.0, %v2806
      %v2808 = vpop.f32.mrb[0].mxu0
      %v2809 = vpop.f32.mrb[0].mxu0
      %v2810 = vadd.f32 0.0, %v2809
      %v2811 = vpop.f32.mrb[0].mxu0
      %2812 = vmatprep.mubr.bf16.mxu0 0
      %2813 = vmatmul.mubr.bf16.gmra.mrb[0].mxu0 %v2734
      %v2814 = vpop.f32.mrb[0].mxu0
      %v2815 = vadd.f32 0.0, %v2814
      %v2816 = vpop.f32.mrb[0].mxu0
      %v2817 = vpop.f32.mrb[0].mxu0
      %v2818 = vadd.f32 0.0, %v2817
      %v2819 = vpop.f32.mrb[0].mxu0
      %2820 = vmatprep.mubr.bf16.mxu0 0
      %2821 = vmatmul.mubr.bf16.gmra.mrb[0].mxu0 %v2735
      %v2822 = vpop.f32.mrb[0].mxu0
      %v2823 = vadd.f32 0.0, %v2822
      %v2824 = vpop.f32.mrb[0].mxu0
      %v2825 = vpop.f32.mrb[0].mxu0
      %v2826 = vadd.f32 0.0, %v2825
      %v2827 = vpop.f32.mrb[0].mxu0
      %2828 = vmatprep.mubr.bf16.mxu0 0
      %2829 = vmatmul.mubr.bf16.gmra.mrb[0].mxu0 %v2736
      %v2830 = vpop.f32.mrb[0].mxu0
      %v2831 = vadd.f32 0.0, %v2830
      %v2832 = vpop.f32.mrb[0].mxu0
      %v2833 = vpop.f32.mrb[0].mxu0
      %v2834 = vadd.f32 0.0, %v2833
      %v2835 = vpop.f32.mrb[0].mxu0
      %2836 = vmatprep.mubr.bf16.mxu0 0
      %2837 = vmatmul.mubr.bf16.gmra.mrb[0].mxu0 %v2737
      %v2838 = vpop.f32.mrb[0].mxu0
      %v2839 = vadd.f32 0.0, %v2838
      %v2840 = vpop.f32.mrb[0].mxu0
      %v2841 = vpop.f32.mrb[0].mxu0
      %v2842 = vadd.f32 0.0, %v2841
      %v2843 = vpop.f32.mrb[0].mxu0
      %2844 = vmatprep.mubr.bf16.mxu0 0
      %2845 = vmatmul.mubr.bf16.gmra.mrb[0].mxu0 %v2738
      %v2846 = vpop.f32.mrb[0].mxu0
      %v2847 = vadd.f32 0.0, %v2846
      %v2848 = vpop.f32.mrb[0].mxu0
      %v2849 = vpop.f32.mrb[0].mxu0
      %v2850 = vadd.f32 0.0, %v2849
      %v2851 = vpop.f32.mrb[0].mxu0
      %2852 = vmatprep.mubr.bf16.mxu0 0
      %2853 = vmatmul.mubr.bf16.gmra.mrb[0].mxu0 %v2739
      %v2854 = vpop.f32.mrb[0].mxu0
      %v2855 = vadd.f32 0.0, %v2854
      %v2856 = vpop.f32.mrb[0].mxu0
      %v2857 = vpop.f32.mrb[0].mxu0
      %v2858 = vadd.f32 0.0, %v2857
      %v2859 = vpop.f32.mrb[0].mxu0
      %2860 = vdwg.mxu0
      %v2861 = vpack.c.bf16 %v2802, %v2799
      %v2862 = vpack.c.bf16 %v2810, %v2807
      %v2863 = vpack.c.bf16 %v2818, %v2815
      %v2864 = vpack.c.bf16 %v2826, %v2823
      %v2865 = vpack.c.bf16 %v2834, %v2831
      %v2866 = vpack.c.bf16 %v2842, %v2839
      %v2867 = vpack.c.bf16 %v2850, %v2847
      %v2868 = vpack.c.bf16 %v2858, %v2855
      %2869 = vrot.lane.b32.xlu0 %v1502, 32
      %v2870 = vpop.permute.xlu0 %2869
      %2871 = vrot.lane.b32.xlu0 %v1503, 32
      %v2872 = vpop.permute.xlu0 %2871
      %2873 = vrot.lane.b32.xlu0 %v1504, 32
      %v2874 = vpop.permute.xlu0 %2873
      %2875 = vrot.lane.b32.xlu0 %v1505, 32
      %v2876 = vpop.permute.xlu0 %2875
      %2877 = vrot.lane.b32.xlu0 %v1506, 32
      %v2878 = vpop.permute.xlu0 %2877
      %2879 = vrot.lane.b32.xlu0 %v1507, 32
      %v2880 = vpop.permute.xlu0 %2879
      %2881 = vrot.lane.b32.xlu0 %v1508, 32
      %v2882 = vpop.permute.xlu0 %2881
      %2883 = vrot.lane.b32.xlu0 %v1509, 32
      %v2884 = vpop.permute.xlu0 %2883
      %2885 = vrot.lane.b32.xlu0 %v1510, 32
      %v2886 = vpop.permute.xlu0 %2885
      %2887 = vrot.lane.b32.xlu0 %v1511, 32
      %v2888 = vpop.permute.xlu0 %2887
      %2889 = vrot.lane.b32.xlu0 %v1512, 32
      %v2890 = vpop.permute.xlu0 %2889
      %2891 = vrot.lane.b32.xlu0 %v1513, 32
      %v2892 = vpop.permute.xlu0 %2891
      %2893 = vrot.lane.b32.xlu0 %v1514, 32
      %v2894 = vpop.permute.xlu0 %2893
      %2895 = vrot.lane.b32.xlu0 %v1515, 32
      %v2896 = vpop.permute.xlu0 %2895
      %2897 = vrot.lane.b32.xlu0 %v1516, 32
      %v2898 = vpop.permute.xlu0 %2897
      %2899 = vrot.lane.b32.xlu0 %v1517, 32
      %v2900 = vpop.permute.xlu0 %2899
      %v2902 = vsel %vm1526, %v2870, 0
      %v2905 = vsel %vm1526, %v2872, 0
      %v2908 = vsel %vm1526, %v2874, 0
      %v2911 = vsel %vm1526, %v2876, 0
      %v2914 = vsel %vm1526, %v2878, 0
      %v2917 = vsel %vm1526, %v2880, 0
      %v2920 = vsel %vm1526, %v2882, 0
      %v2923 = vsel %vm1526, %v2884, 0
      %v2926 = vsel %vm1526, %v2886, 0
      %v2929 = vsel %vm1526, %v2888, 0
      %v2932 = vsel %vm1526, %v2890, 0
      %v2935 = vsel %vm1526, %v2892, 0
      %v2938 = vsel %vm1526, %v2894, 0
      %v2941 = vsel %vm1526, %v2896, 0
      %v2944 = vsel %vm1526, %v2898, 0
      %v2947 = vsel %vm1526, %v2900, 0
      %2949 = vmatprep.subr.bf16.mxu0 0
      %2950 = vmatpush1.bf16.xpose.msra.mxu0 %v2926
      %2951 = vmatprep.subr.bf16.mxu0 0
      %2952 = vmatpush1.bf16.xpose.msra.mxu0 %v2929
      %2953 = vmatprep.subr.bf16.mxu0 0
      %2954 = vmatpush1.bf16.xpose.msra.mxu0 %v2932
      %2955 = vmatprep.subr.bf16.mxu0 0
      %2956 = vmatpush1.bf16.xpose.msra.mxu0 %v2935
      %2957 = vmatprep.subr.bf16.mxu0 0
      %2958 = vmatpush1.bf16.xpose.msra.mxu0 %v2938
      %2959 = vmatprep.subr.bf16.mxu0 0
      %2960 = vmatpush1.bf16.xpose.msra.mxu0 %v2941
      %2961 = vmatprep.subr.bf16.mxu0 0
      %2962 = vmatpush1.bf16.xpose.msra.mxu0 %v2944
      %2963 = vmatprep.subr.bf16.mxu0 0
      %2964 = vmatpush1.bf16.xpose.msra.mxu0 %v2947
      %2965 = vmatprep.subr.bf16.mxu0 0
      %2966 = vmatpush1.bf16.xpose.msra.mxu0 0
      %2967 = vmatprep.subr.bf16.mxu0 0
      %2968 = vmatpush1.bf16.xpose.msra.mxu0 0
      %2969 = vmatprep.subr.bf16.mxu0 0
      %2970 = vmatpush1.bf16.xpose.msra.mxu0 0
      %2971 = vmatprep.subr.bf16.mxu0 0
      %2972 = vmatpush1.bf16.xpose.msra.mxu0 0
      %2973 = vmatprep.subr.bf16.mxu0 0
      %2974 = vmatpush1.bf16.xpose.msra.mxu0 0
      %2975 = vmatprep.subr.bf16.mxu0 0
      %2976 = vmatpush1.bf16.xpose.msra.mxu0 0
      %2977 = vmatprep.subr.bf16.mxu0 0
      %2978 = vmatpush1.bf16.xpose.msra.mxu0 0
      %2979 = vmatprep.subr.bf16.mxu0 0
      %2980 = vmatpush1.bf16.xpose.msra.mxu0 0
      %2981 = vmatprep.mubr.bf16.mxu0 0
      %2982 = vmatmul.mubr.bf16.gmra.mrb[0].mxu0 %v2902
      %v2983 = vpop.f32.mrb[0].mxu0
      %v2984 = vadd.f32 %v1501, %v2983
      %v2985 = vpop.f32.mrb[0].mxu0
      %v2986 = vpop.f32.mrb[0].mxu0
      %v2987 = vadd.f32 %v1501, %v2986
      %v2988 = vpop.f32.mrb[0].mxu0
      %2989 = vmatprep.mubr.bf16.mxu0 0
      %2990 = vmatmul.mubr.bf16.gmra.mrb[0].mxu0 %v2905
      %v2991 = vpop.f32.mrb[0].mxu0
      %v2992 = vadd.f32 %v1501, %v2991
      %v2993 = vpop.f32.mrb[0].mxu0
      %v2994 = vpop.f32.mrb[0].mxu0
      %v2995 = vadd.f32 %v1501, %v2994
      %v2996 = vpop.f32.mrb[0].mxu0
      %2997 = vmatprep.mubr.bf16.mxu0 0
      %2998 = vmatmul.mubr.bf16.gmra.mrb[0].mxu0 %v2908
      %v2999 = vpop.f32.mrb[0].mxu0
      %v3000 = vadd.f32 %v1501, %v2999
      %v3001 = vpop.f32.mrb[0].mxu0
      %v3002 = vpop.f32.mrb[0].mxu0
      %v3003 = vadd.f32 %v1501, %v3002
      %v3004 = vpop.f32.mrb[0].mxu0
      %3005 = vmatprep.mubr.bf16.mxu0 0
      %3006 = vmatmul.mubr.bf16.gmra.mrb[0].mxu0 %v2911
      %v3007 = vpop.f32.mrb[0].mxu0
      %v3008 = vadd.f32 %v1501, %v3007
      %v3009 = vpop.f32.mrb[0].mxu0
      %v3010 = vpop.f32.mrb[0].mxu0
      %v3011 = vadd.f32 %v1501, %v3010
      %v3012 = vpop.f32.mrb[0].mxu0
      %3013 = vmatprep.mubr.bf16.mxu0 0
      %3014 = vmatmul.mubr.bf16.gmra.mrb[0].mxu0 %v2914
      %v3015 = vpop.f32.mrb[0].mxu0
      %v3016 = vadd.f32 %v1501, %v3015
      %v3017 = vpop.f32.mrb[0].mxu0
      %v3018 = vpop.f32.mrb[0].mxu0
      %v3019 = vadd.f32 %v1501, %v3018
      %v3020 = vpop.f32.mrb[0].mxu0
      %3021 = vmatprep.mubr.bf16.mxu0 0
      %3022 = vmatmul.mubr.bf16.gmra.mrb[0].mxu0 %v2917
      %v3023 = vpop.f32.mrb[0].mxu0
      %v3024 = vadd.f32 %v1501, %v3023
      %v3025 = vpop.f32.mrb[0].mxu0
      %v3026 = vpop.f32.mrb[0].mxu0
      %v3027 = vadd.f32 %v1501, %v3026
      %v3028 = vpop.f32.mrb[0].mxu0
      %3029 = vmatprep.mubr.bf16.mxu0 0
      %3030 = vmatmul.mubr.bf16.gmra.mrb[0].mxu0 %v2920
      %v3031 = vpop.f32.mrb[0].mxu0
      %v3032 = vadd.f32 %v1501, %v3031
      %v3033 = vpop.f32.mrb[0].mxu0
      %v3034 = vpop.f32.mrb[0].mxu0
      %v3035 = vadd.f32 %v1501, %v3034
      %v3036 = vpop.f32.mrb[0].mxu0
      %3037 = vmatprep.mubr.bf16.mxu0 0
      %3038 = vmatmul.mubr.bf16.gmra.mrb[0].mxu0 %v2923
      %v3039 = vpop.f32.mrb[0].mxu0
      %v3040 = vadd.f32 %v1501, %v3039
      %v3041 = vpop.f32.mrb[0].mxu0
      %v3042 = vpop.f32.mrb[0].mxu0
      %v3043 = vadd.f32 %v1501, %v3042
      %v3044 = vpop.f32.mrb[0].mxu0
      %3045 = vdwg.mxu0
      %3046 = vmax.xlane.f32.xlu0 %v2984
      %v3047 = vpop.xlane.xlu0 %3046
      %3048 = vmax.xlane.f32.xlu0 %v2987
      %v3049 = vpop.xlane.xlu0 %3048
      %3050 = vmax.xlane.f32.xlu0 %v2992
      %v3051 = vpop.xlane.xlu0 %3050
      %3052 = vmax.xlane.f32.xlu0 %v2995
      %v3053 = vpop.xlane.xlu0 %3052
      %3054 = vmax.xlane.f32.xlu0 %v3000
      %v3055 = vpop.xlane.xlu0 %3054
      %3056 = vmax.xlane.f32.xlu0 %v3003
      %v3057 = vpop.xlane.xlu0 %3056
      %3058 = vmax.xlane.f32.xlu0 %v3008
      %v3059 = vpop.xlane.xlu0 %3058
      %3060 = vmax.xlane.f32.xlu0 %v3011
      %v3061 = vpop.xlane.xlu0 %3060
      %3062 = vmax.xlane.f32.xlu0 %v3016
      %v3063 = vpop.xlane.xlu0 %3062
      %3064 = vmax.xlane.f32.xlu0 %v3019
      %v3065 = vpop.xlane.xlu0 %3064
      %3066 = vmax.xlane.f32.xlu0 %v3024
      %v3067 = vpop.xlane.xlu0 %3066
      %3068 = vmax.xlane.f32.xlu0 %v3027
      %v3069 = vpop.xlane.xlu0 %3068
      %3070 = vmax.xlane.f32.xlu0 %v3032
      %v3071 = vpop.xlane.xlu0 %3070
      %3072 = vmax.xlane.f32.xlu0 %v3035
      %v3073 = vpop.xlane.xlu0 %3072
      %3074 = vmax.xlane.f32.xlu0 %v3040
      %v3075 = vpop.xlane.xlu0 %3074
      %3076 = vmax.xlane.f32.xlu0 %v3043
      %v3077 = vpop.xlane.xlu0 %3076
      %v3078 = vsub.f32 %v2984, %v3047
      %v3079 = vsub.f32 %v2987, %v3049
      %v3080 = vsub.f32 %v2992, %v3051
      %v3081 = vsub.f32 %v2995, %v3053
      %v3082 = vsub.f32 %v3000, %v3055
      %v3083 = vsub.f32 %v3003, %v3057
      %v3084 = vsub.f32 %v3008, %v3059
      %v3085 = vsub.f32 %v3011, %v3061
      %v3086 = vsub.f32 %v3016, %v3063
      %v3087 = vsub.f32 %v3019, %v3065
      %v3088 = vsub.f32 %v3024, %v3067
      %v3089 = vsub.f32 %v3027, %v3069
      %v3090 = vsub.f32 %v3032, %v3071
      %v3091 = vsub.f32 %v3035, %v3073
      %v3092 = vsub.f32 %v3040, %v3075
      %v3093 = vsub.f32 %v3043, %v3077
      %v3094 = vmul.f32 %v3078, 1.442695
      %v3095 = vpow.pop %v3094
      %v3096 = vmul.f32 %v3079, 1.442695
      %v3097 = vpow.pop %v3096
      %v3098 = vmul.f32 %v3080, 1.442695
      %v3099 = vpow.pop %v3098
      %v3100 = vmul.f32 %v3081, 1.442695
      %v3101 = vpow.pop %v3100
      %v3102 = vmul.f32 %v3082, 1.442695
      %v3103 = vpow.pop %v3102
      %v3104 = vmul.f32 %v3083, 1.442695
      %v3105 = vpow.pop %v3104
      %v3106 = vmul.f32 %v3084, 1.442695
      %v3107 = vpow.pop %v3106
      %v3108 = vmul.f32 %v3085, 1.442695
      %v3109 = vpow.pop %v3108
      %v3110 = vmul.f32 %v3086, 1.442695
      %v3111 = vpow.pop %v3110
      %v3112 = vmul.f32 %v3087, 1.442695
      %v3113 = vpow.pop %v3112
      %v3114 = vmul.f32 %v3088, 1.442695
      %v3115 = vpow.pop %v3114
      %v3116 = vmul.f32 %v3089, 1.442695
      %v3117 = vpow.pop %v3116
      %v3118 = vmul.f32 %v3090, 1.442695
      %v3119 = vpow.pop %v3118
      %v3120 = vmul.f32 %v3091, 1.442695
      %v3121 = vpow.pop %v3120
      %v3122 = vmul.f32 %v3092, 1.442695
      %v3123 = vpow.pop %v3122
      %v3124 = vmul.f32 %v3093, 1.442695
      %v3125 = vpow.pop %v3124
      %3126 = vadd.xlane.f32.xlu0 %v3095
      %v3127 = vpop.xlane.xlu0 %3126
      %3128 = vadd.xlane.f32.xlu0 %v3097
      %v3129 = vpop.xlane.xlu0 %3128
      %3130 = vadd.xlane.f32.xlu0 %v3099
      %v3131 = vpop.xlane.xlu0 %3130
      %3132 = vadd.xlane.f32.xlu0 %v3101
      %v3133 = vpop.xlane.xlu0 %3132
      %3134 = vadd.xlane.f32.xlu0 %v3103
      %v3135 = vpop.xlane.xlu0 %3134
      %3136 = vadd.xlane.f32.xlu0 %v3105
      %v3137 = vpop.xlane.xlu0 %3136
      %3138 = vadd.xlane.f32.xlu0 %v3107
      %v3139 = vpop.xlane.xlu0 %3138
      %3140 = vadd.xlane.f32.xlu0 %v3109
      %v3141 = vpop.xlane.xlu0 %3140
      %3142 = vadd.xlane.f32.xlu0 %v3111
      %v3143 = vpop.xlane.xlu0 %3142
      %3144 = vadd.xlane.f32.xlu0 %v3113
      %v3145 = vpop.xlane.xlu0 %3144
      %3146 = vadd.xlane.f32.xlu0 %v3115
      %v3147 = vpop.xlane.xlu0 %3146
      %3148 = vadd.xlane.f32.xlu0 %v3117
      %v3149 = vpop.xlane.xlu0 %3148
      %3150 = vadd.xlane.f32.xlu0 %v3119
      %v3151 = vpop.xlane.xlu0 %3150
      %3152 = vadd.xlane.f32.xlu0 %v3121
      %v3153 = vpop.xlane.xlu0 %3152
      %3154 = vadd.xlane.f32.xlu0 %v3123
      %v3155 = vpop.xlane.xlu0 %3154
      %3156 = vadd.xlane.f32.xlu0 %v3125
      %v3157 = vpop.xlane.xlu0 %3156
      %v3158 = vrcp.pop %v3127
      %v3159 = vrcp.pop %v3129
      %v3160 = vrcp.pop %v3131
      %v3161 = vrcp.pop %v3133
      %v3162 = vrcp.pop %v3135
      %v3163 = vrcp.pop %v3137
      %v3164 = vrcp.pop %v3139
      %v3165 = vrcp.pop %v3141
      %v3166 = vrcp.pop %v3143
      %v3167 = vrcp.pop %v3145
      %v3168 = vrcp.pop %v3147
      %v3169 = vrcp.pop %v3149
      %v3170 = vrcp.pop %v3151
      %v3171 = vrcp.pop %v3153
      %v3172 = vrcp.pop %v3155
      %v3173 = vrcp.pop %v3157
      %v3174 = vmul.f32 %v3095, %v3158
      %v3175 = vmul.f32 %v3097, %v3159
      %v3176 = vmul.f32 %v3099, %v3160
      %v3177 = vmul.f32 %v3101, %v3161
      %v3178 = vmul.f32 %v3103, %v3162
      %v3179 = vmul.f32 %v3105, %v3163
      %v3180 = vmul.f32 %v3107, %v3164
      %v3181 = vmul.f32 %v3109, %v3165
      %v3182 = vmul.f32 %v3111, %v3166
      %v3183 = vmul.f32 %v3113, %v3167
      %v3184 = vmul.f32 %v3115, %v3168
      %v3185 = vmul.f32 %v3117, %v3169
      %v3186 = vmul.f32 %v3119, %v3170
      %v3187 = vmul.f32 %v3121, %v3171
      %v3188 = vmul.f32 %v3123, %v3172
      %v3189 = vmul.f32 %v3125, %v3173
      %v3190 = vpack.c.bf16 %v3175, %v3174
      %v3191 = vpack.c.bf16 %v3177, %v3176
      %v3192 = vpack.c.bf16 %v3179, %v3178
      %v3193 = vpack.c.bf16 %v3181, %v3180
      %v3194 = vpack.c.bf16 %v3183, %v3182
      %v3195 = vpack.c.bf16 %v3185, %v3184
      %v3196 = vpack.c.bf16 %v3187, %v3186
      %v3197 = vpack.c.bf16 %v3189, %v3188
      %3198 = vrot.lane.b32.xlu0 %v1518, 32
      %v3199 = vpop.permute.xlu0 %3198
      %3200 = vrot.lane.b32.xlu0 %v1519, 32
      %v3201 = vpop.permute.xlu0 %3200
      %3202 = vrot.lane.b32.xlu0 %v1520, 32
      %v3203 = vpop.permute.xlu0 %3202
      %3204 = vrot.lane.b32.xlu0 %v1521, 32
      %v3205 = vpop.permute.xlu0 %3204
      %3206 = vrot.lane.b32.xlu0 %v1522, 32
      %v3207 = vpop.permute.xlu0 %3206
      %3208 = vrot.lane.b32.xlu0 %v1523, 32
      %v3209 = vpop.permute.xlu0 %3208
      %3210 = vrot.lane.b32.xlu0 %v1524, 32
      %v3211 = vpop.permute.xlu0 %3210
      %3212 = vrot.lane.b32.xlu0 %v1525, 32
      %v3213 = vpop.permute.xlu0 %3212
      %3222 = vmatprep.subr.bf16.mxu0 0
      %3223 = vmatpush1.bf16.msra.mxu0 %v3199
      %3224 = vmatprep.subr.bf16.mxu0 0
      %3225 = vmatpush1.bf16.msra.mxu0 %v3201
      %3226 = vmatprep.subr.bf16.mxu0 0
      %3227 = vmatpush1.bf16.msra.mxu0 %v3203
      %3228 = vmatprep.subr.bf16.mxu0 0
      %3229 = vmatpush1.bf16.msra.mxu0 %v3205
      %3230 = vmatprep.subr.bf16.mxu0 0
      %3231 = vmatpush1.bf16.msra.mxu0 %v3207
      %3232 = vmatprep.subr.bf16.mxu0 0
      %3233 = vmatpush1.bf16.msra.mxu0 %v3209
      %3234 = vmatprep.subr.bf16.mxu0 0
      %3235 = vmatpush1.bf16.msra.mxu0 %v3211
      %3236 = vmatprep.subr.bf16.mxu0 0
      %3237 = vmatpush1.bf16.msra.mxu0 %v3213
      %3238 = vmatprep.subr.bf16.mxu0 0
      %3239 = vmatpush1.bf16.msra.mxu0 0
      %3240 = vmatprep.subr.bf16.mxu0 0
      %3241 = vmatpush1.bf16.msra.mxu0 0
      %3242 = vmatprep.subr.bf16.mxu0 0
      %3243 = vmatpush1.bf16.msra.mxu0 0
      %3244 = vmatprep.subr.bf16.mxu0 0
      %3245 = vmatpush1.bf16.msra.mxu0 0
      %3246 = vmatprep.subr.bf16.mxu0 0
      %3247 = vmatpush1.bf16.msra.mxu0 0
      %3248 = vmatprep.subr.bf16.mxu0 0
      %3249 = vmatpush1.bf16.msra.mxu0 0
      %3250 = vmatprep.subr.bf16.mxu0 0
      %3251 = vmatpush1.bf16.msra.mxu0 0
      %3252 = vmatprep.subr.bf16.mxu0 0
      %3253 = vmatpush1.bf16.msra.mxu0 0
      %3254 = vmatprep.mubr.bf16.mxu0 0
      %3255 = vmatmul.mubr.bf16.gmra.mrb[0].mxu0 %v3190
      %v3256 = vpop.f32.mrb[0].mxu0
      %v3257 = vadd.f32 0.0, %v3256
      %v3258 = vpop.f32.mrb[0].mxu0
      %v3259 = vpop.f32.mrb[0].mxu0
      %v3260 = vadd.f32 0.0, %v3259
      %v3261 = vpop.f32.mrb[0].mxu0
      %3262 = vmatprep.mubr.bf16.mxu0 0
      %3263 = vmatmul.mubr.bf16.gmra.mrb[0].mxu0 %v3191
      %v3264 = vpop.f32.mrb[0].mxu0
      %v3265 = vadd.f32 0.0, %v3264
      %v3266 = vpop.f32.mrb[0].mxu0
      %v3267 = vpop.f32.mrb[0].mxu0
      %v3268 = vadd.f32 0.0, %v3267
      %v3269 = vpop.f32.mrb[0].mxu0
      %3270 = vmatprep.mubr.bf16.mxu0 0
      %3271 = vmatmul.mubr.bf16.gmra.mrb[0].mxu0 %v3192
      %v3272 = vpop.f32.mrb[0].mxu0
      %v3273 = vadd.f32 0.0, %v3272
      %v3274 = vpop.f32.mrb[0].mxu0
      %v3275 = vpop.f32.mrb[0].mxu0
      %v3276 = vadd.f32 0.0, %v3275
      %v3277 = vpop.f32.mrb[0].mxu0
      %3278 = vmatprep.mubr.bf16.mxu0 0
      %3279 = vmatmul.mubr.bf16.gmra.mrb[0].mxu0 %v3193
      %v3280 = vpop.f32.mrb[0].mxu0
      %v3281 = vadd.f32 0.0, %v3280
      %v3282 = vpop.f32.mrb[0].mxu0
      %v3283 = vpop.f32.mrb[0].mxu0
      %v3284 = vadd.f32 0.0, %v3283
      %v3285 = vpop.f32.mrb[0].mxu0
      %3286 = vmatprep.mubr.bf16.mxu0 0
      %3287 = vmatmul.mubr.bf16.gmra.mrb[0].mxu0 %v3194
      %v3288 = vpop.f32.mrb[0].mxu0
      %v3289 = vadd.f32 0.0, %v3288
      %v3290 = vpop.f32.mrb[0].mxu0
      %v3291 = vpop.f32.mrb[0].mxu0
      %v3292 = vadd.f32 0.0, %v3291
      %v3293 = vpop.f32.mrb[0].mxu0
      %3294 = vmatprep.mubr.bf16.mxu0 0
      %3295 = vmatmul.mubr.bf16.gmra.mrb[0].mxu0 %v3195
      %v3296 = vpop.f32.mrb[0].mxu0
      %v3297 = vadd.f32 0.0, %v3296
      %v3298 = vpop.f32.mrb[0].mxu0
      %v3299 = vpop.f32.mrb[0].mxu0
      %v3300 = vadd.f32 0.0, %v3299
      %v3301 = vpop.f32.mrb[0].mxu0
      %3302 = vmatprep.mubr.bf16.mxu0 0
      %3303 = vmatmul.mubr.bf16.gmra.mrb[0].mxu0 %v3196
      %v3304 = vpop.f32.mrb[0].mxu0
      %v3305 = vadd.f32 0.0, %v3304
      %v3306 = vpop.f32.mrb[0].mxu0
      %v3307 = vpop.f32.mrb[0].mxu0
      %v3308 = vadd.f32 0.0, %v3307
      %v3309 = vpop.f32.mrb[0].mxu0
      %3310 = vmatprep.mubr.bf16.mxu0 0
      %3311 = vmatmul.mubr.bf16.gmra.mrb[0].mxu0 %v3197
      %v3312 = vpop.f32.mrb[0].mxu0
      %v3313 = vadd.f32 0.0, %v3312
      %v3314 = vpop.f32.mrb[0].mxu0
      %v3315 = vpop.f32.mrb[0].mxu0
      %v3316 = vadd.f32 0.0, %v3315
      %v3317 = vpop.f32.mrb[0].mxu0
      %3318 = vdwg.mxu0
      %v3319 = vpack.c.bf16 %v3260, %v3257
      %v3320 = vpack.c.bf16 %v3268, %v3265
      %v3321 = vpack.c.bf16 %v3276, %v3273
      %v3322 = vpack.c.bf16 %v3284, %v3281
      %v3323 = vpack.c.bf16 %v3292, %v3289
      %v3324 = vpack.c.bf16 %v3300, %v3297
      %v3325 = vpack.c.bf16 %v3308, %v3305
      %v3326 = vpack.c.bf16 %v3316, %v3313
      %3335 = vrot.lane.b32.xlu0 %v2403, 32
      %v3336 = vpop.permute.xlu0 %3335
      %3337 = vrot.lane.b32.xlu0 %v2404, 32
      %v3338 = vpop.permute.xlu0 %3337
      %3339 = vrot.lane.b32.xlu0 %v2405, 32
      %v3340 = vpop.permute.xlu0 %3339
      %3341 = vrot.lane.b32.xlu0 %v2406, 32
      %v3342 = vpop.permute.xlu0 %3341
      %3343 = vrot.lane.b32.xlu0 %v2407, 32
      %v3344 = vpop.permute.xlu0 %3343
      %3345 = vrot.lane.b32.xlu0 %v2408, 32
      %v3346 = vpop.permute.xlu0 %3345
      %3347 = vrot.lane.b32.xlu0 %v2409, 32
      %v3348 = vpop.permute.xlu0 %3347
      %3349 = vrot.lane.b32.xlu0 %v2410, 32
      %v3350 = vpop.permute.xlu0 %3349
      %3359 = vrot.lane.b32.xlu0 %v2861, 64
      %v3360 = vpop.permute.xlu0 %3359
      %3361 = vrot.lane.b32.xlu0 %v2862, 64
      %v3362 = vpop.permute.xlu0 %3361
      %3363 = vrot.lane.b32.xlu0 %v2863, 64
      %v3364 = vpop.permute.xlu0 %3363
      %3365 = vrot.lane.b32.xlu0 %v2864, 64
      %v3366 = vpop.permute.xlu0 %3365
      %3367 = vrot.lane.b32.xlu0 %v2865, 64
      %v3368 = vpop.permute.xlu0 %3367
      %3369 = vrot.lane.b32.xlu0 %v2866, 64
      %v3370 = vpop.permute.xlu0 %3369
      %3371 = vrot.lane.b32.xlu0 %v2867, 64
      %v3372 = vpop.permute.xlu0 %3371
      %3373 = vrot.lane.b32.xlu0 %v2868, 64
      %v3374 = vpop.permute.xlu0 %3373
      %3383 = vrot.lane.b32.xlu0 %v3319, 96
      %v3384 = vpop.permute.xlu0 %3383
      %3385 = vrot.lane.b32.xlu0 %v3320, 96
      %v3386 = vpop.permute.xlu0 %3385
      %3387 = vrot.lane.b32.xlu0 %v3321, 96
      %v3388 = vpop.permute.xlu0 %3387
      %3389 = vrot.lane.b32.xlu0 %v3322, 96
      %v3390 = vpop.permute.xlu0 %3389
      %3391 = vrot.lane.b32.xlu0 %v3323, 96
      %v3392 = vpop.permute.xlu0 %3391
      %3393 = vrot.lane.b32.xlu0 %v3324, 96
      %v3394 = vpop.permute.xlu0 %3393
      %3395 = vrot.lane.b32.xlu0 %v3325, 96
      %v3396 = vpop.permute.xlu0 %3395
      %3397 = vrot.lane.b32.xlu0 %v3326, 96
      %v3398 = vpop.permute.xlu0 %3397
      %v3401 = vsel %vm1526, %v1921, %v3336
      %v3404 = vsel %vm1526, %v1922, %v3338
      %v3407 = vsel %vm1526, %v1923, %v3340
      %v3410 = vsel %vm1526, %v1924, %v3342
      %v3413 = vsel %vm1526, %v1925, %v3344
      %v3416 = vsel %vm1526, %v1926, %v3346
      %v3419 = vsel %vm1526, %v1927, %v3348
      %v3422 = vsel %vm1526, %v1928, %v3350
      %v3424 = vsel %vm726, %v3401, %v3360
      %v3426 = vsel %vm726, %v3404, %v3362
      %v3428 = vsel %vm726, %v3407, %v3364
      %v3430 = vsel %vm726, %v3410, %v3366
      %v3432 = vsel %vm726, %v3413, %v3368
      %v3434 = vsel %vm726, %v3416, %v3370
      %v3436 = vsel %vm726, %v3419, %v3372
      %v3438 = vsel %vm726, %v3422, %v3374
      %vm3439 = vcmask 785408
      %v3441 = vsel %vm3439, %v3424, %v3384
      %v3444 = vsel %vm3439, %v3426, %v3386
      %v3447 = vsel %vm3439, %v3428, %v3388
      %v3450 = vsel %vm3439, %v3430, %v3390
      %v3453 = vsel %vm3439, %v3432, %v3392
      %v3456 = vsel %vm3439, %v3434, %v3394
      %v3459 = vsel %vm3439, %v3436, %v3396
      %v3462 = vsel %vm3439, %v3438, %v3398
      %3464 = vst [vmem:[#allocation2] sm:$0xff] %v3441
      %3465 = vst [vmem:[#allocation2 + $0x8] sm:$0xff] %v3444
      %3466 = vst [vmem:[#allocation2 + $0x10] sm:$0xff] %v3447
      %3467 = vst [vmem:[#allocation2 + $0x18] sm:$0xff] %v3450
      %3468 = vst [vmem:[#allocation2 + $0x20] sm:$0xff] %v3453
      %3469 = vst [vmem:[#allocation2 + $0x28] sm:$0xff] %v3456
      %3470 = vst [vmem:[#allocation2 + $0x30] sm:$0xff] %v3459
      %3471 = vst [vmem:[#allocation2 + $0x38] sm:$0xff] %v3462
      %v3472 = vld [vmem:[#allocation2] sm:$0xff]
      %v3473 = vld [vmem:[#allocation2 + $0x8] sm:$0xff]
      %v3474 = vld [vmem:[#allocation2 + $0x10] sm:$0xff]
      %v3475 = vld [vmem:[#allocation2 + $0x18] sm:$0xff]
      %v3476 = vld [vmem:[#allocation2 + $0x20] sm:$0xff]
      %v3477 = vld [vmem:[#allocation2 + $0x28] sm:$0xff]
      %v3478 = vld [vmem:[#allocation2 + $0x30] sm:$0xff]
      %v3479 = vld [vmem:[#allocation2 + $0x38] sm:$0xff]
      %v3480 = vld [vmem:[%s8] sm:$0xf]
      %v3481 = vld [vmem:[%s8 + $0x4] sm:$0xf]
      %v3482 = vld [vmem:[%s8 + $0x8] sm:$0xf]
      %v3483 = vld [vmem:[%s8 + $0xc] sm:$0xf]
      %v3484 = vld [vmem:[%s8 + $0x10] sm:$0xf]
      %v3485 = vld [vmem:[%s8 + $0x14] sm:$0xf]
      %v3486 = vld [vmem:[%s8 + $0x18] sm:$0xf]
      %v3487 = vld [vmem:[%s8 + $0x1c] sm:$0xf]
      %v3488 = vld [vmem:[%s8 + $0x20] sm:$0xf]
      %v3489 = vld [vmem:[%s8 + $0x24] sm:$0xf]
      %v3490 = vld [vmem:[%s8 + $0x28] sm:$0xf]
      %v3491 = vld [vmem:[%s8 + $0x2c] sm:$0xf]
      %v3492 = vld [vmem:[%s8 + $0x30] sm:$0xf]
      %v3493 = vld [vmem:[%s8 + $0x34] sm:$0xf]
      %v3494 = vld [vmem:[%s8 + $0x38] sm:$0xf]
      %v3495 = vld [vmem:[%s8 + $0x3c] sm:$0xf]
      %v3496 = vld [vmem:[%s9] sm:$0x1]
      %v3498 = vlaneseq
      %v3499 = vshrl.u32 %v3498, 7
      %v3500 = vsub.s32 0, %v3499
      %v3501 = vrot.slane %v3496, %v3500
      %v3519 = vunpack.c.l.b16 %v3480
      %v3520 = vunpack.c.l.b16 %v3481
      %v3521 = vunpack.c.l.b16 %v3482
      %v3522 = vunpack.c.l.b16 %v3483
      %v3523 = vunpack.c.l.b16 %v3484
      %v3524 = vunpack.c.l.b16 %v3485
      %v3525 = vunpack.c.l.b16 %v3486
      %v3526 = vunpack.c.l.b16 %v3487
      %v3527 = vunpack.c.l.b16 %v3488
      %v3528 = vunpack.c.l.b16 %v3489
      %v3529 = vunpack.c.l.b16 %v3490
      %v3530 = vunpack.c.l.b16 %v3491
      %v3531 = vunpack.c.l.b16 %v3492
      %v3532 = vunpack.c.l.b16 %v3493
      %v3533 = vunpack.c.l.b16 %v3494
      %v3534 = vunpack.c.l.b16 %v3495
      %v3535 = vpack.c.b16 %v3520, %v3519
      %v3536 = vpack.c.b16 %v3522, %v3521
      %v3537 = vpack.c.b16 %v3524, %v3523
      %v3538 = vpack.c.b16 %v3526, %v3525
      %v3539 = vpack.c.b16 %v3528, %v3527
      %v3540 = vpack.c.b16 %v3530, %v3529
      %v3541 = vpack.c.b16 %v3532, %v3531
      %v3542 = vpack.c.b16 %v3534, %v3533
      %3551 = vmatprep.subr.bf16.mxu0 0
      %3552 = vmatpush1.bf16.msra.mxu0 %v3535
      %3553 = vmatprep.subr.bf16.mxu0 0
      %3554 = vmatpush1.bf16.msra.mxu0 %v3536
      %3555 = vmatprep.subr.bf16.mxu0 0
      %3556 = vmatpush1.bf16.msra.mxu0 %v3537
      %3557 = vmatprep.subr.bf16.mxu0 0
      %3558 = vmatpush1.bf16.msra.mxu0 %v3538
      %3559 = vmatprep.subr.bf16.mxu0 0
      %3560 = vmatpush1.bf16.msra.mxu0 %v3539
      %3561 = vmatprep.subr.bf16.mxu0 0
      %3562 = vmatpush1.bf16.msra.mxu0 %v3540
      %3563 = vmatprep.subr.bf16.mxu0 0
      %3564 = vmatpush1.bf16.msra.mxu0 %v3541
      %3565 = vmatprep.subr.bf16.mxu0 0
      %3566 = vmatpush1.bf16.msra.mxu0 %v3542
      %3567 = vmatprep.subr.bf16.mxu0 0
      %3568 = vmatpush1.bf16.msra.mxu0 0
      %3569 = vmatprep.subr.bf16.mxu0 0
      %3570 = vmatpush1.bf16.msra.mxu0 0
      %3571 = vmatprep.subr.bf16.mxu0 0
      %3572 = vmatpush1.bf16.msra.mxu0 0
      %3573 = vmatprep.subr.bf16.mxu0 0
      %3574 = vmatpush1.bf16.msra.mxu0 0
      %3575 = vmatprep.subr.bf16.mxu0 0
      %3576 = vmatpush1.bf16.msra.mxu0 0
      %3577 = vmatprep.subr.bf16.mxu0 0
      %3578 = vmatpush1.bf16.msra.mxu0 0
      %3579 = vmatprep.subr.bf16.mxu0 0
      %3580 = vmatpush1.bf16.msra.mxu0 0
      %3581 = vmatprep.subr.bf16.mxu0 0
      %3582 = vmatpush1.bf16.msra.mxu0 0
      %3583 = vmatprep.mubr.bf16.mxu0 0
      %3584 = vmatmul.mubr.bf16.gmra.mrb[0].mxu0 %v3472
      %v3585 = vpop.f32.mrb[0].mxu0
      %v3586 = vadd.f32 %v3501, %v3585
      %v3587 = vpop.f32.mrb[0].mxu0
      %v3588 = vpop.f32.mrb[0].mxu0
      %v3589 = vadd.f32 %v3501, %v3588
      %v3590 = vpop.f32.mrb[0].mxu0
      %3591 = vmatprep.mubr.bf16.mxu0 0
      %3592 = vmatmul.mubr.bf16.gmra.mrb[0].mxu0 %v3473
      %v3593 = vpop.f32.mrb[0].mxu0
      %v3594 = vadd.f32 %v3501, %v3593
      %v3595 = vpop.f32.mrb[0].mxu0
      %v3596 = vpop.f32.mrb[0].mxu0
      %v3597 = vadd.f32 %v3501, %v3596
      %v3598 = vpop.f32.mrb[0].mxu0
      %3599 = vmatprep.mubr.bf16.mxu0 0
      %3600 = vmatmul.mubr.bf16.gmra.mrb[0].mxu0 %v3474
      %v3601 = vpop.f32.mrb[0].mxu0
      %v3602 = vadd.f32 %v3501, %v3601
      %v3603 = vpop.f32.mrb[0].mxu0
      %v3604 = vpop.f32.mrb[0].mxu0
      %v3605 = vadd.f32 %v3501, %v3604
      %v3606 = vpop.f32.mrb[0].mxu0
      %3607 = vmatprep.mubr.bf16.mxu0 0
      %3608 = vmatmul.mubr.bf16.gmra.mrb[0].mxu0 %v3475
      %v3609 = vpop.f32.mrb[0].mxu0
      %v3610 = vadd.f32 %v3501, %v3609
      %v3611 = vpop.f32.mrb[0].mxu0
      %v3612 = vpop.f32.mrb[0].mxu0
      %v3613 = vadd.f32 %v3501, %v3612
      %v3614 = vpop.f32.mrb[0].mxu0
      %3615 = vmatprep.mubr.bf16.mxu0 0
      %3616 = vmatmul.mubr.bf16.gmra.mrb[0].mxu0 %v3476
      %v3617 = vpop.f32.mrb[0].mxu0
      %v3618 = vadd.f32 %v3501, %v3617
      %v3619 = vpop.f32.mrb[0].mxu0
      %v3620 = vpop.f32.mrb[0].mxu0
      %v3621 = vadd.f32 %v3501, %v3620
      %v3622 = vpop.f32.mrb[0].mxu0
      %3623 = vmatprep.mubr.bf16.mxu0 0
      %3624 = vmatmul.mubr.bf16.gmra.mrb[0].mxu0 %v3477
      %v3625 = vpop.f32.mrb[0].mxu0
      %v3626 = vadd.f32 %v3501, %v3625
      %v3627 = vpop.f32.mrb[0].mxu0
      %v3628 = vpop.f32.mrb[0].mxu0
      %v3629 = vadd.f32 %v3501, %v3628
      %v3630 = vpop.f32.mrb[0].mxu0
      %3631 = vmatprep.mubr.bf16.mxu0 0
      %3632 = vmatmul.mubr.bf16.gmra.mrb[0].mxu0 %v3478
      %v3633 = vpop.f32.mrb[0].mxu0
      %v3634 = vadd.f32 %v3501, %v3633
      %v3635 = vpop.f32.mrb[0].mxu0
      %v3636 = vpop.f32.mrb[0].mxu0
      %v3637 = vadd.f32 %v3501, %v3636
      %v3638 = vpop.f32.mrb[0].mxu0
      %3639 = vmatprep.mubr.bf16.mxu0 0
      %3640 = vmatmul.mubr.bf16.gmra.mrb[0].mxu0 %v3479
      %v3641 = vpop.f32.mrb[0].mxu0
      %v3642 = vadd.f32 %v3501, %v3641
      %v3643 = vpop.f32.mrb[0].mxu0
      %v3644 = vpop.f32.mrb[0].mxu0
      %v3645 = vadd.f32 %v3501, %v3644
      %v3646 = vpop.f32.mrb[0].mxu0
      %3647 = vdwg.mxu0
      %v3648 = vadd.f32 %v864, %v3586
      %v3649 = vadd.f32 %v865, %v3589
      %v3650 = vadd.f32 %v866, %v3594
      %v3651 = vadd.f32 %v867, %v3597
      %v3652 = vadd.f32 %v868, %v3602
      %v3653 = vadd.f32 %v869, %v3605
      %v3654 = vadd.f32 %v870, %v3610
      %v3655 = vadd.f32 %v871, %v3613
      %v3656 = vadd.f32 %v872, %v3618
      %v3657 = vadd.f32 %v873, %v3621
      %v3658 = vadd.f32 %v874, %v3626
      %v3659 = vadd.f32 %v875, %v3629
      %v3660 = vadd.f32 %v876, %v3634
      %v3661 = vadd.f32 %v877, %v3637
      %v3662 = vadd.f32 %v878, %v3642
      %v3663 = vadd.f32 %v879, %v3645
      %v3664 = vld [vmem:[%s10] sm:$0x1]
      %v3665 = vld [vmem:[%s11] sm:$0x1]
      %3666 = vadd.xlane.f32.xlu0 %v3648
      %v3667 = vpop.xlane.xlu0 %3666
      %3668 = vadd.xlane.f32.xlu0 %v3649
      %v3669 = vpop.xlane.xlu0 %3668
      %3670 = vadd.xlane.f32.xlu0 %v3650
      %v3671 = vpop.xlane.xlu0 %3670
      %3672 = vadd.xlane.f32.xlu0 %v3651
      %v3673 = vpop.xlane.xlu0 %3672
      %3674 = vadd.xlane.f32.xlu0 %v3652
      %v3675 = vpop.xlane.xlu0 %3674
      %3676 = vadd.xlane.f32.xlu0 %v3653
      %v3677 = vpop.xlane.xlu0 %3676
      %3678 = vadd.xlane.f32.xlu0 %v3654
      %v3679 = vpop.xlane.xlu0 %3678
      %3680 = vadd.xlane.f32.xlu0 %v3655
      %v3681 = vpop.xlane.xlu0 %3680
      %3682 = vadd.xlane.f32.xlu0 %v3656
      %v3683 = vpop.xlane.xlu0 %3682
      %3684 = vadd.xlane.f32.xlu0 %v3657
      %v3685 = vpop.xlane.xlu0 %3684
      %3686 = vadd.xlane.f32.xlu0 %v3658
      %v3687 = vpop.xlane.xlu0 %3686
      %3688 = vadd.xlane.f32.xlu0 %v3659
      %v3689 = vpop.xlane.xlu0 %3688
      %3690 = vadd.xlane.f32.xlu0 %v3660
      %v3691 = vpop.xlane.xlu0 %3690
      %3692 = vadd.xlane.f32.xlu0 %v3661
      %v3693 = vpop.xlane.xlu0 %3692
      %3694 = vadd.xlane.f32.xlu0 %v3662
      %v3695 = vpop.xlane.xlu0 %3694
      %3696 = vadd.xlane.f32.xlu0 %v3663
      %v3697 = vpop.xlane.xlu0 %3696
      %v3698 = vmul.f32 %v3667, %v914
      %v3699 = vmul.f32 %v3669, %v914
      %v3700 = vmul.f32 %v3671, %v914
      %v3701 = vmul.f32 %v3673, %v914
      %v3702 = vmul.f32 %v3675, %v914
      %v3703 = vmul.f32 %v3677, %v914
      %v3704 = vmul.f32 %v3679, %v914
      %v3705 = vmul.f32 %v3681, %v914
      %v3706 = vmul.f32 %v3683, %v914
      %v3707 = vmul.f32 %v3685, %v914
      %v3708 = vmul.f32 %v3687, %v914
      %v3709 = vmul.f32 %v3689, %v914
      %v3710 = vmul.f32 %v3691, %v914
      %v3711 = vmul.f32 %v3693, %v914
      %v3712 = vmul.f32 %v3695, %v914
      %v3713 = vmul.f32 %v3697, %v914
      %v3714 = vsub.f32 %v3648, %v3698
      %v3715 = vsub.f32 %v3649, %v3699
      %v3716 = vsub.f32 %v3650, %v3700
      %v3717 = vsub.f32 %v3651, %v3701
      %v3718 = vsub.f32 %v3652, %v3702
      %v3719 = vsub.f32 %v3653, %v3703
      %v3720 = vsub.f32 %v3654, %v3704
      %v3721 = vsub.f32 %v3655, %v3705
      %v3722 = vsub.f32 %v3656, %v3706
      %v3723 = vsub.f32 %v3657, %v3707
      %v3724 = vsub.f32 %v3658, %v3708
      %v3725 = vsub.f32 %v3659, %v3709
      %v3726 = vsub.f32 %v3660, %v3710
      %v3727 = vsub.f32 %v3661, %v3711
      %v3728 = vsub.f32 %v3662, %v3712
      %v3729 = vsub.f32 %v3663, %v3713
      %v3730 = vmul.f32 %v3714, %v3714
      %v3731 = vmul.f32 %v3715, %v3715
      %v3732 = vmul.f32 %v3716, %v3716
      %v3733 = vmul.f32 %v3717, %v3717
      %v3734 = vmul.f32 %v3718, %v3718
      %v3735 = vmul.f32 %v3719, %v3719
      %v3736 = vmul.f32 %v3720, %v3720
      %v3737 = vmul.f32 %v3721, %v3721
      %v3738 = vmul.f32 %v3722, %v3722
      %v3739 = vmul.f32 %v3723, %v3723
      %v3740 = vmul.f32 %v3724, %v3724
      %v3741 = vmul.f32 %v3725, %v3725
      %v3742 = vmul.f32 %v3726, %v3726
      %v3743 = vmul.f32 %v3727, %v3727
      %v3744 = vmul.f32 %v3728, %v3728
      %v3745 = vmul.f32 %v3729, %v3729
      %3746 = vadd.xlane.f32.xlu0 %v3730
      %v3747 = vpop.xlane.xlu0 %3746
      %3748 = vadd.xlane.f32.xlu0 %v3731
      %v3749 = vpop.xlane.xlu0 %3748
      %3750 = vadd.xlane.f32.xlu0 %v3732
      %v3751 = vpop.xlane.xlu0 %3750
      %3752 = vadd.xlane.f32.xlu0 %v3733
      %v3753 = vpop.xlane.xlu0 %3752
      %3754 = vadd.xlane.f32.xlu0 %v3734
      %v3755 = vpop.xlane.xlu0 %3754
      %3756 = vadd.xlane.f32.xlu0 %v3735
      %v3757 = vpop.xlane.xlu0 %3756
      %3758 = vadd.xlane.f32.xlu0 %v3736
      %v3759 = vpop.xlane.xlu0 %3758
      %3760 = vadd.xlane.f32.xlu0 %v3737
      %v3761 = vpop.xlane.xlu0 %3760
      %3762 = vadd.xlane.f32.xlu0 %v3738
      %v3763 = vpop.xlane.xlu0 %3762
      %3764 = vadd.xlane.f32.xlu0 %v3739
      %v3765 = vpop.xlane.xlu0 %3764
      %3766 = vadd.xlane.f32.xlu0 %v3740
      %v3767 = vpop.xlane.xlu0 %3766
      %3768 = vadd.xlane.f32.xlu0 %v3741
      %v3769 = vpop.xlane.xlu0 %3768
      %3770 = vadd.xlane.f32.xlu0 %v3742
      %v3771 = vpop.xlane.xlu0 %3770
      %3772 = vadd.xlane.f32.xlu0 %v3743
      %v3773 = vpop.xlane.xlu0 %3772
      %3774 = vadd.xlane.f32.xlu0 %v3744
      %v3775 = vpop.xlane.xlu0 %3774
      %3776 = vadd.xlane.f32.xlu0 %v3745
      %v3777 = vpop.xlane.xlu0 %3776
      %v3778 = vmul.f32 %v3747, %v914
      %v3779 = vmul.f32 %v3749, %v914
      %v3780 = vmul.f32 %v3751, %v914
      %v3781 = vmul.f32 %v3753, %v914
      %v3782 = vmul.f32 %v3755, %v914
      %v3783 = vmul.f32 %v3757, %v914
      %v3784 = vmul.f32 %v3759, %v914
      %v3785 = vmul.f32 %v3761, %v914
      %v3786 = vmul.f32 %v3763, %v914
      %v3787 = vmul.f32 %v3765, %v914
      %v3788 = vmul.f32 %v3767, %v914
      %v3789 = vmul.f32 %v3769, %v914
      %v3790 = vmul.f32 %v3771, %v914
      %v3791 = vmul.f32 %v3773, %v914
      %v3792 = vmul.f32 %v3775, %v914
      %v3793 = vmul.f32 %v3777, %v914
      %v3794 = vadd.f32 %v3778, 1e-06
      %v3795 = vadd.f32 %v3779, 1e-06
      %v3796 = vadd.f32 %v3780, 1e-06
      %v3797 = vadd.f32 %v3781, 1e-06
      %v3798 = vadd.f32 %v3782, 1e-06
      %v3799 = vadd.f32 %v3783, 1e-06
      %v3800 = vadd.f32 %v3784, 1e-06
      %v3801 = vadd.f32 %v3785, 1e-06
      %v3802 = vadd.f32 %v3786, 1e-06
      %v3803 = vadd.f32 %v3787, 1e-06
      %v3804 = vadd.f32 %v3788, 1e-06
      %v3805 = vadd.f32 %v3789, 1e-06
      %v3806 = vadd.f32 %v3790, 1e-06
      %v3807 = vadd.f32 %v3791, 1e-06
      %v3808 = vadd.f32 %v3792, 1e-06
      %v3809 = vadd.f32 %v3793, 1e-06
      %v3810 = vrsqrt.pop %v3794
      %v3811 = vrsqrt.pop %v3795
      %v3812 = vrsqrt.pop %v3796
      %v3813 = vrsqrt.pop %v3797
      %v3814 = vrsqrt.pop %v3798
      %v3815 = vrsqrt.pop %v3799
      %v3816 = vrsqrt.pop %v3800
      %v3817 = vrsqrt.pop %v3801
      %v3818 = vrsqrt.pop %v3802
      %v3819 = vrsqrt.pop %v3803
      %v3820 = vrsqrt.pop %v3804
      %v3821 = vrsqrt.pop %v3805
      %v3822 = vrsqrt.pop %v3806
      %v3823 = vrsqrt.pop %v3807
      %v3824 = vrsqrt.pop %v3808
      %v3825 = vrsqrt.pop %v3809
      %v3826 = vmul.f32 %v3714, %v3810
      %v3827 = vmul.f32 %v3715, %v3811
      %v3828 = vmul.f32 %v3716, %v3812
      %v3829 = vmul.f32 %v3717, %v3813
      %v3830 = vmul.f32 %v3718, %v3814
      %v3831 = vmul.f32 %v3719, %v3815
      %v3832 = vmul.f32 %v3720, %v3816
      %v3833 = vmul.f32 %v3721, %v3817
      %v3834 = vmul.f32 %v3722, %v3818
      %v3835 = vmul.f32 %v3723, %v3819
      %v3836 = vmul.f32 %v3724, %v3820
      %v3837 = vmul.f32 %v3725, %v3821
      %v3838 = vmul.f32 %v3726, %v3822
      %v3839 = vmul.f32 %v3727, %v3823
      %v3840 = vmul.f32 %v3728, %v3824
      %v3841 = vmul.f32 %v3729, %v3825
      %v3843 = vlaneseq
      %v3844 = vshrl.u32 %v3843, 7
      %v3845 = vsub.s32 0, %v3844
      %v3846 = vrot.slane %v3664, %v3845
      %v3848 = vmul.f32 %v3826, %v3846
      %v3849 = vmul.f32 %v3827, %v3846
      %v3850 = vmul.f32 %v3828, %v3846
      %v3851 = vmul.f32 %v3829, %v3846
      %v3852 = vmul.f32 %v3830, %v3846
      %v3853 = vmul.f32 %v3831, %v3846
      %v3854 = vmul.f32 %v3832, %v3846
      %v3855 = vmul.f32 %v3833, %v3846
      %v3856 = vmul.f32 %v3834, %v3846
      %v3857 = vmul.f32 %v3835, %v3846
      %v3858 = vmul.f32 %v3836, %v3846
      %v3859 = vmul.f32 %v3837, %v3846
      %v3860 = vmul.f32 %v3838, %v3846
      %v3861 = vmul.f32 %v3839, %v3846
      %v3862 = vmul.f32 %v3840, %v3846
      %v3863 = vmul.f32 %v3841, %v3846
      %v3865 = vlaneseq
      %v3866 = vshrl.u32 %v3865, 7
      %v3867 = vsub.s32 0, %v3866
      %v3868 = vrot.slane %v3665, %v3867
      %v3870 = vadd.f32 %v3848, %v3868
      %v3871 = vadd.f32 %v3849, %v3868
      %v3872 = vadd.f32 %v3850, %v3868
      %v3873 = vadd.f32 %v3851, %v3868
      %v3874 = vadd.f32 %v3852, %v3868
      %v3875 = vadd.f32 %v3853, %v3868
      %v3876 = vadd.f32 %v3854, %v3868
      %v3877 = vadd.f32 %v3855, %v3868
      %v3878 = vadd.f32 %v3856, %v3868
      %v3879 = vadd.f32 %v3857, %v3868
      %v3880 = vadd.f32 %v3858, %v3868
      %v3881 = vadd.f32 %v3859, %v3868
      %v3882 = vadd.f32 %v3860, %v3868
      %v3883 = vadd.f32 %v3861, %v3868
      %v3884 = vadd.f32 %v3862, %v3868
      %v3885 = vadd.f32 %v3863, %v3868
      %v3886 = vpack.c.bf16 %v3871, %v3870
      %v3887 = vpack.c.bf16 %v3873, %v3872
      %v3888 = vpack.c.bf16 %v3875, %v3874
      %v3889 = vpack.c.bf16 %v3877, %v3876
      %v3890 = vpack.c.bf16 %v3879, %v3878
      %v3891 = vpack.c.bf16 %v3881, %v3880
      %v3892 = vpack.c.bf16 %v3883, %v3882
      %v3893 = vpack.c.bf16 %v3885, %v3884
      %v3894 = vld [vmem:[%s12] sm:$0xff]
      %v3895 = vld [vmem:[%s12 + $0x8] sm:$0xff]
      %v3896 = vld [vmem:[%s12 + $0x10] sm:$0xff]
      %v3897 = vld [vmem:[%s12 + $0x18] sm:$0xff]
      %v3898 = vld [vmem:[%s12 + $0x20] sm:$0xff]
      %v3899 = vld [vmem:[%s12 + $0x28] sm:$0xff]
      %v3900 = vld [vmem:[%s12 + $0x30] sm:$0xff]
      %v3901 = vld [vmem:[%s12 + $0x38] sm:$0xff]
      %v3902 = vld [vmem:[%s12 + $0x40] sm:$0xff]
      %v3903 = vld [vmem:[%s12 + $0x48] sm:$0xff]
      %v3904 = vld [vmem:[%s12 + $0x50] sm:$0xff]
      %v3905 = vld [vmem:[%s12 + $0x58] sm:$0xff]
      %v3906 = vld [vmem:[%s12 + $0x60] sm:$0xff]
      %v3907 = vld [vmem:[%s12 + $0x68] sm:$0xff]
      %v3908 = vld [vmem:[%s12 + $0x70] sm:$0xff]
      %v3909 = vld [vmem:[%s12 + $0x78] sm:$0xff]
      %v3910 = vld [vmem:[%s12 + $0x80] sm:$0xff]
      %v3911 = vld [vmem:[%s12 + $0x88] sm:$0xff]
      %v3912 = vld [vmem:[%s12 + $0x90] sm:$0xff]
      %v3913 = vld [vmem:[%s12 + $0x98] sm:$0xff]
      %v3914 = vld [vmem:[%s12 + $0xa0] sm:$0xff]
      %v3915 = vld [vmem:[%s12 + $0xa8] sm:$0xff]
      %v3916 = vld [vmem:[%s12 + $0xb0] sm:$0xff]
      %v3917 = vld [vmem:[%s12 + $0xb8] sm:$0xff]
      %v3918 = vld [vmem:[%s12 + $0xc0] sm:$0xff]
      %v3919 = vld [vmem:[%s12 + $0xc8] sm:$0xff]
      %v3920 = vld [vmem:[%s12 + $0xd0] sm:$0xff]
      %v3921 = vld [vmem:[%s12 + $0xd8] sm:$0xff]
      %v3922 = vld [vmem:[%s12 + $0xe0] sm:$0xff]
      %v3923 = vld [vmem:[%s12 + $0xe8] sm:$0xff]
      %v3924 = vld [vmem:[%s12 + $0xf0] sm:$0xff]
      %v3925 = vld [vmem:[%s12 + $0xf8] sm:$0xff]
      %v3926 = vld [vmem:[%s13] sm:$0xf]
      %v3928 = vlaneseq
      %v3929 = vshrl.u32 %v3928, 7
      %v3930 = vsub.s32 0, %v3929
      %v3931 = vrot.slane %v3926, %v3930
      %v3932 = vlaneseq
      %v3933 = vshrl.u32 %v3932, 7
      %v3934 = vsub.s32 1, %v3933
      %v3935 = vrot.slane %v3926, %v3934
      %v3936 = vlaneseq
      %v3937 = vshrl.u32 %v3936, 7
      %v3938 = vsub.s32 2, %v3937
      %v3939 = vrot.slane %v3926, %v3938
      %v3940 = vlaneseq
      %v3941 = vshrl.u32 %v3940, 7
      %v3942 = vsub.s32 3, %v3941
      %v3943 = vrot.slane %v3926, %v3942
      %v3980 = vunpack.c.l.b16 %v3894
      %v3981 = vunpack.c.h.b16 %v3894
      %v3982 = vunpack.c.l.b16 %v3895
      %v3983 = vunpack.c.h.b16 %v3895
      %v3984 = vunpack.c.l.b16 %v3896
      %v3985 = vunpack.c.h.b16 %v3896
      %v3986 = vunpack.c.l.b16 %v3897
      %v3987 = vunpack.c.h.b16 %v3897
      %v3988 = vunpack.c.l.b16 %v3898
      %v3989 = vunpack.c.h.b16 %v3898
      %v3990 = vunpack.c.l.b16 %v3899
      %v3991 = vunpack.c.h.b16 %v3899
      %v3992 = vunpack.c.l.b16 %v3900
      %v3993 = vunpack.c.h.b16 %v3900
      %v3994 = vunpack.c.l.b16 %v3901
      %v3995 = vunpack.c.h.b16 %v3901
      %v3996 = vunpack.c.l.b16 %v3902
      %v3997 = vunpack.c.h.b16 %v3902
      %v3998 = vunpack.c.l.b16 %v3903
      %v3999 = vunpack.c.h.b16 %v3903
      %v4000 = vunpack.c.l.b16 %v3904
      %v4001 = vunpack.c.h.b16 %v3904
      %v4002 = vunpack.c.l.b16 %v3905
      %v4003 = vunpack.c.h.b16 %v3905
      %v4004 = vunpack.c.l.b16 %v3906
      %v4005 = vunpack.c.h.b16 %v3906
      %v4006 = vunpack.c.l.b16 %v3907
      %v4007 = vunpack.c.h.b16 %v3907
      %v4008 = vunpack.c.l.b16 %v3908
      %v4009 = vunpack.c.h.b16 %v3908
      %v4010 = vunpack.c.l.b16 %v3909
      %v4011 = vunpack.c.h.b16 %v3909
      %v4012 = vunpack.c.l.b16 %v3910
      %v4013 = vunpack.c.h.b16 %v3910
      %v4014 = vunpack.c.l.b16 %v3911
      %v4015 = vunpack.c.h.b16 %v3911
      %v4016 = vunpack.c.l.b16 %v3912
      %v4017 = vunpack.c.h.b16 %v3912
      %v4018 = vunpack.c.l.b16 %v3913
      %v4019 = vunpack.c.h.b16 %v3913
      %v4020 = vunpack.c.l.b16 %v3914
      %v4021 = vunpack.c.h.b16 %v3914
      %v4022 = vunpack.c.l.b16 %v3915
      %v4023 = vunpack.c.h.b16 %v3915
      %v4024 = vunpack.c.l.b16 %v3916
      %v4025 = vunpack.c.h.b16 %v3916
      %v4026 = vunpack.c.l.b16 %v3917
      %v4027 = vunpack.c.h.b16 %v3917
      %v4028 = vunpack.c.l.b16 %v3918
      %v4029 = vunpack.c.h.b16 %v3918
      %v4030 = vunpack.c.l.b16 %v3919
      %v4031 = vunpack.c.h.b16 %v3919
      %v4032 = vunpack.c.l.b16 %v3920
      %v4033 = vunpack.c.h.b16 %v3920
      %v4034 = vunpack.c.l.b16 %v3921
      %v4035 = vunpack.c.h.b16 %v3921
      %v4036 = vunpack.c.l.b16 %v3922
      %v4037 = vunpack.c.h.b16 %v3922
      %v4038 = vunpack.c.l.b16 %v3923
      %v4039 = vunpack.c.h.b16 %v3923
      %v4040 = vunpack.c.l.b16 %v3924
      %v4041 = vunpack.c.h.b16 %v3924
      %v4042 = vunpack.c.l.b16 %v3925
      %v4043 = vunpack.c.h.b16 %v3925
      %v4044 = vpack.c.b16 %v3984, %v3980
      %v4045 = vpack.c.b16 %v3985, %v3981
      %v4046 = vpack.c.b16 %v3986, %v3982
      %v4047 = vpack.c.b16 %v3987, %v3983
      %v4048 = vpack.c.b16 %v3992, %v3988
      %v4049 = vpack.c.b16 %v3993, %v3989
      %v4050 = vpack.c.b16 %v3994, %v3990
      %v4051 = vpack.c.b16 %v3995, %v3991
      %v4052 = vpack.c.b16 %v4000, %v3996
      %v4053 = vpack.c.b16 %v4001, %v3997
      %v4054 = vpack.c.b16 %v4002, %v3998
      %v4055 = vpack.c.b16 %v4003, %v3999
      %v4056 = vpack.c.b16 %v4008, %v4004
      %v4057 = vpack.c.b16 %v4009, %v4005
      %v4058 = vpack.c.b16 %v4010, %v4006
      %v4059 = vpack.c.b16 %v4011, %v4007
      %v4060 = vpack.c.b16 %v4016, %v4012
      %v4061 = vpack.c.b16 %v4017, %v4013
      %v4062 = vpack.c.b16 %v4018, %v4014
      %v4063 = vpack.c.b16 %v4019, %v4015
      %v4064 = vpack.c.b16 %v4024, %v4020
      %v4065 = vpack.c.b16 %v4025, %v4021
      %v4066 = vpack.c.b16 %v4026, %v4022
      %v4067 = vpack.c.b16 %v4027, %v4023
      %v4068 = vpack.c.b16 %v4032, %v4028
      %v4069 = vpack.c.b16 %v4033, %v4029
      %v4070 = vpack.c.b16 %v4034, %v4030
      %v4071 = vpack.c.b16 %v4035, %v4031
      %v4072 = vpack.c.b16 %v4040, %v4036
      %v4073 = vpack.c.b16 %v4041, %v4037
      %v4074 = vpack.c.b16 %v4042, %v4038
      %v4075 = vpack.c.b16 %v4043, %v4039
      %4108 = vmatprep.subr.bf16.mxu0 %v4045
      %4109 = vmatpush1.bf16.msra.mxu0 %v4044
      %4110 = vmatprep.subr.bf16.mxu0 %v4049
      %4111 = vmatpush1.bf16.msra.mxu0 %v4048
      %4112 = vmatprep.subr.bf16.mxu0 %v4053
      %4113 = vmatpush1.bf16.msra.mxu0 %v4052
      %4114 = vmatprep.subr.bf16.mxu0 %v4057
      %4115 = vmatpush1.bf16.msra.mxu0 %v4056
      %4116 = vmatprep.subr.bf16.mxu0 %v4061
      %4117 = vmatpush1.bf16.msra.mxu0 %v4060
      %4118 = vmatprep.subr.bf16.mxu0 %v4065
      %4119 = vmatpush1.bf16.msra.mxu0 %v4064
      %4120 = vmatprep.subr.bf16.mxu0 %v4069
      %4121 = vmatpush1.bf16.msra.mxu0 %v4068
      %4122 = vmatprep.subr.bf16.mxu0 %v4073
      %4123 = vmatpush1.bf16.msra.mxu0 %v4072
      %4124 = vmatprep.subr.bf16.mxu0 0
      %4125 = vmatpush1.bf16.msra.mxu0 0
      %4126 = vmatprep.subr.bf16.mxu0 0
      %4127 = vmatpush1.bf16.msra.mxu0 0
      %4128 = vmatprep.subr.bf16.mxu0 0
      %4129 = vmatpush1.bf16.msra.mxu0 0
      %4130 = vmatprep.subr.bf16.mxu0 0
      %4131 = vmatpush1.bf16.msra.mxu0 0
      %4132 = vmatprep.subr.bf16.mxu0 0
      %4133 = vmatpush1.bf16.msra.mxu0 0
      %4134 = vmatprep.subr.bf16.mxu0 0
      %4135 = vmatpush1.bf16.msra.mxu0 0
      %4136 = vmatprep.subr.bf16.mxu0 0
      %4137 = vmatpush1.bf16.msra.mxu0 0
      %4138 = vmatprep.subr.bf16.mxu0 0
      %4139 = vmatpush1.bf16.msra.mxu0 0
      %4140 = vmatprep.mubr.bf16.mxu0 0
      %4141 = vmatmul.mubr.bf16.gmra.mrb[0].mxu0 %v3886
      %v4142 = vpop.f32.mrb[0].mxu0
      %v4143 = vadd.f32 %v3931, %v4142
      %v4144 = vpop.f32.mrb[0].mxu0
      %v4145 = vadd.f32 %v3935, %v4144
      %v4146 = vpop.f32.mrb[0].mxu0
      %v4147 = vadd.f32 %v3931, %v4146
      %v4148 = vpop.f32.mrb[0].mxu0
      %v4149 = vadd.f32 %v3935, %v4148
      %4150 = vmatprep.mubr.bf16.mxu0 0
      %4151 = vmatmul.mubr.bf16.gmra.mrb[0].mxu0 %v3887
      %v4152 = vpop.f32.mrb[0].mxu0
      %v4153 = vadd.f32 %v3931, %v4152
      %v4154 = vpop.f32.mrb[0].mxu0
      %v4155 = vadd.f32 %v3935, %v4154
      %v4156 = vpop.f32.mrb[0].mxu0
      %v4157 = vadd.f32 %v3931, %v4156
      %v4158 = vpop.f32.mrb[0].mxu0
      %v4159 = vadd.f32 %v3935, %v4158
      %4160 = vmatprep.mubr.bf16.mxu0 0
      %4161 = vmatmul.mubr.bf16.gmra.mrb[0].mxu0 %v3888
      %v4162 = vpop.f32.mrb[0].mxu0
      %v4163 = vadd.f32 %v3931, %v4162
      %v4164 = vpop.f32.mrb[0].mxu0
      %v4165 = vadd.f32 %v3935, %v4164
      %v4166 = vpop.f32.mrb[0].mxu0
      %v4167 = vadd.f32 %v3931, %v4166
      %v4168 = vpop.f32.mrb[0].mxu0
      %v4169 = vadd.f32 %v3935, %v4168
      %4170 = vmatprep.mubr.bf16.mxu0 0
      %4171 = vmatmul.mubr.bf16.gmra.mrb[0].mxu0 %v3889
      %v4172 = vpop.f32.mrb[0].mxu0
      %v4173 = vadd.f32 %v3931, %v4172
      %v4174 = vpop.f32.mrb[0].mxu0
      %v4175 = vadd.f32 %v3935, %v4174
      %v4176 = vpop.f32.mrb[0].mxu0
      %v4177 = vadd.f32 %v3931, %v4176
      %v4178 = vpop.f32.mrb[0].mxu0
      %v4179 = vadd.f32 %v3935, %v4178
      %4180 = vmatprep.mubr.bf16.mxu0 0
      %4181 = vmatmul.mubr.bf16.gmra.mrb[0].mxu0 %v3890
      %v4182 = vpop.f32.mrb[0].mxu0
      %v4183 = vadd.f32 %v3931, %v4182
      %v4184 = vpop.f32.mrb[0].mxu0
      %v4185 = vadd.f32 %v3935, %v4184
      %v4186 = vpop.f32.mrb[0].mxu0
      %v4187 = vadd.f32 %v3931, %v4186
      %v4188 = vpop.f32.mrb[0].mxu0
      %v4189 = vadd.f32 %v3935, %v4188
      %4190 = vmatprep.mubr.bf16.mxu0 0
      %4191 = vmatmul.mubr.bf16.gmra.mrb[0].mxu0 %v3891
      %v4192 = vpop.f32.mrb[0].mxu0
      %v4193 = vadd.f32 %v3931, %v4192
      %v4194 = vpop.f32.mrb[0].mxu0
      %v4195 = vadd.f32 %v3935, %v4194
      %v4196 = vpop.f32.mrb[0].mxu0
      %v4197 = vadd.f32 %v3931, %v4196
      %v4198 = vpop.f32.mrb[0].mxu0
      %v4199 = vadd.f32 %v3935, %v4198
      %4200 = vmatprep.mubr.bf16.mxu0 0
      %4201 = vmatmul.mubr.bf16.gmra.mrb[0].mxu0 %v3892
      %v4202 = vpop.f32.mrb[0].mxu0
      %v4203 = vadd.f32 %v3931, %v4202
      %v4204 = vpop.f32.mrb[0].mxu0
      %v4205 = vadd.f32 %v3935, %v4204
      %v4206 = vpop.f32.mrb[0].mxu0
      %v4207 = vadd.f32 %v3931, %v4206
      %v4208 = vpop.f32.mrb[0].mxu0
      %v4209 = vadd.f32 %v3935, %v4208
      %4210 = vmatprep.mubr.bf16.mxu0 0
      %4211 = vmatmul.mubr.bf16.gmra.mrb[0].mxu0 %v3893
      %v4212 = vpop.f32.mrb[0].mxu0
      %v4213 = vadd.f32 %v3931, %v4212
      %v4214 = vpop.f32.mrb[0].mxu0
      %v4215 = vadd.f32 %v3935, %v4214
      %v4216 = vpop.f32.mrb[0].mxu0
      %v4217 = vadd.f32 %v3931, %v4216
      %v4218 = vpop.f32.mrb[0].mxu0
      %v4219 = vadd.f32 %v3935, %v4218
      %4220 = vdwg.mxu0
      %4221 = vmatprep.subr.bf16.mxu0 %v4047
      %4222 = vmatpush1.bf16.msra.mxu0 %v4046
      %4223 = vmatprep.subr.bf16.mxu0 %v4051
      %4224 = vmatpush1.bf16.msra.mxu0 %v4050
      %4225 = vmatprep.subr.bf16.mxu0 %v4055
      %4226 = vmatpush1.bf16.msra.mxu0 %v4054
      %4227 = vmatprep.subr.bf16.mxu0 %v4059
      %4228 = vmatpush1.bf16.msra.mxu0 %v4058
      %4229 = vmatprep.subr.bf16.mxu0 %v4063
      %4230 = vmatpush1.bf16.msra.mxu0 %v4062
      %4231 = vmatprep.subr.bf16.mxu0 %v4067
      %4232 = vmatpush1.bf16.msra.mxu0 %v4066
      %4233 = vmatprep.subr.bf16.mxu0 %v4071
      %4234 = vmatpush1.bf16.msra.mxu0 %v4070
      %4235 = vmatprep.subr.bf16.mxu0 %v4075
      %4236 = vmatpush1.bf16.msra.mxu0 %v4074
      %4237 = vmatprep.subr.bf16.mxu0 0
      %4238 = vmatpush1.bf16.msra.mxu0 0
      %4239 = vmatprep.subr.bf16.mxu0 0
      %4240 = vmatpush1.bf16.msra.mxu0 0
      %4241 = vmatprep.subr.bf16.mxu0 0
      %4242 = vmatpush1.bf16.msra.mxu0 0
      %4243 = vmatprep.subr.bf16.mxu0 0
      %4244 = vmatpush1.bf16.msra.mxu0 0
      %4245 = vmatprep.subr.bf16.mxu0 0
      %4246 = vmatpush1.bf16.msra.mxu0 0
      %4247 = vmatprep.subr.bf16.mxu0 0
      %4248 = vmatpush1.bf16.msra.mxu0 0
      %4249 = vmatprep.subr.bf16.mxu0 0
      %4250 = vmatpush1.bf16.msra.mxu0 0
      %4251 = vmatprep.subr.bf16.mxu0 0
      %4252 = vmatpush1.bf16.msra.mxu0 0
      %4253 = vmatprep.mubr.bf16.mxu0 0
      %4254 = vmatmul.mubr.bf16.gmra.mrb[0].mxu0 %v3886
      %v4255 = vpop.f32.mrb[0].mxu0
      %v4256 = vadd.f32 %v3939, %v4255
      %v4257 = vpop.f32.mrb[0].mxu0
      %v4258 = vadd.f32 %v3943, %v4257
      %v4259 = vpop.f32.mrb[0].mxu0
      %v4260 = vadd.f32 %v3939, %v4259
      %v4261 = vpop.f32.mrb[0].mxu0
      %v4262 = vadd.f32 %v3943, %v4261
      %4263 = vmatprep.mubr.bf16.mxu0 0
      %4264 = vmatmul.mubr.bf16.gmra.mrb[0].mxu0 %v3887
      %v4265 = vpop.f32.mrb[0].mxu0
      %v4266 = vadd.f32 %v3939, %v4265
      %v4267 = vpop.f32.mrb[0].mxu0
      %v4268 = vadd.f32 %v3943, %v4267
      %v4269 = vpop.f32.mrb[0].mxu0
      %v4270 = vadd.f32 %v3939, %v4269
      %v4271 = vpop.f32.mrb[0].mxu0
      %v4272 = vadd.f32 %v3943, %v4271
      %4273 = vmatprep.mubr.bf16.mxu0 0
      %4274 = vmatmul.mubr.bf16.gmra.mrb[0].mxu0 %v3888
      %v4275 = vpop.f32.mrb[0].mxu0
      %v4276 = vadd.f32 %v3939, %v4275
      %v4277 = vpop.f32.mrb[0].mxu0
      %v4278 = vadd.f32 %v3943, %v4277
      %v4279 = vpop.f32.mrb[0].mxu0
      %v4280 = vadd.f32 %v3939, %v4279
      %v4281 = vpop.f32.mrb[0].mxu0
      %v4282 = vadd.f32 %v3943, %v4281
      %4283 = vmatprep.mubr.bf16.mxu0 0
      %4284 = vmatmul.mubr.bf16.gmra.mrb[0].mxu0 %v3889
      %v4285 = vpop.f32.mrb[0].mxu0
      %v4286 = vadd.f32 %v3939, %v4285
      %v4287 = vpop.f32.mrb[0].mxu0
      %v4288 = vadd.f32 %v3943, %v4287
      %v4289 = vpop.f32.mrb[0].mxu0
      %v4290 = vadd.f32 %v3939, %v4289
      %v4291 = vpop.f32.mrb[0].mxu0
      %v4292 = vadd.f32 %v3943, %v4291
      %4293 = vmatprep.mubr.bf16.mxu0 0
      %4294 = vmatmul.mubr.bf16.gmra.mrb[0].mxu0 %v3890
      %v4295 = vpop.f32.mrb[0].mxu0
      %v4296 = vadd.f32 %v3939, %v4295
      %v4297 = vpop.f32.mrb[0].mxu0
      %v4298 = vadd.f32 %v3943, %v4297
      %v4299 = vpop.f32.mrb[0].mxu0
      %v4300 = vadd.f32 %v3939, %v4299
      %v4301 = vpop.f32.mrb[0].mxu0
      %v4302 = vadd.f32 %v3943, %v4301
      %4303 = vmatprep.mubr.bf16.mxu0 0
      %4304 = vmatmul.mubr.bf16.gmra.mrb[0].mxu0 %v3891
      %v4305 = vpop.f32.mrb[0].mxu0
      %v4306 = vadd.f32 %v3939, %v4305
      %v4307 = vpop.f32.mrb[0].mxu0
      %v4308 = vadd.f32 %v3943, %v4307
      %v4309 = vpop.f32.mrb[0].mxu0
      %v4310 = vadd.f32 %v3939, %v4309
      %v4311 = vpop.f32.mrb[0].mxu0
      %v4312 = vadd.f32 %v3943, %v4311
      %4313 = vmatprep.mubr.bf16.mxu0 0
      %4314 = vmatmul.mubr.bf16.gmra.mrb[0].mxu0 %v3892
      %v4315 = vpop.f32.mrb[0].mxu0
      %v4316 = vadd.f32 %v3939, %v4315
      %v4317 = vpop.f32.mrb[0].mxu0
      %v4318 = vadd.f32 %v3943, %v4317
      %v4319 = vpop.f32.mrb[0].mxu0
      %v4320 = vadd.f32 %v3939, %v4319
      %v4321 = vpop.f32.mrb[0].mxu0
      %v4322 = vadd.f32 %v3943, %v4321
      %4323 = vmatprep.mubr.bf16.mxu0 0
      %4324 = vmatmul.mubr.bf16.gmra.mrb[0].mxu0 %v3893
      %v4325 = vpop.f32.mrb[0].mxu0
      %v4326 = vadd.f32 %v3939, %v4325
      %v4327 = vpop.f32.mrb[0].mxu0
      %v4328 = vadd.f32 %v3943, %v4327
      %v4329 = vpop.f32.mrb[0].mxu0
      %v4330 = vadd.f32 %v3939, %v4329
      %v4331 = vpop.f32.mrb[0].mxu0
      %v4332 = vadd.f32 %v3943, %v4331
      %4333 = vdwg.mxu0
      %v4334 = vmul.f32 %v4143, 0.5
      %v4335 = vmul.f32 %v4145, 0.5
      %v4336 = vmul.f32 %v4256, 0.5
      %v4337 = vmul.f32 %v4258, 0.5
      %v4338 = vmul.f32 %v4147, 0.5
      %v4339 = vmul.f32 %v4149, 0.5
      %v4340 = vmul.f32 %v4260, 0.5
      %v4341 = vmul.f32 %v4262, 0.5
      %v4342 = vmul.f32 %v4153, 0.5
      %v4343 = vmul.f32 %v4155, 0.5
      %v4344 = vmul.f32 %v4266, 0.5
      %v4345 = vmul.f32 %v4268, 0.5
      %v4346 = vmul.f32 %v4157, 0.5
      %v4347 = vmul.f32 %v4159, 0.5
      %v4348 = vmul.f32 %v4270, 0.5
      %v4349 = vmul.f32 %v4272, 0.5
      %v4350 = vmul.f32 %v4163, 0.5
      %v4351 = vmul.f32 %v4165, 0.5
      %v4352 = vmul.f32 %v4276, 0.5
      %v4353 = vmul.f32 %v4278, 0.5
      %v4354 = vmul.f32 %v4167, 0.5
      %v4355 = vmul.f32 %v4169, 0.5
      %v4356 = vmul.f32 %v4280, 0.5
      %v4357 = vmul.f32 %v4282, 0.5
      %v4358 = vmul.f32 %v4173, 0.5
      %v4359 = vmul.f32 %v4175, 0.5
      %v4360 = vmul.f32 %v4286, 0.5
      %v4361 = vmul.f32 %v4288, 0.5
      %v4362 = vmul.f32 %v4177, 0.5
      %v4363 = vmul.f32 %v4179, 0.5
      %v4364 = vmul.f32 %v4290, 0.5
      %v4365 = vmul.f32 %v4292, 0.5
      %v4366 = vmul.f32 %v4183, 0.5
      %v4367 = vmul.f32 %v4185, 0.5
      %v4368 = vmul.f32 %v4296, 0.5
      %v4369 = vmul.f32 %v4298, 0.5
      %v4370 = vmul.f32 %v4187, 0.5
      %v4371 = vmul.f32 %v4189, 0.5
      %v4372 = vmul.f32 %v4300, 0.5
      %v4373 = vmul.f32 %v4302, 0.5
      %v4374 = vmul.f32 %v4193, 0.5
      %v4375 = vmul.f32 %v4195, 0.5
      %v4376 = vmul.f32 %v4306, 0.5
      %v4377 = vmul.f32 %v4308, 0.5
      %v4378 = vmul.f32 %v4197, 0.5
      %v4379 = vmul.f32 %v4199, 0.5
      %v4380 = vmul.f32 %v4310, 0.5
      %v4381 = vmul.f32 %v4312, 0.5
      %v4382 = vmul.f32 %v4203, 0.5
      %v4383 = vmul.f32 %v4205, 0.5
      %v4384 = vmul.f32 %v4316, 0.5
      %v4385 = vmul.f32 %v4318, 0.5
      %v4386 = vmul.f32 %v4207, 0.5
      %v4387 = vmul.f32 %v4209, 0.5
      %v4388 = vmul.f32 %v4320, 0.5
      %v4389 = vmul.f32 %v4322, 0.5
      %v4390 = vmul.f32 %v4213, 0.5
      %v4391 = vmul.f32 %v4215, 0.5
      %v4392 = vmul.f32 %v4326, 0.5
      %v4393 = vmul.f32 %v4328, 0.5
      %v4394 = vmul.f32 %v4217, 0.5
      %v4395 = vmul.f32 %v4219, 0.5
      %v4396 = vmul.f32 %v4330, 0.5
      %v4397 = vmul.f32 %v4332, 0.5
      %v4398 = vmul.f32 %v4143, 0.044715
      %v4399 = vmul.f32 %v4145, 0.044715
      %v4400 = vmul.f32 %v4256, 0.044715
      %v4401 = vmul.f32 %v4258, 0.044715
      %v4402 = vmul.f32 %v4147, 0.044715
      %v4403 = vmul.f32 %v4149, 0.044715
      %v4404 = vmul.f32 %v4260, 0.044715
      %v4405 = vmul.f32 %v4262, 0.044715
      %v4406 = vmul.f32 %v4153, 0.044715
      %v4407 = vmul.f32 %v4155, 0.044715
      %v4408 = vmul.f32 %v4266, 0.044715
      %v4409 = vmul.f32 %v4268, 0.044715
      %v4410 = vmul.f32 %v4157, 0.044715
      %v4411 = vmul.f32 %v4159, 0.044715
      %v4412 = vmul.f32 %v4270, 0.044715
      %v4413 = vmul.f32 %v4272, 0.044715
      %v4414 = vmul.f32 %v4163, 0.044715
      %v4415 = vmul.f32 %v4165, 0.044715
      %v4416 = vmul.f32 %v4276, 0.044715
      %v4417 = vmul.f32 %v4278, 0.044715
      %v4418 = vmul.f32 %v4167, 0.044715
      %v4419 = vmul.f32 %v4169, 0.044715
      %v4420 = vmul.f32 %v4280, 0.044715
      %v4421 = vmul.f32 %v4282, 0.044715
      %v4422 = vmul.f32 %v4173, 0.044715
      %v4423 = vmul.f32 %v4175, 0.044715
      %v4424 = vmul.f32 %v4286, 0.044715
      %v4425 = vmul.f32 %v4288, 0.044715
      %v4426 = vmul.f32 %v4177, 0.044715
      %v4427 = vmul.f32 %v4179, 0.044715
      %v4428 = vmul.f32 %v4290, 0.044715
      %v4429 = vmul.f32 %v4292, 0.044715
      %v4430 = vmul.f32 %v4183, 0.044715
      %v4431 = vmul.f32 %v4185, 0.044715
      %v4432 = vmul.f32 %v4296, 0.044715
      %v4433 = vmul.f32 %v4298, 0.044715
      %v4434 = vmul.f32 %v4187, 0.044715
      %v4435 = vmul.f32 %v4189, 0.044715
      %v4436 = vmul.f32 %v4300, 0.044715
      %v4437 = vmul.f32 %v4302, 0.044715
      %v4438 = vmul.f32 %v4193, 0.044715
      %v4439 = vmul.f32 %v4195, 0.044715
      %v4440 = vmul.f32 %v4306, 0.044715
      %v4441 = vmul.f32 %v4308, 0.044715
      %v4442 = vmul.f32 %v4197, 0.044715
      %v4443 = vmul.f32 %v4199, 0.044715
      %v4444 = vmul.f32 %v4310, 0.044715
      %v4445 = vmul.f32 %v4312, 0.044715
      %v4446 = vmul.f32 %v4203, 0.044715
      %v4447 = vmul.f32 %v4205, 0.044715
      %v4448 = vmul.f32 %v4316, 0.044715
      %v4449 = vmul.f32 %v4318, 0.044715
      %v4450 = vmul.f32 %v4207, 0.044715
      %v4451 = vmul.f32 %v4209, 0.044715
      %v4452 = vmul.f32 %v4320, 0.044715
      %v4453 = vmul.f32 %v4322, 0.044715
      %v4454 = vmul.f32 %v4213, 0.044715
      %v4455 = vmul.f32 %v4215, 0.044715
      %v4456 = vmul.f32 %v4326, 0.044715
      %v4457 = vmul.f32 %v4328, 0.044715
      %v4458 = vmul.f32 %v4217, 0.044715
      %v4459 = vmul.f32 %v4219, 0.044715
      %v4460 = vmul.f32 %v4330, 0.044715
      %v4461 = vmul.f32 %v4332, 0.044715
      %v4462 = vmul.f32 %v4398, %v4143
      %v4463 = vmul.f32 %v4399, %v4145
      %v4464 = vmul.f32 %v4400, %v4256
      %v4465 = vmul.f32 %v4401, %v4258
      %v4466 = vmul.f32 %v4402, %v4147
      %v4467 = vmul.f32 %v4403, %v4149
      %v4468 = vmul.f32 %v4404, %v4260
      %v4469 = vmul.f32 %v4405, %v4262
      %v4470 = vmul.f32 %v4406, %v4153
      %v4471 = vmul.f32 %v4407, %v4155
      %v4472 = vmul.f32 %v4408, %v4266
      %v4473 = vmul.f32 %v4409, %v4268
      %v4474 = vmul.f32 %v4410, %v4157
      %v4475 = vmul.f32 %v4411, %v4159
      %v4476 = vmul.f32 %v4412, %v4270
      %v4477 = vmul.f32 %v4413, %v4272
      %v4478 = vmul.f32 %v4414, %v4163
      %v4479 = vmul.f32 %v4415, %v4165
      %v4480 = vmul.f32 %v4416, %v4276
      %v4481 = vmul.f32 %v4417, %v4278
      %v4482 = vmul.f32 %v4418, %v4167
      %v4483 = vmul.f32 %v4419, %v4169
      %v4484 = vmul.f32 %v4420, %v4280
      %v4485 = vmul.f32 %v4421, %v4282
      %v4486 = vmul.f32 %v4422, %v4173
      %v4487 = vmul.f32 %v4423, %v4175
      %v4488 = vmul.f32 %v4424, %v4286
      %v4489 = vmul.f32 %v4425, %v4288
      %v4490 = vmul.f32 %v4426, %v4177
      %v4491 = vmul.f32 %v4427, %v4179
      %v4492 = vmul.f32 %v4428, %v4290
      %v4493 = vmul.f32 %v4429, %v4292
      %v4494 = vmul.f32 %v4430, %v4183
      %v4495 = vmul.f32 %v4431, %v4185
      %v4496 = vmul.f32 %v4432, %v4296
      %v4497 = vmul.f32 %v4433, %v4298
      %v4498 = vmul.f32 %v4434, %v4187
      %v4499 = vmul.f32 %v4435, %v4189
      %v4500 = vmul.f32 %v4436, %v4300
      %v4501 = vmul.f32 %v4437, %v4302
      %v4502 = vmul.f32 %v4438, %v4193
      %v4503 = vmul.f32 %v4439, %v4195
      %v4504 = vmul.f32 %v4440, %v4306
      %v4505 = vmul.f32 %v4441, %v4308
      %v4506 = vmul.f32 %v4442, %v4197
      %v4507 = vmul.f32 %v4443, %v4199
      %v4508 = vmul.f32 %v4444, %v4310
      %v4509 = vmul.f32 %v4445, %v4312
      %v4510 = vmul.f32 %v4446, %v4203
      %v4511 = vmul.f32 %v4447, %v4205
      %v4512 = vmul.f32 %v4448, %v4316
      %v4513 = vmul.f32 %v4449, %v4318
      %v4514 = vmul.f32 %v4450, %v4207
      %v4515 = vmul.f32 %v4451, %v4209
      %v4516 = vmul.f32 %v4452, %v4320
      %v4517 = vmul.f32 %v4453, %v4322
      %v4518 = vmul.f32 %v4454, %v4213
      %v4519 = vmul.f32 %v4455, %v4215
      %v4520 = vmul.f32 %v4456, %v4326
      %v4521 = vmul.f32 %v4457, %v4328
      %v4522 = vmul.f32 %v4458, %v4217
      %v4523 = vmul.f32 %v4459, %v4219
      %v4524 = vmul.f32 %v4460, %v4330
      %v4525 = vmul.f32 %v4461, %v4332
      %v4526 = vmul.f32 %v4462, %v4143
      %v4527 = vmul.f32 %v4463, %v4145
      %v4528 = vmul.f32 %v4464, %v4256
      %v4529 = vmul.f32 %v4465, %v4258
      %v4530 = vmul.f32 %v4466, %v4147
      %v4531 = vmul.f32 %v4467, %v4149
      %v4532 = vmul.f32 %v4468, %v4260
      %v4533 = vmul.f32 %v4469, %v4262
      %v4534 = vmul.f32 %v4470, %v4153
      %v4535 = vmul.f32 %v4471, %v4155
      %v4536 = vmul.f32 %v4472, %v4266
      %v4537 = vmul.f32 %v4473, %v4268
      %v4538 = vmul.f32 %v4474, %v4157
      %v4539 = vmul.f32 %v4475, %v4159
      %v4540 = vmul.f32 %v4476, %v4270
      %v4541 = vmul.f32 %v4477, %v4272
      %v4542 = vmul.f32 %v4478, %v4163
      %v4543 = vmul.f32 %v4479, %v4165
      %v4544 = vmul.f32 %v4480, %v4276
      %v4545 = vmul.f32 %v4481, %v4278
      %v4546 = vmul.f32 %v4482, %v4167
      %v4547 = vmul.f32 %v4483, %v4169
      %v4548 = vmul.f32 %v4484, %v4280
      %v4549 = vmul.f32 %v4485, %v4282
      %v4550 = vmul.f32 %v4486, %v4173
      %v4551 = vmul.f32 %v4487, %v4175
      %v4552 = vmul.f32 %v4488, %v4286
      %v4553 = vmul.f32 %v4489, %v4288
      %v4554 = vmul.f32 %v4490, %v4177
      %v4555 = vmul.f32 %v4491, %v4179
      %v4556 = vmul.f32 %v4492, %v4290
      %v4557 = vmul.f32 %v4493, %v4292
      %v4558 = vmul.f32 %v4494, %v4183
      %v4559 = vmul.f32 %v4495, %v4185
      %v4560 = vmul.f32 %v4496, %v4296
      %v4561 = vmul.f32 %v4497, %v4298
      %v4562 = vmul.f32 %v4498, %v4187
      %v4563 = vmul.f32 %v4499, %v4189
      %v4564 = vmul.f32 %v4500, %v4300
      %v4565 = vmul.f32 %v4501, %v4302
      %v4566 = vmul.f32 %v4502, %v4193
      %v4567 = vmul.f32 %v4503, %v4195
      %v4568 = vmul.f32 %v4504, %v4306
      %v4569 = vmul.f32 %v4505, %v4308
      %v4570 = vmul.f32 %v4506, %v4197
      %v4571 = vmul.f32 %v4507, %v4199
      %v4572 = vmul.f32 %v4508, %v4310
      %v4573 = vmul.f32 %v4509, %v4312
      %v4574 = vmul.f32 %v4510, %v4203
      %v4575 = vmul.f32 %v4511, %v4205
      %v4576 = vmul.f32 %v4512, %v4316
      %v4577 = vmul.f32 %v4513, %v4318
      %v4578 = vmul.f32 %v4514, %v4207
      %v4579 = vmul.f32 %v4515, %v4209
      %v4580 = vmul.f32 %v4516, %v4320
      %v4581 = vmul.f32 %v4517, %v4322
      %v4582 = vmul.f32 %v4518, %v4213
      %v4583 = vmul.f32 %v4519, %v4215
      %v4584 = vmul.f32 %v4520, %v4326
      %v4585 = vmul.f32 %v4521, %v4328
      %v4586 = vmul.f32 %v4522, %v4217
      %v4587 = vmul.f32 %v4523, %v4219
      %v4588 = vmul.f32 %v4524, %v4330
      %v4589 = vmul.f32 %v4525, %v4332
      %v4590 = vadd.f32 %v4143, %v4526
      %v4591 = vadd.f32 %v4145, %v4527
      %v4592 = vadd.f32 %v4256, %v4528
      %v4593 = vadd.f32 %v4258, %v4529
      %v4594 = vadd.f32 %v4147, %v4530
      %v4595 = vadd.f32 %v4149, %v4531
      %v4596 = vadd.f32 %v4260, %v4532
      %v4597 = vadd.f32 %v4262, %v4533
      %v4598 = vadd.f32 %v4153, %v4534
      %v4599 = vadd.f32 %v4155, %v4535
      %v4600 = vadd.f32 %v4266, %v4536
      %v4601 = vadd.f32 %v4268, %v4537
      %v4602 = vadd.f32 %v4157, %v4538
      %v4603 = vadd.f32 %v4159, %v4539
      %v4604 = vadd.f32 %v4270, %v4540
      %v4605 = vadd.f32 %v4272, %v4541
      %v4606 = vadd.f32 %v4163, %v4542
      %v4607 = vadd.f32 %v4165, %v4543
      %v4608 = vadd.f32 %v4276, %v4544
      %v4609 = vadd.f32 %v4278, %v4545
      %v4610 = vadd.f32 %v4167, %v4546
      %v4611 = vadd.f32 %v4169, %v4547
      %v4612 = vadd.f32 %v4280, %v4548
      %v4613 = vadd.f32 %v4282, %v4549
      %v4614 = vadd.f32 %v4173, %v4550
      %v4615 = vadd.f32 %v4175, %v4551
      %v4616 = vadd.f32 %v4286, %v4552
      %v4617 = vadd.f32 %v4288, %v4553
      %v4618 = vadd.f32 %v4177, %v4554
      %v4619 = vadd.f32 %v4179, %v4555
      %v4620 = vadd.f32 %v4290, %v4556
      %v4621 = vadd.f32 %v4292, %v4557
      %v4622 = vadd.f32 %v4183, %v4558
      %v4623 = vadd.f32 %v4185, %v4559
      %v4624 = vadd.f32 %v4296, %v4560
      %v4625 = vadd.f32 %v4298, %v4561
      %v4626 = vadd.f32 %v4187, %v4562
      %v4627 = vadd.f32 %v4189, %v4563
      %v4628 = vadd.f32 %v4300, %v4564
      %v4629 = vadd.f32 %v4302, %v4565
      %v4630 = vadd.f32 %v4193, %v4566
      %v4631 = vadd.f32 %v4195, %v4567
      %v4632 = vadd.f32 %v4306, %v4568
      %v4633 = vadd.f32 %v4308, %v4569
      %v4634 = vadd.f32 %v4197, %v4570
      %v4635 = vadd.f32 %v4199, %v4571
      %v4636 = vadd.f32 %v4310, %v4572
      %v4637 = vadd.f32 %v4312, %v4573
      %v4638 = vadd.f32 %v4203, %v4574
      %v4639 = vadd.f32 %v4205, %v4575
      %v4640 = vadd.f32 %v4316, %v4576
      %v4641 = vadd.f32 %v4318, %v4577
      %v4642 = vadd.f32 %v4207, %v4578
      %v4643 = vadd.f32 %v4209, %v4579
      %v4644 = vadd.f32 %v4320, %v4580
      %v4645 = vadd.f32 %v4322, %v4581
      %v4646 = vadd.f32 %v4213, %v4582
      %v4647 = vadd.f32 %v4215, %v4583
      %v4648 = vadd.f32 %v4326, %v4584
      %v4649 = vadd.f32 %v4328, %v4585
      %v4650 = vadd.f32 %v4217, %v4586
      %v4651 = vadd.f32 %v4219, %v4587
      %v4652 = vadd.f32 %v4330, %v4588
      %v4653 = vadd.f32 %v4332, %v4589
      %v4654 = vmul.f32 %v4590, 0.7978846
      %v4655 = vmul.f32 %v4591, 0.7978846
      %v4656 = vmul.f32 %v4592, 0.7978846
      %v4657 = vmul.f32 %v4593, 0.7978846
      %v4658 = vmul.f32 %v4594, 0.7978846
      %v4659 = vmul.f32 %v4595, 0.7978846
      %v4660 = vmul.f32 %v4596, 0.7978846
      %v4661 = vmul.f32 %v4597, 0.7978846
      %v4662 = vmul.f32 %v4598, 0.7978846
      %v4663 = vmul.f32 %v4599, 0.7978846
      %v4664 = vmul.f32 %v4600, 0.7978846
      %v4665 = vmul.f32 %v4601, 0.7978846
      %v4666 = vmul.f32 %v4602, 0.7978846
      %v4667 = vmul.f32 %v4603, 0.7978846
      %v4668 = vmul.f32 %v4604, 0.7978846
      %v4669 = vmul.f32 %v4605, 0.7978846
      %v4670 = vmul.f32 %v4606, 0.7978846
      %v4671 = vmul.f32 %v4607, 0.7978846
      %v4672 = vmul.f32 %v4608, 0.7978846
      %v4673 = vmul.f32 %v4609, 0.7978846
      %v4674 = vmul.f32 %v4610, 0.7978846
      %v4675 = vmul.f32 %v4611, 0.7978846
      %v4676 = vmul.f32 %v4612, 0.7978846
      %v4677 = vmul.f32 %v4613, 0.7978846
      %v4678 = vmul.f32 %v4614, 0.7978846
      %v4679 = vmul.f32 %v4615, 0.7978846
      %v4680 = vmul.f32 %v4616, 0.7978846
      %v4681 = vmul.f32 %v4617, 0.7978846
      %v4682 = vmul.f32 %v4618, 0.7978846
      %v4683 = vmul.f32 %v4619, 0.7978846
      %v4684 = vmul.f32 %v4620, 0.7978846
      %v4685 = vmul.f32 %v4621, 0.7978846
      %v4686 = vmul.f32 %v4622, 0.7978846
      %v4687 = vmul.f32 %v4623, 0.7978846
      %v4688 = vmul.f32 %v4624, 0.7978846
      %v4689 = vmul.f32 %v4625, 0.7978846
      %v4690 = vmul.f32 %v4626, 0.7978846
      %v4691 = vmul.f32 %v4627, 0.7978846
      %v4692 = vmul.f32 %v4628, 0.7978846
      %v4693 = vmul.f32 %v4629, 0.7978846
      %v4694 = vmul.f32 %v4630, 0.7978846
      %v4695 = vmul.f32 %v4631, 0.7978846
      %v4696 = vmul.f32 %v4632, 0.7978846
      %v4697 = vmul.f32 %v4633, 0.7978846
      %v4698 = vmul.f32 %v4634, 0.7978846
      %v4699 = vmul.f32 %v4635, 0.7978846
      %v4700 = vmul.f32 %v4636, 0.7978846
      %v4701 = vmul.f32 %v4637, 0.7978846
      %v4702 = vmul.f32 %v4638, 0.7978846
      %v4703 = vmul.f32 %v4639, 0.7978846
      %v4704 = vmul.f32 %v4640, 0.7978846
      %v4705 = vmul.f32 %v4641, 0.7978846
      %v4706 = vmul.f32 %v4642, 0.7978846
      %v4707 = vmul.f32 %v4643, 0.7978846
      %v4708 = vmul.f32 %v4644, 0.7978846
      %v4709 = vmul.f32 %v4645, 0.7978846
      %v4710 = vmul.f32 %v4646, 0.7978846
      %v4711 = vmul.f32 %v4647, 0.7978846
      %v4712 = vmul.f32 %v4648, 0.7978846
      %v4713 = vmul.f32 %v4649, 0.7978846
      %v4714 = vmul.f32 %v4650, 0.7978846
      %v4715 = vmul.f32 %v4651, 0.7978846
      %v4716 = vmul.f32 %v4652, 0.7978846
      %v4717 = vmul.f32 %v4653, 0.7978846
      %v4718 = vtanh.pop %v4654
      %v4719 = vtanh.pop %v4655
      %v4720 = vtanh.pop %v4656
      %v4721 = vtanh.pop %v4657
      %v4722 = vtanh.pop %v4658
      %v4723 = vtanh.pop %v4659
      %v4724 = vtanh.pop %v4660
      %v4725 = vtanh.pop %v4661
      %v4726 = vtanh.pop %v4662
      %v4727 = vtanh.pop %v4663
      %v4728 = vtanh.pop %v4664
      %v4729 = vtanh.pop %v4665
      %v4730 = vtanh.pop %v4666
      %v4731 = vtanh.pop %v4667
      %v4732 = vtanh.pop %v4668
      %v4733 = vtanh.pop %v4669
      %v4734 = vtanh.pop %v4670
      %v4735 = vtanh.pop %v4671
      %v4736 = vtanh.pop %v4672
      %v4737 = vtanh.pop %v4673
      %v4738 = vtanh.pop %v4674
      %v4739 = vtanh.pop %v4675
      %v4740 = vtanh.pop %v4676
      %v4741 = vtanh.pop %v4677
      %v4742 = vtanh.pop %v4678
      %v4743 = vtanh.pop %v4679
      %v4744 = vtanh.pop %v4680
      %v4745 = vtanh.pop %v4681
      %v4746 = vtanh.pop %v4682
      %v4747 = vtanh.pop %v4683
      %v4748 = vtanh.pop %v4684
      %v4749 = vtanh.pop %v4685
      %v4750 = vtanh.pop %v4686
      %v4751 = vtanh.pop %v4687
      %v4752 = vtanh.pop %v4688
      %v4753 = vtanh.pop %v4689
      %v4754 = vtanh.pop %v4690
      %v4755 = vtanh.pop %v4691
      %v4756 = vtanh.pop %v4692
      %v4757 = vtanh.pop %v4693
      %v4758 = vtanh.pop %v4694
      %v4759 = vtanh.pop %v4695
      %v4760 = vtanh.pop %v4696
      %v4761 = vtanh.pop %v4697
      %v4762 = vtanh.pop %v4698
      %v4763 = vtanh.pop %v4699
      %v4764 = vtanh.pop %v4700
      %v4765 = vtanh.pop %v4701
      %v4766 = vtanh.pop %v4702
      %v4767 = vtanh.pop %v4703
      %v4768 = vtanh.pop %v4704
      %v4769 = vtanh.pop %v4705
      %v4770 = vtanh.pop %v4706
      %v4771 = vtanh.pop %v4707
      %v4772 = vtanh.pop %v4708
      %v4773 = vtanh.pop %v4709
      %v4774 = vtanh.pop %v4710
      %v4775 = vtanh.pop %v4711
      %v4776 = vtanh.pop %v4712
      %v4777 = vtanh.pop %v4713
      %v4778 = vtanh.pop %v4714
      %v4779 = vtanh.pop %v4715
      %v4780 = vtanh.pop %v4716
      %v4781 = vtanh.pop %v4717
      %v4782 = vadd.f32 %v4718, 1.0
      %v4783 = vadd.f32 %v4719, 1.0
      %v4784 = vadd.f32 %v4720, 1.0
      %v4785 = vadd.f32 %v4721, 1.0
      %v4786 = vadd.f32 %v4722, 1.0
      %v4787 = vadd.f32 %v4723, 1.0
      %v4788 = vadd.f32 %v4724, 1.0
      %v4789 = vadd.f32 %v4725, 1.0
      %v4790 = vadd.f32 %v4726, 1.0
      %v4791 = vadd.f32 %v4727, 1.0
      %v4792 = vadd.f32 %v4728, 1.0
      %v4793 = vadd.f32 %v4729, 1.0
      %v4794 = vadd.f32 %v4730, 1.0
      %v4795 = vadd.f32 %v4731, 1.0
      %v4796 = vadd.f32 %v4732, 1.0
      %v4797 = vadd.f32 %v4733, 1.0
      %v4798 = vadd.f32 %v4734, 1.0
      %v4799 = vadd.f32 %v4735, 1.0
      %v4800 = vadd.f32 %v4736, 1.0
      %v4801 = vadd.f32 %v4737, 1.0
      %v4802 = vadd.f32 %v4738, 1.0
      %v4803 = vadd.f32 %v4739, 1.0
      %v4804 = vadd.f32 %v4740, 1.0
      %v4805 = vadd.f32 %v4741, 1.0
      %v4806 = vadd.f32 %v4742, 1.0
      %v4807 = vadd.f32 %v4743, 1.0
      %v4808 = vadd.f32 %v4744, 1.0
      %v4809 = vadd.f32 %v4745, 1.0
      %v4810 = vadd.f32 %v4746, 1.0
      %v4811 = vadd.f32 %v4747, 1.0
      %v4812 = vadd.f32 %v4748, 1.0
      %v4813 = vadd.f32 %v4749, 1.0
      %v4814 = vadd.f32 %v4750, 1.0
      %v4815 = vadd.f32 %v4751, 1.0
      %v4816 = vadd.f32 %v4752, 1.0
      %v4817 = vadd.f32 %v4753, 1.0
      %v4818 = vadd.f32 %v4754, 1.0
      %v4819 = vadd.f32 %v4755, 1.0
      %v4820 = vadd.f32 %v4756, 1.0
      %v4821 = vadd.f32 %v4757, 1.0
      %v4822 = vadd.f32 %v4758, 1.0
      %v4823 = vadd.f32 %v4759, 1.0
      %v4824 = vadd.f32 %v4760, 1.0
      %v4825 = vadd.f32 %v4761, 1.0
      %v4826 = vadd.f32 %v4762, 1.0
      %v4827 = vadd.f32 %v4763, 1.0
      %v4828 = vadd.f32 %v4764, 1.0
      %v4829 = vadd.f32 %v4765, 1.0
      %v4830 = vadd.f32 %v4766, 1.0
      %v4831 = vadd.f32 %v4767, 1.0
      %v4832 = vadd.f32 %v4768, 1.0
      %v4833 = vadd.f32 %v4769, 1.0
      %v4834 = vadd.f32 %v4770, 1.0
      %v4835 = vadd.f32 %v4771, 1.0
      %v4836 = vadd.f32 %v4772, 1.0
      %v4837 = vadd.f32 %v4773, 1.0
      %v4838 = vadd.f32 %v4774, 1.0
      %v4839 = vadd.f32 %v4775, 1.0
      %v4840 = vadd.f32 %v4776, 1.0
      %v4841 = vadd.f32 %v4777, 1.0
      %v4842 = vadd.f32 %v4778, 1.0
      %v4843 = vadd.f32 %v4779, 1.0
      %v4844 = vadd.f32 %v4780, 1.0
      %v4845 = vadd.f32 %v4781, 1.0
      %v4846 = vmul.f32 %v4334, %v4782
      %v4847 = vmul.f32 %v4335, %v4783
      %v4848 = vmul.f32 %v4336, %v4784
      %v4849 = vmul.f32 %v4337, %v4785
      %v4850 = vmul.f32 %v4338, %v4786
      %v4851 = vmul.f32 %v4339, %v4787
      %v4852 = vmul.f32 %v4340, %v4788
      %v4853 = vmul.f32 %v4341, %v4789
      %v4854 = vmul.f32 %v4342, %v4790
      %v4855 = vmul.f32 %v4343, %v4791
      %v4856 = vmul.f32 %v4344, %v4792
      %v4857 = vmul.f32 %v4345, %v4793
      %v4858 = vmul.f32 %v4346, %v4794
      %v4859 = vmul.f32 %v4347, %v4795
      %v4860 = vmul.f32 %v4348, %v4796
      %v4861 = vmul.f32 %v4349, %v4797
      %v4862 = vmul.f32 %v4350, %v4798
      %v4863 = vmul.f32 %v4351, %v4799
      %v4864 = vmul.f32 %v4352, %v4800
      %v4865 = vmul.f32 %v4353, %v4801
      %v4866 = vmul.f32 %v4354, %v4802
      %v4867 = vmul.f32 %v4355, %v4803
      %v4868 = vmul.f32 %v4356, %v4804
      %v4869 = vmul.f32 %v4357, %v4805
      %v4870 = vmul.f32 %v4358, %v4806
      %v4871 = vmul.f32 %v4359, %v4807
      %v4872 = vmul.f32 %v4360, %v4808
      %v4873 = vmul.f32 %v4361, %v4809
      %v4874 = vmul.f32 %v4362, %v4810
      %v4875 = vmul.f32 %v4363, %v4811
      %v4876 = vmul.f32 %v4364, %v4812
      %v4877 = vmul.f32 %v4365, %v4813
      %v4878 = vmul.f32 %v4366, %v4814
      %v4879 = vmul.f32 %v4367, %v4815
      %v4880 = vmul.f32 %v4368, %v4816
      %v4881 = vmul.f32 %v4369, %v4817
      %v4882 = vmul.f32 %v4370, %v4818
      %v4883 = vmul.f32 %v4371, %v4819
      %v4884 = vmul.f32 %v4372, %v4820
      %v4885 = vmul.f32 %v4373, %v4821
      %v4886 = vmul.f32 %v4374, %v4822
      %v4887 = vmul.f32 %v4375, %v4823
      %v4888 = vmul.f32 %v4376, %v4824
      %v4889 = vmul.f32 %v4377, %v4825
      %v4890 = vmul.f32 %v4378, %v4826
      %v4891 = vmul.f32 %v4379, %v4827
      %v4892 = vmul.f32 %v4380, %v4828
      %v4893 = vmul.f32 %v4381, %v4829
      %v4894 = vmul.f32 %v4382, %v4830
      %v4895 = vmul.f32 %v4383, %v4831
      %v4896 = vmul.f32 %v4384, %v4832
      %v4897 = vmul.f32 %v4385, %v4833
      %v4898 = vmul.f32 %v4386, %v4834
      %v4899 = vmul.f32 %v4387, %v4835
      %v4900 = vmul.f32 %v4388, %v4836
      %v4901 = vmul.f32 %v4389, %v4837
      %v4902 = vmul.f32 %v4390, %v4838
      %v4903 = vmul.f32 %v4391, %v4839
      %v4904 = vmul.f32 %v4392, %v4840
      %v4905 = vmul.f32 %v4393, %v4841
      %v4906 = vmul.f32 %v4394, %v4842
      %v4907 = vmul.f32 %v4395, %v4843
      %v4908 = vmul.f32 %v4396, %v4844
      %v4909 = vmul.f32 %v4397, %v4845
      %v4910 = vpack.c.bf16 %v4850, %v4846
      %v4911 = vpack.c.bf16 %v4851, %v4847
      %v4912 = vpack.c.bf16 %v4852, %v4848
      %v4913 = vpack.c.bf16 %v4853, %v4849
      %v4914 = vpack.c.bf16 %v4858, %v4854
      %v4915 = vpack.c.bf16 %v4859, %v4855
      %v4916 = vpack.c.bf16 %v4860, %v4856
      %v4917 = vpack.c.bf16 %v4861, %v4857
      %v4918 = vpack.c.bf16 %v4866, %v4862
      %v4919 = vpack.c.bf16 %v4867, %v4863
      %v4920 = vpack.c.bf16 %v4868, %v4864
      %v4921 = vpack.c.bf16 %v4869, %v4865
      %v4922 = vpack.c.bf16 %v4874, %v4870
      %v4923 = vpack.c.bf16 %v4875, %v4871
      %v4924 = vpack.c.bf16 %v4876, %v4872
      %v4925 = vpack.c.bf16 %v4877, %v4873
      %v4926 = vpack.c.bf16 %v4882, %v4878
      %v4927 = vpack.c.bf16 %v4883, %v4879
      %v4928 = vpack.c.bf16 %v4884, %v4880
      %v4929 = vpack.c.bf16 %v4885, %v4881
      %v4930 = vpack.c.bf16 %v4890, %v4886
      %v4931 = vpack.c.bf16 %v4891, %v4887
      %v4932 = vpack.c.bf16 %v4892, %v4888
      %v4933 = vpack.c.bf16 %v4893, %v4889
      %v4934 = vpack.c.bf16 %v4898, %v4894
      %v4935 = vpack.c.bf16 %v4899, %v4895
      %v4936 = vpack.c.bf16 %v4900, %v4896
      %v4937 = vpack.c.bf16 %v4901, %v4897
      %v4938 = vpack.c.bf16 %v4906, %v4902
      %v4939 = vpack.c.bf16 %v4907, %v4903
      %v4940 = vpack.c.bf16 %v4908, %v4904
      %v4941 = vpack.c.bf16 %v4909, %v4905
      %v4942 = vld [vmem:[%s14] sm:$0xf]
      %v4943 = vld [vmem:[%s14 + $0x4] sm:$0xf]
      %v4944 = vld [vmem:[%s14 + $0x8] sm:$0xf]
      %v4945 = vld [vmem:[%s14 + $0xc] sm:$0xf]
      %v4946 = vld [vmem:[%s14 + $0x10] sm:$0xf]
      %v4947 = vld [vmem:[%s14 + $0x14] sm:$0xf]
      %v4948 = vld [vmem:[%s14 + $0x18] sm:$0xf]
      %v4949 = vld [vmem:[%s14 + $0x1c] sm:$0xf]
      %v4950 = vld [vmem:[%s14 + $0x20] sm:$0xf]
      %v4951 = vld [vmem:[%s14 + $0x24] sm:$0xf]
      %v4952 = vld [vmem:[%s14 + $0x28] sm:$0xf]
      %v4953 = vld [vmem:[%s14 + $0x2c] sm:$0xf]
      %v4954 = vld [vmem:[%s14 + $0x30] sm:$0xf]
      %v4955 = vld [vmem:[%s14 + $0x34] sm:$0xf]
      %v4956 = vld [vmem:[%s14 + $0x38] sm:$0xf]
      %v4957 = vld [vmem:[%s14 + $0x3c] sm:$0xf]
      %v4958 = vld [vmem:[%s14 + $0x40] sm:$0xf]
      %v4959 = vld [vmem:[%s14 + $0x44] sm:$0xf]
      %v4960 = vld [vmem:[%s14 + $0x48] sm:$0xf]
      %v4961 = vld [vmem:[%s14 + $0x4c] sm:$0xf]
      %v4962 = vld [vmem:[%s14 + $0x50] sm:$0xf]
      %v4963 = vld [vmem:[%s14 + $0x54] sm:$0xf]
      %v4964 = vld [vmem:[%s14 + $0x58] sm:$0xf]
      %v4965 = vld [vmem:[%s14 + $0x5c] sm:$0xf]
      %v4966 = vld [vmem:[%s14 + $0x60] sm:$0xf]
      %v4967 = vld [vmem:[%s14 + $0x64] sm:$0xf]
      %v4968 = vld [vmem:[%s14 + $0x68] sm:$0xf]
      %v4969 = vld [vmem:[%s14 + $0x6c] sm:$0xf]
      %v4970 = vld [vmem:[%s14 + $0x70] sm:$0xf]
      %v4971 = vld [vmem:[%s14 + $0x74] sm:$0xf]
      %v4972 = vld [vmem:[%s14 + $0x78] sm:$0xf]
      %v4973 = vld [vmem:[%s14 + $0x7c] sm:$0xf]
      %v4974 = vld [vmem:[%s14 + $0x80] sm:$0xf]
      %v4975 = vld [vmem:[%s14 + $0x84] sm:$0xf]
      %v4976 = vld [vmem:[%s14 + $0x88] sm:$0xf]
      %v4977 = vld [vmem:[%s14 + $0x8c] sm:$0xf]
      %v4978 = vld [vmem:[%s14 + $0x90] sm:$0xf]
      %v4979 = vld [vmem:[%s14 + $0x94] sm:$0xf]
      %v4980 = vld [vmem:[%s14 + $0x98] sm:$0xf]
      %v4981 = vld [vmem:[%s14 + $0x9c] sm:$0xf]
      %v4982 = vld [vmem:[%s14 + $0xa0] sm:$0xf]
      %v4983 = vld [vmem:[%s14 + $0xa4] sm:$0xf]
      %v4984 = vld [vmem:[%s14 + $0xa8] sm:$0xf]
      %v4985 = vld [vmem:[%s14 + $0xac] sm:$0xf]
      %v4986 = vld [vmem:[%s14 + $0xb0] sm:$0xf]
      %v4987 = vld [vmem:[%s14 + $0xb4] sm:$0xf]
      %v4988 = vld [vmem:[%s14 + $0xb8] sm:$0xf]
      %v4989 = vld [vmem:[%s14 + $0xbc] sm:$0xf]
      %v4990 = vld [vmem:[%s14 + $0xc0] sm:$0xf]
      %v4991 = vld [vmem:[%s14 + $0xc4] sm:$0xf]
      %v4992 = vld [vmem:[%s14 + $0xc8] sm:$0xf]
      %v4993 = vld [vmem:[%s14 + $0xcc] sm:$0xf]
      %v4994 = vld [vmem:[%s14 + $0xd0] sm:$0xf]
      %v4995 = vld [vmem:[%s14 + $0xd4] sm:$0xf]
      %v4996 = vld [vmem:[%s14 + $0xd8] sm:$0xf]
      %v4997 = vld [vmem:[%s14 + $0xdc] sm:$0xf]
      %v4998 = vld [vmem:[%s14 + $0xe0] sm:$0xf]
      %v4999 = vld [vmem:[%s14 + $0xe4] sm:$0xf]
      %v5000 = vld [vmem:[%s14 + $0xe8] sm:$0xf]
      %v5001 = vld [vmem:[%s14 + $0xec] sm:$0xf]
      %v5002 = vld [vmem:[%s14 + $0xf0] sm:$0xf]
      %v5003 = vld [vmem:[%s14 + $0xf4] sm:$0xf]
      %v5004 = vld [vmem:[%s14 + $0xf8] sm:$0xf]
      %v5005 = vld [vmem:[%s14 + $0xfc] sm:$0xf]
      %v5006 = vld [vmem:[%s15] sm:$0x1]
      %v5008 = vlaneseq
      %v5009 = vshrl.u32 %v5008, 7
      %v5010 = vsub.s32 0, %v5009
      %v5011 = vrot.slane %v5006, %v5010
      %v5077 = vunpack.c.l.b16 %v4942
      %v5078 = vunpack.c.l.b16 %v4943
      %v5079 = vunpack.c.l.b16 %v4944
      %v5080 = vunpack.c.l.b16 %v4945
      %v5081 = vunpack.c.l.b16 %v4946
      %v5082 = vunpack.c.l.b16 %v4947
      %v5083 = vunpack.c.l.b16 %v4948
      %v5084 = vunpack.c.l.b16 %v4949
      %v5085 = vunpack.c.l.b16 %v4950
      %v5086 = vunpack.c.l.b16 %v4951
      %v5087 = vunpack.c.l.b16 %v4952
      %v5088 = vunpack.c.l.b16 %v4953
      %v5089 = vunpack.c.l.b16 %v4954
      %v5090 = vunpack.c.l.b16 %v4955
      %v5091 = vunpack.c.l.b16 %v4956
      %v5092 = vunpack.c.l.b16 %v4957
      %v5093 = vunpack.c.l.b16 %v4958
      %v5094 = vunpack.c.l.b16 %v4959
      %v5095 = vunpack.c.l.b16 %v4960
      %v5096 = vunpack.c.l.b16 %v4961
      %v5097 = vunpack.c.l.b16 %v4962
      %v5098 = vunpack.c.l.b16 %v4963
      %v5099 = vunpack.c.l.b16 %v4964
      %v5100 = vunpack.c.l.b16 %v4965
      %v5101 = vunpack.c.l.b16 %v4966
      %v5102 = vunpack.c.l.b16 %v4967
      %v5103 = vunpack.c.l.b16 %v4968
      %v5104 = vunpack.c.l.b16 %v4969
      %v5105 = vunpack.c.l.b16 %v4970
      %v5106 = vunpack.c.l.b16 %v4971
      %v5107 = vunpack.c.l.b16 %v4972
      %v5108 = vunpack.c.l.b16 %v4973
      %v5109 = vunpack.c.l.b16 %v4974
      %v5110 = vunpack.c.l.b16 %v4975
      %v5111 = vunpack.c.l.b16 %v4976
      %v5112 = vunpack.c.l.b16 %v4977
      %v5113 = vunpack.c.l.b16 %v4978
      %v5114 = vunpack.c.l.b16 %v4979
      %v5115 = vunpack.c.l.b16 %v4980
      %v5116 = vunpack.c.l.b16 %v4981
      %v5117 = vunpack.c.l.b16 %v4982
      %v5118 = vunpack.c.l.b16 %v4983
      %v5119 = vunpack.c.l.b16 %v4984
      %v5120 = vunpack.c.l.b16 %v4985
      %v5121 = vunpack.c.l.b16 %v4986
      %v5122 = vunpack.c.l.b16 %v4987
      %v5123 = vunpack.c.l.b16 %v4988
      %v5124 = vunpack.c.l.b16 %v4989
      %v5125 = vunpack.c.l.b16 %v4990
      %v5126 = vunpack.c.l.b16 %v4991
      %v5127 = vunpack.c.l.b16 %v4992
      %v5128 = vunpack.c.l.b16 %v4993
      %v5129 = vunpack.c.l.b16 %v4994
      %v5130 = vunpack.c.l.b16 %v4995
      %v5131 = vunpack.c.l.b16 %v4996
      %v5132 = vunpack.c.l.b16 %v4997
      %v5133 = vunpack.c.l.b16 %v4998
      %v5134 = vunpack.c.l.b16 %v4999
      %v5135 = vunpack.c.l.b16 %v5000
      %v5136 = vunpack.c.l.b16 %v5001
      %v5137 = vunpack.c.l.b16 %v5002
      %v5138 = vunpack.c.l.b16 %v5003
      %v5139 = vunpack.c.l.b16 %v5004
      %v5140 = vunpack.c.l.b16 %v5005
      %v5141 = vpack.c.b16 %v5078, %v5077
      %v5142 = vpack.c.b16 %v5080, %v5079
      %v5143 = vpack.c.b16 %v5082, %v5081
      %v5144 = vpack.c.b16 %v5084, %v5083
      %v5145 = vpack.c.b16 %v5086, %v5085
      %v5146 = vpack.c.b16 %v5088, %v5087
      %v5147 = vpack.c.b16 %v5090, %v5089
      %v5148 = vpack.c.b16 %v5092, %v5091
      %v5149 = vpack.c.b16 %v5094, %v5093
      %v5150 = vpack.c.b16 %v5096, %v5095
      %v5151 = vpack.c.b16 %v5098, %v5097
      %v5152 = vpack.c.b16 %v5100, %v5099
      %v5153 = vpack.c.b16 %v5102, %v5101
      %v5154 = vpack.c.b16 %v5104, %v5103
      %v5155 = vpack.c.b16 %v5106, %v5105
      %v5156 = vpack.c.b16 %v5108, %v5107
      %v5157 = vpack.c.b16 %v5110, %v5109
      %v5158 = vpack.c.b16 %v5112, %v5111
      %v5159 = vpack.c.b16 %v5114, %v5113
      %v5160 = vpack.c.b16 %v5116, %v5115
      %v5161 = vpack.c.b16 %v5118, %v5117
      %v5162 = vpack.c.b16 %v5120, %v5119
      %v5163 = vpack.c.b16 %v5122, %v5121
      %v5164 = vpack.c.b16 %v5124, %v5123
      %v5165 = vpack.c.b16 %v5126, %v5125
      %v5166 = vpack.c.b16 %v5128, %v5127
      %v5167 = vpack.c.b16 %v5130, %v5129
      %v5168 = vpack.c.b16 %v5132, %v5131
      %v5169 = vpack.c.b16 %v5134, %v5133
      %v5170 = vpack.c.b16 %v5136, %v5135
      %v5171 = vpack.c.b16 %v5138, %v5137
      %v5172 = vpack.c.b16 %v5140, %v5139
      %5205 = vmatprep.subr.bf16.mxu0 0
      %5206 = vmatpush1.bf16.msra.mxu0 %v5141
      %5207 = vmatprep.subr.bf16.mxu0 0
      %5208 = vmatpush1.bf16.msra.mxu0 %v5142
      %5209 = vmatprep.subr.bf16.mxu0 0
      %5210 = vmatpush1.bf16.msra.mxu0 %v5143
      %5211 = vmatprep.subr.bf16.mxu0 0
      %5212 = vmatpush1.bf16.msra.mxu0 %v5144
      %5213 = vmatprep.subr.bf16.mxu0 0
      %5214 = vmatpush1.bf16.msra.mxu0 %v5145
      %5215 = vmatprep.subr.bf16.mxu0 0
      %5216 = vmatpush1.bf16.msra.mxu0 %v5146
      %5217 = vmatprep.subr.bf16.mxu0 0
      %5218 = vmatpush1.bf16.msra.mxu0 %v5147
      %5219 = vmatprep.subr.bf16.mxu0 0
      %5220 = vmatpush1.bf16.msra.mxu0 %v5148
      %5221 = vmatprep.subr.bf16.mxu0 0
      %5222 = vmatpush1.bf16.msra.mxu0 %v5149
      %5223 = vmatprep.subr.bf16.mxu0 0
      %5224 = vmatpush1.bf16.msra.mxu0 %v5150
      %5225 = vmatprep.subr.bf16.mxu0 0
      %5226 = vmatpush1.bf16.msra.mxu0 %v5151
      %5227 = vmatprep.subr.bf16.mxu0 0
      %5228 = vmatpush1.bf16.msra.mxu0 %v5152
      %5229 = vmatprep.subr.bf16.mxu0 0
      %5230 = vmatpush1.bf16.msra.mxu0 %v5153
      %5231 = vmatprep.subr.bf16.mxu0 0
      %5232 = vmatpush1.bf16.msra.mxu0 %v5154
      %5233 = vmatprep.subr.bf16.mxu0 0
      %5234 = vmatpush1.bf16.msra.mxu0 %v5155
      %5235 = vmatprep.subr.bf16.mxu0 0
      %5236 = vmatpush1.bf16.msra.mxu0 %v5156
      %5237 = vmatprep.mubr.bf16.mxu0 %v4911
      %5238 = vmatmul.mubr.bf16.gmra.mrb[0].mxu0 %v4910
      %v5239 = vpop.f32.mrb[0].mxu0
      %v5240 = vadd.f32 %v5011, %v5239
      %v5241 = vpop.f32.mrb[0].mxu0
      %v5242 = vpop.f32.mrb[0].mxu0
      %v5243 = vpop.f32.mrb[0].mxu0
      %5244 = vmatprep.mubr.bf16.mxu0 %v4915
      %5245 = vmatmul.mubr.bf16.gmra.mrb[0].mxu0 %v4914
      %v5246 = vpop.f32.mrb[0].mxu0
      %v5247 = vpop.f32.mrb[0].mxu0
      %v5248 = vpop.f32.mrb[0].mxu0
      %v5249 = vpop.f32.mrb[0].mxu0
      %5250 = vmatprep.mubr.bf16.mxu0 %v4919
      %5251 = vmatmul.mubr.bf16.gmra.mrb[0].mxu0 %v4918
      %v5252 = vpop.f32.mrb[0].mxu0
      %v5253 = vpop.f32.mrb[0].mxu0
      %v5254 = vpop.f32.mrb[0].mxu0
      %v5255 = vpop.f32.mrb[0].mxu0
      %5256 = vmatprep.mubr.bf16.mxu0 %v4923
      %5257 = vmatmul.mubr.bf16.gmra.mrb[0].mxu0 %v4922
      %v5258 = vpop.f32.mrb[0].mxu0
      %v5259 = vpop.f32.mrb[0].mxu0
      %v5260 = vpop.f32.mrb[0].mxu0
      %v5261 = vpop.f32.mrb[0].mxu0
      %5262 = vmatprep.mubr.bf16.mxu0 %v4927
      %5263 = vmatmul.mubr.bf16.gmra.mrb[0].mxu0 %v4926
      %v5264 = vpop.f32.mrb[0].mxu0
      %v5265 = vpop.f32.mrb[0].mxu0
      %v5266 = vpop.f32.mrb[0].mxu0
      %v5267 = vpop.f32.mrb[0].mxu0
      %5268 = vmatprep.mubr.bf16.mxu0 %v4931
      %5269 = vmatmul.mubr.bf16.gmra.mrb[0].mxu0 %v4930
      %v5270 = vpop.f32.mrb[0].mxu0
      %v5271 = vpop.f32.mrb[0].mxu0
      %v5272 = vpop.f32.mrb[0].mxu0
      %v5273 = vpop.f32.mrb[0].mxu0
      %5274 = vmatprep.mubr.bf16.mxu0 %v4935
      %5275 = vmatmul.mubr.bf16.gmra.mrb[0].mxu0 %v4934
      %v5276 = vpop.f32.mrb[0].mxu0
      %v5277 = vpop.f32.mrb[0].mxu0
      %v5278 = vpop.f32.mrb[0].mxu0
      %v5279 = vpop.f32.mrb[0].mxu0
      %5280 = vmatprep.mubr.bf16.mxu0 %v4939
      %5281 = vmatmul.mubr.bf16.gmra.mrb[0].mxu0 %v4938
      %v5282 = vpop.f32.mrb[0].mxu0
      %v5283 = vpop.f32.mrb[0].mxu0
      %v5284 = vpop.f32.mrb[0].mxu0
      %v5285 = vpop.f32.mrb[0].mxu0
      %5286 = vdwg.mxu0
      %5287 = vmatprep.subr.bf16.mxu0 0
      %5288 = vmatpush1.bf16.msra.mxu0 %v5157
      %5289 = vmatprep.subr.bf16.mxu0 0
      %5290 = vmatpush1.bf16.msra.mxu0 %v5158
      %5291 = vmatprep.subr.bf16.mxu0 0
      %5292 = vmatpush1.bf16.msra.mxu0 %v5159
      %5293 = vmatprep.subr.bf16.mxu0 0
      %5294 = vmatpush1.bf16.msra.mxu0 %v5160
      %5295 = vmatprep.subr.bf16.mxu0 0
      %5296 = vmatpush1.bf16.msra.mxu0 %v5161
      %5297 = vmatprep.subr.bf16.mxu0 0
      %5298 = vmatpush1.bf16.msra.mxu0 %v5162
      %5299 = vmatprep.subr.bf16.mxu0 0
      %5300 = vmatpush1.bf16.msra.mxu0 %v5163
      %5301 = vmatprep.subr.bf16.mxu0 0
      %5302 = vmatpush1.bf16.msra.mxu0 %v5164
      %5303 = vmatprep.subr.bf16.mxu0 0
      %5304 = vmatpush1.bf16.msra.mxu0 %v5165
      %5305 = vmatprep.subr.bf16.mxu0 0
      %5306 = vmatpush1.bf16.msra.mxu0 %v5166
      %5307 = vmatprep.subr.bf16.mxu0 0
      %5308 = vmatpush1.bf16.msra.mxu0 %v5167
      %5309 = vmatprep.subr.bf16.mxu0 0
      %5310 = vmatpush1.bf16.msra.mxu0 %v5168
      %5311 = vmatprep.subr.bf16.mxu0 0
      %5312 = vmatpush1.bf16.msra.mxu0 %v5169
      %5313 = vmatprep.subr.bf16.mxu0 0
      %5314 = vmatpush1.bf16.msra.mxu0 %v5170
      %5315 = vmatprep.subr.bf16.mxu0 0
      %5316 = vmatpush1.bf16.msra.mxu0 %v5171
      %5317 = vmatprep.subr.bf16.mxu0 0
      %5318 = vmatpush1.bf16.msra.mxu0 %v5172
      %5319 = vmatprep.mubr.bf16.mxu0 %v4913
      %5320 = vmatmul.mubr.bf16.gmra.mrb[0].mxu0 %v4912
      %v5321 = vpop.f32.mrb[0].mxu0
      %v5322 = vadd.f32 %v5240, %v5321
      %v5323 = vpop.f32.mrb[0].mxu0
      %v5324 = vpop.f32.mrb[0].mxu0
      %v5325 = vpop.f32.mrb[0].mxu0
      %5326 = vmatprep.mubr.bf16.mxu0 %v4917
      %5327 = vmatmul.mubr.bf16.gmra.mrb[0].mxu0 %v4916
      %v5328 = vpop.f32.mrb[0].mxu0
      %v5329 = vpop.f32.mrb[0].mxu0
      %v5330 = vpop.f32.mrb[0].mxu0
      %v5331 = vpop.f32.mrb[0].mxu0
      %5332 = vmatprep.mubr.bf16.mxu0 %v4921
      %5333 = vmatmul.mubr.bf16.gmra.mrb[0].mxu0 %v4920
      %v5334 = vpop.f32.mrb[0].mxu0
      %v5335 = vpop.f32.mrb[0].mxu0
      %v5336 = vpop.f32.mrb[0].mxu0
      %v5337 = vpop.f32.mrb[0].mxu0
      %5338 = vmatprep.mubr.bf16.mxu0 %v4925
      %5339 = vmatmul.mubr.bf16.gmra.mrb[0].mxu0 %v4924
      %v5340 = vpop.f32.mrb[0].mxu0
      %v5341 = vpop.f32.mrb[0].mxu0
      %v5342 = vpop.f32.mrb[0].mxu0
      %v5343 = vpop.f32.mrb[0].mxu0
      %5344 = vmatprep.mubr.bf16.mxu0 %v4929
      %5345 = vmatmul.mubr.bf16.gmra.mrb[0].mxu0 %v4928
      %v5346 = vpop.f32.mrb[0].mxu0
      %v5347 = vpop.f32.mrb[0].mxu0
      %v5348 = vpop.f32.mrb[0].mxu0
      %v5349 = vpop.f32.mrb[0].mxu0
      %5350 = vmatprep.mubr.bf16.mxu0 %v4933
      %5351 = vmatmul.mubr.bf16.gmra.mrb[0].mxu0 %v4932
      %v5352 = vpop.f32.mrb[0].mxu0
      %v5353 = vpop.f32.mrb[0].mxu0
      %v5354 = vpop.f32.mrb[0].mxu0
      %v5355 = vpop.f32.mrb[0].mxu0
      %5356 = vmatprep.mubr.bf16.mxu0 %v4937
      %5357 = vmatmul.mubr.bf16.gmra.mrb[0].mxu0 %v4936
      %v5358 = vpop.f32.mrb[0].mxu0
      %v5359 = vpop.f32.mrb[0].mxu0
      %v5360 = vpop.f32.mrb[0].mxu0
      %v5361 = vpop.f32.mrb[0].mxu0
      %5362 = vmatprep.mubr.bf16.mxu0 %v4941
      %5363 = vmatmul.mubr.bf16.gmra.mrb[0].mxu0 %v4940
      %v5364 = vpop.f32.mrb[0].mxu0
      %v5365 = vpop.f32.mrb[0].mxu0
      %v5366 = vpop.f32.mrb[0].mxu0
      %v5367 = vpop.f32.mrb[0].mxu0
      %5368 = vdwg.mxu0
      %v5369 = vadd.f32 %v3648, %v5322
      %v5370 = vld [vmem:[%s16] sm:$0x1]
      %v5371 = vld [vmem:[%s17] sm:$0x1]
      %5372 = vadd.xlane.f32.xlu0 %v5369
      %v5373 = vpop.xlane.xlu0 %5372
      %v5374 = vmul.f32 %v5373, %v914
      %v5375 = vsub.f32 %v5369, %v5374
      %v5376 = vmul.f32 %v5375, %v5375
      %5377 = vadd.xlane.f32.xlu0 %v5376
      %v5378 = vpop.xlane.xlu0 %5377
      %v5379 = vmul.f32 %v5378, %v914
      %v5380 = vadd.f32 %v5379, 1e-06
      %v5381 = vrsqrt.pop %v5380
      %v5382 = vmul.f32 %v5375, %v5381
      %v5384 = vlaneseq
      %v5385 = vshrl.u32 %v5384, 7
      %v5386 = vsub.s32 0, %v5385
      %v5387 = vrot.slane %v5370, %v5386
      %v5389 = vmul.f32 %v5382, %v5387
      %v5391 = vlaneseq
      %v5392 = vshrl.u32 %v5391, 7
      %v5393 = vsub.s32 0, %v5392
      %v5394 = vrot.slane %v5371, %v5393
      %v5396 = vadd.f32 %v5389, %v5394
      %5397 = vst [vmem:[%s573] sm:$0xf] %v5396
      %p5398 = scmp.lt.s32.totalorder %s29, 1
      %s5399 = scalar_select %p5398, %s29, 1
      %s5400 = smul.addr %s5399, 4
      %s5401 = scalar_lea.vmem %s18, %s5400
      // Predicated region
      $region93: #{transformer_classifier_forward.2} parent=91 // pred_check
        %p5402 = pneg %p430
      $region94: #{transformer_classifier_forward.2} parent=91 // pred_check_branch
        %5404 = sbr.rel (%p5402) target = $region96
      $region95: #{transformer_classifier_forward.2} parent=91 // pred_region
        _
      $region96: #{transformer_classifier_forward.2} parent=91 // pred_fallthru
        _
    $region92: #{transformer_classifier_forward.2} parent=5 // pred_fallthru
      _
    %p5405 = scmp.le.s32.totalorder 2, %s24
    // Predicated region
    $region97: #{transformer_classifier_forward.2} parent=5 // pred_check
      %p5406 = pneg %p5405
    $region98: #{transformer_classifier_forward.2} parent=5 // pred_check_branch
      %5408 = sbr.rel (%p5406) target = $region100
    $region99: #{transformer_classifier_forward.2} parent=5 // pred_region
      %s5409 = ssub.s32 %s24, 2
      // Predicated region
      $region101: #{transformer_classifier_forward.2} parent=99 // pred_check
        %p5410 = pneg %p436
      $region102: #{transformer_classifier_forward.2} parent=99 // pred_check_branch
        %5412 = sbr.rel (%p5410) target = $region104
      $region103: #{transformer_classifier_forward.2} parent=99 // pred_region
        %p5413 = scmp.lt.s32.totalorder %s30, 1
        %s5414 = scalar_select %p5413, %s30, 1
        %s5415 = smul.addr %s5414, 4
        %s5416 = scalar_lea.vmem %s18, %s5415
      $region104: #{transformer_classifier_forward.2} parent=99 // pred_fallthru
        _
    $region100: #{transformer_classifier_forward.2} parent=5 // pred_fallthru
      _
  $region6: #{transformer_classifier_forward.2} parent=0 // loop_footer
    %s28 = sadd.s32 1, %s24
  $region7: #{transformer_classifier_forward.2} parent=0 // loop_footer_branch
    %23 = sbr.rel target = $region3
  $region8: #{transformer_classifier_forward.2} parent=0 // loop_exit
    _

</llo_original>
